<compile_context>
chip_gen: v6e
topology: v6e:2x2x1
jax: 0.10.0
libtpu: 0.0.40
codegen_flags: <defaults>
</compile_context>

<pallas_src>
import functools

import jax
import jax.numpy as jnp
from jax.experimental import pallas as pl
from jax.experimental.pallas import tpu as pltpu

BN_EPS = 1e-5
LANE = 128


def _round_up(v, m):
    return (v + m - 1) // m * m


def _lane_width(c):
    # MXU output (N-dim) width: 128 floor; multiples of 256 above that (v6e/v7x 2x256 MXU).
    return LANE if c <= LANE else _round_up(c, 2 * LANE)


def _fused_block_kernel(x1_ref, w1_ref, w2_ref, g1_ref, beta1_ref, g2_ref, beta2_ref,
                        out_ref, pad_ref, *, stage1_packed: bool, cin_p: int):
    """Fused (conv3x3 + BN + ReLU) x 2.

    x1_ref    : packed path    : (N, H, W, 128)    bf16  wrapper-built im2col, K=9*Cin padded
                non-packed path: (N, H, W, cin_p)  bf16  lane-padded input
    w1_ref    : (K1, Cp) / (9*cin_p, Cp)           bf16
    w2_ref    : (9*Cp, Cp)                         bf16
    g*_ref    : (1, Cp) f32 BN gamma (0 in padded channels)
    beta*_ref : (1, Cp) f32 BN beta  (0 in padded channels)
    out_ref   : (N, H, W, Cp) f32 lane-dense output (wrapper slices back to Cout)
    pad_ref   : (N, H+2, W+2, Ch) bf16 scratch: shared zero-halo buffer
    """
    N, Hp, Wp, Ch = pad_ref.shape
    H, W = Hp - 2, Wp - 2
    Cp = out_ref.shape[-1]
    M = N * H * W
    inv_m = 1.0 / M
    zdt = pad_ref.dtype

    # Zero ONLY the 1-pixel halo border (VMEM scratch is NOT zero-initialized); the
    # interior is always fully overwritten (lane-dense) before it is read.
    zrow = jnp.zeros((N, 1, Wp, Ch), zdt)
    zcol = jnp.zeros((N, Hp, 1, Ch), zdt)
    pad_ref[:, 0:1, :, :] = zrow
    pad_ref[:, Hp - 1:Hp, :, :] = zrow
    pad_ref[:, :, 0:1, :] = zcol
    pad_ref[:, :, Wp - 1:Wp, :] = zcol

    def bn_relu(acc, g_ref, beta_ref):
        # Single-pass batch statistics over the N*H*W rows, all f32. Clamp var >= 0 to
        # guard against E[x^2]-E[x]^2 cancellation on the bf16-matmul accumulator.
        mean = jnp.sum(acc, axis=0, keepdims=True) * inv_m                     # (1, Cp)
        var = jnp.sum(acc * acc, axis=0, keepdims=True) * inv_m - mean * mean  # biased
        var = jnp.maximum(var, 0.0)
        scale = g_ref[...] * jax.lax.rsqrt(var + BN_EPS)                       # EUP rsqrt
        shift = beta_ref[...] - mean * scale
        return jnp.maximum(acc * scale + shift, 0.0)                           # fused ReLU

    def conv_taps(w_ref, c_taps):
        # 9 accumulating per-tap MXU matmuls; no materialized im2col, f32 accumulation.
        acc = jnp.zeros((M, Cp), jnp.float32)
        for k in range(9):
            ky, kx = k // 3, k % 3
            tap = pad_ref[:, ky:ky + H, kx:kx + W, :c_taps].reshape(M, c_taps)
            acc += jnp.dot(tap, w_ref[k * c_taps:(k + 1) * c_taps, :],
                           preferred_element_type=jnp.float32)
        return acc

    # ---------------- stage 1: conv -> BN -> ReLU ----------------
    if stage1_packed:
        # K = 9*Cin packed into one 128-wide tile in the wrapper -> single MXU matmul.
        k1 = x1_ref.shape[-1]
        acc1 = jnp.dot(x1_ref[...].reshape(M, k1), w1_ref[...],
                       preferred_element_type=jnp.float32)
    else:
        # Lane-dense (cin_p) unmasked interior write, then 9 per-tap matmuls.
        pad_ref[:, 1:H + 1, 1:W + 1, :cin_p] = x1_ref[...]
        acc1 = conv_taps(w1_ref, cin_p)
    y1 = bn_relu(acc1, g1_ref, beta1_ref)

    # ---------------- stage 2: conv -> BN -> ReLU ----------------
    # Reuse the same halo scratch (border is still zero); y1 never round-trips HBM.
    pad_ref[:, 1:H + 1, 1:W + 1, :Cp] = y1.reshape(N, H, W, Cp).astype(zdt)
    acc2 = conv_taps(w2_ref, Cp)
    y2 = bn_relu(acc2, g2_ref, beta2_ref)

    out_ref[...] = y2.reshape(N, H, W, Cp).astype(out_ref.dtype)


@jax.jit
def convolution_block(x_nchw, params):
    """Forward pass of ConvolutionBlock (training-mode BN). Input/output NCHW like PyTorch."""
    N, Cin, H, W = x_nchw.shape
    Cout = params["w1"].shape[-1]
    Cp = _lane_width(Cout)                        # lane-dense channel width of both stages

    x = jnp.transpose(x_nchw, (0, 2, 3, 1))       # NCHW -> NHWC (channels on lanes)

    stage1_packed = 9 * Cin <= LANE
    if stage1_packed:
        # Tiny Cin: pack stage-1 K = 9*Cin into a single 128-wide tile (wrapper im2col).
        k1 = LANE
        xp = jnp.pad(x, ((0, 0), (1, 1), (1, 1), (0, 0)))
        cols = [xp[:, ky:ky + H, kx:kx + W, :] for ky in range(3) for kx in range(3)]
        x1 = jnp.concatenate(cols, axis=-1)                                 # (N,H,W,9*Cin)
        x1 = jnp.pad(x1, ((0, 0),) * 3 + ((0, k1 - 9 * Cin),)).astype(jnp.bfloat16)
        w1p = (jnp.zeros((k1, Cp), jnp.float32)
               .at[:9 * Cin, :Cout].set(params["w1"].reshape(9 * Cin, Cout))
               .astype(jnp.bfloat16))
        cin_p = Cp                                 # (unused by the packed stage-1 path)
        c_halo = Cp
    else:
        cin_p = _round_up(Cin, LANE)
        x1 = jnp.pad(x, ((0, 0),) * 3 + ((0, cin_p - Cin),)).astype(jnp.bfloat16)
        w1p = (jnp.zeros((3, 3, cin_p, Cp), jnp.float32)
               .at[:, :, :Cin, :Cout].set(params["w1"])
               .reshape(9 * cin_p, Cp).astype(jnp.bfloat16))
        c_halo = max(cin_p, Cp)

    w2p = (jnp.zeros((3, 3, Cp, Cp), jnp.float32)
           .at[:, :, :Cout, :Cout].set(params["w2"])
           .reshape(9 * Cp, Cp).astype(jnp.bfloat16))

    def prep_c(v):                                 # (co,) -> (1, Cp) f32, zero-padded
        return jnp.zeros((1, Cp), jnp.float32).at[0, :v.shape[0]].set(v)

    # NOTE: conv biases b1/b2 are intentionally not passed to the kernel — a per-channel
    # bias cancels exactly under training-mode BatchNorm mean subtraction. (Not valid if
    # this block is ever run with eval-mode running statistics.)
    args = (x1, w1p, w2p,
            prep_c(params["g1"]), prep_c(params["beta1"]),
            prep_c(params["g2"]), prep_c(params["beta2"]))

    # Scoped-VMEM budget from the actual resident buffers (+ f32 accumulator/activation
    # temporaries and headroom); the default 16/32 MiB scoped limit is far below what the
    # fused kernel can legitimately use on 64/128 MiB parts.
    resident = sum(int(a.size) * jnp.dtype(a.dtype).itemsize for a in args)
    resident += N * (H + 2) * (W + 2) * c_halo * 2          # bf16 halo scratch
    resident += N * H * W * Cp * 4                          # f32 output
    resident += 3 * N * H * W * Cp * 4                      # f32 acc / activation temps
    vmem_limit = int(min(resident * 3 // 2 + (2 << 20), 100 * (1 << 20)))

    vmem = pl.BlockSpec(memory_space=pltpu.MemorySpace.VMEM)
    out = pl.pallas_call(
        functools.partial(_fused_block_kernel, stage1_packed=stage1_packed, cin_p=cin_p),
        out_shape=jax.ShapeDtypeStruct((N, H, W, Cp), jnp.float32),
        in_specs=[vmem] * len(args),
        out_specs=vmem,
        scratch_shapes=[pltpu.VMEM((N, H + 2, W + 2, c_halo), jnp.bfloat16)],
        compiler_params=pltpu.CompilerParams(vmem_limit_bytes=vmem_limit),
    )(*args)

    # TODO(synk): for large N*H*W (working set beyond the 32 MiB scoped / 64 MiB physical
    # VMEM of v7x) replace this single-program design with a gridded two-phase kernel:
    # per-row-tile conv producing partial BN sum/sumsq accumulators with
    # dimension_semantics=("parallel", ...) (uses both v7x TensorCores, lets BlockSpec
    # pipelining overlap HBM DMA with MXU work), followed by a cheap normalize+ReLU pass —
    # BatchNorm needs full-batch statistics, so it cannot stay single-pass once tiled.
    return jnp.transpose(out[..., :Cout], (0, 3, 1, 2))     # lane-padded NHWC -> NCHW


def _reference_block(x_nchw, params):
    """Pure-JAX reference (mirrors PyTorch training-mode forward, f32, with conv bias)."""
    def stage(x, w, b, g, be):
        y = jax.lax.conv_general_dilated(
            x, w, window_strides=(1, 1), padding=((1, 1), (1, 1)),
            dimension_numbers=("NCHW", "HWIO", "NCHW"),
            precision=jax.lax.Precision.HIGHEST,
        ) + b[None, :, None, None]
        mean = jnp.mean(y, axis=(0, 2, 3), keepdims=True)
        var = jnp.mean((y - mean) ** 2, axis=(0, 2, 3), keepdims=True)
        y = (y - mean) / jnp.sqrt(var + BN_EPS)
        y = y * g[None, :, None, None] + be[None, :, None, None]
        return jnp.maximum(y, 0.0)

    y = stage(x_nchw, params["w1"], params["b1"], params["g1"], params["beta1"])
    return stage(y, params["w2"], params["b2"], params["g2"], params["beta2"])


def _init_params(key, in_channels, out_channels):
    k1, k2, k3, k4 = jax.random.split(key, 4)
    fan1 = in_channels * 9
    fan2 = out_channels * 9
    return {
        # conv weights in HWIO layout: (3, 3, Cin, Cout)
        "w1": jax.random.uniform(k1, (3, 3, in_channels, out_channels), jnp.float32,
                                 -1.0, 1.0) / jnp.sqrt(fan1),
        "b1": jax.random.uniform(k2, (out_channels,), jnp.float32, -1.0, 1.0) / jnp.sqrt(fan1),
        "g1": jnp.ones((out_channels,), jnp.float32),
        "beta1": jnp.zeros((out_channels,), jnp.float32),
        "w2": jax.random.uniform(k3, (3, 3, out_channels, out_channels), jnp.float32,
                                 -1.0, 1.0) / jnp.sqrt(fan2),
        "b2": jax.random.uniform(k4, (out_channels,), jnp.float32, -1.0, 1.0) / jnp.sqrt(fan2),
        "g2": jnp.ones((out_channels,), jnp.float32),
        "beta2": jnp.zeros((out_channels,), jnp.float32),
    }


if __name__ == "__main__":
    key = jax.random.PRNGKey(0)
    k_params, k_x = jax.random.split(key)

    N, C_IN, C_OUT, H, W = 2, 4, 8, 16, 16
    x = jax.random.normal(k_x, (N, C_IN, H, W), jnp.float32)
    params = _init_params(k_params, C_IN, C_OUT)

    out = jax.block_until_ready(convolution_block(x, params))
    ref = jax.block_until_ready(_reference_block(x, params))

    assert out.shape == (N, C_OUT, H, W), out.shape
    # Tolerance accounts for bf16 MXU operands (f32 accumulation) across two conv+BN stages
    # versus the f32 HIGHEST-precision reference.
    assert jnp.allclose(out, ref, atol=3e-2, rtol=2e-2), (
        float(jnp.max(jnp.abs(out - ref)))
    )
    print("KERNEL_OK")
</pallas_src>

<mosaic_0001>
module attributes {stable_mosaic.version = 11 : i64} {
  func.func @_fused_block_kernel(%arg0: memref<2x16x16x128xbf16, #tpu.memory_space<vmem>>, %arg1: memref<128x128xbf16, #tpu.memory_space<vmem>>, %arg2: memref<1152x128xbf16, #tpu.memory_space<vmem>>, %arg3: memref<1x128xf32, #tpu.memory_space<vmem>>, %arg4: memref<1x128xf32, #tpu.memory_space<vmem>>, %arg5: memref<1x128xf32, #tpu.memory_space<vmem>>, %arg6: memref<1x128xf32, #tpu.memory_space<vmem>>, %arg7: memref<2x16x16x128xf32, #tpu.memory_space<vmem>>, %arg8: memref<2x18x18x128xbf16, #tpu.memory_space<vmem>>) attributes {dimension_semantics = [], scalar_prefetch = 0 : i64, scratch_operands = 1 : i64, tpu.core_type = #tpu.core_type<tc>} {
    %cst = arith.constant 0.000000e+00 : bf16
    %0 = vector.broadcast %cst : bf16 to vector<2x1x18x128xbf16>
    %cst_0 = arith.constant 0.000000e+00 : bf16
    %1 = vector.broadcast %cst_0 : bf16 to vector<2x18x1x128xbf16>
    %c0 = arith.constant 0 : index
    %c0_1 = arith.constant 0 : index
    %c0_2 = arith.constant 0 : index
    %c0_3 = arith.constant 0 : index
    %2 = vector.load %arg8[%c0, %c0_1, %c0_2, %c0_3] : memref<2x18x18x128xbf16, #tpu.memory_space<vmem>>, vector<2x1x18x128xbf16>
    tpu.vector_store %arg8[%c0, %c0_1, %c0_2, %c0_3], %0 {strides = array<i32>} : memref<2x18x18x128xbf16, #tpu.memory_space<vmem>>, vector<2x1x18x128xbf16>,
    %c0_4 = arith.constant 0 : index
    %c17 = arith.constant 17 : index
    %c0_5 = arith.constant 0 : index
    %c0_6 = arith.constant 0 : index
    %3 = vector.load %arg8[%c0_4, %c17, %c0_5, %c0_6] : memref<2x18x18x128xbf16, #tpu.memory_space<vmem>>, vector<2x1x18x128xbf16>
    tpu.vector_store %arg8[%c0_4, %c17, %c0_5, %c0_6], %0 {strides = array<i32>} : memref<2x18x18x128xbf16, #tpu.memory_space<vmem>>, vector<2x1x18x128xbf16>,
    %c0_7 = arith.constant 0 : index
    %c0_8 = arith.constant 0 : index
    %c0_9 = arith.constant 0 : index
    %c0_10 = arith.constant 0 : index
    %4 = vector.load %arg8[%c0_7, %c0_8, %c0_9, %c0_10] : memref<2x18x18x128xbf16, #tpu.memory_space<vmem>>, vector<2x18x1x128xbf16>
    tpu.vector_store %arg8[%c0_7, %c0_8, %c0_9, %c0_10], %1 {strides = array<i32>} : memref<2x18x18x128xbf16, #tpu.memory_space<vmem>>, vector<2x18x1x128xbf16>,
    %c0_11 = arith.constant 0 : index
    %c0_12 = arith.constant 0 : index
    %c17_13 = arith.constant 17 : index
    %c0_14 = arith.constant 0 : index
    %5 = vector.load %arg8[%c0_11, %c0_12, %c17_13, %c0_14] : memref<2x18x18x128xbf16, #tpu.memory_space<vmem>>, vector<2x18x1x128xbf16>
    tpu.vector_store %arg8[%c0_11, %c0_12, %c17_13, %c0_14], %1 {strides = array<i32>} : memref<2x18x18x128xbf16, #tpu.memory_space<vmem>>, vector<2x18x1x128xbf16>,
    %c0_15 = arith.constant 0 : index
    %c0_16 = arith.constant 0 : index
    %c0_17 = arith.constant 0 : index
    %c0_18 = arith.constant 0 : index
    %6 = vector.load %arg0[%c0_15, %c0_16, %c0_17, %c0_18] : memref<2x16x16x128xbf16, #tpu.memory_space<vmem>>, vector<2x16x16x128xbf16>
    %7 = vector.shape_cast %6 : vector<2x16x16x128xbf16> to vector<512x128xbf16>
    %c0_19 = arith.constant 0 : index
    %c0_20 = arith.constant 0 : index
    %8 = vector.load %arg1[%c0_19, %c0_20] : memref<128x128xbf16, #tpu.memory_space<vmem>>, vector<128x128xbf16>
    %cst_21 = arith.constant dense<0.000000e+00> : vector<512x128xf32>
    %9 = tpu.matmul %7, %8, %cst_21 {dimension_numbers = #tpu.dot_dimension_numbers<[1], [0], [0], [1], [0, 0, 1, 1], [], []>} : vector<512x128xbf16>, vector<128x128xbf16>, vector<512x128xf32> -> vector<512x128xf32>
    %cst_22 = arith.constant dense<0.000000e+00> : vector<128xf32>
    %10 = vector.multi_reduction <add>, %9, %cst_22 [0] : vector<512x128xf32> to vector<128xf32>
    %11 = vector.shape_cast %10 : vector<128xf32> to vector<1x128xf32>
    %cst_23 = arith.constant 0.001953125 : f32
    %12 = vector.broadcast %cst_23 : f32 to vector<1x128xf32>
    %13 = arith.mulf %11, %12 : vector<1x128xf32>
    %14 = arith.mulf %9, %9 : vector<512x128xf32>
    %cst_24 = arith.constant dense<0.000000e+00> : vector<128xf32>
    %15 = vector.multi_reduction <add>, %14, %cst_24 [0] : vector<512x128xf32> to vector<128xf32>
    %16 = vector.shape_cast %15 : vector<128xf32> to vector<1x128xf32>
    %cst_25 = arith.constant 0.001953125 : f32
    %17 = vector.broadcast %cst_25 : f32 to vector<1x128xf32>
    %18 = arith.mulf %16, %17 : vector<1x128xf32>
    %19 = arith.mulf %13, %13 : vector<1x128xf32>
    %20 = arith.subf %18, %19 : vector<1x128xf32>
    %cst_26 = arith.constant 0.000000e+00 : f32
    %21 = vector.broadcast %cst_26 : f32 to vector<1x128xf32>
    %22 = arith.maximumf %20, %21 : vector<1x128xf32>
    %c0_27 = arith.constant 0 : index
    %c0_28 = arith.constant 0 : index
    %23 = vector.load %arg3[%c0_27, %c0_28] : memref<1x128xf32, #tpu.memory_space<vmem>>, vector<1x128xf32>
    %cst_29 = arith.constant 9.99999974E-6 : f32
    %24 = vector.broadcast %cst_29 : f32 to vector<1x128xf32>
    %25 = arith.addf %22, %24 : vector<1x128xf32>
    %26 = math.rsqrt %25 : vector<1x128xf32>
    %27 = arith.mulf %23, %26 : vector<1x128xf32>
    %c0_30 = arith.constant 0 : index
    %c0_31 = arith.constant 0 : index
    %28 = vector.load %arg4[%c0_30, %c0_31] : memref<1x128xf32, #tpu.memory_space<vmem>>, vector<1x128xf32>
    %29 = arith.mulf %13, %27 : vector<1x128xf32>
    %30 = arith.subf %28, %29 : vector<1x128xf32>
    %31 = vector.broadcast %27 : vector<1x128xf32> to vector<512x128xf32>
    %32 = arith.mulf %9, %31 : vector<512x128xf32>
    %33 = vector.broadcast %30 : vector<1x128xf32> to vector<512x128xf32>
    %34 = arith.addf %32, %33 : vector<512x128xf32>
    %cst_32 = arith.constant 0.000000e+00 : f32
    %35 = vector.broadcast %cst_32 : f32 to vector<512x128xf32>
    %36 = arith.maximumf %34, %35 : vector<512x128xf32>
    %37 = vector.shape_cast %36 : vector<512x128xf32> to vector<2x16x16x128xf32>
    %38 = arith.truncf %37 : vector<2x16x16x128xf32> to vector<2x16x16x128xbf16>
    %c0_33 = arith.constant 0 : index
    %c1 = arith.constant 1 : index
    %c1_34 = arith.constant 1 : index
    %c0_35 = arith.constant 0 : index
    %39 = vector.load %arg8[%c0_33, %c1, %c1_34, %c0_35] : memref<2x18x18x128xbf16, #tpu.memory_space<vmem>>, vector<2x16x16x128xbf16>
    tpu.vector_store %arg8[%c0_33, %c1, %c1_34, %c0_35], %38 {strides = array<i32>} : memref<2x18x18x128xbf16, #tpu.memory_space<vmem>>, vector<2x16x16x128xbf16>,
    %cst_36 = arith.constant 0.000000e+00 : f32
    %40 = vector.broadcast %cst_36 : f32 to vector<512x128xf32>
    %c0_37 = arith.constant 0 : index
    %c0_38 = arith.constant 0 : index
    %c0_39 = arith.constant 0 : index
    %c0_40 = arith.constant 0 : index
    %41 = vector.load %arg8[%c0_37, %c0_38, %c0_39, %c0_40] : memref<2x18x18x128xbf16, #tpu.memory_space<vmem>>, vector<2x16x16x128xbf16>
    %42 = vector.shape_cast %41 : vector<2x16x16x128xbf16> to vector<512x128xbf16>
    %c0_41 = arith.constant 0 : index
    %c0_42 = arith.constant 0 : index
    %43 = vector.load %arg2[%c0_41, %c0_42] : memref<1152x128xbf16, #tpu.memory_space<vmem>>, vector<128x128xbf16>
    %cst_43 = arith.constant dense<0.000000e+00> : vector<512x128xf32>
    %44 = tpu.matmul %42, %43, %cst_43 {dimension_numbers = #tpu.dot_dimension_numbers<[1], [0], [0], [1], [0, 0, 1, 1], [], []>} : vector<512x128xbf16>, vector<128x128xbf16>, vector<512x128xf32> -> vector<512x128xf32>
    %45 = arith.addf %40, %44 : vector<512x128xf32>
    %c0_44 = arith.constant 0 : index
    %c0_45 = arith.constant 0 : index
    %c1_46 = arith.constant 1 : index
    %c0_47 = arith.constant 0 : index
    %46 = vector.load %arg8[%c0_44, %c0_45, %c1_46, %c0_47] : memref<2x18x18x128xbf16, #tpu.memory_space<vmem>>, vector<2x16x16x128xbf16>
    %47 = vector.shape_cast %46 : vector<2x16x16x128xbf16> to vector<512x128xbf16>
    %c128 = arith.constant 128 : index
    %c0_48 = arith.constant 0 : index
    %48 = vector.load %arg2[%c128, %c0_48] : memref<1152x128xbf16, #tpu.memory_space<vmem>>, vector<128x128xbf16>
    %cst_49 = arith.constant dense<0.000000e+00> : vector<512x128xf32>
    %49 = tpu.matmul %47, %48, %cst_49 {dimension_numbers = #tpu.dot_dimension_numbers<[1], [0], [0], [1], [0, 0, 1, 1], [], []>} : vector<512x128xbf16>, vector<128x128xbf16>, vector<512x128xf32> -> vector<512x128xf32>
    %50 = arith.addf %45, %49 : vector<512x128xf32>
    %c0_50 = arith.constant 0 : index
    %c0_51 = arith.constant 0 : index
    %c2 = arith.constant 2 : index
    %c0_52 = arith.constant 0 : index
    %51 = vector.load %arg8[%c0_50, %c0_51, %c2, %c0_52] : memref<2x18x18x128xbf16, #tpu.memory_space<vmem>>, vector<2x16x16x128xbf16>
    %52 = vector.shape_cast %51 : vector<2x16x16x128xbf16> to vector<512x128xbf16>
    %c256 = arith.constant 256 : index
    %c0_53 = arith.constant 0 : index
    %53 = vector.load %arg2[%c256, %c0_53] : memref<1152x128xbf16, #tpu.memory_space<vmem>>, vector<128x128xbf16>
    %cst_54 = arith.constant dense<0.000000e+00> : vector<512x128xf32>
    %54 = tpu.matmul %52, %53, %cst_54 {dimension_numbers = #tpu.dot_dimension_numbers<[1], [0], [0], [1], [0, 0, 1, 1], [], []>} : vector<512x128xbf16>, vector<128x128xbf16>, vector<512x128xf32> -> vector<512x128xf32>
    %55 = arith.addf %50, %54 : vector<512x128xf32>
    %c0_55 = arith.constant 0 : index
    %c1_56 = arith.constant 1 : index
    %c0_57 = arith.constant 0 : index
    %c0_58 = arith.constant 0 : index
    %56 = vector.load %arg8[%c0_55, %c1_56, %c0_57, %c0_58] : memref<2x18x18x128xbf16, #tpu.memory_space<vmem>>, vector<2x16x16x128xbf16>
    %57 = vector.shape_cast %56 : vector<2x16x16x128xbf16> to vector<512x128xbf16>
    %c384 = arith.constant 384 : index
    %c0_59 = arith.constant 0 : index
    %58 = vector.load %arg2[%c384, %c0_59] : memref<1152x128xbf16, #tpu.memory_space<vmem>>, vector<128x128xbf16>
    %cst_60 = arith.constant dense<0.000000e+00> : vector<512x128xf32>
    %59 = tpu.matmul %57, %58, %cst_60 {dimension_numbers = #tpu.dot_dimension_numbers<[1], [0], [0], [1], [0, 0, 1, 1], [], []>} : vector<512x128xbf16>, vector<128x128xbf16>, vector<512x128xf32> -> vector<512x128xf32>
    %60 = arith.addf %55, %59 : vector<512x128xf32>
    %c0_61 = arith.constant 0 : index
    %c1_62 = arith.constant 1 : index
    %c1_63 = arith.constant 1 : index
    %c0_64 = arith.constant 0 : index
    %61 = vector.load %arg8[%c0_61, %c1_62, %c1_63, %c0_64] : memref<2x18x18x128xbf16, #tpu.memory_space<vmem>>, vector<2x16x16x128xbf16>
    %62 = vector.shape_cast %61 : vector<2x16x16x128xbf16> to vector<512x128xbf16>
    %c512 = arith.constant 512 : index
    %c0_65 = arith.constant 0 : index
    %63 = vector.load %arg2[%c512, %c0_65] : memref<1152x128xbf16, #tpu.memory_space<vmem>>, vector<128x128xbf16>
    %cst_66 = arith.constant dense<0.000000e+00> : vector<512x128xf32>
    %64 = tpu.matmul %62, %63, %cst_66 {dimension_numbers = #tpu.dot_dimension_numbers<[1], [0], [0], [1], [0, 0, 1, 1], [], []>} : vector<512x128xbf16>, vector<128x128xbf16>, vector<512x128xf32> -> vector<512x128xf32>
    %65 = arith.addf %60, %64 : vector<512x128xf32>
    %c0_67 = arith.constant 0 : index
    %c1_68 = arith.constant 1 : index
    %c2_69 = arith.constant 2 : index
    %c0_70 = arith.constant 0 : index
    %66 = vector.load %arg8[%c0_67, %c1_68, %c2_69, %c0_70] : memref<2x18x18x128xbf16, #tpu.memory_space<vmem>>, vector<2x16x16x128xbf16>
    %67 = vector.shape_cast %66 : vector<2x16x16x128xbf16> to vector<512x128xbf16>
    %c640 = arith.constant 640 : index
    %c0_71 = arith.constant 0 : index
    %68 = vector.load %arg2[%c640, %c0_71] : memref<1152x128xbf16, #tpu.memory_space<vmem>>, vector<128x128xbf16>
    %cst_72 = arith.constant dense<0.000000e+00> : vector<512x128xf32>
    %69 = tpu.matmul %67, %68, %cst_72 {dimension_numbers = #tpu.dot_dimension_numbers<[1], [0], [0], [1], [0, 0, 1, 1], [], []>} : vector<512x128xbf16>, vector<128x128xbf16>, vector<512x128xf32> -> vector<512x128xf32>
    %70 = arith.addf %65, %69 : vector<512x128xf32>
    %c0_73 = arith.constant 0 : index
    %c2_74 = arith.constant 2 : index
    %c0_75 = arith.constant 0 : index
    %c0_76 = arith.constant 0 : index
    %71 = vector.load %arg8[%c0_73, %c2_74, %c0_75, %c0_76] : memref<2x18x18x128xbf16, #tpu.memory_space<vmem>>, vector<2x16x16x128xbf16>
    %72 = vector.shape_cast %71 : vector<2x16x16x128xbf16> to vector<512x128xbf16>
    %c768 = arith.constant 768 : index
    %c0_77 = arith.constant 0 : index
    %73 = vector.load %arg2[%c768, %c0_77] : memref<1152x128xbf16, #tpu.memory_space<vmem>>, vector<128x128xbf16>
    %cst_78 = arith.constant dense<0.000000e+00> : vector<512x128xf32>
    %74 = tpu.matmul %72, %73, %cst_78 {dimension_numbers = #tpu.dot_dimension_numbers<[1], [0], [0], [1], [0, 0, 1, 1], [], []>} : vector<512x128xbf16>, vector<128x128xbf16>, vector<512x128xf32> -> vector<512x128xf32>
    %75 = arith.addf %70, %74 : vector<512x128xf32>
    %c0_79 = arith.constant 0 : index
    %c2_80 = arith.constant 2 : index
    %c1_81 = arith.constant 1 : index
    %c0_82 = arith.constant 0 : index
    %76 = vector.load %arg8[%c0_79, %c2_80, %c1_81, %c0_82] : memref<2x18x18x128xbf16, #tpu.memory_space<vmem>>, vector<2x16x16x128xbf16>
    %77 = vector.shape_cast %76 : vector<2x16x16x128xbf16> to vector<512x128xbf16>
    %c896 = arith.constant 896 : index
    %c0_83 = arith.constant 0 : index
    %78 = vector.load %arg2[%c896, %c0_83] : memref<1152x128xbf16, #tpu.memory_space<vmem>>, vector<128x128xbf16>
    %cst_84 = arith.constant dense<0.000000e+00> : vector<512x128xf32>
    %79 = tpu.matmul %77, %78, %cst_84 {dimension_numbers = #tpu.dot_dimension_numbers<[1], [0], [0], [1], [0, 0, 1, 1], [], []>} : vector<512x128xbf16>, vector<128x128xbf16>, vector<512x128xf32> -> vector<512x128xf32>
    %80 = arith.addf %75, %79 : vector<512x128xf32>
    %c0_85 = arith.constant 0 : index
    %c2_86 = arith.constant 2 : index
    %c2_87 = arith.constant 2 : index
    %c0_88 = arith.constant 0 : index
    %81 = vector.load %arg8[%c0_85, %c2_86, %c2_87, %c0_88] : memref<2x18x18x128xbf16, #tpu.memory_space<vmem>>, vector<2x16x16x128xbf16>
    %82 = vector.shape_cast %81 : vector<2x16x16x128xbf16> to vector<512x128xbf16>
    %c1024 = arith.constant 1024 : index
    %c0_89 = arith.constant 0 : index
    %83 = vector.load %arg2[%c1024, %c0_89] : memref<1152x128xbf16, #tpu.memory_space<vmem>>, vector<128x128xbf16>
    %cst_90 = arith.constant dense<0.000000e+00> : vector<512x128xf32>
    %84 = tpu.matmul %82, %83, %cst_90 {dimension_numbers = #tpu.dot_dimension_numbers<[1], [0], [0], [1], [0, 0, 1, 1], [], []>} : vector<512x128xbf16>, vector<128x128xbf16>, vector<512x128xf32> -> vector<512x128xf32>
    %85 = arith.addf %80, %84 : vector<512x128xf32>
    %cst_91 = arith.constant dense<0.000000e+00> : vector<128xf32>
    %86 = vector.multi_reduction <add>, %85, %cst_91 [0] : vector<512x128xf32> to vector<128xf32>
    %87 = vector.shape_cast %86 : vector<128xf32> to vector<1x128xf32>
    %cst_92 = arith.constant 0.001953125 : f32
    %88 = vector.broadcast %cst_92 : f32 to vector<1x128xf32>
    %89 = arith.mulf %87, %88 : vector<1x128xf32>
    %90 = arith.mulf %85, %85 : vector<512x128xf32>
    %cst_93 = arith.constant dense<0.000000e+00> : vector<128xf32>
    %91 = vector.multi_reduction <add>, %90, %cst_93 [0] : vector<512x128xf32> to vector<128xf32>
    %92 = vector.shape_cast %91 : vector<128xf32> to vector<1x128xf32>
    %cst_94 = arith.constant 0.001953125 : f32
    %93 = vector.broadcast %cst_94 : f32 to vector<1x128xf32>
    %94 = arith.mulf %92, %93 : vector<1x128xf32>
    %95 = arith.mulf %89, %89 : vector<1x128xf32>
    %96 = arith.subf %94, %95 : vector<1x128xf32>
    %cst_95 = arith.constant 0.000000e+00 : f32
    %97 = vector.broadcast %cst_95 : f32 to vector<1x128xf32>
    %98 = arith.maximumf %96, %97 : vector<1x128xf32>
    %c0_96 = arith.constant 0 : index
    %c0_97 = arith.constant 0 : index
    %99 = vector.load %arg5[%c0_96, %c0_97] : memref<1x128xf32, #tpu.memory_space<vmem>>, vector<1x128xf32>
    %cst_98 = arith.constant 9.99999974E-6 : f32
    %100 = vector.broadcast %cst_98 : f32 to vector<1x128xf32>
    %101 = arith.addf %98, %100 : vector<1x128xf32>
    %102 = math.rsqrt %101 : vector<1x128xf32>
    %103 = arith.mulf %99, %102 : vector<1x128xf32>
    %c0_99 = arith.constant 0 : index
    %c0_100 = arith.constant 0 : index
    %104 = vector.load %arg6[%c0_99, %c0_100] : memref<1x128xf32, #tpu.memory_space<vmem>>, vector<1x128xf32>
    %105 = arith.mulf %89, %103 : vector<1x128xf32>
    %106 = arith.subf %104, %105 : vector<1x128xf32>
    %107 = vector.broadcast %103 : vector<1x128xf32> to vector<512x128xf32>
    %108 = arith.mulf %85, %107 : vector<512x128xf32>
    %109 = vector.broadcast %106 : vector<1x128xf32> to vector<512x128xf32>
    %110 = arith.addf %108, %109 : vector<512x128xf32>
    %cst_101 = arith.constant 0.000000e+00 : f32
    %111 = vector.broadcast %cst_101 : f32 to vector<512x128xf32>
    %112 = arith.maximumf %110, %111 : vector<512x128xf32>
    %113 = vector.shape_cast %112 : vector<512x128xf32> to vector<2x16x16x128xf32>
    %c0_102 = arith.constant 0 : index
    %c0_103 = arith.constant 0 : index
    %c0_104 = arith.constant 0 : index
    %c0_105 = arith.constant 0 : index
    %114 = vector.load %arg7[%c0_102, %c0_103, %c0_104, %c0_105] : memref<2x16x16x128xf32, #tpu.memory_space<vmem>>, vector<2x16x16x128xf32>
    tpu.vector_store %arg7[%c0_102, %c0_103, %c0_104, %c0_105], %113 {strides = array<i32>} : memref<2x16x16x128xf32, #tpu.memory_space<vmem>>, vector<2x16x16x128xf32>,
    return
  }
}

</mosaic_0001>

<llo_original>
// kernel: convolution_block.1
$region0: #{convolution_block.1}
  #allocation0 [shape = 'u32[]', space=smem, size = 0x4, offset = 0x4, fixed_abs, tag = 'smem constant byte address 0x4 - core index']
  #allocation1 [shape = 'u32[144,128]{1,0:T(1,128)}', space=vmem, size = 0x12000, scoped, tag = 'internal scratch']
  #allocation2 [shape = 'bf16[2,18,18,128]{3,2,1,0:T(8,128)(2,1)}', space=vmem, size = 0x36000, scoped, tag = 'scratch operand']
  %s0 = inlined_call_operand.vmem [shape: bf16[2,16,16,128], index: 0, kind: input, shape index: {}]
  %s1 = inlined_call_operand.vmem [shape: bf16[128,128], index: 1, kind: input, shape index: {}]
  %s2 = inlined_call_operand.vmem [shape: bf16[1152,128], index: 2, kind: input, shape index: {}]
  %s3 = inlined_call_operand.vmem [shape: f32[1,128], index: 3, kind: input, shape index: {}]
  %s4 = inlined_call_operand.vmem [shape: f32[1,128], index: 4, kind: input, shape index: {}]
  %s5 = inlined_call_operand.vmem [shape: f32[1,128], index: 5, kind: input, shape index: {}]
  %s6 = inlined_call_operand.vmem [shape: f32[1,128], index: 6, kind: input, shape index: {}]
  %s7 = inlined_call_operand.vmem [shape: f32[2,16,16,128], index: 7, kind: output, shape index: {}]
  %s8 = sld [smem:[#allocation0]]
  $region38: #{convolution_block.1} parent=0
    _
  %s10 = ssub.s32 1, %s8
  %s11 = scalar_select 0, %s10, %s8
  // Predicated region
  $region2: #{convolution_block.1} parent=0 // pred_check
    _
  $region3: #{convolution_block.1} parent=0 // pred_check_branch
    %13 = sbr.rel (0) target = $region5
  $region4: #{convolution_block.1} parent=0 // pred_region
    _
  $region5: #{convolution_block.1} parent=0 // pred_fallthru
    _
  // Predicated region
  $region6: #{convolution_block.1} parent=0 // pred_check
    _
  $region7: #{convolution_block.1} parent=0 // pred_check_branch
    %15 = sbr.rel (0) target = $region9
  $region8: #{convolution_block.1} parent=0 // pred_region
    _
  $region9: #{convolution_block.1} parent=0 // pred_fallthru
    _
  // Predicated region
  $region10: #{convolution_block.1} parent=0 // pred_check
    _
  $region11: #{convolution_block.1} parent=0 // pred_check_branch
    %17 = sbr.rel (0) target = $region13
  $region12: #{convolution_block.1} parent=0 // pred_region
    _
  $region13: #{convolution_block.1} parent=0 // pred_fallthru
    _
  // Predicated region
  $region14: #{convolution_block.1} parent=0 // pred_check
    _
  $region15: #{convolution_block.1} parent=0 // pred_check_branch
    %19 = sbr.rel (0) target = $region17
  $region16: #{convolution_block.1} parent=0 // pred_region
    _
  $region17: #{convolution_block.1} parent=0 // pred_fallthru
    _
  // Predicated region
  $region18: #{convolution_block.1} parent=0 // pred_check
    _
  $region19: #{convolution_block.1} parent=0 // pred_check_branch
    %21 = sbr.rel (0) target = $region21
  $region20: #{convolution_block.1} parent=0 // pred_region
    _
  $region21: #{convolution_block.1} parent=0 // pred_fallthru
    _
  // Predicated region
  $region22: #{convolution_block.1} parent=0 // pred_check
    _
  $region23: #{convolution_block.1} parent=0 // pred_check_branch
    %23 = sbr.rel (0) target = $region25
  $region24: #{convolution_block.1} parent=0 // pred_region
    _
  $region25: #{convolution_block.1} parent=0 // pred_fallthru
    _
  // Predicated region
  $region26: #{convolution_block.1} parent=0 // pred_check
    _
  $region27: #{convolution_block.1} parent=0 // pred_check_branch
    %25 = sbr.rel (0) target = $region29
  $region28: #{convolution_block.1} parent=0 // pred_region
    _
  $region29: #{convolution_block.1} parent=0 // pred_fallthru
    _
  %27 = vst [vmem:[#allocation2] sm:$0xf] 0
  %28 = vst [vmem:[#allocation2 + $0x4] sm:$0xf] 0
  %29 = vst [vmem:[#allocation2 + $0x8] sm:$0x1] 0
  %30 = vst [vmem:[#allocation2 + $0xd8] sm:$0xf] 0
  %31 = vst [vmem:[#allocation2 + $0xdc] sm:$0xf] 0
  %32 = vst [vmem:[#allocation2 + $0xe0] sm:$0x1] 0
  %s33 = scalar_lea.vmem [#allocation2], 204
  %34 = vst [vmem:[%s33] sm:$0xf] 0
  %35 = vst [vmem:[%s33 + $0x4] sm:$0xf] 0
  %36 = vst [vmem:[%s33 + $0x8] sm:$0x1] 0
  %37 = vst [vmem:[%s33 + $0xd8] sm:$0xf] 0
  %38 = vst [vmem:[%s33 + $0xdc] sm:$0xf] 0
  %39 = vst [vmem:[%s33 + $0xe0] sm:$0x1] 0
  %vm40 = vcmask 1040384
  %vm41 = vsmask.f32 256
  %vm42 = vmand %vm40, %vm41
  %v43 = vld [vmem:[#allocation2] sm:$0x1]
  %v44 = vsel %vm42, 0, %v43
  %45 = vst [vmem:[#allocation2] sm:$0x1] %v44
  %v46 = vld [vmem:[#allocation2 + $0xc] sm:$0x1]
  %v47 = vsel %vm42, 0, %v46
  %48 = vst [vmem:[#allocation2 + $0xc] sm:$0x1] %v47
  %v49 = vld [vmem:[#allocation2 + $0x18] sm:$0x1]
  %v50 = vsel %vm42, 0, %v49
  %51 = vst [vmem:[#allocation2 + $0x18] sm:$0x1] %v50
  %v52 = vld [vmem:[#allocation2 + $0x24] sm:$0x1]
  %v53 = vsel %vm42, 0, %v52
  %54 = vst [vmem:[#allocation2 + $0x24] sm:$0x1] %v53
  %v55 = vld [vmem:[#allocation2 + $0x30] sm:$0x1]
  %v56 = vsel %vm42, 0, %v55
  %57 = vst [vmem:[#allocation2 + $0x30] sm:$0x1] %v56
  %v58 = vld [vmem:[#allocation2 + $0x3c] sm:$0x1]
  %v59 = vsel %vm42, 0, %v58
  %60 = vst [vmem:[#allocation2 + $0x3c] sm:$0x1] %v59
  %v61 = vld [vmem:[#allocation2 + $0x48] sm:$0x1]
  %v62 = vsel %vm42, 0, %v61
  %63 = vst [vmem:[#allocation2 + $0x48] sm:$0x1] %v62
  %v64 = vld [vmem:[#allocation2 + $0x54] sm:$0x1]
  %v65 = vsel %vm42, 0, %v64
  %66 = vst [vmem:[#allocation2 + $0x54] sm:$0x1] %v65
  %v67 = vld [vmem:[#allocation2 + $0x60] sm:$0x1]
  %v68 = vsel %vm42, 0, %v67
  %69 = vst [vmem:[#allocation2 + $0x60] sm:$0x1] %v68
  %v70 = vld [vmem:[#allocation2 + $0x6c] sm:$0x1]
  %v71 = vsel %vm42, 0, %v70
  %72 = vst [vmem:[#allocation2 + $0x6c] sm:$0x1] %v71
  %v73 = vld [vmem:[#allocation2 + $0x78] sm:$0x1]
  %v74 = vsel %vm42, 0, %v73
  %75 = vst [vmem:[#allocation2 + $0x78] sm:$0x1] %v74
  %v76 = vld [vmem:[#allocation2 + $0x84] sm:$0x1]
  %v77 = vsel %vm42, 0, %v76
  %78 = vst [vmem:[#allocation2 + $0x84] sm:$0x1] %v77
  %v79 = vld [vmem:[#allocation2 + $0x90] sm:$0x1]
  %v80 = vsel %vm42, 0, %v79
  %81 = vst [vmem:[#allocation2 + $0x90] sm:$0x1] %v80
  %v82 = vld [vmem:[#allocation2 + $0x9c] sm:$0x1]
  %v83 = vsel %vm42, 0, %v82
  %84 = vst [vmem:[#allocation2 + $0x9c] sm:$0x1] %v83
  %v85 = vld [vmem:[#allocation2 + $0xa8] sm:$0x1]
  %v86 = vsel %vm42, 0, %v85
  %87 = vst [vmem:[#allocation2 + $0xa8] sm:$0x1] %v86
  %v88 = vld [vmem:[#allocation2 + $0xb4] sm:$0x1]
  %v89 = vsel %vm42, 0, %v88
  %90 = vst [vmem:[#allocation2 + $0xb4] sm:$0x1] %v89
  %v91 = vld [vmem:[#allocation2 + $0xc0] sm:$0x1]
  %v92 = vsel %vm42, 0, %v91
  %93 = vst [vmem:[#allocation2 + $0xc0] sm:$0x1] %v92
  %v94 = vld [vmem:[#allocation2 + $0xcc] sm:$0x1]
  %v95 = vsel %vm42, 0, %v94
  %96 = vst [vmem:[#allocation2 + $0xcc] sm:$0x1] %v95
  %v97 = vld [vmem:[#allocation2 + $0xd8] sm:$0x1]
  %v98 = vsel %vm42, 0, %v97
  %99 = vst [vmem:[#allocation2 + $0xd8] sm:$0x1] %v98
  %v100 = vld [vmem:[#allocation2 + $0xe4] sm:$0x1]
  %v101 = vsel %vm42, 0, %v100
  %102 = vst [vmem:[#allocation2 + $0xe4] sm:$0x1] %v101
  %v103 = vld [vmem:[#allocation2 + $0xf0] sm:$0x1]
  %v104 = vsel %vm42, 0, %v103
  %105 = vst [vmem:[#allocation2 + $0xf0] sm:$0x1] %v104
  %v106 = vld [vmem:[#allocation2 + $0xfc] sm:$0x1]
  %v107 = vsel %vm42, 0, %v106
  %108 = vst [vmem:[#allocation2 + $0xfc] sm:$0x1] %v107
  %v109 = vld [vmem:[#allocation2 + $0x108] sm:$0x1]
  %v110 = vsel %vm42, 0, %v109
  %111 = vst [vmem:[#allocation2 + $0x108] sm:$0x1] %v110
  %v112 = vld [vmem:[#allocation2 + $0x114] sm:$0x1]
  %v113 = vsel %vm42, 0, %v112
  %114 = vst [vmem:[#allocation2 + $0x114] sm:$0x1] %v113
  %v115 = vld [vmem:[#allocation2 + $0x120] sm:$0x1]
  %v116 = vsel %vm42, 0, %v115
  %117 = vst [vmem:[#allocation2 + $0x120] sm:$0x1] %v116
  %v118 = vld [vmem:[#allocation2 + $0x12c] sm:$0x1]
  %v119 = vsel %vm42, 0, %v118
  %120 = vst [vmem:[#allocation2 + $0x12c] sm:$0x1] %v119
  %v121 = vld [vmem:[#allocation2 + $0x138] sm:$0x1]
  %v122 = vsel %vm42, 0, %v121
  %123 = vst [vmem:[#allocation2 + $0x138] sm:$0x1] %v122
  %v124 = vld [vmem:[#allocation2 + $0x144] sm:$0x1]
  %v125 = vsel %vm42, 0, %v124
  %126 = vst [vmem:[#allocation2 + $0x144] sm:$0x1] %v125
  %v127 = vld [vmem:[#allocation2 + $0x150] sm:$0x1]
  %v128 = vsel %vm42, 0, %v127
  %129 = vst [vmem:[#allocation2 + $0x150] sm:$0x1] %v128
  %v130 = vld [vmem:[#allocation2 + $0x15c] sm:$0x1]
  %v131 = vsel %vm42, 0, %v130
  %132 = vst [vmem:[#allocation2 + $0x15c] sm:$0x1] %v131
  %v133 = vld [vmem:[#allocation2 + $0x168] sm:$0x1]
  %v134 = vsel %vm42, 0, %v133
  %135 = vst [vmem:[#allocation2 + $0x168] sm:$0x1] %v134
  %v136 = vld [vmem:[#allocation2 + $0x174] sm:$0x1]
  %v137 = vsel %vm42, 0, %v136
  %138 = vst [vmem:[#allocation2 + $0x174] sm:$0x1] %v137
  %v139 = vld [vmem:[#allocation2 + $0x180] sm:$0x1]
  %v140 = vsel %vm42, 0, %v139
  %141 = vst [vmem:[#allocation2 + $0x180] sm:$0x1] %v140
  %v142 = vld [vmem:[#allocation2 + $0x18c] sm:$0x1]
  %v143 = vsel %vm42, 0, %v142
  %144 = vst [vmem:[#allocation2 + $0x18c] sm:$0x1] %v143
  %v145 = vld [vmem:[#allocation2 + $0x198] sm:$0x1]
  %v146 = vsel %vm42, 0, %v145
  %147 = vst [vmem:[#allocation2 + $0x198] sm:$0x1] %v146
  %v148 = vld [vmem:[#allocation2 + $0x1a4] sm:$0x1]
  %v149 = vsel %vm42, 0, %v148
  %150 = vst [vmem:[#allocation2 + $0x1a4] sm:$0x1] %v149
  %vm151 = vsmask.f32 7938
  %vm152 = vmand %vm40, %vm151
  %v153 = vld [vmem:[#allocation2 + $0x8] sm:$0x1]
  %v154 = vsel %vm152, 0, %v153
  %155 = vst [vmem:[#allocation2 + $0x8] sm:$0x1] %v154
  %v156 = vld [vmem:[#allocation2 + $0x14] sm:$0x1]
  %v157 = vsel %vm152, 0, %v156
  %158 = vst [vmem:[#allocation2 + $0x14] sm:$0x1] %v157
  %v159 = vld [vmem:[#allocation2 + $0x20] sm:$0x1]
  %v160 = vsel %vm152, 0, %v159
  %161 = vst [vmem:[#allocation2 + $0x20] sm:$0x1] %v160
  %v162 = vld [vmem:[#allocation2 + $0x2c] sm:$0x1]
  %v163 = vsel %vm152, 0, %v162
  %164 = vst [vmem:[#allocation2 + $0x2c] sm:$0x1] %v163
  %v165 = vld [vmem:[#allocation2 + $0x38] sm:$0x1]
  %v166 = vsel %vm152, 0, %v165
  %167 = vst [vmem:[#allocation2 + $0x38] sm:$0x1] %v166
  %v168 = vld [vmem:[#allocation2 + $0x44] sm:$0x1]
  %v169 = vsel %vm152, 0, %v168
  %170 = vst [vmem:[#allocation2 + $0x44] sm:$0x1] %v169
  %v171 = vld [vmem:[#allocation2 + $0x50] sm:$0x1]
  %v172 = vsel %vm152, 0, %v171
  %173 = vst [vmem:[#allocation2 + $0x50] sm:$0x1] %v172
  %v174 = vld [vmem:[#allocation2 + $0x5c] sm:$0x1]
  %v175 = vsel %vm152, 0, %v174
  %176 = vst [vmem:[#allocation2 + $0x5c] sm:$0x1] %v175
  %v177 = vld [vmem:[#allocation2 + $0x68] sm:$0x1]
  %v178 = vsel %vm152, 0, %v177
  %179 = vst [vmem:[#allocation2 + $0x68] sm:$0x1] %v178
  %v180 = vld [vmem:[#allocation2 + $0x74] sm:$0x1]
  %v181 = vsel %vm152, 0, %v180
  %182 = vst [vmem:[#allocation2 + $0x74] sm:$0x1] %v181
  %v183 = vld [vmem:[#allocation2 + $0x80] sm:$0x1]
  %v184 = vsel %vm152, 0, %v183
  %185 = vst [vmem:[#allocation2 + $0x80] sm:$0x1] %v184
  %v186 = vld [vmem:[#allocation2 + $0x8c] sm:$0x1]
  %v187 = vsel %vm152, 0, %v186
  %188 = vst [vmem:[#allocation2 + $0x8c] sm:$0x1] %v187
  %v189 = vld [vmem:[#allocation2 + $0x98] sm:$0x1]
  %v190 = vsel %vm152, 0, %v189
  %191 = vst [vmem:[#allocation2 + $0x98] sm:$0x1] %v190
  %v192 = vld [vmem:[#allocation2 + $0xa4] sm:$0x1]
  %v193 = vsel %vm152, 0, %v192
  %194 = vst [vmem:[#allocation2 + $0xa4] sm:$0x1] %v193
  %v195 = vld [vmem:[#allocation2 + $0xb0] sm:$0x1]
  %v196 = vsel %vm152, 0, %v195
  %197 = vst [vmem:[#allocation2 + $0xb0] sm:$0x1] %v196
  %v198 = vld [vmem:[#allocation2 + $0xbc] sm:$0x1]
  %v199 = vsel %vm152, 0, %v198
  %200 = vst [vmem:[#allocation2 + $0xbc] sm:$0x1] %v199
  %v201 = vld [vmem:[#allocation2 + $0xc8] sm:$0x1]
  %v202 = vsel %vm152, 0, %v201
  %203 = vst [vmem:[#allocation2 + $0xc8] sm:$0x1] %v202
  %v204 = vld [vmem:[#allocation2 + $0xd4] sm:$0x1]
  %v205 = vsel %vm152, 0, %v204
  %206 = vst [vmem:[#allocation2 + $0xd4] sm:$0x1] %v205
  %v207 = vld [vmem:[#allocation2 + $0xe0] sm:$0x1]
  %v208 = vsel %vm152, 0, %v207
  %209 = vst [vmem:[#allocation2 + $0xe0] sm:$0x1] %v208
  %v210 = vld [vmem:[#allocation2 + $0xec] sm:$0x1]
  %v211 = vsel %vm152, 0, %v210
  %212 = vst [vmem:[#allocation2 + $0xec] sm:$0x1] %v211
  %v213 = vld [vmem:[#allocation2 + $0xf8] sm:$0x1]
  %v214 = vsel %vm152, 0, %v213
  %215 = vst [vmem:[#allocation2 + $0xf8] sm:$0x1] %v214
  %v216 = vld [vmem:[#allocation2 + $0x104] sm:$0x1]
  %v217 = vsel %vm152, 0, %v216
  %218 = vst [vmem:[#allocation2 + $0x104] sm:$0x1] %v217
  %v219 = vld [vmem:[#allocation2 + $0x110] sm:$0x1]
  %v220 = vsel %vm152, 0, %v219
  %221 = vst [vmem:[#allocation2 + $0x110] sm:$0x1] %v220
  %v222 = vld [vmem:[#allocation2 + $0x11c] sm:$0x1]
  %v223 = vsel %vm152, 0, %v222
  %224 = vst [vmem:[#allocation2 + $0x11c] sm:$0x1] %v223
  %v225 = vld [vmem:[#allocation2 + $0x128] sm:$0x1]
  %v226 = vsel %vm152, 0, %v225
  %227 = vst [vmem:[#allocation2 + $0x128] sm:$0x1] %v226
  %v228 = vld [vmem:[#allocation2 + $0x134] sm:$0x1]
  %v229 = vsel %vm152, 0, %v228
  %230 = vst [vmem:[#allocation2 + $0x134] sm:$0x1] %v229
  %v231 = vld [vmem:[#allocation2 + $0x140] sm:$0x1]
  %v232 = vsel %vm152, 0, %v231
  %233 = vst [vmem:[#allocation2 + $0x140] sm:$0x1] %v232
  %v234 = vld [vmem:[#allocation2 + $0x14c] sm:$0x1]
  %v235 = vsel %vm152, 0, %v234
  %236 = vst [vmem:[#allocation2 + $0x14c] sm:$0x1] %v235
  %v237 = vld [vmem:[#allocation2 + $0x158] sm:$0x1]
  %v238 = vsel %vm152, 0, %v237
  %239 = vst [vmem:[#allocation2 + $0x158] sm:$0x1] %v238
  %v240 = vld [vmem:[#allocation2 + $0x164] sm:$0x1]
  %v241 = vsel %vm152, 0, %v240
  %242 = vst [vmem:[#allocation2 + $0x164] sm:$0x1] %v241
  %v243 = vld [vmem:[#allocation2 + $0x170] sm:$0x1]
  %v244 = vsel %vm152, 0, %v243
  %245 = vst [vmem:[#allocation2 + $0x170] sm:$0x1] %v244
  %v246 = vld [vmem:[#allocation2 + $0x17c] sm:$0x1]
  %v247 = vsel %vm152, 0, %v246
  %248 = vst [vmem:[#allocation2 + $0x17c] sm:$0x1] %v247
  %v249 = vld [vmem:[#allocation2 + $0x188] sm:$0x1]
  %v250 = vsel %vm152, 0, %v249
  %251 = vst [vmem:[#allocation2 + $0x188] sm:$0x1] %v250
  %v252 = vld [vmem:[#allocation2 + $0x194] sm:$0x1]
  %v253 = vsel %vm152, 0, %v252
  %254 = vst [vmem:[#allocation2 + $0x194] sm:$0x1] %v253
  %v255 = vld [vmem:[#allocation2 + $0x1a0] sm:$0x1]
  %v256 = vsel %vm152, 0, %v255
  %257 = vst [vmem:[#allocation2 + $0x1a0] sm:$0x1] %v256
  %v258 = vld [vmem:[#allocation2 + $0x1ac] sm:$0x1]
  %v259 = vsel %vm152, 0, %v258
  %260 = vst [vmem:[#allocation2 + $0x1ac] sm:$0x1] %v259
  %v261 = vld [vmem:[%s0] sm:$0xf]
  %v262 = vld [vmem:[%s0 + $0x4] sm:$0xf]
  %v263 = vld [vmem:[%s0 + $0x8] sm:$0xf]
  %v264 = vld [vmem:[%s0 + $0xc] sm:$0xf]
  %v265 = vld [vmem:[%s0 + $0x10] sm:$0xf]
  %v266 = vld [vmem:[%s0 + $0x14] sm:$0xf]
  %v267 = vld [vmem:[%s0 + $0x18] sm:$0xf]
  %v268 = vld [vmem:[%s0 + $0x1c] sm:$0xf]
  %v269 = vld [vmem:[%s0 + $0x20] sm:$0xf]
  %v270 = vld [vmem:[%s0 + $0x24] sm:$0xf]
  %v271 = vld [vmem:[%s0 + $0x28] sm:$0xf]
  %v272 = vld [vmem:[%s0 + $0x2c] sm:$0xf]
  %v273 = vld [vmem:[%s0 + $0x30] sm:$0xf]
  %v274 = vld [vmem:[%s0 + $0x34] sm:$0xf]
  %v275 = vld [vmem:[%s0 + $0x38] sm:$0xf]
  %v276 = vld [vmem:[%s0 + $0x3c] sm:$0xf]
  %v277 = vld [vmem:[%s0 + $0x40] sm:$0xf]
  %v278 = vld [vmem:[%s0 + $0x44] sm:$0xf]
  %v279 = vld [vmem:[%s0 + $0x48] sm:$0xf]
  %v280 = vld [vmem:[%s0 + $0x4c] sm:$0xf]
  %v281 = vld [vmem:[%s0 + $0x50] sm:$0xf]
  %v282 = vld [vmem:[%s0 + $0x54] sm:$0xf]
  %v283 = vld [vmem:[%s0 + $0x58] sm:$0xf]
  %v284 = vld [vmem:[%s0 + $0x5c] sm:$0xf]
  %v285 = vld [vmem:[%s0 + $0x60] sm:$0xf]
  %v286 = vld [vmem:[%s0 + $0x64] sm:$0xf]
  %v287 = vld [vmem:[%s0 + $0x68] sm:$0xf]
  %v288 = vld [vmem:[%s0 + $0x6c] sm:$0xf]
  %v289 = vld [vmem:[%s0 + $0x70] sm:$0xf]
  %v290 = vld [vmem:[%s0 + $0x74] sm:$0xf]
  %v291 = vld [vmem:[%s0 + $0x78] sm:$0xf]
  %v292 = vld [vmem:[%s0 + $0x7c] sm:$0xf]
  %v293 = vld [vmem:[%s0 + $0x80] sm:$0xf]
  %v294 = vld [vmem:[%s0 + $0x84] sm:$0xf]
  %v295 = vld [vmem:[%s0 + $0x88] sm:$0xf]
  %v296 = vld [vmem:[%s0 + $0x8c] sm:$0xf]
  %v297 = vld [vmem:[%s0 + $0x90] sm:$0xf]
  %v298 = vld [vmem:[%s0 + $0x94] sm:$0xf]
  %v299 = vld [vmem:[%s0 + $0x98] sm:$0xf]
  %v300 = vld [vmem:[%s0 + $0x9c] sm:$0xf]
  %v301 = vld [vmem:[%s0 + $0xa0] sm:$0xf]
  %v302 = vld [vmem:[%s0 + $0xa4] sm:$0xf]
  %v303 = vld [vmem:[%s0 + $0xa8] sm:$0xf]
  %v304 = vld [vmem:[%s0 + $0xac] sm:$0xf]
  %v305 = vld [vmem:[%s0 + $0xb0] sm:$0xf]
  %v306 = vld [vmem:[%s0 + $0xb4] sm:$0xf]
  %v307 = vld [vmem:[%s0 + $0xb8] sm:$0xf]
  %v308 = vld [vmem:[%s0 + $0xbc] sm:$0xf]
  %v309 = vld [vmem:[%s0 + $0xc0] sm:$0xf]
  %v310 = vld [vmem:[%s0 + $0xc4] sm:$0xf]
  %v311 = vld [vmem:[%s0 + $0xc8] sm:$0xf]
  %v312 = vld [vmem:[%s0 + $0xcc] sm:$0xf]
  %v313 = vld [vmem:[%s0 + $0xd0] sm:$0xf]
  %v314 = vld [vmem:[%s0 + $0xd4] sm:$0xf]
  %v315 = vld [vmem:[%s0 + $0xd8] sm:$0xf]
  %v316 = vld [vmem:[%s0 + $0xdc] sm:$0xf]
  %v317 = vld [vmem:[%s0 + $0xe0] sm:$0xf]
  %v318 = vld [vmem:[%s0 + $0xe4] sm:$0xf]
  %v319 = vld [vmem:[%s0 + $0xe8] sm:$0xf]
  %v320 = vld [vmem:[%s0 + $0xec] sm:$0xf]
  %v321 = vld [vmem:[%s0 + $0xf0] sm:$0xf]
  %v322 = vld [vmem:[%s0 + $0xf4] sm:$0xf]
  %v323 = vld [vmem:[%s0 + $0xf8] sm:$0xf]
  %v324 = vld [vmem:[%s0 + $0xfc] sm:$0xf]
  %v325 = vld [vmem:[%s1] sm:$0xf]
  %v326 = vld [vmem:[%s1 + $0x4] sm:$0xf]
  %v327 = vld [vmem:[%s1 + $0x8] sm:$0xf]
  %v328 = vld [vmem:[%s1 + $0xc] sm:$0xf]
  %v329 = vld [vmem:[%s1 + $0x10] sm:$0xf]
  %v330 = vld [vmem:[%s1 + $0x14] sm:$0xf]
  %v331 = vld [vmem:[%s1 + $0x18] sm:$0xf]
  %v332 = vld [vmem:[%s1 + $0x1c] sm:$0xf]
  %v333 = vld [vmem:[%s1 + $0x20] sm:$0xf]
  %v334 = vld [vmem:[%s1 + $0x24] sm:$0xf]
  %v335 = vld [vmem:[%s1 + $0x28] sm:$0xf]
  %v336 = vld [vmem:[%s1 + $0x2c] sm:$0xf]
  %v337 = vld [vmem:[%s1 + $0x30] sm:$0xf]
  %v338 = vld [vmem:[%s1 + $0x34] sm:$0xf]
  %v339 = vld [vmem:[%s1 + $0x38] sm:$0xf]
  %v340 = vld [vmem:[%s1 + $0x3c] sm:$0xf]
  %v405 = vunpack.c.l.b16 %v261
  %v406 = vunpack.c.l.b16 %v262
  %v407 = vunpack.c.l.b16 %v263
  %v408 = vunpack.c.l.b16 %v264
  %v409 = vunpack.c.l.b16 %v265
  %v410 = vunpack.c.l.b16 %v266
  %v411 = vunpack.c.l.b16 %v267
  %v412 = vunpack.c.l.b16 %v268
  %v413 = vunpack.c.l.b16 %v269
  %v414 = vunpack.c.l.b16 %v270
  %v415 = vunpack.c.l.b16 %v271
  %v416 = vunpack.c.l.b16 %v272
  %v417 = vunpack.c.l.b16 %v273
  %v418 = vunpack.c.l.b16 %v274
  %v419 = vunpack.c.l.b16 %v275
  %v420 = vunpack.c.l.b16 %v276
  %v421 = vunpack.c.l.b16 %v277
  %v422 = vunpack.c.l.b16 %v278
  %v423 = vunpack.c.l.b16 %v279
  %v424 = vunpack.c.l.b16 %v280
  %v425 = vunpack.c.l.b16 %v281
  %v426 = vunpack.c.l.b16 %v282
  %v427 = vunpack.c.l.b16 %v283
  %v428 = vunpack.c.l.b16 %v284
  %v429 = vunpack.c.l.b16 %v285
  %v430 = vunpack.c.l.b16 %v286
  %v431 = vunpack.c.l.b16 %v287
  %v432 = vunpack.c.l.b16 %v288
  %v433 = vunpack.c.l.b16 %v289
  %v434 = vunpack.c.l.b16 %v290
  %v435 = vunpack.c.l.b16 %v291
  %v436 = vunpack.c.l.b16 %v292
  %v437 = vunpack.c.l.b16 %v293
  %v438 = vunpack.c.l.b16 %v294
  %v439 = vunpack.c.l.b16 %v295
  %v440 = vunpack.c.l.b16 %v296
  %v441 = vunpack.c.l.b16 %v297
  %v442 = vunpack.c.l.b16 %v298
  %v443 = vunpack.c.l.b16 %v299
  %v444 = vunpack.c.l.b16 %v300
  %v445 = vunpack.c.l.b16 %v301
  %v446 = vunpack.c.l.b16 %v302
  %v447 = vunpack.c.l.b16 %v303
  %v448 = vunpack.c.l.b16 %v304
  %v449 = vunpack.c.l.b16 %v305
  %v450 = vunpack.c.l.b16 %v306
  %v451 = vunpack.c.l.b16 %v307
  %v452 = vunpack.c.l.b16 %v308
  %v453 = vunpack.c.l.b16 %v309
  %v454 = vunpack.c.l.b16 %v310
  %v455 = vunpack.c.l.b16 %v311
  %v456 = vunpack.c.l.b16 %v312
  %v457 = vunpack.c.l.b16 %v313
  %v458 = vunpack.c.l.b16 %v314
  %v459 = vunpack.c.l.b16 %v315
  %v460 = vunpack.c.l.b16 %v316
  %v461 = vunpack.c.l.b16 %v317
  %v462 = vunpack.c.l.b16 %v318
  %v463 = vunpack.c.l.b16 %v319
  %v464 = vunpack.c.l.b16 %v320
  %v465 = vunpack.c.l.b16 %v321
  %v466 = vunpack.c.l.b16 %v322
  %v467 = vunpack.c.l.b16 %v323
  %v468 = vunpack.c.l.b16 %v324
  %v469 = vpack.c.b16 %v406, %v405
  %v470 = vpack.c.b16 %v408, %v407
  %v471 = vpack.c.b16 %v410, %v409
  %v472 = vpack.c.b16 %v412, %v411
  %v473 = vpack.c.b16 %v414, %v413
  %v474 = vpack.c.b16 %v416, %v415
  %v475 = vpack.c.b16 %v418, %v417
  %v476 = vpack.c.b16 %v420, %v419
  %v477 = vpack.c.b16 %v422, %v421
  %v478 = vpack.c.b16 %v424, %v423
  %v479 = vpack.c.b16 %v426, %v425
  %v480 = vpack.c.b16 %v428, %v427
  %v481 = vpack.c.b16 %v430, %v429
  %v482 = vpack.c.b16 %v432, %v431
  %v483 = vpack.c.b16 %v434, %v433
  %v484 = vpack.c.b16 %v436, %v435
  %v485 = vpack.c.b16 %v438, %v437
  %v486 = vpack.c.b16 %v440, %v439
  %v487 = vpack.c.b16 %v442, %v441
  %v488 = vpack.c.b16 %v444, %v443
  %v489 = vpack.c.b16 %v446, %v445
  %v490 = vpack.c.b16 %v448, %v447
  %v491 = vpack.c.b16 %v450, %v449
  %v492 = vpack.c.b16 %v452, %v451
  %v493 = vpack.c.b16 %v454, %v453
  %v494 = vpack.c.b16 %v456, %v455
  %v495 = vpack.c.b16 %v458, %v457
  %v496 = vpack.c.b16 %v460, %v459
  %v497 = vpack.c.b16 %v462, %v461
  %v498 = vpack.c.b16 %v464, %v463
  %v499 = vpack.c.b16 %v466, %v465
  %v500 = vpack.c.b16 %v468, %v467
  %v549 = vunpack.c.l.b16 %v325
  %v550 = vunpack.c.l.b16 %v326
  %v551 = vunpack.c.l.b16 %v327
  %v552 = vunpack.c.l.b16 %v328
  %v553 = vunpack.c.l.b16 %v329
  %v554 = vunpack.c.l.b16 %v330
  %v555 = vunpack.c.l.b16 %v331
  %v556 = vunpack.c.l.b16 %v332
  %v557 = vunpack.c.l.b16 %v333
  %v558 = vunpack.c.l.b16 %v334
  %v559 = vunpack.c.l.b16 %v335
  %v560 = vunpack.c.l.b16 %v336
  %v561 = vunpack.c.l.b16 %v337
  %v562 = vunpack.c.l.b16 %v338
  %v563 = vunpack.c.l.b16 %v339
  %v564 = vunpack.c.l.b16 %v340
  %v565 = vpack.c.b16 %v550, %v549
  %v566 = vpack.c.b16 %v552, %v551
  %v567 = vpack.c.b16 %v554, %v553
  %v568 = vpack.c.b16 %v556, %v555
  %v569 = vpack.c.b16 %v558, %v557
  %v570 = vpack.c.b16 %v560, %v559
  %v571 = vpack.c.b16 %v562, %v561
  %v572 = vpack.c.b16 %v564, %v563
  %581 = vmatprep.subr.bf16.mxu0 0
  %582 = vmatpush1.bf16.msra.mxu0 %v572
  %583 = vmatprep.subr.bf16.mxu0 0
  %584 = vmatpush1.bf16.msra.mxu0 %v571
  %585 = vmatprep.subr.bf16.mxu0 0
  %586 = vmatpush1.bf16.msra.mxu0 %v570
  %587 = vmatprep.subr.bf16.mxu0 0
  %588 = vmatpush1.bf16.msra.mxu0 %v569
  %589 = vmatprep.subr.bf16.mxu0 0
  %590 = vmatpush1.bf16.msra.mxu0 %v568
  %591 = vmatprep.subr.bf16.mxu0 0
  %592 = vmatpush1.bf16.msra.mxu0 %v567
  %593 = vmatprep.subr.bf16.mxu0 0
  %594 = vmatpush1.bf16.msra.mxu0 %v566
  %595 = vmatprep.subr.bf16.mxu0 0
  %596 = vmatpush1.bf16.msra.mxu0 %v565
  %597 = vmatprep.subr.bf16.mxu0 0
  %598 = vmatpush2.bf16.msra.mxu0 0
  %599 = vmatprep.subr.bf16.mxu0 0
  %600 = vmatpush2.bf16.msra.mxu0 0
  %601 = vmatprep.subr.bf16.mxu0 0
  %602 = vmatpush2.bf16.msra.mxu0 0
  %603 = vmatprep.subr.bf16.mxu0 0
  %604 = vmatpush2.bf16.msra.mxu0 0
  %605 = vmatprep.subr.bf16.mxu0 0
  %606 = vmatpush2.bf16.msra.mxu0 0
  %607 = vmatprep.subr.bf16.mxu0 0
  %608 = vmatpush2.bf16.msra.mxu0 0
  %609 = vmatprep.subr.bf16.mxu0 0
  %610 = vmatpush2.bf16.msra.mxu0 0
  %611 = vmatprep.subr.bf16.mxu0 0
  %612 = vmatpush2.bf16.msra.mxu0 0
  %613 = vmatprep.mubr.bf16.mxu0 0
  %614 = vmatmul.mubr.bf16.gmra.mxu0 %v469
  %v615 = vpop.f32.mrf.mxu0
  %v616 = vadd.f32 0.0, %v615
  %v617 = vpop.f32.mrf.mxu0
  %v618 = vpop.f32.mrf.mxu0
  %v619 = vadd.f32 0.0, %v618
  %v620 = vpop.f32.mrf.mxu0
  %621 = vmatprep.mubr.bf16.mxu0 0
  %622 = vmatmul.mubr.bf16.gmra.mxu0 %v470
  %v623 = vpop.f32.mrf.mxu0
  %v624 = vadd.f32 0.0, %v623
  %v625 = vpop.f32.mrf.mxu0
  %v626 = vpop.f32.mrf.mxu0
  %v627 = vadd.f32 0.0, %v626
  %v628 = vpop.f32.mrf.mxu0
  %629 = vmatprep.mubr.bf16.mxu0 0
  %630 = vmatmul.mubr.bf16.gmra.mxu0 %v471
  %v631 = vpop.f32.mrf.mxu0
  %v632 = vadd.f32 0.0, %v631
  %v633 = vpop.f32.mrf.mxu0
  %v634 = vpop.f32.mrf.mxu0
  %v635 = vadd.f32 0.0, %v634
  %v636 = vpop.f32.mrf.mxu0
  %637 = vmatprep.mubr.bf16.mxu0 0
  %638 = vmatmul.mubr.bf16.gmra.mxu0 %v472
  %v639 = vpop.f32.mrf.mxu0
  %v640 = vadd.f32 0.0, %v639
  %v641 = vpop.f32.mrf.mxu0
  %v642 = vpop.f32.mrf.mxu0
  %v643 = vadd.f32 0.0, %v642
  %v644 = vpop.f32.mrf.mxu0
  %645 = vmatprep.mubr.bf16.mxu0 0
  %646 = vmatmul.mubr.bf16.gmra.mxu0 %v473
  %v647 = vpop.f32.mrf.mxu0
  %v648 = vadd.f32 0.0, %v647
  %v649 = vpop.f32.mrf.mxu0
  %v650 = vpop.f32.mrf.mxu0
  %v651 = vadd.f32 0.0, %v650
  %v652 = vpop.f32.mrf.mxu0
  %653 = vmatprep.mubr.bf16.mxu0 0
  %654 = vmatmul.mubr.bf16.gmra.mxu0 %v474
  %v655 = vpop.f32.mrf.mxu0
  %v656 = vadd.f32 0.0, %v655
  %v657 = vpop.f32.mrf.mxu0
  %v658 = vpop.f32.mrf.mxu0
  %v659 = vadd.f32 0.0, %v658
  %v660 = vpop.f32.mrf.mxu0
  %661 = vmatprep.mubr.bf16.mxu0 0
  %662 = vmatmul.mubr.bf16.gmra.mxu0 %v475
  %v663 = vpop.f32.mrf.mxu0
  %v664 = vadd.f32 0.0, %v663
  %v665 = vpop.f32.mrf.mxu0
  %v666 = vpop.f32.mrf.mxu0
  %v667 = vadd.f32 0.0, %v666
  %v668 = vpop.f32.mrf.mxu0
  %669 = vmatprep.mubr.bf16.mxu0 0
  %670 = vmatmul.mubr.bf16.gmra.mxu0 %v476
  %v671 = vpop.f32.mrf.mxu0
  %v672 = vadd.f32 0.0, %v671
  %v673 = vpop.f32.mrf.mxu0
  %v674 = vpop.f32.mrf.mxu0
  %v675 = vadd.f32 0.0, %v674
  %v676 = vpop.f32.mrf.mxu0
  %677 = vmatprep.mubr.bf16.mxu0 0
  %678 = vmatmul.mubr.bf16.gmra.mxu0 %v477
  %v679 = vpop.f32.mrf.mxu0
  %v680 = vadd.f32 0.0, %v679
  %v681 = vpop.f32.mrf.mxu0
  %v682 = vpop.f32.mrf.mxu0
  %v683 = vadd.f32 0.0, %v682
  %v684 = vpop.f32.mrf.mxu0
  %685 = vmatprep.mubr.bf16.mxu0 0
  %686 = vmatmul.mubr.bf16.gmra.mxu0 %v478
  %v687 = vpop.f32.mrf.mxu0
  %v688 = vadd.f32 0.0, %v687
  %v689 = vpop.f32.mrf.mxu0
  %v690 = vpop.f32.mrf.mxu0
  %v691 = vadd.f32 0.0, %v690
  %v692 = vpop.f32.mrf.mxu0
  %693 = vmatprep.mubr.bf16.mxu0 0
  %694 = vmatmul.mubr.bf16.gmra.mxu0 %v479
  %v695 = vpop.f32.mrf.mxu0
  %v696 = vadd.f32 0.0, %v695
  %v697 = vpop.f32.mrf.mxu0
  %v698 = vpop.f32.mrf.mxu0
  %v699 = vadd.f32 0.0, %v698
  %v700 = vpop.f32.mrf.mxu0
  %701 = vmatprep.mubr.bf16.mxu0 0
  %702 = vmatmul.mubr.bf16.gmra.mxu0 %v480
  %v703 = vpop.f32.mrf.mxu0
  %v704 = vadd.f32 0.0, %v703
  %v705 = vpop.f32.mrf.mxu0
  %v706 = vpop.f32.mrf.mxu0
  %v707 = vadd.f32 0.0, %v706
  %v708 = vpop.f32.mrf.mxu0
  %709 = vmatprep.mubr.bf16.mxu0 0
  %710 = vmatmul.mubr.bf16.gmra.mxu0 %v481
  %v711 = vpop.f32.mrf.mxu0
  %v712 = vadd.f32 0.0, %v711
  %v713 = vpop.f32.mrf.mxu0
  %v714 = vpop.f32.mrf.mxu0
  %v715 = vadd.f32 0.0, %v714
  %v716 = vpop.f32.mrf.mxu0
  %717 = vmatprep.mubr.bf16.mxu0 0
  %718 = vmatmul.mubr.bf16.gmra.mxu0 %v482
  %v719 = vpop.f32.mrf.mxu0
  %v720 = vadd.f32 0.0, %v719
  %v721 = vpop.f32.mrf.mxu0
  %v722 = vpop.f32.mrf.mxu0
  %v723 = vadd.f32 0.0, %v722
  %v724 = vpop.f32.mrf.mxu0
  %725 = vmatprep.mubr.bf16.mxu0 0
  %726 = vmatmul.mubr.bf16.gmra.mxu0 %v483
  %v727 = vpop.f32.mrf.mxu0
  %v728 = vadd.f32 0.0, %v727
  %v729 = vpop.f32.mrf.mxu0
  %v730 = vpop.f32.mrf.mxu0
  %v731 = vadd.f32 0.0, %v730
  %v732 = vpop.f32.mrf.mxu0
  %733 = vmatprep.mubr.bf16.mxu0 0
  %734 = vmatmul.mubr.bf16.gmra.mxu0 %v484
  %v735 = vpop.f32.mrf.mxu0
  %v736 = vadd.f32 0.0, %v735
  %v737 = vpop.f32.mrf.mxu0
  %v738 = vpop.f32.mrf.mxu0
  %v739 = vadd.f32 0.0, %v738
  %v740 = vpop.f32.mrf.mxu0
  %741 = vmatprep.mubr.bf16.mxu0 0
  %742 = vmatmul.mubr.bf16.gmra.mxu0 %v485
  %v743 = vpop.f32.mrf.mxu0
  %v744 = vadd.f32 0.0, %v743
  %v745 = vpop.f32.mrf.mxu0
  %v746 = vpop.f32.mrf.mxu0
  %v747 = vadd.f32 0.0, %v746
  %v748 = vpop.f32.mrf.mxu0
  %749 = vmatprep.mubr.bf16.mxu0 0
  %750 = vmatmul.mubr.bf16.gmra.mxu0 %v486
  %v751 = vpop.f32.mrf.mxu0
  %v752 = vadd.f32 0.0, %v751
  %v753 = vpop.f32.mrf.mxu0
  %v754 = vpop.f32.mrf.mxu0
  %v755 = vadd.f32 0.0, %v754
  %v756 = vpop.f32.mrf.mxu0
  %757 = vmatprep.mubr.bf16.mxu0 0
  %758 = vmatmul.mubr.bf16.gmra.mxu0 %v487
  %v759 = vpop.f32.mrf.mxu0
  %v760 = vadd.f32 0.0, %v759
  %v761 = vpop.f32.mrf.mxu0
  %v762 = vpop.f32.mrf.mxu0
  %v763 = vadd.f32 0.0, %v762
  %v764 = vpop.f32.mrf.mxu0
  %765 = vmatprep.mubr.bf16.mxu0 0
  %766 = vmatmul.mubr.bf16.gmra.mxu0 %v488
  %v767 = vpop.f32.mrf.mxu0
  %v768 = vadd.f32 0.0, %v767
  %v769 = vpop.f32.mrf.mxu0
  %v770 = vpop.f32.mrf.mxu0
  %v771 = vadd.f32 0.0, %v770
  %v772 = vpop.f32.mrf.mxu0
  %773 = vmatprep.mubr.bf16.mxu0 0
  %774 = vmatmul.mubr.bf16.gmra.mxu0 %v489
  %v775 = vpop.f32.mrf.mxu0
  %v776 = vadd.f32 0.0, %v775
  %v777 = vpop.f32.mrf.mxu0
  %v778 = vpop.f32.mrf.mxu0
  %v779 = vadd.f32 0.0, %v778
  %v780 = vpop.f32.mrf.mxu0
  %781 = vmatprep.mubr.bf16.mxu0 0
  %782 = vmatmul.mubr.bf16.gmra.mxu0 %v490
  %v783 = vpop.f32.mrf.mxu0
  %v784 = vadd.f32 0.0, %v783
  %v785 = vpop.f32.mrf.mxu0
  %v786 = vpop.f32.mrf.mxu0
  %v787 = vadd.f32 0.0, %v786
  %v788 = vpop.f32.mrf.mxu0
  %789 = vmatprep.mubr.bf16.mxu0 0
  %790 = vmatmul.mubr.bf16.gmra.mxu0 %v491
  %v791 = vpop.f32.mrf.mxu0
  %v792 = vadd.f32 0.0, %v791
  %v793 = vpop.f32.mrf.mxu0
  %v794 = vpop.f32.mrf.mxu0
  %v795 = vadd.f32 0.0, %v794
  %v796 = vpop.f32.mrf.mxu0
  %797 = vmatprep.mubr.bf16.mxu0 0
  %798 = vmatmul.mubr.bf16.gmra.mxu0 %v492
  %v799 = vpop.f32.mrf.mxu0
  %v800 = vadd.f32 0.0, %v799
  %v801 = vpop.f32.mrf.mxu0
  %v802 = vpop.f32.mrf.mxu0
  %v803 = vadd.f32 0.0, %v802
  %v804 = vpop.f32.mrf.mxu0
  %805 = vmatprep.mubr.bf16.mxu0 0
  %806 = vmatmul.mubr.bf16.gmra.mxu0 %v493
  %v807 = vpop.f32.mrf.mxu0
  %v808 = vadd.f32 0.0, %v807
  %v809 = vpop.f32.mrf.mxu0
  %v810 = vpop.f32.mrf.mxu0
  %v811 = vadd.f32 0.0, %v810
  %v812 = vpop.f32.mrf.mxu0
  %813 = vmatprep.mubr.bf16.mxu0 0
  %814 = vmatmul.mubr.bf16.gmra.mxu0 %v494
  %v815 = vpop.f32.mrf.mxu0
  %v816 = vadd.f32 0.0, %v815
  %v817 = vpop.f32.mrf.mxu0
  %v818 = vpop.f32.mrf.mxu0
  %v819 = vadd.f32 0.0, %v818
  %v820 = vpop.f32.mrf.mxu0
  %821 = vmatprep.mubr.bf16.mxu0 0
  %822 = vmatmul.mubr.bf16.gmra.mxu0 %v495
  %v823 = vpop.f32.mrf.mxu0
  %v824 = vadd.f32 0.0, %v823
  %v825 = vpop.f32.mrf.mxu0
  %v826 = vpop.f32.mrf.mxu0
  %v827 = vadd.f32 0.0, %v826
  %v828 = vpop.f32.mrf.mxu0
  %829 = vmatprep.mubr.bf16.mxu0 0
  %830 = vmatmul.mubr.bf16.gmra.mxu0 %v496
  %v831 = vpop.f32.mrf.mxu0
  %v832 = vadd.f32 0.0, %v831
  %v833 = vpop.f32.mrf.mxu0
  %v834 = vpop.f32.mrf.mxu0
  %v835 = vadd.f32 0.0, %v834
  %v836 = vpop.f32.mrf.mxu0
  %837 = vmatprep.mubr.bf16.mxu0 0
  %838 = vmatmul.mubr.bf16.gmra.mxu0 %v497
  %v839 = vpop.f32.mrf.mxu0
  %v840 = vadd.f32 0.0, %v839
  %v841 = vpop.f32.mrf.mxu0
  %v842 = vpop.f32.mrf.mxu0
  %v843 = vadd.f32 0.0, %v842
  %v844 = vpop.f32.mrf.mxu0
  %845 = vmatprep.mubr.bf16.mxu0 0
  %846 = vmatmul.mubr.bf16.gmra.mxu0 %v498
  %v847 = vpop.f32.mrf.mxu0
  %v848 = vadd.f32 0.0, %v847
  %v849 = vpop.f32.mrf.mxu0
  %v850 = vpop.f32.mrf.mxu0
  %v851 = vadd.f32 0.0, %v850
  %v852 = vpop.f32.mrf.mxu0
  %853 = vmatprep.mubr.bf16.mxu0 0
  %854 = vmatmul.mubr.bf16.gmra.mxu0 %v499
  %v855 = vpop.f32.mrf.mxu0
  %v856 = vadd.f32 0.0, %v855
  %v857 = vpop.f32.mrf.mxu0
  %v858 = vpop.f32.mrf.mxu0
  %v859 = vadd.f32 0.0, %v858
  %v860 = vpop.f32.mrf.mxu0
  %861 = vmatprep.mubr.bf16.mxu0 0
  %862 = vmatmul.mubr.bf16.gmra.mxu0 %v500
  %v863 = vpop.f32.mrf.mxu0
  %v864 = vadd.f32 0.0, %v863
  %v865 = vpop.f32.mrf.mxu0
  %v866 = vpop.f32.mrf.mxu0
  %v867 = vadd.f32 0.0, %v866
  %v868 = vpop.f32.mrf.mxu0
  %869 = vdwg.mxu0
  %v870 = vadd.f32 %v616, %v619
  %v871 = vadd.f32 %v870, %v624
  %v872 = vadd.f32 %v871, %v627
  %v873 = vadd.f32 %v872, %v632
  %v874 = vadd.f32 %v873, %v635
  %v875 = vadd.f32 %v874, %v640
  %v876 = vadd.f32 %v875, %v643
  %v877 = vadd.f32 %v876, %v648
  %v878 = vadd.f32 %v877, %v651
  %v879 = vadd.f32 %v878, %v656
  %v880 = vadd.f32 %v879, %v659
  %v881 = vadd.f32 %v880, %v664
  %v882 = vadd.f32 %v881, %v667
  %v883 = vadd.f32 %v882, %v672
  %v884 = vadd.f32 %v883, %v675
  %v885 = vadd.f32 %v884, %v680
  %v886 = vadd.f32 %v885, %v683
  %v887 = vadd.f32 %v886, %v688
  %v888 = vadd.f32 %v887, %v691
  %v889 = vadd.f32 %v888, %v696
  %v890 = vadd.f32 %v889, %v699
  %v891 = vadd.f32 %v890, %v704
  %v892 = vadd.f32 %v891, %v707
  %v893 = vadd.f32 %v892, %v712
  %v894 = vadd.f32 %v893, %v715
  %v895 = vadd.f32 %v894, %v720
  %v896 = vadd.f32 %v895, %v723
  %v897 = vadd.f32 %v896, %v728
  %v898 = vadd.f32 %v897, %v731
  %v899 = vadd.f32 %v898, %v736
  %v900 = vadd.f32 %v899, %v739
  %v901 = vadd.f32 %v900, %v744
  %v902 = vadd.f32 %v901, %v747
  %v903 = vadd.f32 %v902, %v752
  %v904 = vadd.f32 %v903, %v755
  %v905 = vadd.f32 %v904, %v760
  %v906 = vadd.f32 %v905, %v763
  %v907 = vadd.f32 %v906, %v768
  %v908 = vadd.f32 %v907, %v771
  %v909 = vadd.f32 %v908, %v776
  %v910 = vadd.f32 %v909, %v779
  %v911 = vadd.f32 %v910, %v784
  %v912 = vadd.f32 %v911, %v787
  %v913 = vadd.f32 %v912, %v792
  %v914 = vadd.f32 %v913, %v795
  %v915 = vadd.f32 %v914, %v800
  %v916 = vadd.f32 %v915, %v803
  %v917 = vadd.f32 %v916, %v808
  %v918 = vadd.f32 %v917, %v811
  %v919 = vadd.f32 %v918, %v816
  %v920 = vadd.f32 %v919, %v819
  %v921 = vadd.f32 %v920, %v824
  %v922 = vadd.f32 %v921, %v827
  %v923 = vadd.f32 %v922, %v832
  %v924 = vadd.f32 %v923, %v835
  %v925 = vadd.f32 %v924, %v840
  %v926 = vadd.f32 %v925, %v843
  %v927 = vadd.f32 %v926, %v848
  %v928 = vadd.f32 %v927, %v851
  %v929 = vadd.f32 %v928, %v856
  %v930 = vadd.f32 %v929, %v859
  %v931 = vadd.f32 %v930, %v864
  %v932 = vadd.f32 %v931, %v867
  %v933 = vrot.slane %v932, 4
  %v934 = vadd.f32 %v932, %v933
  %v935 = vrot.slane %v934, 2
  %v936 = vadd.f32 %v934, %v935
  %v937 = vrot.slane %v936, 1
  %v938 = vadd.f32 %v936, %v937
  %v939 = vmul.f32 %v938, 0.001953125
  %v940 = vmul.f32 %v616, %v616
  %v941 = vmul.f32 %v619, %v619
  %v942 = vmul.f32 %v624, %v624
  %v943 = vmul.f32 %v627, %v627
  %v944 = vmul.f32 %v632, %v632
  %v945 = vmul.f32 %v635, %v635
  %v946 = vmul.f32 %v640, %v640
  %v947 = vmul.f32 %v643, %v643
  %v948 = vmul.f32 %v648, %v648
  %v949 = vmul.f32 %v651, %v651
  %v950 = vmul.f32 %v656, %v656
  %v951 = vmul.f32 %v659, %v659
  %v952 = vmul.f32 %v664, %v664
  %v953 = vmul.f32 %v667, %v667
  %v954 = vmul.f32 %v672, %v672
  %v955 = vmul.f32 %v675, %v675
  %v956 = vmul.f32 %v680, %v680
  %v957 = vmul.f32 %v683, %v683
  %v958 = vmul.f32 %v688, %v688
  %v959 = vmul.f32 %v691, %v691
  %v960 = vmul.f32 %v696, %v696
  %v961 = vmul.f32 %v699, %v699
  %v962 = vmul.f32 %v704, %v704
  %v963 = vmul.f32 %v707, %v707
  %v964 = vmul.f32 %v712, %v712
  %v965 = vmul.f32 %v715, %v715
  %v966 = vmul.f32 %v720, %v720
  %v967 = vmul.f32 %v723, %v723
  %v968 = vmul.f32 %v728, %v728
  %v969 = vmul.f32 %v731, %v731
  %v970 = vmul.f32 %v736, %v736
  %v971 = vmul.f32 %v739, %v739
  %v972 = vmul.f32 %v744, %v744
  %v973 = vmul.f32 %v747, %v747
  %v974 = vmul.f32 %v752, %v752
  %v975 = vmul.f32 %v755, %v755
  %v976 = vmul.f32 %v760, %v760
  %v977 = vmul.f32 %v763, %v763
  %v978 = vmul.f32 %v768, %v768
  %v979 = vmul.f32 %v771, %v771
  %v980 = vmul.f32 %v776, %v776
  %v981 = vmul.f32 %v779, %v779
  %v982 = vmul.f32 %v784, %v784
  %v983 = vmul.f32 %v787, %v787
  %v984 = vmul.f32 %v792, %v792
  %v985 = vmul.f32 %v795, %v795
  %v986 = vmul.f32 %v800, %v800
  %v987 = vmul.f32 %v803, %v803
  %v988 = vmul.f32 %v808, %v808
  %v989 = vmul.f32 %v811, %v811
  %v990 = vmul.f32 %v816, %v816
  %v991 = vmul.f32 %v819, %v819
  %v992 = vmul.f32 %v824, %v824
  %v993 = vmul.f32 %v827, %v827
  %v994 = vmul.f32 %v832, %v832
  %v995 = vmul.f32 %v835, %v835
  %v996 = vmul.f32 %v840, %v840
  %v997 = vmul.f32 %v843, %v843
  %v998 = vmul.f32 %v848, %v848
  %v999 = vmul.f32 %v851, %v851
  %v1000 = vmul.f32 %v856, %v856
  %v1001 = vmul.f32 %v859, %v859
  %v1002 = vmul.f32 %v864, %v864
  %v1003 = vmul.f32 %v867, %v867
  %v1004 = vadd.f32 %v940, %v941
  %v1005 = vadd.f32 %v1004, %v942
  %v1006 = vadd.f32 %v1005, %v943
  %v1007 = vadd.f32 %v1006, %v944
  %v1008 = vadd.f32 %v1007, %v945
  %v1009 = vadd.f32 %v1008, %v946
  %v1010 = vadd.f32 %v1009, %v947
  %v1011 = vadd.f32 %v1010, %v948
  %v1012 = vadd.f32 %v1011, %v949
  %v1013 = vadd.f32 %v1012, %v950
  %v1014 = vadd.f32 %v1013, %v951
  %v1015 = vadd.f32 %v1014, %v952
  %v1016 = vadd.f32 %v1015, %v953
  %v1017 = vadd.f32 %v1016, %v954
  %v1018 = vadd.f32 %v1017, %v955
  %v1019 = vadd.f32 %v1018, %v956
  %v1020 = vadd.f32 %v1019, %v957
  %v1021 = vadd.f32 %v1020, %v958
  %v1022 = vadd.f32 %v1021, %v959
  %v1023 = vadd.f32 %v1022, %v960
  %v1024 = vadd.f32 %v1023, %v961
  %v1025 = vadd.f32 %v1024, %v962
  %v1026 = vadd.f32 %v1025, %v963
  %v1027 = vadd.f32 %v1026, %v964
  %v1028 = vadd.f32 %v1027, %v965
  %v1029 = vadd.f32 %v1028, %v966
  %v1030 = vadd.f32 %v1029, %v967
  %v1031 = vadd.f32 %v1030, %v968
  %v1032 = vadd.f32 %v1031, %v969
  %v1033 = vadd.f32 %v1032, %v970
  %v1034 = vadd.f32 %v1033, %v971
  %v1035 = vadd.f32 %v1034, %v972
  %v1036 = vadd.f32 %v1035, %v973
  %v1037 = vadd.f32 %v1036, %v974
  %v1038 = vadd.f32 %v1037, %v975
  %v1039 = vadd.f32 %v1038, %v976
  %v1040 = vadd.f32 %v1039, %v977
  %v1041 = vadd.f32 %v1040, %v978
  %v1042 = vadd.f32 %v1041, %v979
  %v1043 = vadd.f32 %v1042, %v980
  %v1044 = vadd.f32 %v1043, %v981
  %v1045 = vadd.f32 %v1044, %v982
  %v1046 = vadd.f32 %v1045, %v983
  %v1047 = vadd.f32 %v1046, %v984
  %v1048 = vadd.f32 %v1047, %v985
  %v1049 = vadd.f32 %v1048, %v986
  %v1050 = vadd.f32 %v1049, %v987
  %v1051 = vadd.f32 %v1050, %v988
  %v1052 = vadd.f32 %v1051, %v989
  %v1053 = vadd.f32 %v1052, %v990
  %v1054 = vadd.f32 %v1053, %v991
  %v1055 = vadd.f32 %v1054, %v992
  %v1056 = vadd.f32 %v1055, %v993
  %v1057 = vadd.f32 %v1056, %v994
  %v1058 = vadd.f32 %v1057, %v995
  %v1059 = vadd.f32 %v1058, %v996
  %v1060 = vadd.f32 %v1059, %v997
  %v1061 = vadd.f32 %v1060, %v998
  %v1062 = vadd.f32 %v1061, %v999
  %v1063 = vadd.f32 %v1062, %v1000
  %v1064 = vadd.f32 %v1063, %v1001
  %v1065 = vadd.f32 %v1064, %v1002
  %v1066 = vadd.f32 %v1065, %v1003
  %v1067 = vrot.slane %v1066, 4
  %v1068 = vadd.f32 %v1066, %v1067
  %v1069 = vrot.slane %v1068, 2
  %v1070 = vadd.f32 %v1068, %v1069
  %v1071 = vrot.slane %v1070, 1
  %v1072 = vadd.f32 %v1070, %v1071
  %v1073 = vmul.f32 %v1072, 0.001953125
  %v1074 = vmul.f32 %v939, %v939
  %v1075 = vsub.f32 %v1073, %v1074
  %v1076 = vmax.f32 %v1075, 0.0
  %v1077 = vld [vmem:[%s3] sm:$0x1]
  %v1078 = vadd.f32 %v1076, 1e-05
  %v1079 = vrsqrt.pop %v1078
  %v1080 = vmul.f32 %v1077, %v1079
  %v1081 = vld [vmem:[%s4] sm:$0x1]
  %v1082 = vmul.f32 %v939, %v1080
  %v1083 = vsub.f32 %v1081, %v1082
  %v1085 = vlaneseq
  %v1086 = vshrl.u32 %v1085, 7
  %v1087 = vsub.s32 0, %v1086
  %v1088 = vrot.slane %v1080, %v1087
  %v1090 = vmul.f32 %v616, %v1088
  %v1091 = vmul.f32 %v619, %v1088
  %v1092 = vmul.f32 %v624, %v1088
  %v1093 = vmul.f32 %v627, %v1088
  %v1094 = vmul.f32 %v632, %v1088
  %v1095 = vmul.f32 %v635, %v1088
  %v1096 = vmul.f32 %v640, %v1088
  %v1097 = vmul.f32 %v643, %v1088
  %v1098 = vmul.f32 %v648, %v1088
  %v1099 = vmul.f32 %v651, %v1088
  %v1100 = vmul.f32 %v656, %v1088
  %v1101 = vmul.f32 %v659, %v1088
  %v1102 = vmul.f32 %v664, %v1088
  %v1103 = vmul.f32 %v667, %v1088
  %v1104 = vmul.f32 %v672, %v1088
  %v1105 = vmul.f32 %v675, %v1088
  %v1106 = vmul.f32 %v680, %v1088
  %v1107 = vmul.f32 %v683, %v1088
  %v1108 = vmul.f32 %v688, %v1088
  %v1109 = vmul.f32 %v691, %v1088
  %v1110 = vmul.f32 %v696, %v1088
  %v1111 = vmul.f32 %v699, %v1088
  %v1112 = vmul.f32 %v704, %v1088
  %v1113 = vmul.f32 %v707, %v1088
  %v1114 = vmul.f32 %v712, %v1088
  %v1115 = vmul.f32 %v715, %v1088
  %v1116 = vmul.f32 %v720, %v1088
  %v1117 = vmul.f32 %v723, %v1088
  %v1118 = vmul.f32 %v728, %v1088
  %v1119 = vmul.f32 %v731, %v1088
  %v1120 = vmul.f32 %v736, %v1088
  %v1121 = vmul.f32 %v739, %v1088
  %v1122 = vmul.f32 %v744, %v1088
  %v1123 = vmul.f32 %v747, %v1088
  %v1124 = vmul.f32 %v752, %v1088
  %v1125 = vmul.f32 %v755, %v1088
  %v1126 = vmul.f32 %v760, %v1088
  %v1127 = vmul.f32 %v763, %v1088
  %v1128 = vmul.f32 %v768, %v1088
  %v1129 = vmul.f32 %v771, %v1088
  %v1130 = vmul.f32 %v776, %v1088
  %v1131 = vmul.f32 %v779, %v1088
  %v1132 = vmul.f32 %v784, %v1088
  %v1133 = vmul.f32 %v787, %v1088
  %v1134 = vmul.f32 %v792, %v1088
  %v1135 = vmul.f32 %v795, %v1088
  %v1136 = vmul.f32 %v800, %v1088
  %v1137 = vmul.f32 %v803, %v1088
  %v1138 = vmul.f32 %v808, %v1088
  %v1139 = vmul.f32 %v811, %v1088
  %v1140 = vmul.f32 %v816, %v1088
  %v1141 = vmul.f32 %v819, %v1088
  %v1142 = vmul.f32 %v824, %v1088
  %v1143 = vmul.f32 %v827, %v1088
  %v1144 = vmul.f32 %v832, %v1088
  %v1145 = vmul.f32 %v835, %v1088
  %v1146 = vmul.f32 %v840, %v1088
  %v1147 = vmul.f32 %v843, %v1088
  %v1148 = vmul.f32 %v848, %v1088
  %v1149 = vmul.f32 %v851, %v1088
  %v1150 = vmul.f32 %v856, %v1088
  %v1151 = vmul.f32 %v859, %v1088
  %v1152 = vmul.f32 %v864, %v1088
  %v1153 = vmul.f32 %v867, %v1088
  %v1155 = vlaneseq
  %v1156 = vshrl.u32 %v1155, 7
  %v1157 = vsub.s32 0, %v1156
  %v1158 = vrot.slane %v1083, %v1157
  %v1160 = vadd.f32 %v1090, %v1158
  %v1161 = vadd.f32 %v1091, %v1158
  %v1162 = vadd.f32 %v1092, %v1158
  %v1163 = vadd.f32 %v1093, %v1158
  %v1164 = vadd.f32 %v1094, %v1158
  %v1165 = vadd.f32 %v1095, %v1158
  %v1166 = vadd.f32 %v1096, %v1158
  %v1167 = vadd.f32 %v1097, %v1158
  %v1168 = vadd.f32 %v1098, %v1158
  %v1169 = vadd.f32 %v1099, %v1158
  %v1170 = vadd.f32 %v1100, %v1158
  %v1171 = vadd.f32 %v1101, %v1158
  %v1172 = vadd.f32 %v1102, %v1158
  %v1173 = vadd.f32 %v1103, %v1158
  %v1174 = vadd.f32 %v1104, %v1158
  %v1175 = vadd.f32 %v1105, %v1158
  %v1176 = vadd.f32 %v1106, %v1158
  %v1177 = vadd.f32 %v1107, %v1158
  %v1178 = vadd.f32 %v1108, %v1158
  %v1179 = vadd.f32 %v1109, %v1158
  %v1180 = vadd.f32 %v1110, %v1158
  %v1181 = vadd.f32 %v1111, %v1158
  %v1182 = vadd.f32 %v1112, %v1158
  %v1183 = vadd.f32 %v1113, %v1158
  %v1184 = vadd.f32 %v1114, %v1158
  %v1185 = vadd.f32 %v1115, %v1158
  %v1186 = vadd.f32 %v1116, %v1158
  %v1187 = vadd.f32 %v1117, %v1158
  %v1188 = vadd.f32 %v1118, %v1158
  %v1189 = vadd.f32 %v1119, %v1158
  %v1190 = vadd.f32 %v1120, %v1158
  %v1191 = vadd.f32 %v1121, %v1158
  %v1192 = vadd.f32 %v1122, %v1158
  %v1193 = vadd.f32 %v1123, %v1158
  %v1194 = vadd.f32 %v1124, %v1158
  %v1195 = vadd.f32 %v1125, %v1158
  %v1196 = vadd.f32 %v1126, %v1158
  %v1197 = vadd.f32 %v1127, %v1158
  %v1198 = vadd.f32 %v1128, %v1158
  %v1199 = vadd.f32 %v1129, %v1158
  %v1200 = vadd.f32 %v1130, %v1158
  %v1201 = vadd.f32 %v1131, %v1158
  %v1202 = vadd.f32 %v1132, %v1158
  %v1203 = vadd.f32 %v1133, %v1158
  %v1204 = vadd.f32 %v1134, %v1158
  %v1205 = vadd.f32 %v1135, %v1158
  %v1206 = vadd.f32 %v1136, %v1158
  %v1207 = vadd.f32 %v1137, %v1158
  %v1208 = vadd.f32 %v1138, %v1158
  %v1209 = vadd.f32 %v1139, %v1158
  %v1210 = vadd.f32 %v1140, %v1158
  %v1211 = vadd.f32 %v1141, %v1158
  %v1212 = vadd.f32 %v1142, %v1158
  %v1213 = vadd.f32 %v1143, %v1158
  %v1214 = vadd.f32 %v1144, %v1158
  %v1215 = vadd.f32 %v1145, %v1158
  %v1216 = vadd.f32 %v1146, %v1158
  %v1217 = vadd.f32 %v1147, %v1158
  %v1218 = vadd.f32 %v1148, %v1158
  %v1219 = vadd.f32 %v1149, %v1158
  %v1220 = vadd.f32 %v1150, %v1158
  %v1221 = vadd.f32 %v1151, %v1158
  %v1222 = vadd.f32 %v1152, %v1158
  %v1223 = vadd.f32 %v1153, %v1158
  %v1224 = vmax.f32 %v1160, 0.0
  %v1225 = vmax.f32 %v1161, 0.0
  %v1226 = vmax.f32 %v1162, 0.0
  %v1227 = vmax.f32 %v1163, 0.0
  %v1228 = vmax.f32 %v1164, 0.0
  %v1229 = vmax.f32 %v1165, 0.0
  %v1230 = vmax.f32 %v1166, 0.0
  %v1231 = vmax.f32 %v1167, 0.0
  %v1232 = vmax.f32 %v1168, 0.0
  %v1233 = vmax.f32 %v1169, 0.0
  %v1234 = vmax.f32 %v1170, 0.0
  %v1235 = vmax.f32 %v1171, 0.0
  %v1236 = vmax.f32 %v1172, 0.0
  %v1237 = vmax.f32 %v1173, 0.0
  %v1238 = vmax.f32 %v1174, 0.0
  %v1239 = vmax.f32 %v1175, 0.0
  %v1240 = vmax.f32 %v1176, 0.0
  %v1241 = vmax.f32 %v1177, 0.0
  %v1242 = vmax.f32 %v1178, 0.0
  %v1243 = vmax.f32 %v1179, 0.0
  %v1244 = vmax.f32 %v1180, 0.0
  %v1245 = vmax.f32 %v1181, 0.0
  %v1246 = vmax.f32 %v1182, 0.0
  %v1247 = vmax.f32 %v1183, 0.0
  %v1248 = vmax.f32 %v1184, 0.0
  %v1249 = vmax.f32 %v1185, 0.0
  %v1250 = vmax.f32 %v1186, 0.0
  %v1251 = vmax.f32 %v1187, 0.0
  %v1252 = vmax.f32 %v1188, 0.0
  %v1253 = vmax.f32 %v1189, 0.0
  %v1254 = vmax.f32 %v1190, 0.0
  %v1255 = vmax.f32 %v1191, 0.0
  %v1256 = vmax.f32 %v1192, 0.0
  %v1257 = vmax.f32 %v1193, 0.0
  %v1258 = vmax.f32 %v1194, 0.0
  %v1259 = vmax.f32 %v1195, 0.0
  %v1260 = vmax.f32 %v1196, 0.0
  %v1261 = vmax.f32 %v1197, 0.0
  %v1262 = vmax.f32 %v1198, 0.0
  %v1263 = vmax.f32 %v1199, 0.0
  %v1264 = vmax.f32 %v1200, 0.0
  %v1265 = vmax.f32 %v1201, 0.0
  %v1266 = vmax.f32 %v1202, 0.0
  %v1267 = vmax.f32 %v1203, 0.0
  %v1268 = vmax.f32 %v1204, 0.0
  %v1269 = vmax.f32 %v1205, 0.0
  %v1270 = vmax.f32 %v1206, 0.0
  %v1271 = vmax.f32 %v1207, 0.0
  %v1272 = vmax.f32 %v1208, 0.0
  %v1273 = vmax.f32 %v1209, 0.0
  %v1274 = vmax.f32 %v1210, 0.0
  %v1275 = vmax.f32 %v1211, 0.0
  %v1276 = vmax.f32 %v1212, 0.0
  %v1277 = vmax.f32 %v1213, 0.0
  %v1278 = vmax.f32 %v1214, 0.0
  %v1279 = vmax.f32 %v1215, 0.0
  %v1280 = vmax.f32 %v1216, 0.0
  %v1281 = vmax.f32 %v1217, 0.0
  %v1282 = vmax.f32 %v1218, 0.0
  %v1283 = vmax.f32 %v1219, 0.0
  %v1284 = vmax.f32 %v1220, 0.0
  %v1285 = vmax.f32 %v1221, 0.0
  %v1286 = vmax.f32 %v1222, 0.0
  %v1287 = vmax.f32 %v1223, 0.0
  %v1288 = vpack.c.bf16 %v1225, %v1224
  %v1289 = vpack.c.bf16 %v1227, %v1226
  %v1290 = vpack.c.bf16 %v1229, %v1228
  %v1291 = vpack.c.bf16 %v1231, %v1230
  %v1292 = vpack.c.bf16 %v1233, %v1232
  %v1293 = vpack.c.bf16 %v1235, %v1234
  %v1294 = vpack.c.bf16 %v1237, %v1236
  %v1295 = vpack.c.bf16 %v1239, %v1238
  %v1296 = vpack.c.bf16 %v1241, %v1240
  %v1297 = vpack.c.bf16 %v1243, %v1242
  %v1298 = vpack.c.bf16 %v1245, %v1244
  %v1299 = vpack.c.bf16 %v1247, %v1246
  %v1300 = vpack.c.bf16 %v1249, %v1248
  %v1301 = vpack.c.bf16 %v1251, %v1250
  %v1302 = vpack.c.bf16 %v1253, %v1252
  %v1303 = vpack.c.bf16 %v1255, %v1254
  %v1304 = vpack.c.bf16 %v1257, %v1256
  %v1305 = vpack.c.bf16 %v1259, %v1258
  %v1306 = vpack.c.bf16 %v1261, %v1260
  %v1307 = vpack.c.bf16 %v1263, %v1262
  %v1308 = vpack.c.bf16 %v1265, %v1264
  %v1309 = vpack.c.bf16 %v1267, %v1266
  %v1310 = vpack.c.bf16 %v1269, %v1268
  %v1311 = vpack.c.bf16 %v1271, %v1270
  %v1312 = vpack.c.bf16 %v1273, %v1272
  %v1313 = vpack.c.bf16 %v1275, %v1274
  %v1314 = vpack.c.bf16 %v1277, %v1276
  %v1315 = vpack.c.bf16 %v1279, %v1278
  %v1316 = vpack.c.bf16 %v1281, %v1280
  %v1317 = vpack.c.bf16 %v1283, %v1282
  %v1318 = vpack.c.bf16 %v1285, %v1284
  %v1319 = vpack.c.bf16 %v1287, %v1286
  %v1352 = vunpack.c.l.b16 %v1288
  %v1353 = vunpack.c.h.b16 %v1288
  %v1354 = vunpack.c.l.b16 %v1289
  %v1355 = vunpack.c.h.b16 %v1289
  %v1356 = vunpack.c.l.b16 %v1290
  %v1357 = vunpack.c.h.b16 %v1290
  %v1358 = vunpack.c.l.b16 %v1291
  %v1359 = vunpack.c.h.b16 %v1291
  %v1360 = vunpack.c.l.b16 %v1292
  %v1361 = vunpack.c.h.b16 %v1292
  %v1362 = vunpack.c.l.b16 %v1293
  %v1363 = vunpack.c.h.b16 %v1293
  %v1364 = vunpack.c.l.b16 %v1294
  %v1365 = vunpack.c.h.b16 %v1294
  %v1366 = vunpack.c.l.b16 %v1295
  %v1367 = vunpack.c.h.b16 %v1295
  %v1368 = vunpack.c.l.b16 %v1296
  %v1369 = vunpack.c.h.b16 %v1296
  %v1370 = vunpack.c.l.b16 %v1297
  %v1371 = vunpack.c.h.b16 %v1297
  %v1372 = vunpack.c.l.b16 %v1298
  %v1373 = vunpack.c.h.b16 %v1298
  %v1374 = vunpack.c.l.b16 %v1299
  %v1375 = vunpack.c.h.b16 %v1299
  %v1376 = vunpack.c.l.b16 %v1300
  %v1377 = vunpack.c.h.b16 %v1300
  %v1378 = vunpack.c.l.b16 %v1301
  %v1379 = vunpack.c.h.b16 %v1301
  %v1380 = vunpack.c.l.b16 %v1302
  %v1381 = vunpack.c.h.b16 %v1302
  %v1382 = vunpack.c.l.b16 %v1303
  %v1383 = vunpack.c.h.b16 %v1303
  %v1384 = vunpack.c.l.b16 %v1304
  %v1385 = vunpack.c.h.b16 %v1304
  %v1386 = vunpack.c.l.b16 %v1305
  %v1387 = vunpack.c.h.b16 %v1305
  %v1388 = vunpack.c.l.b16 %v1306
  %v1389 = vunpack.c.h.b16 %v1306
  %v1390 = vunpack.c.l.b16 %v1307
  %v1391 = vunpack.c.h.b16 %v1307
  %v1392 = vunpack.c.l.b16 %v1308
  %v1393 = vunpack.c.h.b16 %v1308
  %v1394 = vunpack.c.l.b16 %v1309
  %v1395 = vunpack.c.h.b16 %v1309
  %v1396 = vunpack.c.l.b16 %v1310
  %v1397 = vunpack.c.h.b16 %v1310
  %v1398 = vunpack.c.l.b16 %v1311
  %v1399 = vunpack.c.h.b16 %v1311
  %v1400 = vunpack.c.l.b16 %v1312
  %v1401 = vunpack.c.h.b16 %v1312
  %v1402 = vunpack.c.l.b16 %v1313
  %v1403 = vunpack.c.h.b16 %v1313
  %v1404 = vunpack.c.l.b16 %v1314
  %v1405 = vunpack.c.h.b16 %v1314
  %v1406 = vunpack.c.l.b16 %v1315
  %v1407 = vunpack.c.h.b16 %v1315
  %v1408 = vunpack.c.l.b16 %v1316
  %v1409 = vunpack.c.h.b16 %v1316
  %v1410 = vunpack.c.l.b16 %v1317
  %v1411 = vunpack.c.h.b16 %v1317
  %v1412 = vunpack.c.l.b16 %v1318
  %v1413 = vunpack.c.h.b16 %v1318
  %v1414 = vunpack.c.l.b16 %v1319
  %v1415 = vunpack.c.h.b16 %v1319
  %v1416 = vpack.c.b16 %v1352, %v1352
  %v1417 = vpack.c.b16 %v1353, %v1353
  %v1418 = vpack.c.b16 %v1354, %v1354
  %v1419 = vpack.c.b16 %v1355, %v1355
  %v1420 = vpack.c.b16 %v1356, %v1356
  %v1421 = vpack.c.b16 %v1357, %v1357
  %v1422 = vpack.c.b16 %v1358, %v1358
  %v1423 = vpack.c.b16 %v1359, %v1359
  %v1424 = vpack.c.b16 %v1360, %v1360
  %v1425 = vpack.c.b16 %v1361, %v1361
  %v1426 = vpack.c.b16 %v1362, %v1362
  %v1427 = vpack.c.b16 %v1363, %v1363
  %v1428 = vpack.c.b16 %v1364, %v1364
  %v1429 = vpack.c.b16 %v1365, %v1365
  %v1430 = vpack.c.b16 %v1366, %v1366
  %v1431 = vpack.c.b16 %v1367, %v1367
  %v1432 = vpack.c.b16 %v1368, %v1368
  %v1433 = vpack.c.b16 %v1369, %v1369
  %v1434 = vpack.c.b16 %v1370, %v1370
  %v1435 = vpack.c.b16 %v1371, %v1371
  %v1436 = vpack.c.b16 %v1372, %v1372
  %v1437 = vpack.c.b16 %v1373, %v1373
  %v1438 = vpack.c.b16 %v1374, %v1374
  %v1439 = vpack.c.b16 %v1375, %v1375
  %v1440 = vpack.c.b16 %v1376, %v1376
  %v1441 = vpack.c.b16 %v1377, %v1377
  %v1442 = vpack.c.b16 %v1378, %v1378
  %v1443 = vpack.c.b16 %v1379, %v1379
  %v1444 = vpack.c.b16 %v1380, %v1380
  %v1445 = vpack.c.b16 %v1381, %v1381
  %v1446 = vpack.c.b16 %v1382, %v1382
  %v1447 = vpack.c.b16 %v1383, %v1383
  %v1448 = vpack.c.b16 %v1384, %v1384
  %v1449 = vpack.c.b16 %v1385, %v1385
  %v1450 = vpack.c.b16 %v1386, %v1386
  %v1451 = vpack.c.b16 %v1387, %v1387
  %v1452 = vpack.c.b16 %v1388, %v1388
  %v1453 = vpack.c.b16 %v1389, %v1389
  %v1454 = vpack.c.b16 %v1390, %v1390
  %v1455 = vpack.c.b16 %v1391, %v1391
  %v1456 = vpack.c.b16 %v1392, %v1392
  %v1457 = vpack.c.b16 %v1393, %v1393
  %v1458 = vpack.c.b16 %v1394, %v1394
  %v1459 = vpack.c.b16 %v1395, %v1395
  %v1460 = vpack.c.b16 %v1396, %v1396
  %v1461 = vpack.c.b16 %v1397, %v1397
  %v1462 = vpack.c.b16 %v1398, %v1398
  %v1463 = vpack.c.b16 %v1399, %v1399
  %v1464 = vpack.c.b16 %v1400, %v1400
  %v1465 = vpack.c.b16 %v1401, %v1401
  %v1466 = vpack.c.b16 %v1402, %v1402
  %v1467 = vpack.c.b16 %v1403, %v1403
  %v1468 = vpack.c.b16 %v1404, %v1404
  %v1469 = vpack.c.b16 %v1405, %v1405
  %v1470 = vpack.c.b16 %v1406, %v1406
  %v1471 = vpack.c.b16 %v1407, %v1407
  %v1472 = vpack.c.b16 %v1408, %v1408
  %v1473 = vpack.c.b16 %v1409, %v1409
  %v1474 = vpack.c.b16 %v1410, %v1410
  %v1475 = vpack.c.b16 %v1411, %v1411
  %v1476 = vpack.c.b16 %v1412, %v1412
  %v1477 = vpack.c.b16 %v1413, %v1413
  %v1478 = vpack.c.b16 %v1414, %v1414
  %v1479 = vpack.c.b16 %v1415, %v1415
  %vm1480 = vsmask.f32 4368
  %vm1481 = vmor %vm41, %vm1480
  %v1483 = vshrl.u32 %v1416, 16
  %v1485 = vrot.slane %v1483, 7
  %v1486 = vshll.u32 %v1416, 16
  %v1488 = vor.u32 %v1485, %v1486
  %v1489 = vrot.slane %v1485, 4
  %v1491 = vshrl.u32 %v1417, 16
  %v1493 = vrot.slane %v1491, 7
  %v1494 = vshll.u32 %v1417, 16
  %v1496 = vor.u32 %v1493, %v1494
  %v1497 = vsel %vm1481, %v1489, %v1496
  %v1498 = vrot.slane %v1493, 4
  %v1500 = vshrl.u32 %v1418, 16
  %v1502 = vrot.slane %v1500, 7
  %v1503 = vshll.u32 %v1418, 16
  %v1505 = vor.u32 %v1502, %v1503
  %v1506 = vrot.slane %v1502, 4
  %v1508 = vshrl.u32 %v1419, 16
  %v1510 = vrot.slane %v1508, 7
  %v1511 = vshll.u32 %v1419, 16
  %v1513 = vor.u32 %v1510, %v1511
  %v1514 = vsel %vm1481, %v1506, %v1513
  %v1515 = vrot.slane %v1510, 4
  %v1517 = vshrl.u32 %v1420, 16
  %v1519 = vrot.slane %v1517, 7
  %v1520 = vshll.u32 %v1420, 16
  %v1522 = vor.u32 %v1519, %v1520
  %v1523 = vrot.slane %v1519, 4
  %v1525 = vshrl.u32 %v1421, 16
  %v1527 = vrot.slane %v1525, 7
  %v1528 = vshll.u32 %v1421, 16
  %v1530 = vor.u32 %v1527, %v1528
  %v1531 = vsel %vm1481, %v1523, %v1530
  %v1532 = vrot.slane %v1527, 4
  %v1534 = vshrl.u32 %v1422, 16
  %v1536 = vrot.slane %v1534, 7
  %v1537 = vshll.u32 %v1422, 16
  %v1539 = vor.u32 %v1536, %v1537
  %v1540 = vrot.slane %v1536, 4
  %v1542 = vshrl.u32 %v1423, 16
  %v1544 = vrot.slane %v1542, 7
  %v1545 = vshll.u32 %v1423, 16
  %v1547 = vor.u32 %v1544, %v1545
  %v1548 = vsel %vm1481, %v1540, %v1547
  %v1549 = vrot.slane %v1544, 4
  %v1551 = vshrl.u32 %v1424, 16
  %v1553 = vrot.slane %v1551, 7
  %v1554 = vshll.u32 %v1424, 16
  %v1556 = vor.u32 %v1553, %v1554
  %v1557 = vrot.slane %v1553, 4
  %v1559 = vshrl.u32 %v1425, 16
  %v1561 = vrot.slane %v1559, 7
  %v1562 = vshll.u32 %v1425, 16
  %v1564 = vor.u32 %v1561, %v1562
  %v1565 = vsel %vm1481, %v1557, %v1564
  %v1566 = vrot.slane %v1561, 4
  %v1568 = vshrl.u32 %v1426, 16
  %v1570 = vrot.slane %v1568, 7
  %v1571 = vshll.u32 %v1426, 16
  %v1573 = vor.u32 %v1570, %v1571
  %v1574 = vrot.slane %v1570, 4
  %v1576 = vshrl.u32 %v1427, 16
  %v1578 = vrot.slane %v1576, 7
  %v1579 = vshll.u32 %v1427, 16
  %v1581 = vor.u32 %v1578, %v1579
  %v1582 = vsel %vm1481, %v1574, %v1581
  %v1583 = vrot.slane %v1578, 4
  %v1585 = vshrl.u32 %v1428, 16
  %v1587 = vrot.slane %v1585, 7
  %v1588 = vshll.u32 %v1428, 16
  %v1590 = vor.u32 %v1587, %v1588
  %v1591 = vrot.slane %v1587, 4
  %v1593 = vshrl.u32 %v1429, 16
  %v1595 = vrot.slane %v1593, 7
  %v1596 = vshll.u32 %v1429, 16
  %v1598 = vor.u32 %v1595, %v1596
  %v1599 = vsel %vm1481, %v1591, %v1598
  %v1600 = vrot.slane %v1595, 4
  %v1602 = vshrl.u32 %v1430, 16
  %v1604 = vrot.slane %v1602, 7
  %v1605 = vshll.u32 %v1430, 16
  %v1607 = vor.u32 %v1604, %v1605
  %v1608 = vrot.slane %v1604, 4
  %v1610 = vshrl.u32 %v1431, 16
  %v1612 = vrot.slane %v1610, 7
  %v1613 = vshll.u32 %v1431, 16
  %v1615 = vor.u32 %v1612, %v1613
  %v1616 = vsel %vm1481, %v1608, %v1615
  %v1617 = vrot.slane %v1612, 4
  %v1619 = vshrl.u32 %v1432, 16
  %v1621 = vrot.slane %v1619, 7
  %v1622 = vshll.u32 %v1432, 16
  %v1624 = vor.u32 %v1621, %v1622
  %v1625 = vrot.slane %v1621, 4
  %v1627 = vshrl.u32 %v1433, 16
  %v1629 = vrot.slane %v1627, 7
  %v1630 = vshll.u32 %v1433, 16
  %v1632 = vor.u32 %v1629, %v1630
  %v1633 = vsel %vm1481, %v1625, %v1632
  %v1634 = vrot.slane %v1629, 4
  %v1636 = vshrl.u32 %v1434, 16
  %v1638 = vrot.slane %v1636, 7
  %v1639 = vshll.u32 %v1434, 16
  %v1641 = vor.u32 %v1638, %v1639
  %v1642 = vrot.slane %v1638, 4
  %v1644 = vshrl.u32 %v1435, 16
  %v1646 = vrot.slane %v1644, 7
  %v1647 = vshll.u32 %v1435, 16
  %v1649 = vor.u32 %v1646, %v1647
  %v1650 = vsel %vm1481, %v1642, %v1649
  %v1651 = vrot.slane %v1646, 4
  %v1653 = vshrl.u32 %v1436, 16
  %v1655 = vrot.slane %v1653, 7
  %v1656 = vshll.u32 %v1436, 16
  %v1658 = vor.u32 %v1655, %v1656
  %v1659 = vrot.slane %v1655, 4
  %v1661 = vshrl.u32 %v1437, 16
  %v1663 = vrot.slane %v1661, 7
  %v1664 = vshll.u32 %v1437, 16
  %v1666 = vor.u32 %v1663, %v1664
  %v1667 = vsel %vm1481, %v1659, %v1666
  %v1668 = vrot.slane %v1663, 4
  %v1670 = vshrl.u32 %v1438, 16
  %v1672 = vrot.slane %v1670, 7
  %v1673 = vshll.u32 %v1438, 16
  %v1675 = vor.u32 %v1672, %v1673
  %v1676 = vrot.slane %v1672, 4
  %v1678 = vshrl.u32 %v1439, 16
  %v1680 = vrot.slane %v1678, 7
  %v1681 = vshll.u32 %v1439, 16
  %v1683 = vor.u32 %v1680, %v1681
  %v1684 = vsel %vm1481, %v1676, %v1683
  %v1685 = vrot.slane %v1680, 4
  %v1687 = vshrl.u32 %v1440, 16
  %v1689 = vrot.slane %v1687, 7
  %v1690 = vshll.u32 %v1440, 16
  %v1692 = vor.u32 %v1689, %v1690
  %v1693 = vrot.slane %v1689, 4
  %v1695 = vshrl.u32 %v1441, 16
  %v1697 = vrot.slane %v1695, 7
  %v1698 = vshll.u32 %v1441, 16
  %v1700 = vor.u32 %v1697, %v1698
  %v1701 = vsel %vm1481, %v1693, %v1700
  %v1702 = vrot.slane %v1697, 4
  %v1704 = vshrl.u32 %v1442, 16
  %v1706 = vrot.slane %v1704, 7
  %v1707 = vshll.u32 %v1442, 16
  %v1709 = vor.u32 %v1706, %v1707
  %v1710 = vrot.slane %v1706, 4
  %v1712 = vshrl.u32 %v1443, 16
  %v1714 = vrot.slane %v1712, 7
  %v1715 = vshll.u32 %v1443, 16
  %v1717 = vor.u32 %v1714, %v1715
  %v1718 = vsel %vm1481, %v1710, %v1717
  %v1719 = vrot.slane %v1714, 4
  %v1721 = vshrl.u32 %v1444, 16
  %v1723 = vrot.slane %v1721, 7
  %v1724 = vshll.u32 %v1444, 16
  %v1726 = vor.u32 %v1723, %v1724
  %v1727 = vrot.slane %v1723, 4
  %v1729 = vshrl.u32 %v1445, 16
  %v1731 = vrot.slane %v1729, 7
  %v1732 = vshll.u32 %v1445, 16
  %v1734 = vor.u32 %v1731, %v1732
  %v1735 = vsel %vm1481, %v1727, %v1734
  %v1736 = vrot.slane %v1731, 4
  %v1738 = vshrl.u32 %v1446, 16
  %v1740 = vrot.slane %v1738, 7
  %v1741 = vshll.u32 %v1446, 16
  %v1743 = vor.u32 %v1740, %v1741
  %v1744 = vrot.slane %v1740, 4
  %v1746 = vshrl.u32 %v1447, 16
  %v1748 = vrot.slane %v1746, 7
  %v1749 = vshll.u32 %v1447, 16
  %v1751 = vor.u32 %v1748, %v1749
  %v1752 = vsel %vm1481, %v1744, %v1751
  %v1753 = vrot.slane %v1748, 4
  %v1755 = vshrl.u32 %v1448, 16
  %v1757 = vrot.slane %v1755, 7
  %v1758 = vshll.u32 %v1448, 16
  %v1760 = vor.u32 %v1757, %v1758
  %v1761 = vrot.slane %v1757, 4
  %v1763 = vshrl.u32 %v1449, 16
  %v1765 = vrot.slane %v1763, 7
  %v1766 = vshll.u32 %v1449, 16
  %v1768 = vor.u32 %v1765, %v1766
  %v1769 = vsel %vm1481, %v1761, %v1768
  %v1770 = vrot.slane %v1765, 4
  %v1772 = vshrl.u32 %v1450, 16
  %v1774 = vrot.slane %v1772, 7
  %v1775 = vshll.u32 %v1450, 16
  %v1777 = vor.u32 %v1774, %v1775
  %v1778 = vrot.slane %v1774, 4
  %v1780 = vshrl.u32 %v1451, 16
  %v1782 = vrot.slane %v1780, 7
  %v1783 = vshll.u32 %v1451, 16
  %v1785 = vor.u32 %v1782, %v1783
  %v1786 = vsel %vm1481, %v1778, %v1785
  %v1787 = vrot.slane %v1782, 4
  %v1789 = vshrl.u32 %v1452, 16
  %v1791 = vrot.slane %v1789, 7
  %v1792 = vshll.u32 %v1452, 16
  %v1794 = vor.u32 %v1791, %v1792
  %v1795 = vrot.slane %v1791, 4
  %v1797 = vshrl.u32 %v1453, 16
  %v1799 = vrot.slane %v1797, 7
  %v1800 = vshll.u32 %v1453, 16
  %v1802 = vor.u32 %v1799, %v1800
  %v1803 = vsel %vm1481, %v1795, %v1802
  %v1804 = vrot.slane %v1799, 4
  %v1806 = vshrl.u32 %v1454, 16
  %v1808 = vrot.slane %v1806, 7
  %v1809 = vshll.u32 %v1454, 16
  %v1811 = vor.u32 %v1808, %v1809
  %v1812 = vrot.slane %v1808, 4
  %v1814 = vshrl.u32 %v1455, 16
  %v1816 = vrot.slane %v1814, 7
  %v1817 = vshll.u32 %v1455, 16
  %v1819 = vor.u32 %v1816, %v1817
  %v1820 = vsel %vm1481, %v1812, %v1819
  %v1821 = vrot.slane %v1816, 4
  %v1823 = vshrl.u32 %v1456, 16
  %v1825 = vrot.slane %v1823, 7
  %v1826 = vshll.u32 %v1456, 16
  %v1828 = vor.u32 %v1825, %v1826
  %v1829 = vrot.slane %v1825, 4
  %v1831 = vshrl.u32 %v1457, 16
  %v1833 = vrot.slane %v1831, 7
  %v1834 = vshll.u32 %v1457, 16
  %v1836 = vor.u32 %v1833, %v1834
  %v1837 = vsel %vm1481, %v1829, %v1836
  %v1838 = vrot.slane %v1833, 4
  %v1840 = vshrl.u32 %v1458, 16
  %v1842 = vrot.slane %v1840, 7
  %v1843 = vshll.u32 %v1458, 16
  %v1845 = vor.u32 %v1842, %v1843
  %v1846 = vrot.slane %v1842, 4
  %v1848 = vshrl.u32 %v1459, 16
  %v1850 = vrot.slane %v1848, 7
  %v1851 = vshll.u32 %v1459, 16
  %v1853 = vor.u32 %v1850, %v1851
  %v1854 = vsel %vm1481, %v1846, %v1853
  %v1855 = vrot.slane %v1850, 4
  %v1857 = vshrl.u32 %v1460, 16
  %v1859 = vrot.slane %v1857, 7
  %v1860 = vshll.u32 %v1460, 16
  %v1862 = vor.u32 %v1859, %v1860
  %v1863 = vrot.slane %v1859, 4
  %v1865 = vshrl.u32 %v1461, 16
  %v1867 = vrot.slane %v1865, 7
  %v1868 = vshll.u32 %v1461, 16
  %v1870 = vor.u32 %v1867, %v1868
  %v1871 = vsel %vm1481, %v1863, %v1870
  %v1872 = vrot.slane %v1867, 4
  %v1874 = vshrl.u32 %v1462, 16
  %v1876 = vrot.slane %v1874, 7
  %v1877 = vshll.u32 %v1462, 16
  %v1879 = vor.u32 %v1876, %v1877
  %v1880 = vrot.slane %v1876, 4
  %v1882 = vshrl.u32 %v1463, 16
  %v1884 = vrot.slane %v1882, 7
  %v1885 = vshll.u32 %v1463, 16
  %v1887 = vor.u32 %v1884, %v1885
  %v1888 = vsel %vm1481, %v1880, %v1887
  %v1889 = vrot.slane %v1884, 4
  %v1891 = vshrl.u32 %v1464, 16
  %v1893 = vrot.slane %v1891, 7
  %v1894 = vshll.u32 %v1464, 16
  %v1896 = vor.u32 %v1893, %v1894
  %v1897 = vrot.slane %v1893, 4
  %v1899 = vshrl.u32 %v1465, 16
  %v1901 = vrot.slane %v1899, 7
  %v1902 = vshll.u32 %v1465, 16
  %v1904 = vor.u32 %v1901, %v1902
  %v1905 = vsel %vm1481, %v1897, %v1904
  %v1906 = vrot.slane %v1901, 4
  %v1908 = vshrl.u32 %v1466, 16
  %v1910 = vrot.slane %v1908, 7
  %v1911 = vshll.u32 %v1466, 16
  %v1913 = vor.u32 %v1910, %v1911
  %v1914 = vrot.slane %v1910, 4
  %v1916 = vshrl.u32 %v1467, 16
  %v1918 = vrot.slane %v1916, 7
  %v1919 = vshll.u32 %v1467, 16
  %v1921 = vor.u32 %v1918, %v1919
  %v1922 = vsel %vm1481, %v1914, %v1921
  %v1923 = vrot.slane %v1918, 4
  %v1925 = vshrl.u32 %v1468, 16
  %v1927 = vrot.slane %v1925, 7
  %v1928 = vshll.u32 %v1468, 16
  %v1930 = vor.u32 %v1927, %v1928
  %v1931 = vrot.slane %v1927, 4
  %v1933 = vshrl.u32 %v1469, 16
  %v1935 = vrot.slane %v1933, 7
  %v1936 = vshll.u32 %v1469, 16
  %v1938 = vor.u32 %v1935, %v1936
  %v1939 = vsel %vm1481, %v1931, %v1938
  %v1940 = vrot.slane %v1935, 4
  %v1942 = vshrl.u32 %v1470, 16
  %v1944 = vrot.slane %v1942, 7
  %v1945 = vshll.u32 %v1470, 16
  %v1947 = vor.u32 %v1944, %v1945
  %v1948 = vrot.slane %v1944, 4
  %v1950 = vshrl.u32 %v1471, 16
  %v1952 = vrot.slane %v1950, 7
  %v1953 = vshll.u32 %v1471, 16
  %v1955 = vor.u32 %v1952, %v1953
  %v1956 = vsel %vm1481, %v1948, %v1955
  %v1957 = vrot.slane %v1952, 4
  %v1959 = vshrl.u32 %v1472, 16
  %v1961 = vrot.slane %v1959, 7
  %v1962 = vshll.u32 %v1472, 16
  %v1964 = vor.u32 %v1961, %v1962
  %v1965 = vrot.slane %v1961, 4
  %v1967 = vshrl.u32 %v1473, 16
  %v1969 = vrot.slane %v1967, 7
  %v1970 = vshll.u32 %v1473, 16
  %v1972 = vor.u32 %v1969, %v1970
  %v1973 = vsel %vm1481, %v1965, %v1972
  %v1974 = vrot.slane %v1969, 4
  %v1976 = vshrl.u32 %v1474, 16
  %v1978 = vrot.slane %v1976, 7
  %v1979 = vshll.u32 %v1474, 16
  %v1981 = vor.u32 %v1978, %v1979
  %v1982 = vrot.slane %v1978, 4
  %v1984 = vshrl.u32 %v1475, 16
  %v1986 = vrot.slane %v1984, 7
  %v1987 = vshll.u32 %v1475, 16
  %v1989 = vor.u32 %v1986, %v1987
  %v1990 = vsel %vm1481, %v1982, %v1989
  %v1991 = vrot.slane %v1986, 4
  %v1993 = vshrl.u32 %v1476, 16
  %v1995 = vrot.slane %v1993, 7
  %v1996 = vshll.u32 %v1476, 16
  %v1998 = vor.u32 %v1995, %v1996
  %v1999 = vrot.slane %v1995, 4
  %v2001 = vshrl.u32 %v1477, 16
  %v2003 = vrot.slane %v2001, 7
  %v2004 = vshll.u32 %v1477, 16
  %v2006 = vor.u32 %v2003, %v2004
  %v2007 = vsel %vm1481, %v1999, %v2006
  %v2008 = vrot.slane %v2003, 4
  %v2010 = vshrl.u32 %v1478, 16
  %v2012 = vrot.slane %v2010, 7
  %v2013 = vshll.u32 %v1478, 16
  %v2015 = vor.u32 %v2012, %v2013
  %v2016 = vrot.slane %v2012, 4
  %v2018 = vshrl.u32 %v1479, 16
  %v2020 = vrot.slane %v2018, 7
  %v2021 = vshll.u32 %v1479, 16
  %v2023 = vor.u32 %v2020, %v2021
  %v2024 = vsel %vm1481, %v2016, %v2023
  %v2025 = vrot.slane %v2020, 4
  %s2122 = scalar_lea.vmem [#allocation2], 12
  %vm2123 = vcmask 1043456
  %vm2124 = vmand %vm2123, %vm151
  %v2125 = vld [vmem:[%s2122] sm:$0xf]
  %v2126 = vsel %vm2124, %v1488, %v2125
  %2127 = vst [vmem:[%s2122] sm:$0xf] %v2126
  %2128 = vst [vmem:[%s2122 + $0x4] sm:$0xf] %v1497
  %v2129 = vld [vmem:[%s2122 + $0x8] sm:$0x1]
  %v2130 = vsel %vm42, %v1498, %v2129
  %2131 = vst [vmem:[%s2122 + $0x8] sm:$0x1] %v2130
  %v2132 = vld [vmem:[%s2122 + $0xc] sm:$0xf]
  %v2133 = vsel %vm2124, %v1505, %v2132
  %2134 = vst [vmem:[%s2122 + $0xc] sm:$0xf] %v2133
  %2135 = vst [vmem:[%s2122 + $0x10] sm:$0xf] %v1514
  %v2136 = vld [vmem:[%s2122 + $0x14] sm:$0x1]
  %v2137 = vsel %vm42, %v1515, %v2136
  %2138 = vst [vmem:[%s2122 + $0x14] sm:$0x1] %v2137
  %v2139 = vld [vmem:[%s2122 + $0x18] sm:$0xf]
  %v2140 = vsel %vm2124, %v1522, %v2139
  %2141 = vst [vmem:[%s2122 + $0x18] sm:$0xf] %v2140
  %2142 = vst [vmem:[%s2122 + $0x1c] sm:$0xf] %v1531
  %v2143 = vld [vmem:[%s2122 + $0x20] sm:$0x1]
  %v2144 = vsel %vm42, %v1532, %v2143
  %2145 = vst [vmem:[%s2122 + $0x20] sm:$0x1] %v2144
  %v2146 = vld [vmem:[%s2122 + $0x24] sm:$0xf]
  %v2147 = vsel %vm2124, %v1539, %v2146
  %2148 = vst [vmem:[%s2122 + $0x24] sm:$0xf] %v2147
  %2149 = vst [vmem:[%s2122 + $0x28] sm:$0xf] %v1548
  %v2150 = vld [vmem:[%s2122 + $0x2c] sm:$0x1]
  %v2151 = vsel %vm42, %v1549, %v2150
  %2152 = vst [vmem:[%s2122 + $0x2c] sm:$0x1] %v2151
  %v2153 = vld [vmem:[%s2122 + $0x30] sm:$0xf]
  %v2154 = vsel %vm2124, %v1556, %v2153
  %2155 = vst [vmem:[%s2122 + $0x30] sm:$0xf] %v2154
  %2156 = vst [vmem:[%s2122 + $0x34] sm:$0xf] %v1565
  %v2157 = vld [vmem:[%s2122 + $0x38] sm:$0x1]
  %v2158 = vsel %vm42, %v1566, %v2157
  %2159 = vst [vmem:[%s2122 + $0x38] sm:$0x1] %v2158
  %v2160 = vld [vmem:[%s2122 + $0x3c] sm:$0xf]
  %v2161 = vsel %vm2124, %v1573, %v2160
  %2162 = vst [vmem:[%s2122 + $0x3c] sm:$0xf] %v2161
  %2163 = vst [vmem:[%s2122 + $0x40] sm:$0xf] %v1582
  %v2164 = vld [vmem:[%s2122 + $0x44] sm:$0x1]
  %v2165 = vsel %vm42, %v1583, %v2164
  %2166 = vst [vmem:[%s2122 + $0x44] sm:$0x1] %v2165
  %v2167 = vld [vmem:[%s2122 + $0x48] sm:$0xf]
  %v2168 = vsel %vm2124, %v1590, %v2167
  %2169 = vst [vmem:[%s2122 + $0x48] sm:$0xf] %v2168
  %2170 = vst [vmem:[%s2122 + $0x4c] sm:$0xf] %v1599
  %v2171 = vld [vmem:[%s2122 + $0x50] sm:$0x1]
  %v2172 = vsel %vm42, %v1600, %v2171
  %2173 = vst [vmem:[%s2122 + $0x50] sm:$0x1] %v2172
  %v2174 = vld [vmem:[%s2122 + $0x54] sm:$0xf]
  %v2175 = vsel %vm2124, %v1607, %v2174
  %2176 = vst [vmem:[%s2122 + $0x54] sm:$0xf] %v2175
  %2177 = vst [vmem:[%s2122 + $0x58] sm:$0xf] %v1616
  %v2178 = vld [vmem:[%s2122 + $0x5c] sm:$0x1]
  %v2179 = vsel %vm42, %v1617, %v2178
  %2180 = vst [vmem:[%s2122 + $0x5c] sm:$0x1] %v2179
  %v2181 = vld [vmem:[%s2122 + $0x60] sm:$0xf]
  %v2182 = vsel %vm2124, %v1624, %v2181
  %2183 = vst [vmem:[%s2122 + $0x60] sm:$0xf] %v2182
  %2184 = vst [vmem:[%s2122 + $0x64] sm:$0xf] %v1633
  %v2185 = vld [vmem:[%s2122 + $0x68] sm:$0x1]
  %v2186 = vsel %vm42, %v1634, %v2185
  %2187 = vst [vmem:[%s2122 + $0x68] sm:$0x1] %v2186
  %v2188 = vld [vmem:[%s2122 + $0x6c] sm:$0xf]
  %v2189 = vsel %vm2124, %v1641, %v2188
  %2190 = vst [vmem:[%s2122 + $0x6c] sm:$0xf] %v2189
  %2191 = vst [vmem:[%s2122 + $0x70] sm:$0xf] %v1650
  %v2192 = vld [vmem:[%s2122 + $0x74] sm:$0x1]
  %v2193 = vsel %vm42, %v1651, %v2192
  %2194 = vst [vmem:[%s2122 + $0x74] sm:$0x1] %v2193
  %v2195 = vld [vmem:[%s2122 + $0x78] sm:$0xf]
  %v2196 = vsel %vm2124, %v1658, %v2195
  %2197 = vst [vmem:[%s2122 + $0x78] sm:$0xf] %v2196
  %2198 = vst [vmem:[%s2122 + $0x7c] sm:$0xf] %v1667
  %v2199 = vld [vmem:[%s2122 + $0x80] sm:$0x1]
  %v2200 = vsel %vm42, %v1668, %v2199
  %2201 = vst [vmem:[%s2122 + $0x80] sm:$0x1] %v2200
  %v2202 = vld [vmem:[%s2122 + $0x84] sm:$0xf]
  %v2203 = vsel %vm2124, %v1675, %v2202
  %2204 = vst [vmem:[%s2122 + $0x84] sm:$0xf] %v2203
  %2205 = vst [vmem:[%s2122 + $0x88] sm:$0xf] %v1684
  %v2206 = vld [vmem:[%s2122 + $0x8c] sm:$0x1]
  %v2207 = vsel %vm42, %v1685, %v2206
  %2208 = vst [vmem:[%s2122 + $0x8c] sm:$0x1] %v2207
  %v2209 = vld [vmem:[%s2122 + $0x90] sm:$0xf]
  %v2210 = vsel %vm2124, %v1692, %v2209
  %2211 = vst [vmem:[%s2122 + $0x90] sm:$0xf] %v2210
  %2212 = vst [vmem:[%s2122 + $0x94] sm:$0xf] %v1701
  %v2213 = vld [vmem:[%s2122 + $0x98] sm:$0x1]
  %v2214 = vsel %vm42, %v1702, %v2213
  %2215 = vst [vmem:[%s2122 + $0x98] sm:$0x1] %v2214
  %v2216 = vld [vmem:[%s2122 + $0x9c] sm:$0xf]
  %v2217 = vsel %vm2124, %v1709, %v2216
  %2218 = vst [vmem:[%s2122 + $0x9c] sm:$0xf] %v2217
  %2219 = vst [vmem:[%s2122 + $0xa0] sm:$0xf] %v1718
  %v2220 = vld [vmem:[%s2122 + $0xa4] sm:$0x1]
  %v2221 = vsel %vm42, %v1719, %v2220
  %2222 = vst [vmem:[%s2122 + $0xa4] sm:$0x1] %v2221
  %v2223 = vld [vmem:[%s2122 + $0xa8] sm:$0xf]
  %v2224 = vsel %vm2124, %v1726, %v2223
  %2225 = vst [vmem:[%s2122 + $0xa8] sm:$0xf] %v2224
  %2226 = vst [vmem:[%s2122 + $0xac] sm:$0xf] %v1735
  %v2227 = vld [vmem:[%s2122 + $0xb0] sm:$0x1]
  %v2228 = vsel %vm42, %v1736, %v2227
  %2229 = vst [vmem:[%s2122 + $0xb0] sm:$0x1] %v2228
  %v2230 = vld [vmem:[%s2122 + $0xb4] sm:$0xf]
  %v2231 = vsel %vm2124, %v1743, %v2230
  %2232 = vst [vmem:[%s2122 + $0xb4] sm:$0xf] %v2231
  %2233 = vst [vmem:[%s2122 + $0xb8] sm:$0xf] %v1752
  %v2234 = vld [vmem:[%s2122 + $0xbc] sm:$0x1]
  %v2235 = vsel %vm42, %v1753, %v2234
  %2236 = vst [vmem:[%s2122 + $0xbc] sm:$0x1] %v2235
  %v2237 = vld [vmem:[%s2122 + $0xd8] sm:$0xf]
  %v2238 = vsel %vm2124, %v1760, %v2237
  %2239 = vst [vmem:[%s2122 + $0xd8] sm:$0xf] %v2238
  %2240 = vst [vmem:[%s2122 + $0xdc] sm:$0xf] %v1769
  %v2241 = vld [vmem:[%s2122 + $0xe0] sm:$0x1]
  %v2242 = vsel %vm42, %v1770, %v2241
  %2243 = vst [vmem:[%s2122 + $0xe0] sm:$0x1] %v2242
  %v2244 = vld [vmem:[%s2122 + $0xe4] sm:$0xf]
  %v2245 = vsel %vm2124, %v1777, %v2244
  %2246 = vst [vmem:[%s2122 + $0xe4] sm:$0xf] %v2245
  %2247 = vst [vmem:[%s2122 + $0xe8] sm:$0xf] %v1786
  %v2248 = vld [vmem:[%s2122 + $0xec] sm:$0x1]
  %v2249 = vsel %vm42, %v1787, %v2248
  %2250 = vst [vmem:[%s2122 + $0xec] sm:$0x1] %v2249
  %v2251 = vld [vmem:[%s2122 + $0xf0] sm:$0xf]
  %v2252 = vsel %vm2124, %v1794, %v2251
  %2253 = vst [vmem:[%s2122 + $0xf0] sm:$0xf] %v2252
  %2254 = vst [vmem:[%s2122 + $0xf4] sm:$0xf] %v1803
  %v2255 = vld [vmem:[%s2122 + $0xf8] sm:$0x1]
  %v2256 = vsel %vm42, %v1804, %v2255
  %2257 = vst [vmem:[%s2122 + $0xf8] sm:$0x1] %v2256
  %v2258 = vld [vmem:[%s2122 + $0xfc] sm:$0xf]
  %v2259 = vsel %vm2124, %v1811, %v2258
  %2260 = vst [vmem:[%s2122 + $0xfc] sm:$0xf] %v2259
  %2261 = vst [vmem:[%s2122 + $0x100] sm:$0xf] %v1820
  %v2262 = vld [vmem:[%s2122 + $0x104] sm:$0x1]
  %v2263 = vsel %vm42, %v1821, %v2262
  %2264 = vst [vmem:[%s2122 + $0x104] sm:$0x1] %v2263
  %v2265 = vld [vmem:[%s2122 + $0x108] sm:$0xf]
  %v2266 = vsel %vm2124, %v1828, %v2265
  %2267 = vst [vmem:[%s2122 + $0x108] sm:$0xf] %v2266
  %2268 = vst [vmem:[%s2122 + $0x10c] sm:$0xf] %v1837
  %v2269 = vld [vmem:[%s2122 + $0x110] sm:$0x1]
  %v2270 = vsel %vm42, %v1838, %v2269
  %2271 = vst [vmem:[%s2122 + $0x110] sm:$0x1] %v2270
  %v2272 = vld [vmem:[%s2122 + $0x114] sm:$0xf]
  %v2273 = vsel %vm2124, %v1845, %v2272
  %2274 = vst [vmem:[%s2122 + $0x114] sm:$0xf] %v2273
  %2275 = vst [vmem:[%s2122 + $0x118] sm:$0xf] %v1854
  %v2276 = vld [vmem:[%s2122 + $0x11c] sm:$0x1]
  %v2277 = vsel %vm42, %v1855, %v2276
  %2278 = vst [vmem:[%s2122 + $0x11c] sm:$0x1] %v2277
  %v2279 = vld [vmem:[%s2122 + $0x120] sm:$0xf]
  %v2280 = vsel %vm2124, %v1862, %v2279
  %2281 = vst [vmem:[%s2122 + $0x120] sm:$0xf] %v2280
  %2282 = vst [vmem:[%s2122 + $0x124] sm:$0xf] %v1871
  %v2283 = vld [vmem:[%s2122 + $0x128] sm:$0x1]
  %v2284 = vsel %vm42, %v1872, %v2283
  %2285 = vst [vmem:[%s2122 + $0x128] sm:$0x1] %v2284
  %v2286 = vld [vmem:[%s2122 + $0x12c] sm:$0xf]
  %v2287 = vsel %vm2124, %v1879, %v2286
  %2288 = vst [vmem:[%s2122 + $0x12c] sm:$0xf] %v2287
  %2289 = vst [vmem:[%s2122 + $0x130] sm:$0xf] %v1888
  %v2290 = vld [vmem:[%s2122 + $0x134] sm:$0x1]
  %v2291 = vsel %vm42, %v1889, %v2290
  %2292 = vst [vmem:[%s2122 + $0x134] sm:$0x1] %v2291
  %v2293 = vld [vmem:[%s2122 + $0x138] sm:$0xf]
  %v2294 = vsel %vm2124, %v1896, %v2293
  %2295 = vst [vmem:[%s2122 + $0x138] sm:$0xf] %v2294
  %2296 = vst [vmem:[%s2122 + $0x13c] sm:$0xf] %v1905
  %v2297 = vld [vmem:[%s2122 + $0x140] sm:$0x1]
  %v2298 = vsel %vm42, %v1906, %v2297
  %2299 = vst [vmem:[%s2122 + $0x140] sm:$0x1] %v2298
  %v2300 = vld [vmem:[%s2122 + $0x144] sm:$0xf]
  %v2301 = vsel %vm2124, %v1913, %v2300
  %2302 = vst [vmem:[%s2122 + $0x144] sm:$0xf] %v2301
  %2303 = vst [vmem:[%s2122 + $0x148] sm:$0xf] %v1922
  %v2304 = vld [vmem:[%s2122 + $0x14c] sm:$0x1]
  %v2305 = vsel %vm42, %v1923, %v2304
  %2306 = vst [vmem:[%s2122 + $0x14c] sm:$0x1] %v2305
  %v2307 = vld [vmem:[%s2122 + $0x150] sm:$0xf]
  %v2308 = vsel %vm2124, %v1930, %v2307
  %2309 = vst [vmem:[%s2122 + $0x150] sm:$0xf] %v2308
  %2310 = vst [vmem:[%s2122 + $0x154] sm:$0xf] %v1939
  %v2311 = vld [vmem:[%s2122 + $0x158] sm:$0x1]
  %v2312 = vsel %vm42, %v1940, %v2311
  %2313 = vst [vmem:[%s2122 + $0x158] sm:$0x1] %v2312
  %v2314 = vld [vmem:[%s2122 + $0x15c] sm:$0xf]
  %v2315 = vsel %vm2124, %v1947, %v2314
  %2316 = vst [vmem:[%s2122 + $0x15c] sm:$0xf] %v2315
  %2317 = vst [vmem:[%s2122 + $0x160] sm:$0xf] %v1956
  %v2318 = vld [vmem:[%s2122 + $0x164] sm:$0x1]
  %v2319 = vsel %vm42, %v1957, %v2318
  %2320 = vst [vmem:[%s2122 + $0x164] sm:$0x1] %v2319
  %v2321 = vld [vmem:[%s2122 + $0x168] sm:$0xf]
  %v2322 = vsel %vm2124, %v1964, %v2321
  %2323 = vst [vmem:[%s2122 + $0x168] sm:$0xf] %v2322
  %2324 = vst [vmem:[%s2122 + $0x16c] sm:$0xf] %v1973
  %v2325 = vld [vmem:[%s2122 + $0x170] sm:$0x1]
  %v2326 = vsel %vm42, %v1974, %v2325
  %2327 = vst [vmem:[%s2122 + $0x170] sm:$0x1] %v2326
  %v2328 = vld [vmem:[%s2122 + $0x174] sm:$0xf]
  %v2329 = vsel %vm2124, %v1981, %v2328
  %2330 = vst [vmem:[%s2122 + $0x174] sm:$0xf] %v2329
  %2331 = vst [vmem:[%s2122 + $0x178] sm:$0xf] %v1990
  %v2332 = vld [vmem:[%s2122 + $0x17c] sm:$0x1]
  %v2333 = vsel %vm42, %v1991, %v2332
  %2334 = vst [vmem:[%s2122 + $0x17c] sm:$0x1] %v2333
  %v2335 = vld [vmem:[%s2122 + $0x180] sm:$0xf]
  %v2336 = vsel %vm2124, %v1998, %v2335
  %2337 = vst [vmem:[%s2122 + $0x180] sm:$0xf] %v2336
  %2338 = vst [vmem:[%s2122 + $0x184] sm:$0xf] %v2007
  %v2339 = vld [vmem:[%s2122 + $0x188] sm:$0x1]
  %v2340 = vsel %vm42, %v2008, %v2339
  %2341 = vst [vmem:[%s2122 + $0x188] sm:$0x1] %v2340
  %v2342 = vld [vmem:[%s2122 + $0x18c] sm:$0xf]
  %v2343 = vsel %vm2124, %v2015, %v2342
  %2344 = vst [vmem:[%s2122 + $0x18c] sm:$0xf] %v2343
  %2345 = vst [vmem:[%s2122 + $0x190] sm:$0xf] %v2024
  %v2346 = vld [vmem:[%s2122 + $0x194] sm:$0x1]
  %v2347 = vsel %vm42, %v2025, %v2346
  %2348 = vst [vmem:[%s2122 + $0x194] sm:$0x1] %v2347
  %v2349 = vld [vmem:[#allocation2] sm:$0xf]
  %v2350 = vld [vmem:[#allocation2 + $0x4] sm:$0xf]
  %v2351 = vld [vmem:[#allocation2 + $0xc] sm:$0xf]
  %v2352 = vld [vmem:[#allocation2 + $0x10] sm:$0xf]
  %v2353 = vld [vmem:[#allocation2 + $0x18] sm:$0xf]
  %v2354 = vld [vmem:[#allocation2 + $0x1c] sm:$0xf]
  %v2355 = vld [vmem:[#allocation2 + $0x24] sm:$0xf]
  %v2356 = vld [vmem:[#allocation2 + $0x28] sm:$0xf]
  %v2357 = vld [vmem:[#allocation2 + $0x30] sm:$0xf]
  %v2358 = vld [vmem:[#allocation2 + $0x34] sm:$0xf]
  %v2359 = vld [vmem:[#allocation2 + $0x3c] sm:$0xf]
  %v2360 = vld [vmem:[#allocation2 + $0x40] sm:$0xf]
  %v2361 = vld [vmem:[#allocation2 + $0x48] sm:$0xf]
  %v2362 = vld [vmem:[#allocation2 + $0x4c] sm:$0xf]
  %v2363 = vld [vmem:[#allocation2 + $0x54] sm:$0xf]
  %v2364 = vld [vmem:[#allocation2 + $0x58] sm:$0xf]
  %v2365 = vld [vmem:[#allocation2 + $0x60] sm:$0xf]
  %v2366 = vld [vmem:[#allocation2 + $0x64] sm:$0xf]
  %v2367 = vld [vmem:[#allocation2 + $0x6c] sm:$0xf]
  %v2368 = vld [vmem:[#allocation2 + $0x70] sm:$0xf]
  %v2369 = vld [vmem:[#allocation2 + $0x78] sm:$0xf]
  %v2370 = vld [vmem:[#allocation2 + $0x7c] sm:$0xf]
  %v2371 = vld [vmem:[#allocation2 + $0x84] sm:$0xf]
  %v2372 = vld [vmem:[#allocation2 + $0x88] sm:$0xf]
  %v2373 = vld [vmem:[#allocation2 + $0x90] sm:$0xf]
  %v2374 = vld [vmem:[#allocation2 + $0x94] sm:$0xf]
  %v2375 = vld [vmem:[#allocation2 + $0x9c] sm:$0xf]
  %v2376 = vld [vmem:[#allocation2 + $0xa0] sm:$0xf]
  %v2377 = vld [vmem:[#allocation2 + $0xa8] sm:$0xf]
  %v2378 = vld [vmem:[#allocation2 + $0xac] sm:$0xf]
  %v2379 = vld [vmem:[#allocation2 + $0xb4] sm:$0xf]
  %v2380 = vld [vmem:[#allocation2 + $0xb8] sm:$0xf]
  %v2381 = vld [vmem:[#allocation2 + $0xd8] sm:$0xf]
  %v2382 = vld [vmem:[#allocation2 + $0xdc] sm:$0xf]
  %v2383 = vld [vmem:[#allocation2 + $0xe4] sm:$0xf]
  %v2384 = vld [vmem:[#allocation2 + $0xe8] sm:$0xf]
  %v2385 = vld [vmem:[#allocation2 + $0xf0] sm:$0xf]
  %v2386 = vld [vmem:[#allocation2 + $0xf4] sm:$0xf]
  %v2387 = vld [vmem:[#allocation2 + $0xfc] sm:$0xf]
  %v2388 = vld [vmem:[#allocation2 + $0x100] sm:$0xf]
  %v2389 = vld [vmem:[#allocation2 + $0x108] sm:$0xf]
  %v2390 = vld [vmem:[#allocation2 + $0x10c] sm:$0xf]
  %v2391 = vld [vmem:[#allocation2 + $0x114] sm:$0xf]
  %v2392 = vld [vmem:[#allocation2 + $0x118] sm:$0xf]
  %v2393 = vld [vmem:[#allocation2 + $0x120] sm:$0xf]
  %v2394 = vld [vmem:[#allocation2 + $0x124] sm:$0xf]
  %v2395 = vld [vmem:[#allocation2 + $0x12c] sm:$0xf]
  %v2396 = vld [vmem:[#allocation2 + $0x130] sm:$0xf]
  %v2397 = vld [vmem:[#allocation2 + $0x138] sm:$0xf]
  %v2398 = vld [vmem:[#allocation2 + $0x13c] sm:$0xf]
  %v2399 = vld [vmem:[#allocation2 + $0x144] sm:$0xf]
  %v2400 = vld [vmem:[#allocation2 + $0x148] sm:$0xf]
  %v2401 = vld [vmem:[#allocation2 + $0x150] sm:$0xf]
  %v2402 = vld [vmem:[#allocation2 + $0x154] sm:$0xf]
  %v2403 = vld [vmem:[#allocation2 + $0x15c] sm:$0xf]
  %v2404 = vld [vmem:[#allocation2 + $0x160] sm:$0xf]
  %v2405 = vld [vmem:[#allocation2 + $0x168] sm:$0xf]
  %v2406 = vld [vmem:[#allocation2 + $0x16c] sm:$0xf]
  %v2407 = vld [vmem:[#allocation2 + $0x174] sm:$0xf]
  %v2408 = vld [vmem:[#allocation2 + $0x178] sm:$0xf]
  %v2409 = vld [vmem:[#allocation2 + $0x180] sm:$0xf]
  %v2410 = vld [vmem:[#allocation2 + $0x184] sm:$0xf]
  %v2411 = vld [vmem:[#allocation2 + $0x18c] sm:$0xf]
  %v2412 = vld [vmem:[#allocation2 + $0x190] sm:$0xf]
  %v2413 = vld [vmem:[%s2] sm:$0xf]
  %v2414 = vld [vmem:[%s2 + $0x4] sm:$0xf]
  %v2415 = vld [vmem:[%s2 + $0x8] sm:$0xf]
  %v2416 = vld [vmem:[%s2 + $0xc] sm:$0xf]
  %v2417 = vld [vmem:[%s2 + $0x10] sm:$0xf]
  %v2418 = vld [vmem:[%s2 + $0x14] sm:$0xf]
  %v2419 = vld [vmem:[%s2 + $0x18] sm:$0xf]
  %v2420 = vld [vmem:[%s2 + $0x1c] sm:$0xf]
  %v2421 = vld [vmem:[%s2 + $0x20] sm:$0xf]
  %v2422 = vld [vmem:[%s2 + $0x24] sm:$0xf]
  %v2423 = vld [vmem:[%s2 + $0x28] sm:$0xf]
  %v2424 = vld [vmem:[%s2 + $0x2c] sm:$0xf]
  %v2425 = vld [vmem:[%s2 + $0x30] sm:$0xf]
  %v2426 = vld [vmem:[%s2 + $0x34] sm:$0xf]
  %v2427 = vld [vmem:[%s2 + $0x38] sm:$0xf]
  %v2428 = vld [vmem:[%s2 + $0x3c] sm:$0xf]
  %v2429 = vld [vmem:[#allocation2 + $0x8] sm:$0x1]
  %v2430 = vld [vmem:[#allocation2 + $0x14] sm:$0x1]
  %v2431 = vld [vmem:[#allocation2 + $0x20] sm:$0x1]
  %v2432 = vld [vmem:[#allocation2 + $0x2c] sm:$0x1]
  %v2433 = vld [vmem:[#allocation2 + $0x38] sm:$0x1]
  %v2434 = vld [vmem:[#allocation2 + $0x44] sm:$0x1]
  %v2435 = vld [vmem:[#allocation2 + $0x50] sm:$0x1]
  %v2436 = vld [vmem:[#allocation2 + $0x5c] sm:$0x1]
  %v2437 = vld [vmem:[#allocation2 + $0x68] sm:$0x1]
  %v2438 = vld [vmem:[#allocation2 + $0x74] sm:$0x1]
  %v2439 = vld [vmem:[#allocation2 + $0x80] sm:$0x1]
  %v2440 = vld [vmem:[#allocation2 + $0x8c] sm:$0x1]
  %v2441 = vld [vmem:[#allocation2 + $0x98] sm:$0x1]
  %v2442 = vld [vmem:[#allocation2 + $0xa4] sm:$0x1]
  %v2443 = vld [vmem:[#allocation2 + $0xb0] sm:$0x1]
  %v2444 = vld [vmem:[#allocation2 + $0xbc] sm:$0x1]
  %v2445 = vld [vmem:[#allocation2 + $0xe0] sm:$0x1]
  %v2446 = vld [vmem:[#allocation2 + $0xec] sm:$0x1]
  %v2447 = vld [vmem:[#allocation2 + $0xf8] sm:$0x1]
  %v2448 = vld [vmem:[#allocation2 + $0x104] sm:$0x1]
  %v2449 = vld [vmem:[#allocation2 + $0x110] sm:$0x1]
  %v2450 = vld [vmem:[#allocation2 + $0x11c] sm:$0x1]
  %v2451 = vld [vmem:[#allocation2 + $0x128] sm:$0x1]
  %v2452 = vld [vmem:[#allocation2 + $0x134] sm:$0x1]
  %v2453 = vld [vmem:[#allocation2 + $0x140] sm:$0x1]
  %v2454 = vld [vmem:[#allocation2 + $0x14c] sm:$0x1]
  %v2455 = vld [vmem:[#allocation2 + $0x158] sm:$0x1]
  %v2456 = vld [vmem:[#allocation2 + $0x164] sm:$0x1]
  %v2457 = vld [vmem:[#allocation2 + $0x170] sm:$0x1]
  %v2458 = vld [vmem:[#allocation2 + $0x17c] sm:$0x1]
  %v2459 = vld [vmem:[#allocation2 + $0x188] sm:$0x1]
  %v2460 = vld [vmem:[#allocation2 + $0x194] sm:$0x1]
  %vm2461 = vsmask.f32 3328
  %vm2462 = vsmask.f32 7440
  %vm2463 = vmor %vm2461, %vm2462
  %v2465 = vshrl.u32 %v2349, 16
  %v2467 = vrot.slane %v2465, 4
  %v2468 = vshll.u32 %v2349, 16
  %v2470 = vrot.slane %v2468, 5
  %v2471 = vor.u32 %v2467, %v2470
  %v2472 = vrot.slane %v2471, 4
  %v2474 = vshll.u32 %v2350, 16
  %v2476 = vrot.slane %v2474, 5
  %v2477 = vsel %vm2463, %v2472, %v2476
  %v2478 = vshrl.u32 %v2350, 16
  %v2480 = vrot.slane %v2478, 4
  %v2481 = vor.u32 %v2480, %v2476
  %v2482 = vrot.slane %v2481, 4
  %v2484 = vshll.u32 %v2429, 16
  %v2486 = vrot.slane %v2484, 5
  %v2487 = vsel %vm2463, %v2482, %v2486
  %v2489 = vshrl.u32 %v2351, 16
  %v2491 = vrot.slane %v2489, 4
  %v2492 = vshll.u32 %v2351, 16
  %v2494 = vrot.slane %v2492, 5
  %v2495 = vor.u32 %v2491, %v2494
  %v2496 = vrot.slane %v2495, 4
  %v2498 = vshll.u32 %v2352, 16
  %v2500 = vrot.slane %v2498, 5
  %v2501 = vsel %vm2463, %v2496, %v2500
  %v2502 = vshrl.u32 %v2352, 16
  %v2504 = vrot.slane %v2502, 4
  %v2505 = vor.u32 %v2504, %v2500
  %v2506 = vrot.slane %v2505, 4
  %v2508 = vshll.u32 %v2430, 16
  %v2510 = vrot.slane %v2508, 5
  %v2511 = vsel %vm2463, %v2506, %v2510
  %v2513 = vshrl.u32 %v2353, 16
  %v2515 = vrot.slane %v2513, 4
  %v2516 = vshll.u32 %v2353, 16
  %v2518 = vrot.slane %v2516, 5
  %v2519 = vor.u32 %v2515, %v2518
  %v2520 = vrot.slane %v2519, 4
  %v2522 = vshll.u32 %v2354, 16
  %v2524 = vrot.slane %v2522, 5
  %v2525 = vsel %vm2463, %v2520, %v2524
  %v2526 = vshrl.u32 %v2354, 16
  %v2528 = vrot.slane %v2526, 4
  %v2529 = vor.u32 %v2528, %v2524
  %v2530 = vrot.slane %v2529, 4
  %v2532 = vshll.u32 %v2431, 16
  %v2534 = vrot.slane %v2532, 5
  %v2535 = vsel %vm2463, %v2530, %v2534
  %v2537 = vshrl.u32 %v2355, 16
  %v2539 = vrot.slane %v2537, 4
  %v2540 = vshll.u32 %v2355, 16
  %v2542 = vrot.slane %v2540, 5
  %v2543 = vor.u32 %v2539, %v2542
  %v2544 = vrot.slane %v2543, 4
  %v2546 = vshll.u32 %v2356, 16
  %v2548 = vrot.slane %v2546, 5
  %v2549 = vsel %vm2463, %v2544, %v2548
  %v2550 = vshrl.u32 %v2356, 16
  %v2552 = vrot.slane %v2550, 4
  %v2553 = vor.u32 %v2552, %v2548
  %v2554 = vrot.slane %v2553, 4
  %v2556 = vshll.u32 %v2432, 16
  %v2558 = vrot.slane %v2556, 5
  %v2559 = vsel %vm2463, %v2554, %v2558
  %v2561 = vshrl.u32 %v2357, 16
  %v2563 = vrot.slane %v2561, 4
  %v2564 = vshll.u32 %v2357, 16
  %v2566 = vrot.slane %v2564, 5
  %v2567 = vor.u32 %v2563, %v2566
  %v2568 = vrot.slane %v2567, 4
  %v2570 = vshll.u32 %v2358, 16
  %v2572 = vrot.slane %v2570, 5
  %v2573 = vsel %vm2463, %v2568, %v2572
  %v2574 = vshrl.u32 %v2358, 16
  %v2576 = vrot.slane %v2574, 4
  %v2577 = vor.u32 %v2576, %v2572
  %v2578 = vrot.slane %v2577, 4
  %v2580 = vshll.u32 %v2433, 16
  %v2582 = vrot.slane %v2580, 5
  %v2583 = vsel %vm2463, %v2578, %v2582
  %v2585 = vshrl.u32 %v2359, 16
  %v2587 = vrot.slane %v2585, 4
  %v2588 = vshll.u32 %v2359, 16
  %v2590 = vrot.slane %v2588, 5
  %v2591 = vor.u32 %v2587, %v2590
  %v2592 = vrot.slane %v2591, 4
  %v2594 = vshll.u32 %v2360, 16
  %v2596 = vrot.slane %v2594, 5
  %v2597 = vsel %vm2463, %v2592, %v2596
  %v2598 = vshrl.u32 %v2360, 16
  %v2600 = vrot.slane %v2598, 4
  %v2601 = vor.u32 %v2600, %v2596
  %v2602 = vrot.slane %v2601, 4
  %v2604 = vshll.u32 %v2434, 16
  %v2606 = vrot.slane %v2604, 5
  %v2607 = vsel %vm2463, %v2602, %v2606
  %v2609 = vshrl.u32 %v2361, 16
  %v2611 = vrot.slane %v2609, 4
  %v2612 = vshll.u32 %v2361, 16
  %v2614 = vrot.slane %v2612, 5
  %v2615 = vor.u32 %v2611, %v2614
  %v2616 = vrot.slane %v2615, 4
  %v2618 = vshll.u32 %v2362, 16
  %v2620 = vrot.slane %v2618, 5
  %v2621 = vsel %vm2463, %v2616, %v2620
  %v2622 = vshrl.u32 %v2362, 16
  %v2624 = vrot.slane %v2622, 4
  %v2625 = vor.u32 %v2624, %v2620
  %v2626 = vrot.slane %v2625, 4
  %v2628 = vshll.u32 %v2435, 16
  %v2630 = vrot.slane %v2628, 5
  %v2631 = vsel %vm2463, %v2626, %v2630
  %v2633 = vshrl.u32 %v2363, 16
  %v2635 = vrot.slane %v2633, 4
  %v2636 = vshll.u32 %v2363, 16
  %v2638 = vrot.slane %v2636, 5
  %v2639 = vor.u32 %v2635, %v2638
  %v2640 = vrot.slane %v2639, 4
  %v2642 = vshll.u32 %v2364, 16
  %v2644 = vrot.slane %v2642, 5
  %v2645 = vsel %vm2463, %v2640, %v2644
  %v2646 = vshrl.u32 %v2364, 16
  %v2648 = vrot.slane %v2646, 4
  %v2649 = vor.u32 %v2648, %v2644
  %v2650 = vrot.slane %v2649, 4
  %v2652 = vshll.u32 %v2436, 16
  %v2654 = vrot.slane %v2652, 5
  %v2655 = vsel %vm2463, %v2650, %v2654
  %v2657 = vshrl.u32 %v2365, 16
  %v2659 = vrot.slane %v2657, 4
  %v2660 = vshll.u32 %v2365, 16
  %v2662 = vrot.slane %v2660, 5
  %v2663 = vor.u32 %v2659, %v2662
  %v2664 = vrot.slane %v2663, 4
  %v2666 = vshll.u32 %v2366, 16
  %v2668 = vrot.slane %v2666, 5
  %v2669 = vsel %vm2463, %v2664, %v2668
  %v2670 = vshrl.u32 %v2366, 16
  %v2672 = vrot.slane %v2670, 4
  %v2673 = vor.u32 %v2672, %v2668
  %v2674 = vrot.slane %v2673, 4
  %v2676 = vshll.u32 %v2437, 16
  %v2678 = vrot.slane %v2676, 5
  %v2679 = vsel %vm2463, %v2674, %v2678
  %v2681 = vshrl.u32 %v2367, 16
  %v2683 = vrot.slane %v2681, 4
  %v2684 = vshll.u32 %v2367, 16
  %v2686 = vrot.slane %v2684, 5
  %v2687 = vor.u32 %v2683, %v2686
  %v2688 = vrot.slane %v2687, 4
  %v2690 = vshll.u32 %v2368, 16
  %v2692 = vrot.slane %v2690, 5
  %v2693 = vsel %vm2463, %v2688, %v2692
  %v2694 = vshrl.u32 %v2368, 16
  %v2696 = vrot.slane %v2694, 4
  %v2697 = vor.u32 %v2696, %v2692
  %v2698 = vrot.slane %v2697, 4
  %v2700 = vshll.u32 %v2438, 16
  %v2702 = vrot.slane %v2700, 5
  %v2703 = vsel %vm2463, %v2698, %v2702
  %v2705 = vshrl.u32 %v2369, 16
  %v2707 = vrot.slane %v2705, 4
  %v2708 = vshll.u32 %v2369, 16
  %v2710 = vrot.slane %v2708, 5
  %v2711 = vor.u32 %v2707, %v2710
  %v2712 = vrot.slane %v2711, 4
  %v2714 = vshll.u32 %v2370, 16
  %v2716 = vrot.slane %v2714, 5
  %v2717 = vsel %vm2463, %v2712, %v2716
  %v2718 = vshrl.u32 %v2370, 16
  %v2720 = vrot.slane %v2718, 4
  %v2721 = vor.u32 %v2720, %v2716
  %v2722 = vrot.slane %v2721, 4
  %v2724 = vshll.u32 %v2439, 16
  %v2726 = vrot.slane %v2724, 5
  %v2727 = vsel %vm2463, %v2722, %v2726
  %v2729 = vshrl.u32 %v2371, 16
  %v2731 = vrot.slane %v2729, 4
  %v2732 = vshll.u32 %v2371, 16
  %v2734 = vrot.slane %v2732, 5
  %v2735 = vor.u32 %v2731, %v2734
  %v2736 = vrot.slane %v2735, 4
  %v2738 = vshll.u32 %v2372, 16
  %v2740 = vrot.slane %v2738, 5
  %v2741 = vsel %vm2463, %v2736, %v2740
  %v2742 = vshrl.u32 %v2372, 16
  %v2744 = vrot.slane %v2742, 4
  %v2745 = vor.u32 %v2744, %v2740
  %v2746 = vrot.slane %v2745, 4
  %v2748 = vshll.u32 %v2440, 16
  %v2750 = vrot.slane %v2748, 5
  %v2751 = vsel %vm2463, %v2746, %v2750
  %v2753 = vshrl.u32 %v2373, 16
  %v2755 = vrot.slane %v2753, 4
  %v2756 = vshll.u32 %v2373, 16
  %v2758 = vrot.slane %v2756, 5
  %v2759 = vor.u32 %v2755, %v2758
  %v2760 = vrot.slane %v2759, 4
  %v2762 = vshll.u32 %v2374, 16
  %v2764 = vrot.slane %v2762, 5
  %v2765 = vsel %vm2463, %v2760, %v2764
  %v2766 = vshrl.u32 %v2374, 16
  %v2768 = vrot.slane %v2766, 4
  %v2769 = vor.u32 %v2768, %v2764
  %v2770 = vrot.slane %v2769, 4
  %v2772 = vshll.u32 %v2441, 16
  %v2774 = vrot.slane %v2772, 5
  %v2775 = vsel %vm2463, %v2770, %v2774
  %v2777 = vshrl.u32 %v2375, 16
  %v2779 = vrot.slane %v2777, 4
  %v2780 = vshll.u32 %v2375, 16
  %v2782 = vrot.slane %v2780, 5
  %v2783 = vor.u32 %v2779, %v2782
  %v2784 = vrot.slane %v2783, 4
  %v2786 = vshll.u32 %v2376, 16
  %v2788 = vrot.slane %v2786, 5
  %v2789 = vsel %vm2463, %v2784, %v2788
  %v2790 = vshrl.u32 %v2376, 16
  %v2792 = vrot.slane %v2790, 4
  %v2793 = vor.u32 %v2792, %v2788
  %v2794 = vrot.slane %v2793, 4
  %v2796 = vshll.u32 %v2442, 16
  %v2798 = vrot.slane %v2796, 5
  %v2799 = vsel %vm2463, %v2794, %v2798
  %v2801 = vshrl.u32 %v2377, 16
  %v2803 = vrot.slane %v2801, 4
  %v2804 = vshll.u32 %v2377, 16
  %v2806 = vrot.slane %v2804, 5
  %v2807 = vor.u32 %v2803, %v2806
  %v2808 = vrot.slane %v2807, 4
  %v2810 = vshll.u32 %v2378, 16
  %v2812 = vrot.slane %v2810, 5
  %v2813 = vsel %vm2463, %v2808, %v2812
  %v2814 = vshrl.u32 %v2378, 16
  %v2816 = vrot.slane %v2814, 4
  %v2817 = vor.u32 %v2816, %v2812
  %v2818 = vrot.slane %v2817, 4
  %v2820 = vshll.u32 %v2443, 16
  %v2822 = vrot.slane %v2820, 5
  %v2823 = vsel %vm2463, %v2818, %v2822
  %v2825 = vshrl.u32 %v2379, 16
  %v2827 = vrot.slane %v2825, 4
  %v2828 = vshll.u32 %v2379, 16
  %v2830 = vrot.slane %v2828, 5
  %v2831 = vor.u32 %v2827, %v2830
  %v2832 = vrot.slane %v2831, 4
  %v2834 = vshll.u32 %v2380, 16
  %v2836 = vrot.slane %v2834, 5
  %v2837 = vsel %vm2463, %v2832, %v2836
  %v2838 = vshrl.u32 %v2380, 16
  %v2840 = vrot.slane %v2838, 4
  %v2841 = vor.u32 %v2840, %v2836
  %v2842 = vrot.slane %v2841, 4
  %v2844 = vshll.u32 %v2444, 16
  %v2846 = vrot.slane %v2844, 5
  %v2847 = vsel %vm2463, %v2842, %v2846
  %v2849 = vshrl.u32 %v2381, 16
  %v2851 = vrot.slane %v2849, 4
  %v2852 = vshll.u32 %v2381, 16
  %v2854 = vrot.slane %v2852, 5
  %v2855 = vor.u32 %v2851, %v2854
  %v2856 = vrot.slane %v2855, 4
  %v2858 = vshll.u32 %v2382, 16
  %v2860 = vrot.slane %v2858, 5
  %v2861 = vsel %vm2463, %v2856, %v2860
  %v2862 = vshrl.u32 %v2382, 16
  %v2864 = vrot.slane %v2862, 4
  %v2865 = vor.u32 %v2864, %v2860
  %v2866 = vrot.slane %v2865, 4
  %v2868 = vshll.u32 %v2445, 16
  %v2870 = vrot.slane %v2868, 5
  %v2871 = vsel %vm2463, %v2866, %v2870
  %v2873 = vshrl.u32 %v2383, 16
  %v2875 = vrot.slane %v2873, 4
  %v2876 = vshll.u32 %v2383, 16
  %v2878 = vrot.slane %v2876, 5
  %v2879 = vor.u32 %v2875, %v2878
  %v2880 = vrot.slane %v2879, 4
  %v2882 = vshll.u32 %v2384, 16
  %v2884 = vrot.slane %v2882, 5
  %v2885 = vsel %vm2463, %v2880, %v2884
  %v2886 = vshrl.u32 %v2384, 16
  %v2888 = vrot.slane %v2886, 4
  %v2889 = vor.u32 %v2888, %v2884
  %v2890 = vrot.slane %v2889, 4
  %v2892 = vshll.u32 %v2446, 16
  %v2894 = vrot.slane %v2892, 5
  %v2895 = vsel %vm2463, %v2890, %v2894
  %v2897 = vshrl.u32 %v2385, 16
  %v2899 = vrot.slane %v2897, 4
  %v2900 = vshll.u32 %v2385, 16
  %v2902 = vrot.slane %v2900, 5
  %v2903 = vor.u32 %v2899, %v2902
  %v2904 = vrot.slane %v2903, 4
  %v2906 = vshll.u32 %v2386, 16
  %v2908 = vrot.slane %v2906, 5
  %v2909 = vsel %vm2463, %v2904, %v2908
  %v2910 = vshrl.u32 %v2386, 16
  %v2912 = vrot.slane %v2910, 4
  %v2913 = vor.u32 %v2912, %v2908
  %v2914 = vrot.slane %v2913, 4
  %v2916 = vshll.u32 %v2447, 16
  %v2918 = vrot.slane %v2916, 5
  %v2919 = vsel %vm2463, %v2914, %v2918
  %v2921 = vshrl.u32 %v2387, 16
  %v2923 = vrot.slane %v2921, 4
  %v2924 = vshll.u32 %v2387, 16
  %v2926 = vrot.slane %v2924, 5
  %v2927 = vor.u32 %v2923, %v2926
  %v2928 = vrot.slane %v2927, 4
  %v2930 = vshll.u32 %v2388, 16
  %v2932 = vrot.slane %v2930, 5
  %v2933 = vsel %vm2463, %v2928, %v2932
  %v2934 = vshrl.u32 %v2388, 16
  %v2936 = vrot.slane %v2934, 4
  %v2937 = vor.u32 %v2936, %v2932
  %v2938 = vrot.slane %v2937, 4
  %v2940 = vshll.u32 %v2448, 16
  %v2942 = vrot.slane %v2940, 5
  %v2943 = vsel %vm2463, %v2938, %v2942
  %v2945 = vshrl.u32 %v2389, 16
  %v2947 = vrot.slane %v2945, 4
  %v2948 = vshll.u32 %v2389, 16
  %v2950 = vrot.slane %v2948, 5
  %v2951 = vor.u32 %v2947, %v2950
  %v2952 = vrot.slane %v2951, 4
  %v2954 = vshll.u32 %v2390, 16
  %v2956 = vrot.slane %v2954, 5
  %v2957 = vsel %vm2463, %v2952, %v2956
  %v2958 = vshrl.u32 %v2390, 16
  %v2960 = vrot.slane %v2958, 4
  %v2961 = vor.u32 %v2960, %v2956
  %v2962 = vrot.slane %v2961, 4
  %v2964 = vshll.u32 %v2449, 16
  %v2966 = vrot.slane %v2964, 5
  %v2967 = vsel %vm2463, %v2962, %v2966
  %v2969 = vshrl.u32 %v2391, 16
  %v2971 = vrot.slane %v2969, 4
  %v2972 = vshll.u32 %v2391, 16
  %v2974 = vrot.slane %v2972, 5
  %v2975 = vor.u32 %v2971, %v2974
  %v2976 = vrot.slane %v2975, 4
  %v2978 = vshll.u32 %v2392, 16
  %v2980 = vrot.slane %v2978, 5
  %v2981 = vsel %vm2463, %v2976, %v2980
  %v2982 = vshrl.u32 %v2392, 16
  %v2984 = vrot.slane %v2982, 4
  %v2985 = vor.u32 %v2984, %v2980
  %v2986 = vrot.slane %v2985, 4
  %v2988 = vshll.u32 %v2450, 16
  %v2990 = vrot.slane %v2988, 5
  %v2991 = vsel %vm2463, %v2986, %v2990
  %v2993 = vshrl.u32 %v2393, 16
  %v2995 = vrot.slane %v2993, 4
  %v2996 = vshll.u32 %v2393, 16
  %v2998 = vrot.slane %v2996, 5
  %v2999 = vor.u32 %v2995, %v2998
  %v3000 = vrot.slane %v2999, 4
  %v3002 = vshll.u32 %v2394, 16
  %v3004 = vrot.slane %v3002, 5
  %v3005 = vsel %vm2463, %v3000, %v3004
  %v3006 = vshrl.u32 %v2394, 16
  %v3008 = vrot.slane %v3006, 4
  %v3009 = vor.u32 %v3008, %v3004
  %v3010 = vrot.slane %v3009, 4
  %v3012 = vshll.u32 %v2451, 16
  %v3014 = vrot.slane %v3012, 5
  %v3015 = vsel %vm2463, %v3010, %v3014
  %v3017 = vshrl.u32 %v2395, 16
  %v3019 = vrot.slane %v3017, 4
  %v3020 = vshll.u32 %v2395, 16
  %v3022 = vrot.slane %v3020, 5
  %v3023 = vor.u32 %v3019, %v3022
  %v3024 = vrot.slane %v3023, 4
  %v3026 = vshll.u32 %v2396, 16
  %v3028 = vrot.slane %v3026, 5
  %v3029 = vsel %vm2463, %v3024, %v3028
  %v3030 = vshrl.u32 %v2396, 16
  %v3032 = vrot.slane %v3030, 4
  %v3033 = vor.u32 %v3032, %v3028
  %v3034 = vrot.slane %v3033, 4
  %v3036 = vshll.u32 %v2452, 16
  %v3038 = vrot.slane %v3036, 5
  %v3039 = vsel %vm2463, %v3034, %v3038
  %v3041 = vshrl.u32 %v2397, 16
  %v3043 = vrot.slane %v3041, 4
  %v3044 = vshll.u32 %v2397, 16
  %v3046 = vrot.slane %v3044, 5
  %v3047 = vor.u32 %v3043, %v3046
  %v3048 = vrot.slane %v3047, 4
  %v3050 = vshll.u32 %v2398, 16
  %v3052 = vrot.slane %v3050, 5
  %v3053 = vsel %vm2463, %v3048, %v3052
  %v3054 = vshrl.u32 %v2398, 16
  %v3056 = vrot.slane %v3054, 4
  %v3057 = vor.u32 %v3056, %v3052
  %v3058 = vrot.slane %v3057, 4
  %v3060 = vshll.u32 %v2453, 16
  %v3062 = vrot.slane %v3060, 5
  %v3063 = vsel %vm2463, %v3058, %v3062
  %v3065 = vshrl.u32 %v2399, 16
  %v3067 = vrot.slane %v3065, 4
  %v3068 = vshll.u32 %v2399, 16
  %v3070 = vrot.slane %v3068, 5
  %v3071 = vor.u32 %v3067, %v3070
  %v3072 = vrot.slane %v3071, 4
  %v3074 = vshll.u32 %v2400, 16
  %v3076 = vrot.slane %v3074, 5
  %v3077 = vsel %vm2463, %v3072, %v3076
  %v3078 = vshrl.u32 %v2400, 16
  %v3080 = vrot.slane %v3078, 4
  %v3081 = vor.u32 %v3080, %v3076
  %v3082 = vrot.slane %v3081, 4
  %v3084 = vshll.u32 %v2454, 16
  %v3086 = vrot.slane %v3084, 5
  %v3087 = vsel %vm2463, %v3082, %v3086
  %v3089 = vshrl.u32 %v2401, 16
  %v3091 = vrot.slane %v3089, 4
  %v3092 = vshll.u32 %v2401, 16
  %v3094 = vrot.slane %v3092, 5
  %v3095 = vor.u32 %v3091, %v3094
  %v3096 = vrot.slane %v3095, 4
  %v3098 = vshll.u32 %v2402, 16
  %v3100 = vrot.slane %v3098, 5
  %v3101 = vsel %vm2463, %v3096, %v3100
  %v3102 = vshrl.u32 %v2402, 16
  %v3104 = vrot.slane %v3102, 4
  %v3105 = vor.u32 %v3104, %v3100
  %v3106 = vrot.slane %v3105, 4
  %v3108 = vshll.u32 %v2455, 16
  %v3110 = vrot.slane %v3108, 5
  %v3111 = vsel %vm2463, %v3106, %v3110
  %v3113 = vshrl.u32 %v2403, 16
  %v3115 = vrot.slane %v3113, 4
  %v3116 = vshll.u32 %v2403, 16
  %v3118 = vrot.slane %v3116, 5
  %v3119 = vor.u32 %v3115, %v3118
  %v3120 = vrot.slane %v3119, 4
  %v3122 = vshll.u32 %v2404, 16
  %v3124 = vrot.slane %v3122, 5
  %v3125 = vsel %vm2463, %v3120, %v3124
  %v3126 = vshrl.u32 %v2404, 16
  %v3128 = vrot.slane %v3126, 4
  %v3129 = vor.u32 %v3128, %v3124
  %v3130 = vrot.slane %v3129, 4
  %v3132 = vshll.u32 %v2456, 16
  %v3134 = vrot.slane %v3132, 5
  %v3135 = vsel %vm2463, %v3130, %v3134
  %v3137 = vshrl.u32 %v2405, 16
  %v3139 = vrot.slane %v3137, 4
  %v3140 = vshll.u32 %v2405, 16
  %v3142 = vrot.slane %v3140, 5
  %v3143 = vor.u32 %v3139, %v3142
  %v3144 = vrot.slane %v3143, 4
  %v3146 = vshll.u32 %v2406, 16
  %v3148 = vrot.slane %v3146, 5
  %v3149 = vsel %vm2463, %v3144, %v3148
  %v3150 = vshrl.u32 %v2406, 16
  %v3152 = vrot.slane %v3150, 4
  %v3153 = vor.u32 %v3152, %v3148
  %v3154 = vrot.slane %v3153, 4
  %v3156 = vshll.u32 %v2457, 16
  %v3158 = vrot.slane %v3156, 5
  %v3159 = vsel %vm2463, %v3154, %v3158
  %v3161 = vshrl.u32 %v2407, 16
  %v3163 = vrot.slane %v3161, 4
  %v3164 = vshll.u32 %v2407, 16
  %v3166 = vrot.slane %v3164, 5
  %v3167 = vor.u32 %v3163, %v3166
  %v3168 = vrot.slane %v3167, 4
  %v3170 = vshll.u32 %v2408, 16
  %v3172 = vrot.slane %v3170, 5
  %v3173 = vsel %vm2463, %v3168, %v3172
  %v3174 = vshrl.u32 %v2408, 16
  %v3176 = vrot.slane %v3174, 4
  %v3177 = vor.u32 %v3176, %v3172
  %v3178 = vrot.slane %v3177, 4
  %v3180 = vshll.u32 %v2458, 16
  %v3182 = vrot.slane %v3180, 5
  %v3183 = vsel %vm2463, %v3178, %v3182
  %v3185 = vshrl.u32 %v2409, 16
  %v3187 = vrot.slane %v3185, 4
  %v3188 = vshll.u32 %v2409, 16
  %v3190 = vrot.slane %v3188, 5
  %v3191 = vor.u32 %v3187, %v3190
  %v3192 = vrot.slane %v3191, 4
  %v3194 = vshll.u32 %v2410, 16
  %v3196 = vrot.slane %v3194, 5
  %v3197 = vsel %vm2463, %v3192, %v3196
  %v3198 = vshrl.u32 %v2410, 16
  %v3200 = vrot.slane %v3198, 4
  %v3201 = vor.u32 %v3200, %v3196
  %v3202 = vrot.slane %v3201, 4
  %v3204 = vshll.u32 %v2459, 16
  %v3206 = vrot.slane %v3204, 5
  %v3207 = vsel %vm2463, %v3202, %v3206
  %v3209 = vshrl.u32 %v2411, 16
  %v3211 = vrot.slane %v3209, 4
  %v3212 = vshll.u32 %v2411, 16
  %v3214 = vrot.slane %v3212, 5
  %v3215 = vor.u32 %v3211, %v3214
  %v3216 = vrot.slane %v3215, 4
  %v3218 = vshll.u32 %v2412, 16
  %v3220 = vrot.slane %v3218, 5
  %v3221 = vsel %vm2463, %v3216, %v3220
  %v3222 = vshrl.u32 %v2412, 16
  %v3224 = vrot.slane %v3222, 4
  %v3225 = vor.u32 %v3224, %v3220
  %v3226 = vrot.slane %v3225, 4
  %v3228 = vshll.u32 %v2460, 16
  %v3230 = vrot.slane %v3228, 5
  %v3231 = vsel %vm2463, %v3226, %v3230
  %v3232 = vld [vmem:[%s2 + $0x40] sm:$0xf]
  %v3233 = vld [vmem:[%s2 + $0x44] sm:$0xf]
  %v3234 = vld [vmem:[%s2 + $0x48] sm:$0xf]
  %v3235 = vld [vmem:[%s2 + $0x4c] sm:$0xf]
  %v3236 = vld [vmem:[%s2 + $0x50] sm:$0xf]
  %v3237 = vld [vmem:[%s2 + $0x54] sm:$0xf]
  %v3238 = vld [vmem:[%s2 + $0x58] sm:$0xf]
  %v3239 = vld [vmem:[%s2 + $0x5c] sm:$0xf]
  %v3240 = vld [vmem:[%s2 + $0x60] sm:$0xf]
  %v3241 = vld [vmem:[%s2 + $0x64] sm:$0xf]
  %v3242 = vld [vmem:[%s2 + $0x68] sm:$0xf]
  %v3243 = vld [vmem:[%s2 + $0x6c] sm:$0xf]
  %v3244 = vld [vmem:[%s2 + $0x70] sm:$0xf]
  %v3245 = vld [vmem:[%s2 + $0x74] sm:$0xf]
  %v3246 = vld [vmem:[%s2 + $0x78] sm:$0xf]
  %v3247 = vld [vmem:[%s2 + $0x7c] sm:$0xf]
  %v3248 = vunpack.c.l.b16 %v2477
  %v3249 = vunpack.c.l.b16 %v2487
  %v3250 = vunpack.c.l.b16 %v2501
  %v3251 = vunpack.c.l.b16 %v2511
  %v3252 = vunpack.c.l.b16 %v2525
  %v3253 = vunpack.c.l.b16 %v2535
  %v3254 = vunpack.c.l.b16 %v2549
  %v3255 = vunpack.c.l.b16 %v2559
  %v3256 = vunpack.c.l.b16 %v2573
  %v3257 = vunpack.c.l.b16 %v2583
  %v3258 = vunpack.c.l.b16 %v2597
  %v3259 = vunpack.c.l.b16 %v2607
  %v3260 = vunpack.c.l.b16 %v2621
  %v3261 = vunpack.c.l.b16 %v2631
  %v3262 = vunpack.c.l.b16 %v2645
  %v3263 = vunpack.c.l.b16 %v2655
  %v3264 = vunpack.c.l.b16 %v2669
  %v3265 = vunpack.c.l.b16 %v2679
  %v3266 = vunpack.c.l.b16 %v2693
  %v3267 = vunpack.c.l.b16 %v2703
  %v3268 = vunpack.c.l.b16 %v2717
  %v3269 = vunpack.c.l.b16 %v2727
  %v3270 = vunpack.c.l.b16 %v2741
  %v3271 = vunpack.c.l.b16 %v2751
  %v3272 = vunpack.c.l.b16 %v2765
  %v3273 = vunpack.c.l.b16 %v2775
  %v3274 = vunpack.c.l.b16 %v2789
  %v3275 = vunpack.c.l.b16 %v2799
  %v3276 = vunpack.c.l.b16 %v2813
  %v3277 = vunpack.c.l.b16 %v2823
  %v3278 = vunpack.c.l.b16 %v2837
  %v3279 = vunpack.c.l.b16 %v2847
  %v3280 = vunpack.c.l.b16 %v2861
  %v3281 = vunpack.c.l.b16 %v2871
  %v3282 = vunpack.c.l.b16 %v2885
  %v3283 = vunpack.c.l.b16 %v2895
  %v3284 = vunpack.c.l.b16 %v2909
  %v3285 = vunpack.c.l.b16 %v2919
  %v3286 = vunpack.c.l.b16 %v2933
  %v3287 = vunpack.c.l.b16 %v2943
  %v3288 = vunpack.c.l.b16 %v2957
  %v3289 = vunpack.c.l.b16 %v2967
  %v3290 = vunpack.c.l.b16 %v2981
  %v3291 = vunpack.c.l.b16 %v2991
  %v3292 = vunpack.c.l.b16 %v3005
  %v3293 = vunpack.c.l.b16 %v3015
  %v3294 = vunpack.c.l.b16 %v3029
  %v3295 = vunpack.c.l.b16 %v3039
  %v3296 = vunpack.c.l.b16 %v3053
  %v3297 = vunpack.c.l.b16 %v3063
  %v3298 = vunpack.c.l.b16 %v3077
  %v3299 = vunpack.c.l.b16 %v3087
  %v3300 = vunpack.c.l.b16 %v3101
  %v3301 = vunpack.c.l.b16 %v3111
  %v3302 = vunpack.c.l.b16 %v3125
  %v3303 = vunpack.c.l.b16 %v3135
  %v3304 = vunpack.c.l.b16 %v3149
  %v3305 = vunpack.c.l.b16 %v3159
  %v3306 = vunpack.c.l.b16 %v3173
  %v3307 = vunpack.c.l.b16 %v3183
  %v3308 = vunpack.c.l.b16 %v3197
  %v3309 = vunpack.c.l.b16 %v3207
  %v3310 = vunpack.c.l.b16 %v3221
  %v3311 = vunpack.c.l.b16 %v3231
  %v3312 = vpack.c.b16 %v3249, %v3248
  %v3313 = vpack.c.b16 %v3251, %v3250
  %v3314 = vpack.c.b16 %v3253, %v3252
  %v3315 = vpack.c.b16 %v3255, %v3254
  %v3316 = vpack.c.b16 %v3257, %v3256
  %v3317 = vpack.c.b16 %v3259, %v3258
  %v3318 = vpack.c.b16 %v3261, %v3260
  %v3319 = vpack.c.b16 %v3263, %v3262
  %v3320 = vpack.c.b16 %v3265, %v3264
  %v3321 = vpack.c.b16 %v3267, %v3266
  %v3322 = vpack.c.b16 %v3269, %v3268
  %v3323 = vpack.c.b16 %v3271, %v3270
  %v3324 = vpack.c.b16 %v3273, %v3272
  %v3325 = vpack.c.b16 %v3275, %v3274
  %v3326 = vpack.c.b16 %v3277, %v3276
  %v3327 = vpack.c.b16 %v3279, %v3278
  %v3328 = vpack.c.b16 %v3281, %v3280
  %v3329 = vpack.c.b16 %v3283, %v3282
  %v3330 = vpack.c.b16 %v3285, %v3284
  %v3331 = vpack.c.b16 %v3287, %v3286
  %v3332 = vpack.c.b16 %v3289, %v3288
  %v3333 = vpack.c.b16 %v3291, %v3290
  %v3334 = vpack.c.b16 %v3293, %v3292
  %v3335 = vpack.c.b16 %v3295, %v3294
  %v3336 = vpack.c.b16 %v3297, %v3296
  %v3337 = vpack.c.b16 %v3299, %v3298
  %v3338 = vpack.c.b16 %v3301, %v3300
  %v3339 = vpack.c.b16 %v3303, %v3302
  %v3340 = vpack.c.b16 %v3305, %v3304
  %v3341 = vpack.c.b16 %v3307, %v3306
  %v3342 = vpack.c.b16 %v3309, %v3308
  %v3343 = vpack.c.b16 %v3311, %v3310
  %v3392 = vunpack.c.l.b16 %v3232
  %v3393 = vunpack.c.l.b16 %v3233
  %v3394 = vunpack.c.l.b16 %v3234
  %v3395 = vunpack.c.l.b16 %v3235
  %v3396 = vunpack.c.l.b16 %v3236
  %v3397 = vunpack.c.l.b16 %v3237
  %v3398 = vunpack.c.l.b16 %v3238
  %v3399 = vunpack.c.l.b16 %v3239
  %v3400 = vunpack.c.l.b16 %v3240
  %v3401 = vunpack.c.l.b16 %v3241
  %v3402 = vunpack.c.l.b16 %v3242
  %v3403 = vunpack.c.l.b16 %v3243
  %v3404 = vunpack.c.l.b16 %v3244
  %v3405 = vunpack.c.l.b16 %v3245
  %v3406 = vunpack.c.l.b16 %v3246
  %v3407 = vunpack.c.l.b16 %v3247
  %v3408 = vpack.c.b16 %v3393, %v3392
  %v3409 = vpack.c.b16 %v3395, %v3394
  %v3410 = vpack.c.b16 %v3397, %v3396
  %v3411 = vpack.c.b16 %v3399, %v3398
  %v3412 = vpack.c.b16 %v3401, %v3400
  %v3413 = vpack.c.b16 %v3403, %v3402
  %v3414 = vpack.c.b16 %v3405, %v3404
  %v3415 = vpack.c.b16 %v3407, %v3406
  %3424 = vmatprep.subr.bf16.mxu0 0
  %3425 = vmatpush1.bf16.msra.mxu0 %v3415
  %3426 = vmatprep.subr.bf16.mxu0 0
  %3427 = vmatpush1.bf16.msra.mxu0 %v3414
  %3428 = vmatprep.subr.bf16.mxu0 0
  %3429 = vmatpush1.bf16.msra.mxu0 %v3413
  %3430 = vmatprep.subr.bf16.mxu0 0
  %3431 = vmatpush1.bf16.msra.mxu0 %v3412
  %3432 = vmatprep.subr.bf16.mxu0 0
  %3433 = vmatpush1.bf16.msra.mxu0 %v3411
  %3434 = vmatprep.subr.bf16.mxu0 0
  %3435 = vmatpush1.bf16.msra.mxu0 %v3410
  %3436 = vmatprep.subr.bf16.mxu0 0
  %3437 = vmatpush1.bf16.msra.mxu0 %v3409
  %3438 = vmatprep.subr.bf16.mxu0 0
  %3439 = vmatpush1.bf16.msra.mxu0 %v3408
  %3440 = vmatprep.subr.bf16.mxu0 0
  %3441 = vmatpush2.bf16.msra.mxu0 0
  %3442 = vmatprep.subr.bf16.mxu0 0
  %3443 = vmatpush2.bf16.msra.mxu0 0
  %3444 = vmatprep.subr.bf16.mxu0 0
  %3445 = vmatpush2.bf16.msra.mxu0 0
  %3446 = vmatprep.subr.bf16.mxu0 0
  %3447 = vmatpush2.bf16.msra.mxu0 0
  %3448 = vmatprep.subr.bf16.mxu0 0
  %3449 = vmatpush2.bf16.msra.mxu0 0
  %3450 = vmatprep.subr.bf16.mxu0 0
  %3451 = vmatpush2.bf16.msra.mxu0 0
  %3452 = vmatprep.subr.bf16.mxu0 0
  %3453 = vmatpush2.bf16.msra.mxu0 0
  %3454 = vmatprep.subr.bf16.mxu0 0
  %3455 = vmatpush2.bf16.msra.mxu0 0
  %3456 = vmatprep.mubr.bf16.mxu0 0
  %3457 = vmatmul.mubr.bf16.gmra.mxu0 %v3312
  %v3458 = vpop.f32.mrf.mxu0
  %v3459 = vadd.f32 0.0, %v3458
  %v3460 = vpop.f32.mrf.mxu0
  %v3461 = vpop.f32.mrf.mxu0
  %v3462 = vadd.f32 0.0, %v3461
  %v3463 = vpop.f32.mrf.mxu0
  %3464 = vmatprep.mubr.bf16.mxu0 0
  %3465 = vmatmul.mubr.bf16.gmra.mxu0 %v3313
  %v3466 = vpop.f32.mrf.mxu0
  %v3467 = vadd.f32 0.0, %v3466
  %v3468 = vpop.f32.mrf.mxu0
  %v3469 = vpop.f32.mrf.mxu0
  %v3470 = vadd.f32 0.0, %v3469
  %v3471 = vpop.f32.mrf.mxu0
  %3472 = vmatprep.mubr.bf16.mxu0 0
  %3473 = vmatmul.mubr.bf16.gmra.mxu0 %v3314
  %v3474 = vpop.f32.mrf.mxu0
  %v3475 = vadd.f32 0.0, %v3474
  %v3476 = vpop.f32.mrf.mxu0
  %v3477 = vpop.f32.mrf.mxu0
  %v3478 = vadd.f32 0.0, %v3477
  %v3479 = vpop.f32.mrf.mxu0
  %3480 = vmatprep.mubr.bf16.mxu0 0
  %3481 = vmatmul.mubr.bf16.gmra.mxu0 %v3315
  %v3482 = vpop.f32.mrf.mxu0
  %v3483 = vadd.f32 0.0, %v3482
  %v3484 = vpop.f32.mrf.mxu0
  %v3485 = vpop.f32.mrf.mxu0
  %v3486 = vadd.f32 0.0, %v3485
  %v3487 = vpop.f32.mrf.mxu0
  %3488 = vmatprep.mubr.bf16.mxu0 0
  %3489 = vmatmul.mubr.bf16.gmra.mxu0 %v3316
  %v3490 = vpop.f32.mrf.mxu0
  %v3491 = vadd.f32 0.0, %v3490
  %v3492 = vpop.f32.mrf.mxu0
  %v3493 = vpop.f32.mrf.mxu0
  %v3494 = vadd.f32 0.0, %v3493
  %v3495 = vpop.f32.mrf.mxu0
  %3496 = vmatprep.mubr.bf16.mxu0 0
  %3497 = vmatmul.mubr.bf16.gmra.mxu0 %v3317
  %v3498 = vpop.f32.mrf.mxu0
  %v3499 = vadd.f32 0.0, %v3498
  %v3500 = vpop.f32.mrf.mxu0
  %v3501 = vpop.f32.mrf.mxu0
  %v3502 = vadd.f32 0.0, %v3501
  %v3503 = vpop.f32.mrf.mxu0
  %3504 = vmatprep.mubr.bf16.mxu0 0
  %3505 = vmatmul.mubr.bf16.gmra.mxu0 %v3318
  %v3506 = vpop.f32.mrf.mxu0
  %v3507 = vadd.f32 0.0, %v3506
  %v3508 = vpop.f32.mrf.mxu0
  %v3509 = vpop.f32.mrf.mxu0
  %v3510 = vadd.f32 0.0, %v3509
  %v3511 = vpop.f32.mrf.mxu0
  %3512 = vmatprep.mubr.bf16.mxu0 0
  %3513 = vmatmul.mubr.bf16.gmra.mxu0 %v3319
  %v3514 = vpop.f32.mrf.mxu0
  %v3515 = vadd.f32 0.0, %v3514
  %v3516 = vpop.f32.mrf.mxu0
  %v3517 = vpop.f32.mrf.mxu0
  %v3518 = vadd.f32 0.0, %v3517
  %v3519 = vpop.f32.mrf.mxu0
  %3520 = vmatprep.mubr.bf16.mxu0 0
  %3521 = vmatmul.mubr.bf16.gmra.mxu0 %v3320
  %v3522 = vpop.f32.mrf.mxu0
  %v3523 = vadd.f32 0.0, %v3522
  %v3524 = vpop.f32.mrf.mxu0
  %v3525 = vpop.f32.mrf.mxu0
  %v3526 = vadd.f32 0.0, %v3525
  %v3527 = vpop.f32.mrf.mxu0
  %3528 = vmatprep.mubr.bf16.mxu0 0
  %3529 = vmatmul.mubr.bf16.gmra.mxu0 %v3321
  %v3530 = vpop.f32.mrf.mxu0
  %v3531 = vadd.f32 0.0, %v3530
  %v3532 = vpop.f32.mrf.mxu0
  %v3533 = vpop.f32.mrf.mxu0
  %v3534 = vadd.f32 0.0, %v3533
  %v3535 = vpop.f32.mrf.mxu0
  %3536 = vmatprep.mubr.bf16.mxu0 0
  %3537 = vmatmul.mubr.bf16.gmra.mxu0 %v3322
  %v3538 = vpop.f32.mrf.mxu0
  %v3539 = vadd.f32 0.0, %v3538
  %v3540 = vpop.f32.mrf.mxu0
  %v3541 = vpop.f32.mrf.mxu0
  %v3542 = vadd.f32 0.0, %v3541
  %v3543 = vpop.f32.mrf.mxu0
  %3544 = vmatprep.mubr.bf16.mxu0 0
  %3545 = vmatmul.mubr.bf16.gmra.mxu0 %v3323
  %v3546 = vpop.f32.mrf.mxu0
  %v3547 = vadd.f32 0.0, %v3546
  %v3548 = vpop.f32.mrf.mxu0
  %v3549 = vpop.f32.mrf.mxu0
  %v3550 = vadd.f32 0.0, %v3549
  %v3551 = vpop.f32.mrf.mxu0
  %3552 = vmatprep.mubr.bf16.mxu0 0
  %3553 = vmatmul.mubr.bf16.gmra.mxu0 %v3324
  %v3554 = vpop.f32.mrf.mxu0
  %v3555 = vadd.f32 0.0, %v3554
  %v3556 = vpop.f32.mrf.mxu0
  %v3557 = vpop.f32.mrf.mxu0
  %v3558 = vadd.f32 0.0, %v3557
  %v3559 = vpop.f32.mrf.mxu0
  %3560 = vmatprep.mubr.bf16.mxu0 0
  %3561 = vmatmul.mubr.bf16.gmra.mxu0 %v3325
  %v3562 = vpop.f32.mrf.mxu0
  %v3563 = vadd.f32 0.0, %v3562
  %v3564 = vpop.f32.mrf.mxu0
  %v3565 = vpop.f32.mrf.mxu0
  %v3566 = vadd.f32 0.0, %v3565
  %v3567 = vpop.f32.mrf.mxu0
  %3568 = vmatprep.mubr.bf16.mxu0 0
  %3569 = vmatmul.mubr.bf16.gmra.mxu0 %v3326
  %v3570 = vpop.f32.mrf.mxu0
  %v3571 = vadd.f32 0.0, %v3570
  %v3572 = vpop.f32.mrf.mxu0
  %v3573 = vpop.f32.mrf.mxu0
  %v3574 = vadd.f32 0.0, %v3573
  %v3575 = vpop.f32.mrf.mxu0
  %3576 = vmatprep.mubr.bf16.mxu0 0
  %3577 = vmatmul.mubr.bf16.gmra.mxu0 %v3327
  %v3578 = vpop.f32.mrf.mxu0
  %v3579 = vadd.f32 0.0, %v3578
  %v3580 = vpop.f32.mrf.mxu0
  %v3581 = vpop.f32.mrf.mxu0
  %v3582 = vadd.f32 0.0, %v3581
  %v3583 = vpop.f32.mrf.mxu0
  %3584 = vmatprep.mubr.bf16.mxu0 0
  %3585 = vmatmul.mubr.bf16.gmra.mxu0 %v3328
  %v3586 = vpop.f32.mrf.mxu0
  %v3587 = vadd.f32 0.0, %v3586
  %v3588 = vpop.f32.mrf.mxu0
  %v3589 = vpop.f32.mrf.mxu0
  %v3590 = vadd.f32 0.0, %v3589
  %v3591 = vpop.f32.mrf.mxu0
  %3592 = vmatprep.mubr.bf16.mxu0 0
  %3593 = vmatmul.mubr.bf16.gmra.mxu0 %v3329
  %v3594 = vpop.f32.mrf.mxu0
  %v3595 = vadd.f32 0.0, %v3594
  %v3596 = vpop.f32.mrf.mxu0
  %v3597 = vpop.f32.mrf.mxu0
  %v3598 = vadd.f32 0.0, %v3597
  %v3599 = vpop.f32.mrf.mxu0
  %3600 = vmatprep.mubr.bf16.mxu0 0
  %3601 = vmatmul.mubr.bf16.gmra.mxu0 %v3330
  %v3602 = vpop.f32.mrf.mxu0
  %v3603 = vadd.f32 0.0, %v3602
  %v3604 = vpop.f32.mrf.mxu0
  %v3605 = vpop.f32.mrf.mxu0
  %v3606 = vadd.f32 0.0, %v3605
  %v3607 = vpop.f32.mrf.mxu0
  %3608 = vmatprep.mubr.bf16.mxu0 0
  %3609 = vmatmul.mubr.bf16.gmra.mxu0 %v3331
  %v3610 = vpop.f32.mrf.mxu0
  %v3611 = vadd.f32 0.0, %v3610
  %v3612 = vpop.f32.mrf.mxu0
  %v3613 = vpop.f32.mrf.mxu0
  %v3614 = vadd.f32 0.0, %v3613
  %v3615 = vpop.f32.mrf.mxu0
  %3616 = vmatprep.mubr.bf16.mxu0 0
  %3617 = vmatmul.mubr.bf16.gmra.mxu0 %v3332
  %v3618 = vpop.f32.mrf.mxu0
  %v3619 = vadd.f32 0.0, %v3618
  %v3620 = vpop.f32.mrf.mxu0
  %v3621 = vpop.f32.mrf.mxu0
  %v3622 = vadd.f32 0.0, %v3621
  %v3623 = vpop.f32.mrf.mxu0
  %3624 = vmatprep.mubr.bf16.mxu0 0
  %3625 = vmatmul.mubr.bf16.gmra.mxu0 %v3333
  %v3626 = vpop.f32.mrf.mxu0
  %v3627 = vadd.f32 0.0, %v3626
  %v3628 = vpop.f32.mrf.mxu0
  %v3629 = vpop.f32.mrf.mxu0
  %v3630 = vadd.f32 0.0, %v3629
  %v3631 = vpop.f32.mrf.mxu0
  %3632 = vmatprep.mubr.bf16.mxu0 0
  %3633 = vmatmul.mubr.bf16.gmra.mxu0 %v3334
  %v3634 = vpop.f32.mrf.mxu0
  %v3635 = vadd.f32 0.0, %v3634
  %v3636 = vpop.f32.mrf.mxu0
  %v3637 = vpop.f32.mrf.mxu0
  %v3638 = vadd.f32 0.0, %v3637
  %v3639 = vpop.f32.mrf.mxu0
  %3640 = vmatprep.mubr.bf16.mxu0 0
  %3641 = vmatmul.mubr.bf16.gmra.mxu0 %v3335
  %v3642 = vpop.f32.mrf.mxu0
  %v3643 = vadd.f32 0.0, %v3642
  %v3644 = vpop.f32.mrf.mxu0
  %v3645 = vpop.f32.mrf.mxu0
  %v3646 = vadd.f32 0.0, %v3645
  %v3647 = vpop.f32.mrf.mxu0
  %3648 = vmatprep.mubr.bf16.mxu0 0
  %3649 = vmatmul.mubr.bf16.gmra.mxu0 %v3336
  %v3650 = vpop.f32.mrf.mxu0
  %v3651 = vadd.f32 0.0, %v3650
  %v3652 = vpop.f32.mrf.mxu0
  %v3653 = vpop.f32.mrf.mxu0
  %v3654 = vadd.f32 0.0, %v3653
  %v3655 = vpop.f32.mrf.mxu0
  %3656 = vmatprep.mubr.bf16.mxu0 0
  %3657 = vmatmul.mubr.bf16.gmra.mxu0 %v3337
  %v3658 = vpop.f32.mrf.mxu0
  %v3659 = vadd.f32 0.0, %v3658
  %v3660 = vpop.f32.mrf.mxu0
  %v3661 = vpop.f32.mrf.mxu0
  %v3662 = vadd.f32 0.0, %v3661
  %v3663 = vpop.f32.mrf.mxu0
  %3664 = vmatprep.mubr.bf16.mxu0 0
  %3665 = vmatmul.mubr.bf16.gmra.mxu0 %v3338
  %v3666 = vpop.f32.mrf.mxu0
  %v3667 = vadd.f32 0.0, %v3666
  %v3668 = vpop.f32.mrf.mxu0
  %v3669 = vpop.f32.mrf.mxu0
  %v3670 = vadd.f32 0.0, %v3669
  %v3671 = vpop.f32.mrf.mxu0
  %3672 = vmatprep.mubr.bf16.mxu0 0
  %3673 = vmatmul.mubr.bf16.gmra.mxu0 %v3339
  %v3674 = vpop.f32.mrf.mxu0
  %v3675 = vadd.f32 0.0, %v3674
  %v3676 = vpop.f32.mrf.mxu0
  %v3677 = vpop.f32.mrf.mxu0
  %v3678 = vadd.f32 0.0, %v3677
  %v3679 = vpop.f32.mrf.mxu0
  %3680 = vmatprep.mubr.bf16.mxu0 0
  %3681 = vmatmul.mubr.bf16.gmra.mxu0 %v3340
  %v3682 = vpop.f32.mrf.mxu0
  %v3683 = vadd.f32 0.0, %v3682
  %v3684 = vpop.f32.mrf.mxu0
  %v3685 = vpop.f32.mrf.mxu0
  %v3686 = vadd.f32 0.0, %v3685
  %v3687 = vpop.f32.mrf.mxu0
  %3688 = vmatprep.mubr.bf16.mxu0 0
  %3689 = vmatmul.mubr.bf16.gmra.mxu0 %v3341
  %v3690 = vpop.f32.mrf.mxu0
  %v3691 = vadd.f32 0.0, %v3690
  %v3692 = vpop.f32.mrf.mxu0
  %v3693 = vpop.f32.mrf.mxu0
  %v3694 = vadd.f32 0.0, %v3693
  %v3695 = vpop.f32.mrf.mxu0
  %3696 = vmatprep.mubr.bf16.mxu0 0
  %3697 = vmatmul.mubr.bf16.gmra.mxu0 %v3342
  %v3698 = vpop.f32.mrf.mxu0
  %v3699 = vadd.f32 0.0, %v3698
  %v3700 = vpop.f32.mrf.mxu0
  %v3701 = vpop.f32.mrf.mxu0
  %v3702 = vadd.f32 0.0, %v3701
  %v3703 = vpop.f32.mrf.mxu0
  %3704 = vmatprep.mubr.bf16.mxu0 0
  %3705 = vmatmul.mubr.bf16.gmra.mxu0 %v3343
  %v3706 = vpop.f32.mrf.mxu0
  %v3707 = vadd.f32 0.0, %v3706
  %v3708 = vpop.f32.mrf.mxu0
  %v3709 = vpop.f32.mrf.mxu0
  %v3710 = vadd.f32 0.0, %v3709
  %v3711 = vpop.f32.mrf.mxu0
  %3712 = vdwg.mxu0
  %v3777 = vunpack.c.l.b16 %v2349
  %v3778 = vunpack.c.l.b16 %v2350
  %v3779 = vunpack.c.l.b16 %v2351
  %v3780 = vunpack.c.l.b16 %v2352
  %v3781 = vunpack.c.l.b16 %v2353
  %v3782 = vunpack.c.l.b16 %v2354
  %v3783 = vunpack.c.l.b16 %v2355
  %v3784 = vunpack.c.l.b16 %v2356
  %v3785 = vunpack.c.l.b16 %v2357
  %v3786 = vunpack.c.l.b16 %v2358
  %v3787 = vunpack.c.l.b16 %v2359
  %v3788 = vunpack.c.l.b16 %v2360
  %v3789 = vunpack.c.l.b16 %v2361
  %v3790 = vunpack.c.l.b16 %v2362
  %v3791 = vunpack.c.l.b16 %v2363
  %v3792 = vunpack.c.l.b16 %v2364
  %v3793 = vunpack.c.l.b16 %v2365
  %v3794 = vunpack.c.l.b16 %v2366
  %v3795 = vunpack.c.l.b16 %v2367
  %v3796 = vunpack.c.l.b16 %v2368
  %v3797 = vunpack.c.l.b16 %v2369
  %v3798 = vunpack.c.l.b16 %v2370
  %v3799 = vunpack.c.l.b16 %v2371
  %v3800 = vunpack.c.l.b16 %v2372
  %v3801 = vunpack.c.l.b16 %v2373
  %v3802 = vunpack.c.l.b16 %v2374
  %v3803 = vunpack.c.l.b16 %v2375
  %v3804 = vunpack.c.l.b16 %v2376
  %v3805 = vunpack.c.l.b16 %v2377
  %v3806 = vunpack.c.l.b16 %v2378
  %v3807 = vunpack.c.l.b16 %v2379
  %v3808 = vunpack.c.l.b16 %v2380
  %v3809 = vunpack.c.l.b16 %v2381
  %v3810 = vunpack.c.l.b16 %v2382
  %v3811 = vunpack.c.l.b16 %v2383
  %v3812 = vunpack.c.l.b16 %v2384
  %v3813 = vunpack.c.l.b16 %v2385
  %v3814 = vunpack.c.l.b16 %v2386
  %v3815 = vunpack.c.l.b16 %v2387
  %v3816 = vunpack.c.l.b16 %v2388
  %v3817 = vunpack.c.l.b16 %v2389
  %v3818 = vunpack.c.l.b16 %v2390
  %v3819 = vunpack.c.l.b16 %v2391
  %v3820 = vunpack.c.l.b16 %v2392
  %v3821 = vunpack.c.l.b16 %v2393
  %v3822 = vunpack.c.l.b16 %v2394
  %v3823 = vunpack.c.l.b16 %v2395
  %v3824 = vunpack.c.l.b16 %v2396
  %v3825 = vunpack.c.l.b16 %v2397
  %v3826 = vunpack.c.l.b16 %v2398
  %v3827 = vunpack.c.l.b16 %v2399
  %v3828 = vunpack.c.l.b16 %v2400
  %v3829 = vunpack.c.l.b16 %v2401
  %v3830 = vunpack.c.l.b16 %v2402
  %v3831 = vunpack.c.l.b16 %v2403
  %v3832 = vunpack.c.l.b16 %v2404
  %v3833 = vunpack.c.l.b16 %v2405
  %v3834 = vunpack.c.l.b16 %v2406
  %v3835 = vunpack.c.l.b16 %v2407
  %v3836 = vunpack.c.l.b16 %v2408
  %v3837 = vunpack.c.l.b16 %v2409
  %v3838 = vunpack.c.l.b16 %v2410
  %v3839 = vunpack.c.l.b16 %v2411
  %v3840 = vunpack.c.l.b16 %v2412
  %v3841 = vpack.c.b16 %v3778, %v3777
  %v3842 = vpack.c.b16 %v3780, %v3779
  %v3843 = vpack.c.b16 %v3782, %v3781
  %v3844 = vpack.c.b16 %v3784, %v3783
  %v3845 = vpack.c.b16 %v3786, %v3785
  %v3846 = vpack.c.b16 %v3788, %v3787
  %v3847 = vpack.c.b16 %v3790, %v3789
  %v3848 = vpack.c.b16 %v3792, %v3791
  %v3849 = vpack.c.b16 %v3794, %v3793
  %v3850 = vpack.c.b16 %v3796, %v3795
  %v3851 = vpack.c.b16 %v3798, %v3797
  %v3852 = vpack.c.b16 %v3800, %v3799
  %v3853 = vpack.c.b16 %v3802, %v3801
  %v3854 = vpack.c.b16 %v3804, %v3803
  %v3855 = vpack.c.b16 %v3806, %v3805
  %v3856 = vpack.c.b16 %v3808, %v3807
  %v3857 = vpack.c.b16 %v3810, %v3809
  %v3858 = vpack.c.b16 %v3812, %v3811
  %v3859 = vpack.c.b16 %v3814, %v3813
  %v3860 = vpack.c.b16 %v3816, %v3815
  %v3861 = vpack.c.b16 %v3818, %v3817
  %v3862 = vpack.c.b16 %v3820, %v3819
  %v3863 = vpack.c.b16 %v3822, %v3821
  %v3864 = vpack.c.b16 %v3824, %v3823
  %v3865 = vpack.c.b16 %v3826, %v3825
  %v3866 = vpack.c.b16 %v3828, %v3827
  %v3867 = vpack.c.b16 %v3830, %v3829
  %v3868 = vpack.c.b16 %v3832, %v3831
  %v3869 = vpack.c.b16 %v3834, %v3833
  %v3870 = vpack.c.b16 %v3836, %v3835
  %v3871 = vpack.c.b16 %v3838, %v3837
  %v3872 = vpack.c.b16 %v3840, %v3839
  %v3921 = vunpack.c.l.b16 %v2413
  %v3922 = vunpack.c.l.b16 %v2414
  %v3923 = vunpack.c.l.b16 %v2415
  %v3924 = vunpack.c.l.b16 %v2416
  %v3925 = vunpack.c.l.b16 %v2417
  %v3926 = vunpack.c.l.b16 %v2418
  %v3927 = vunpack.c.l.b16 %v2419
  %v3928 = vunpack.c.l.b16 %v2420
  %v3929 = vunpack.c.l.b16 %v2421
  %v3930 = vunpack.c.l.b16 %v2422
  %v3931 = vunpack.c.l.b16 %v2423
  %v3932 = vunpack.c.l.b16 %v2424
  %v3933 = vunpack.c.l.b16 %v2425
  %v3934 = vunpack.c.l.b16 %v2426
  %v3935 = vunpack.c.l.b16 %v2427
  %v3936 = vunpack.c.l.b16 %v2428
  %v3937 = vpack.c.b16 %v3922, %v3921
  %v3938 = vpack.c.b16 %v3924, %v3923
  %v3939 = vpack.c.b16 %v3926, %v3925
  %v3940 = vpack.c.b16 %v3928, %v3927
  %v3941 = vpack.c.b16 %v3930, %v3929
  %v3942 = vpack.c.b16 %v3932, %v3931
  %v3943 = vpack.c.b16 %v3934, %v3933
  %v3944 = vpack.c.b16 %v3936, %v3935
  %3953 = vmatprep.subr.bf16.mxu0 0
  %3954 = vmatpush1.bf16.msra.mxu0 %v3944
  %3955 = vmatprep.subr.bf16.mxu0 0
  %3956 = vmatpush1.bf16.msra.mxu0 %v3943
  %3957 = vmatprep.subr.bf16.mxu0 0
  %3958 = vmatpush1.bf16.msra.mxu0 %v3942
  %3959 = vmatprep.subr.bf16.mxu0 0
  %3960 = vmatpush1.bf16.msra.mxu0 %v3941
  %3961 = vmatprep.subr.bf16.mxu0 0
  %3962 = vmatpush1.bf16.msra.mxu0 %v3940
  %3963 = vmatprep.subr.bf16.mxu0 0
  %3964 = vmatpush1.bf16.msra.mxu0 %v3939
  %3965 = vmatprep.subr.bf16.mxu0 0
  %3966 = vmatpush1.bf16.msra.mxu0 %v3938
  %3967 = vmatprep.subr.bf16.mxu0 0
  %3968 = vmatpush1.bf16.msra.mxu0 %v3937
  %3969 = vmatprep.subr.bf16.mxu0 0
  %3970 = vmatpush2.bf16.msra.mxu0 0
  %3971 = vmatprep.subr.bf16.mxu0 0
  %3972 = vmatpush2.bf16.msra.mxu0 0
  %3973 = vmatprep.subr.bf16.mxu0 0
  %3974 = vmatpush2.bf16.msra.mxu0 0
  %3975 = vmatprep.subr.bf16.mxu0 0
  %3976 = vmatpush2.bf16.msra.mxu0 0
  %3977 = vmatprep.subr.bf16.mxu0 0
  %3978 = vmatpush2.bf16.msra.mxu0 0
  %3979 = vmatprep.subr.bf16.mxu0 0
  %3980 = vmatpush2.bf16.msra.mxu0 0
  %3981 = vmatprep.subr.bf16.mxu0 0
  %3982 = vmatpush2.bf16.msra.mxu0 0
  %3983 = vmatprep.subr.bf16.mxu0 0
  %3984 = vmatpush2.bf16.msra.mxu0 0
  %3985 = vmatprep.mubr.bf16.mxu0 0
  %3986 = vmatmul.mubr.bf16.gmra.mxu0 %v3841
  %v3987 = vpop.f32.mrf.mxu0
  %v3988 = vadd.f32 %v3459, %v3987
  %v3989 = vpop.f32.mrf.mxu0
  %v3990 = vpop.f32.mrf.mxu0
  %v3991 = vadd.f32 %v3462, %v3990
  %v3992 = vpop.f32.mrf.mxu0
  %3993 = vmatprep.mubr.bf16.mxu0 0
  %3994 = vmatmul.mubr.bf16.gmra.mxu0 %v3842
  %v3995 = vpop.f32.mrf.mxu0
  %v3996 = vadd.f32 %v3467, %v3995
  %v3997 = vpop.f32.mrf.mxu0
  %v3998 = vpop.f32.mrf.mxu0
  %v3999 = vadd.f32 %v3470, %v3998
  %v4000 = vpop.f32.mrf.mxu0
  %4001 = vmatprep.mubr.bf16.mxu0 0
  %4002 = vmatmul.mubr.bf16.gmra.mxu0 %v3843
  %v4003 = vpop.f32.mrf.mxu0
  %v4004 = vadd.f32 %v3475, %v4003
  %v4005 = vpop.f32.mrf.mxu0
  %v4006 = vpop.f32.mrf.mxu0
  %v4007 = vadd.f32 %v3478, %v4006
  %v4008 = vpop.f32.mrf.mxu0
  %4009 = vmatprep.mubr.bf16.mxu0 0
  %4010 = vmatmul.mubr.bf16.gmra.mxu0 %v3844
  %v4011 = vpop.f32.mrf.mxu0
  %v4012 = vadd.f32 %v3483, %v4011
  %v4013 = vpop.f32.mrf.mxu0
  %v4014 = vpop.f32.mrf.mxu0
  %v4015 = vadd.f32 %v3486, %v4014
  %v4016 = vpop.f32.mrf.mxu0
  %4017 = vmatprep.mubr.bf16.mxu0 0
  %4018 = vmatmul.mubr.bf16.gmra.mxu0 %v3845
  %v4019 = vpop.f32.mrf.mxu0
  %v4020 = vadd.f32 %v3491, %v4019
  %v4021 = vpop.f32.mrf.mxu0
  %v4022 = vpop.f32.mrf.mxu0
  %v4023 = vadd.f32 %v3494, %v4022
  %v4024 = vpop.f32.mrf.mxu0
  %4025 = vmatprep.mubr.bf16.mxu0 0
  %4026 = vmatmul.mubr.bf16.gmra.mxu0 %v3846
  %v4027 = vpop.f32.mrf.mxu0
  %v4028 = vadd.f32 %v3499, %v4027
  %v4029 = vpop.f32.mrf.mxu0
  %v4030 = vpop.f32.mrf.mxu0
  %v4031 = vadd.f32 %v3502, %v4030
  %v4032 = vpop.f32.mrf.mxu0
  %4033 = vmatprep.mubr.bf16.mxu0 0
  %4034 = vmatmul.mubr.bf16.gmra.mxu0 %v3847
  %v4035 = vpop.f32.mrf.mxu0
  %v4036 = vadd.f32 %v3507, %v4035
  %v4037 = vpop.f32.mrf.mxu0
  %v4038 = vpop.f32.mrf.mxu0
  %v4039 = vadd.f32 %v3510, %v4038
  %v4040 = vpop.f32.mrf.mxu0
  %4041 = vmatprep.mubr.bf16.mxu0 0
  %4042 = vmatmul.mubr.bf16.gmra.mxu0 %v3848
  %v4043 = vpop.f32.mrf.mxu0
  %v4044 = vadd.f32 %v3515, %v4043
  %v4045 = vpop.f32.mrf.mxu0
  %v4046 = vpop.f32.mrf.mxu0
  %v4047 = vadd.f32 %v3518, %v4046
  %v4048 = vpop.f32.mrf.mxu0
  %4049 = vmatprep.mubr.bf16.mxu0 0
  %4050 = vmatmul.mubr.bf16.gmra.mxu0 %v3849
  %v4051 = vpop.f32.mrf.mxu0
  %v4052 = vadd.f32 %v3523, %v4051
  %v4053 = vpop.f32.mrf.mxu0
  %v4054 = vpop.f32.mrf.mxu0
  %v4055 = vadd.f32 %v3526, %v4054
  %v4056 = vpop.f32.mrf.mxu0
  %4057 = vmatprep.mubr.bf16.mxu0 0
  %4058 = vmatmul.mubr.bf16.gmra.mxu0 %v3850
  %v4059 = vpop.f32.mrf.mxu0
  %v4060 = vadd.f32 %v3531, %v4059
  %v4061 = vpop.f32.mrf.mxu0
  %v4062 = vpop.f32.mrf.mxu0
  %v4063 = vadd.f32 %v3534, %v4062
  %v4064 = vpop.f32.mrf.mxu0
  %4065 = vmatprep.mubr.bf16.mxu0 0
  %4066 = vmatmul.mubr.bf16.gmra.mxu0 %v3851
  %v4067 = vpop.f32.mrf.mxu0
  %v4068 = vadd.f32 %v3539, %v4067
  %v4069 = vpop.f32.mrf.mxu0
  %v4070 = vpop.f32.mrf.mxu0
  %v4071 = vadd.f32 %v3542, %v4070
  %v4072 = vpop.f32.mrf.mxu0
  %4073 = vmatprep.mubr.bf16.mxu0 0
  %4074 = vmatmul.mubr.bf16.gmra.mxu0 %v3852
  %v4075 = vpop.f32.mrf.mxu0
  %v4076 = vadd.f32 %v3547, %v4075
  %v4077 = vpop.f32.mrf.mxu0
  %v4078 = vpop.f32.mrf.mxu0
  %v4079 = vadd.f32 %v3550, %v4078
  %v4080 = vpop.f32.mrf.mxu0
  %4081 = vmatprep.mubr.bf16.mxu0 0
  %4082 = vmatmul.mubr.bf16.gmra.mxu0 %v3853
  %v4083 = vpop.f32.mrf.mxu0
  %v4084 = vadd.f32 %v3555, %v4083
  %v4085 = vpop.f32.mrf.mxu0
  %v4086 = vpop.f32.mrf.mxu0
  %v4087 = vadd.f32 %v3558, %v4086
  %v4088 = vpop.f32.mrf.mxu0
  %4089 = vmatprep.mubr.bf16.mxu0 0
  %4090 = vmatmul.mubr.bf16.gmra.mxu0 %v3854
  %v4091 = vpop.f32.mrf.mxu0
  %v4092 = vadd.f32 %v3563, %v4091
  %v4093 = vpop.f32.mrf.mxu0
  %v4094 = vpop.f32.mrf.mxu0
  %v4095 = vadd.f32 %v3566, %v4094
  %v4096 = vpop.f32.mrf.mxu0
  %4097 = vmatprep.mubr.bf16.mxu0 0
  %4098 = vmatmul.mubr.bf16.gmra.mxu0 %v3855
  %v4099 = vpop.f32.mrf.mxu0
  %v4100 = vadd.f32 %v3571, %v4099
  %v4101 = vpop.f32.mrf.mxu0
  %v4102 = vpop.f32.mrf.mxu0
  %v4103 = vadd.f32 %v3574, %v4102
  %v4104 = vpop.f32.mrf.mxu0
  %4105 = vmatprep.mubr.bf16.mxu0 0
  %4106 = vmatmul.mubr.bf16.gmra.mxu0 %v3856
  %v4107 = vpop.f32.mrf.mxu0
  %v4108 = vadd.f32 %v3579, %v4107
  %v4109 = vpop.f32.mrf.mxu0
  %v4110 = vpop.f32.mrf.mxu0
  %v4111 = vadd.f32 %v3582, %v4110
  %v4112 = vpop.f32.mrf.mxu0
  %4113 = vmatprep.mubr.bf16.mxu0 0
  %4114 = vmatmul.mubr.bf16.gmra.mxu0 %v3857
  %v4115 = vpop.f32.mrf.mxu0
  %v4116 = vadd.f32 %v3587, %v4115
  %v4117 = vpop.f32.mrf.mxu0
  %v4118 = vpop.f32.mrf.mxu0
  %v4119 = vadd.f32 %v3590, %v4118
  %v4120 = vpop.f32.mrf.mxu0
  %4121 = vmatprep.mubr.bf16.mxu0 0
  %4122 = vmatmul.mubr.bf16.gmra.mxu0 %v3858
  %v4123 = vpop.f32.mrf.mxu0
  %v4124 = vadd.f32 %v3595, %v4123
  %v4125 = vpop.f32.mrf.mxu0
  %v4126 = vpop.f32.mrf.mxu0
  %v4127 = vadd.f32 %v3598, %v4126
  %v4128 = vpop.f32.mrf.mxu0
  %4129 = vmatprep.mubr.bf16.mxu0 0
  %4130 = vmatmul.mubr.bf16.gmra.mxu0 %v3859
  %v4131 = vpop.f32.mrf.mxu0
  %v4132 = vadd.f32 %v3603, %v4131
  %v4133 = vpop.f32.mrf.mxu0
  %v4134 = vpop.f32.mrf.mxu0
  %v4135 = vadd.f32 %v3606, %v4134
  %v4136 = vpop.f32.mrf.mxu0
  %4137 = vmatprep.mubr.bf16.mxu0 0
  %4138 = vmatmul.mubr.bf16.gmra.mxu0 %v3860
  %v4139 = vpop.f32.mrf.mxu0
  %v4140 = vadd.f32 %v3611, %v4139
  %v4141 = vpop.f32.mrf.mxu0
  %v4142 = vpop.f32.mrf.mxu0
  %v4143 = vadd.f32 %v3614, %v4142
  %v4144 = vpop.f32.mrf.mxu0
  %4145 = vmatprep.mubr.bf16.mxu0 0
  %4146 = vmatmul.mubr.bf16.gmra.mxu0 %v3861
  %v4147 = vpop.f32.mrf.mxu0
  %v4148 = vadd.f32 %v3619, %v4147
  %v4149 = vpop.f32.mrf.mxu0
  %v4150 = vpop.f32.mrf.mxu0
  %v4151 = vadd.f32 %v3622, %v4150
  %v4152 = vpop.f32.mrf.mxu0
  %4153 = vmatprep.mubr.bf16.mxu0 0
  %4154 = vmatmul.mubr.bf16.gmra.mxu0 %v3862
  %v4155 = vpop.f32.mrf.mxu0
  %v4156 = vadd.f32 %v3627, %v4155
  %v4157 = vpop.f32.mrf.mxu0
  %v4158 = vpop.f32.mrf.mxu0
  %v4159 = vadd.f32 %v3630, %v4158
  %v4160 = vpop.f32.mrf.mxu0
  %4161 = vmatprep.mubr.bf16.mxu0 0
  %4162 = vmatmul.mubr.bf16.gmra.mxu0 %v3863
  %v4163 = vpop.f32.mrf.mxu0
  %v4164 = vadd.f32 %v3635, %v4163
  %v4165 = vpop.f32.mrf.mxu0
  %v4166 = vpop.f32.mrf.mxu0
  %v4167 = vadd.f32 %v3638, %v4166
  %v4168 = vpop.f32.mrf.mxu0
  %4169 = vmatprep.mubr.bf16.mxu0 0
  %4170 = vmatmul.mubr.bf16.gmra.mxu0 %v3864
  %v4171 = vpop.f32.mrf.mxu0
  %v4172 = vadd.f32 %v3643, %v4171
  %v4173 = vpop.f32.mrf.mxu0
  %v4174 = vpop.f32.mrf.mxu0
  %v4175 = vadd.f32 %v3646, %v4174
  %v4176 = vpop.f32.mrf.mxu0
  %4177 = vmatprep.mubr.bf16.mxu0 0
  %4178 = vmatmul.mubr.bf16.gmra.mxu0 %v3865
  %v4179 = vpop.f32.mrf.mxu0
  %v4180 = vadd.f32 %v3651, %v4179
  %v4181 = vpop.f32.mrf.mxu0
  %v4182 = vpop.f32.mrf.mxu0
  %v4183 = vadd.f32 %v3654, %v4182
  %v4184 = vpop.f32.mrf.mxu0
  %4185 = vmatprep.mubr.bf16.mxu0 0
  %4186 = vmatmul.mubr.bf16.gmra.mxu0 %v3866
  %v4187 = vpop.f32.mrf.mxu0
  %v4188 = vadd.f32 %v3659, %v4187
  %v4189 = vpop.f32.mrf.mxu0
  %v4190 = vpop.f32.mrf.mxu0
  %v4191 = vadd.f32 %v3662, %v4190
  %v4192 = vpop.f32.mrf.mxu0
  %4193 = vmatprep.mubr.bf16.mxu0 0
  %4194 = vmatmul.mubr.bf16.gmra.mxu0 %v3867
  %v4195 = vpop.f32.mrf.mxu0
  %v4196 = vadd.f32 %v3667, %v4195
  %v4197 = vpop.f32.mrf.mxu0
  %v4198 = vpop.f32.mrf.mxu0
  %v4199 = vadd.f32 %v3670, %v4198
  %v4200 = vpop.f32.mrf.mxu0
  %4201 = vmatprep.mubr.bf16.mxu0 0
  %4202 = vmatmul.mubr.bf16.gmra.mxu0 %v3868
  %v4203 = vpop.f32.mrf.mxu0
  %v4204 = vadd.f32 %v3675, %v4203
  %v4205 = vpop.f32.mrf.mxu0
  %v4206 = vpop.f32.mrf.mxu0
  %v4207 = vadd.f32 %v3678, %v4206
  %v4208 = vpop.f32.mrf.mxu0
  %4209 = vmatprep.mubr.bf16.mxu0 0
  %4210 = vmatmul.mubr.bf16.gmra.mxu0 %v3869
  %v4211 = vpop.f32.mrf.mxu0
  %v4212 = vadd.f32 %v3683, %v4211
  %v4213 = vpop.f32.mrf.mxu0
  %v4214 = vpop.f32.mrf.mxu0
  %v4215 = vadd.f32 %v3686, %v4214
  %v4216 = vpop.f32.mrf.mxu0
  %4217 = vmatprep.mubr.bf16.mxu0 0
  %4218 = vmatmul.mubr.bf16.gmra.mxu0 %v3870
  %v4219 = vpop.f32.mrf.mxu0
  %v4220 = vadd.f32 %v3691, %v4219
  %v4221 = vpop.f32.mrf.mxu0
  %v4222 = vpop.f32.mrf.mxu0
  %v4223 = vadd.f32 %v3694, %v4222
  %v4224 = vpop.f32.mrf.mxu0
  %4225 = vmatprep.mubr.bf16.mxu0 0
  %4226 = vmatmul.mubr.bf16.gmra.mxu0 %v3871
  %v4227 = vpop.f32.mrf.mxu0
  %v4228 = vadd.f32 %v3699, %v4227
  %v4229 = vpop.f32.mrf.mxu0
  %v4230 = vpop.f32.mrf.mxu0
  %v4231 = vadd.f32 %v3702, %v4230
  %v4232 = vpop.f32.mrf.mxu0
  %4233 = vmatprep.mubr.bf16.mxu0 0
  %4234 = vmatmul.mubr.bf16.gmra.mxu0 %v3872
  %v4235 = vpop.f32.mrf.mxu0
  %v4236 = vadd.f32 %v3707, %v4235
  %v4237 = vpop.f32.mrf.mxu0
  %v4238 = vpop.f32.mrf.mxu0
  %v4239 = vadd.f32 %v3710, %v4238
  %v4240 = vpop.f32.mrf.mxu0
  %4241 = vdwg.mxu0
  %v4242 = vld [vmem:[#allocation2] sm:$0xe]
  %v4243 = vld [vmem:[#allocation2 + $0xc] sm:$0xe]
  %v4244 = vld [vmem:[#allocation2 + $0x18] sm:$0xe]
  %v4245 = vld [vmem:[#allocation2 + $0x24] sm:$0xe]
  %v4246 = vld [vmem:[#allocation2 + $0x30] sm:$0xe]
  %v4247 = vld [vmem:[#allocation2 + $0x3c] sm:$0xe]
  %v4248 = vld [vmem:[#allocation2 + $0x48] sm:$0xe]
  %v4249 = vld [vmem:[#allocation2 + $0x54] sm:$0xe]
  %v4250 = vld [vmem:[#allocation2 + $0x60] sm:$0xe]
  %v4251 = vld [vmem:[#allocation2 + $0x6c] sm:$0xe]
  %v4252 = vld [vmem:[#allocation2 + $0x78] sm:$0xe]
  %v4253 = vld [vmem:[#allocation2 + $0x84] sm:$0xe]
  %v4254 = vld [vmem:[#allocation2 + $0x90] sm:$0xe]
  %v4255 = vld [vmem:[#allocation2 + $0x9c] sm:$0xe]
  %v4256 = vld [vmem:[#allocation2 + $0xa8] sm:$0xe]
  %v4257 = vld [vmem:[#allocation2 + $0xb4] sm:$0xe]
  %v4258 = vld [vmem:[#allocation2 + $0xd8] sm:$0xe]
  %v4259 = vld [vmem:[#allocation2 + $0xe4] sm:$0xe]
  %v4260 = vld [vmem:[#allocation2 + $0xf0] sm:$0xe]
  %v4261 = vld [vmem:[#allocation2 + $0xfc] sm:$0xe]
  %v4262 = vld [vmem:[#allocation2 + $0x108] sm:$0xe]
  %v4263 = vld [vmem:[#allocation2 + $0x114] sm:$0xe]
  %v4264 = vld [vmem:[#allocation2 + $0x120] sm:$0xe]
  %v4265 = vld [vmem:[#allocation2 + $0x12c] sm:$0xe]
  %v4266 = vld [vmem:[#allocation2 + $0x138] sm:$0xe]
  %v4267 = vld [vmem:[#allocation2 + $0x144] sm:$0xe]
  %v4268 = vld [vmem:[#allocation2 + $0x150] sm:$0xe]
  %v4269 = vld [vmem:[#allocation2 + $0x15c] sm:$0xe]
  %v4270 = vld [vmem:[#allocation2 + $0x168] sm:$0xe]
  %v4271 = vld [vmem:[#allocation2 + $0x174] sm:$0xe]
  %v4272 = vld [vmem:[#allocation2 + $0x180] sm:$0xe]
  %v4273 = vld [vmem:[#allocation2 + $0x18c] sm:$0xe]
  %vm4338 = vcmask 1042432
  %vm4339 = vcmask 1046532
  %vm4340 = vmor %vm4338, %vm4339
  %v4341 = vrot.slane %v4242, 5
  %v4342 = vrot.slane %v4341, 4
  %v4343 = vrot.slane %v2350, 5
  %v4344 = vsel %vm4340, %v4342, %v4343
  %v4345 = vrot.slane %v4343, 4
  %v4346 = vrot.slane %v2429, 5
  %v4347 = vsel %vm4340, %v4345, %v4346
  %v4348 = vrot.slane %v4243, 5
  %v4349 = vrot.slane %v4348, 4
  %v4350 = vrot.slane %v2352, 5
  %v4351 = vsel %vm4340, %v4349, %v4350
  %v4352 = vrot.slane %v4350, 4
  %v4353 = vrot.slane %v2430, 5
  %v4354 = vsel %vm4340, %v4352, %v4353
  %v4355 = vrot.slane %v4244, 5
  %v4356 = vrot.slane %v4355, 4
  %v4357 = vrot.slane %v2354, 5
  %v4358 = vsel %vm4340, %v4356, %v4357
  %v4359 = vrot.slane %v4357, 4
  %v4360 = vrot.slane %v2431, 5
  %v4361 = vsel %vm4340, %v4359, %v4360
  %v4362 = vrot.slane %v4245, 5
  %v4363 = vrot.slane %v4362, 4
  %v4364 = vrot.slane %v2356, 5
  %v4365 = vsel %vm4340, %v4363, %v4364
  %v4366 = vrot.slane %v4364, 4
  %v4367 = vrot.slane %v2432, 5
  %v4368 = vsel %vm4340, %v4366, %v4367
  %v4369 = vrot.slane %v4246, 5
  %v4370 = vrot.slane %v4369, 4
  %v4371 = vrot.slane %v2358, 5
  %v4372 = vsel %vm4340, %v4370, %v4371
  %v4373 = vrot.slane %v4371, 4
  %v4374 = vrot.slane %v2433, 5
  %v4375 = vsel %vm4340, %v4373, %v4374
  %v4376 = vrot.slane %v4247, 5
  %v4377 = vrot.slane %v4376, 4
  %v4378 = vrot.slane %v2360, 5
  %v4379 = vsel %vm4340, %v4377, %v4378
  %v4380 = vrot.slane %v4378, 4
  %v4381 = vrot.slane %v2434, 5
  %v4382 = vsel %vm4340, %v4380, %v4381
  %v4383 = vrot.slane %v4248, 5
  %v4384 = vrot.slane %v4383, 4
  %v4385 = vrot.slane %v2362, 5
  %v4386 = vsel %vm4340, %v4384, %v4385
  %v4387 = vrot.slane %v4385, 4
  %v4388 = vrot.slane %v2435, 5
  %v4389 = vsel %vm4340, %v4387, %v4388
  %v4390 = vrot.slane %v4249, 5
  %v4391 = vrot.slane %v4390, 4
  %v4392 = vrot.slane %v2364, 5
  %v4393 = vsel %vm4340, %v4391, %v4392
  %v4394 = vrot.slane %v4392, 4
  %v4395 = vrot.slane %v2436, 5
  %v4396 = vsel %vm4340, %v4394, %v4395
  %v4397 = vrot.slane %v4250, 5
  %v4398 = vrot.slane %v4397, 4
  %v4399 = vrot.slane %v2366, 5
  %v4400 = vsel %vm4340, %v4398, %v4399
  %v4401 = vrot.slane %v4399, 4
  %v4402 = vrot.slane %v2437, 5
  %v4403 = vsel %vm4340, %v4401, %v4402
  %v4404 = vrot.slane %v4251, 5
  %v4405 = vrot.slane %v4404, 4
  %v4406 = vrot.slane %v2368, 5
  %v4407 = vsel %vm4340, %v4405, %v4406
  %v4408 = vrot.slane %v4406, 4
  %v4409 = vrot.slane %v2438, 5
  %v4410 = vsel %vm4340, %v4408, %v4409
  %v4411 = vrot.slane %v4252, 5
  %v4412 = vrot.slane %v4411, 4
  %v4413 = vrot.slane %v2370, 5
  %v4414 = vsel %vm4340, %v4412, %v4413
  %v4415 = vrot.slane %v4413, 4
  %v4416 = vrot.slane %v2439, 5
  %v4417 = vsel %vm4340, %v4415, %v4416
  %v4418 = vrot.slane %v4253, 5
  %v4419 = vrot.slane %v4418, 4
  %v4420 = vrot.slane %v2372, 5
  %v4421 = vsel %vm4340, %v4419, %v4420
  %v4422 = vrot.slane %v4420, 4
  %v4423 = vrot.slane %v2440, 5
  %v4424 = vsel %vm4340, %v4422, %v4423
  %v4425 = vrot.slane %v4254, 5
  %v4426 = vrot.slane %v4425, 4
  %v4427 = vrot.slane %v2374, 5
  %v4428 = vsel %vm4340, %v4426, %v4427
  %v4429 = vrot.slane %v4427, 4
  %v4430 = vrot.slane %v2441, 5
  %v4431 = vsel %vm4340, %v4429, %v4430
  %v4432 = vrot.slane %v4255, 5
  %v4433 = vrot.slane %v4432, 4
  %v4434 = vrot.slane %v2376, 5
  %v4435 = vsel %vm4340, %v4433, %v4434
  %v4436 = vrot.slane %v4434, 4
  %v4437 = vrot.slane %v2442, 5
  %v4438 = vsel %vm4340, %v4436, %v4437
  %v4439 = vrot.slane %v4256, 5
  %v4440 = vrot.slane %v4439, 4
  %v4441 = vrot.slane %v2378, 5
  %v4442 = vsel %vm4340, %v4440, %v4441
  %v4443 = vrot.slane %v4441, 4
  %v4444 = vrot.slane %v2443, 5
  %v4445 = vsel %vm4340, %v4443, %v4444
  %v4446 = vrot.slane %v4257, 5
  %v4447 = vrot.slane %v4446, 4
  %v4448 = vrot.slane %v2380, 5
  %v4449 = vsel %vm4340, %v4447, %v4448
  %v4450 = vrot.slane %v4448, 4
  %v4451 = vrot.slane %v2444, 5
  %v4452 = vsel %vm4340, %v4450, %v4451
  %v4453 = vrot.slane %v4258, 5
  %v4454 = vrot.slane %v4453, 4
  %v4455 = vrot.slane %v2382, 5
  %v4456 = vsel %vm4340, %v4454, %v4455
  %v4457 = vrot.slane %v4455, 4
  %v4458 = vrot.slane %v2445, 5
  %v4459 = vsel %vm4340, %v4457, %v4458
  %v4460 = vrot.slane %v4259, 5
  %v4461 = vrot.slane %v4460, 4
  %v4462 = vrot.slane %v2384, 5
  %v4463 = vsel %vm4340, %v4461, %v4462
  %v4464 = vrot.slane %v4462, 4
  %v4465 = vrot.slane %v2446, 5
  %v4466 = vsel %vm4340, %v4464, %v4465
  %v4467 = vrot.slane %v4260, 5
  %v4468 = vrot.slane %v4467, 4
  %v4469 = vrot.slane %v2386, 5
  %v4470 = vsel %vm4340, %v4468, %v4469
  %v4471 = vrot.slane %v4469, 4
  %v4472 = vrot.slane %v2447, 5
  %v4473 = vsel %vm4340, %v4471, %v4472
  %v4474 = vrot.slane %v4261, 5
  %v4475 = vrot.slane %v4474, 4
  %v4476 = vrot.slane %v2388, 5
  %v4477 = vsel %vm4340, %v4475, %v4476
  %v4478 = vrot.slane %v4476, 4
  %v4479 = vrot.slane %v2448, 5
  %v4480 = vsel %vm4340, %v4478, %v4479
  %v4481 = vrot.slane %v4262, 5
  %v4482 = vrot.slane %v4481, 4
  %v4483 = vrot.slane %v2390, 5
  %v4484 = vsel %vm4340, %v4482, %v4483
  %v4485 = vrot.slane %v4483, 4
  %v4486 = vrot.slane %v2449, 5
  %v4487 = vsel %vm4340, %v4485, %v4486
  %v4488 = vrot.slane %v4263, 5
  %v4489 = vrot.slane %v4488, 4
  %v4490 = vrot.slane %v2392, 5
  %v4491 = vsel %vm4340, %v4489, %v4490
  %v4492 = vrot.slane %v4490, 4
  %v4493 = vrot.slane %v2450, 5
  %v4494 = vsel %vm4340, %v4492, %v4493
  %v4495 = vrot.slane %v4264, 5
  %v4496 = vrot.slane %v4495, 4
  %v4497 = vrot.slane %v2394, 5
  %v4498 = vsel %vm4340, %v4496, %v4497
  %v4499 = vrot.slane %v4497, 4
  %v4500 = vrot.slane %v2451, 5
  %v4501 = vsel %vm4340, %v4499, %v4500
  %v4502 = vrot.slane %v4265, 5
  %v4503 = vrot.slane %v4502, 4
  %v4504 = vrot.slane %v2396, 5
  %v4505 = vsel %vm4340, %v4503, %v4504
  %v4506 = vrot.slane %v4504, 4
  %v4507 = vrot.slane %v2452, 5
  %v4508 = vsel %vm4340, %v4506, %v4507
  %v4509 = vrot.slane %v4266, 5
  %v4510 = vrot.slane %v4509, 4
  %v4511 = vrot.slane %v2398, 5
  %v4512 = vsel %vm4340, %v4510, %v4511
  %v4513 = vrot.slane %v4511, 4
  %v4514 = vrot.slane %v2453, 5
  %v4515 = vsel %vm4340, %v4513, %v4514
  %v4516 = vrot.slane %v4267, 5
  %v4517 = vrot.slane %v4516, 4
  %v4518 = vrot.slane %v2400, 5
  %v4519 = vsel %vm4340, %v4517, %v4518
  %v4520 = vrot.slane %v4518, 4
  %v4521 = vrot.slane %v2454, 5
  %v4522 = vsel %vm4340, %v4520, %v4521
  %v4523 = vrot.slane %v4268, 5
  %v4524 = vrot.slane %v4523, 4
  %v4525 = vrot.slane %v2402, 5
  %v4526 = vsel %vm4340, %v4524, %v4525
  %v4527 = vrot.slane %v4525, 4
  %v4528 = vrot.slane %v2455, 5
  %v4529 = vsel %vm4340, %v4527, %v4528
  %v4530 = vrot.slane %v4269, 5
  %v4531 = vrot.slane %v4530, 4
  %v4532 = vrot.slane %v2404, 5
  %v4533 = vsel %vm4340, %v4531, %v4532
  %v4534 = vrot.slane %v4532, 4
  %v4535 = vrot.slane %v2456, 5
  %v4536 = vsel %vm4340, %v4534, %v4535
  %v4537 = vrot.slane %v4270, 5
  %v4538 = vrot.slane %v4537, 4
  %v4539 = vrot.slane %v2406, 5
  %v4540 = vsel %vm4340, %v4538, %v4539
  %v4541 = vrot.slane %v4539, 4
  %v4542 = vrot.slane %v2457, 5
  %v4543 = vsel %vm4340, %v4541, %v4542
  %v4544 = vrot.slane %v4271, 5
  %v4545 = vrot.slane %v4544, 4
  %v4546 = vrot.slane %v2408, 5
  %v4547 = vsel %vm4340, %v4545, %v4546
  %v4548 = vrot.slane %v4546, 4
  %v4549 = vrot.slane %v2458, 5
  %v4550 = vsel %vm4340, %v4548, %v4549
  %v4551 = vrot.slane %v4272, 5
  %v4552 = vrot.slane %v4551, 4
  %v4553 = vrot.slane %v2410, 5
  %v4554 = vsel %vm4340, %v4552, %v4553
  %v4555 = vrot.slane %v4553, 4
  %v4556 = vrot.slane %v2459, 5
  %v4557 = vsel %vm4340, %v4555, %v4556
  %v4558 = vrot.slane %v4273, 5
  %v4559 = vrot.slane %v4558, 4
  %v4560 = vrot.slane %v2412, 5
  %v4561 = vsel %vm4340, %v4559, %v4560
  %v4562 = vrot.slane %v4560, 4
  %v4563 = vrot.slane %v2460, 5
  %v4564 = vsel %vm4340, %v4562, %v4563
  %v4565 = vld [vmem:[%s2 + $0x80] sm:$0xf]
  %v4566 = vld [vmem:[%s2 + $0x84] sm:$0xf]
  %v4567 = vld [vmem:[%s2 + $0x88] sm:$0xf]
  %v4568 = vld [vmem:[%s2 + $0x8c] sm:$0xf]
  %v4569 = vld [vmem:[%s2 + $0x90] sm:$0xf]
  %v4570 = vld [vmem:[%s2 + $0x94] sm:$0xf]
  %v4571 = vld [vmem:[%s2 + $0x98] sm:$0xf]
  %v4572 = vld [vmem:[%s2 + $0x9c] sm:$0xf]
  %v4573 = vld [vmem:[%s2 + $0xa0] sm:$0xf]
  %v4574 = vld [vmem:[%s2 + $0xa4] sm:$0xf]
  %v4575 = vld [vmem:[%s2 + $0xa8] sm:$0xf]
  %v4576 = vld [vmem:[%s2 + $0xac] sm:$0xf]
  %v4577 = vld [vmem:[%s2 + $0xb0] sm:$0xf]
  %v4578 = vld [vmem:[%s2 + $0xb4] sm:$0xf]
  %v4579 = vld [vmem:[%s2 + $0xb8] sm:$0xf]
  %v4580 = vld [vmem:[%s2 + $0xbc] sm:$0xf]
  %v4581 = vunpack.c.l.b16 %v4344
  %v4582 = vunpack.c.l.b16 %v4347
  %v4583 = vunpack.c.l.b16 %v4351
  %v4584 = vunpack.c.l.b16 %v4354
  %v4585 = vunpack.c.l.b16 %v4358
  %v4586 = vunpack.c.l.b16 %v4361
  %v4587 = vunpack.c.l.b16 %v4365
  %v4588 = vunpack.c.l.b16 %v4368
  %v4589 = vunpack.c.l.b16 %v4372
  %v4590 = vunpack.c.l.b16 %v4375
  %v4591 = vunpack.c.l.b16 %v4379
  %v4592 = vunpack.c.l.b16 %v4382
  %v4593 = vunpack.c.l.b16 %v4386
  %v4594 = vunpack.c.l.b16 %v4389
  %v4595 = vunpack.c.l.b16 %v4393
  %v4596 = vunpack.c.l.b16 %v4396
  %v4597 = vunpack.c.l.b16 %v4400
  %v4598 = vunpack.c.l.b16 %v4403
  %v4599 = vunpack.c.l.b16 %v4407
  %v4600 = vunpack.c.l.b16 %v4410
  %v4601 = vunpack.c.l.b16 %v4414
  %v4602 = vunpack.c.l.b16 %v4417
  %v4603 = vunpack.c.l.b16 %v4421
  %v4604 = vunpack.c.l.b16 %v4424
  %v4605 = vunpack.c.l.b16 %v4428
  %v4606 = vunpack.c.l.b16 %v4431
  %v4607 = vunpack.c.l.b16 %v4435
  %v4608 = vunpack.c.l.b16 %v4438
  %v4609 = vunpack.c.l.b16 %v4442
  %v4610 = vunpack.c.l.b16 %v4445
  %v4611 = vunpack.c.l.b16 %v4449
  %v4612 = vunpack.c.l.b16 %v4452
  %v4613 = vunpack.c.l.b16 %v4456
  %v4614 = vunpack.c.l.b16 %v4459
  %v4615 = vunpack.c.l.b16 %v4463
  %v4616 = vunpack.c.l.b16 %v4466
  %v4617 = vunpack.c.l.b16 %v4470
  %v4618 = vunpack.c.l.b16 %v4473
  %v4619 = vunpack.c.l.b16 %v4477
  %v4620 = vunpack.c.l.b16 %v4480
  %v4621 = vunpack.c.l.b16 %v4484
  %v4622 = vunpack.c.l.b16 %v4487
  %v4623 = vunpack.c.l.b16 %v4491
  %v4624 = vunpack.c.l.b16 %v4494
  %v4625 = vunpack.c.l.b16 %v4498
  %v4626 = vunpack.c.l.b16 %v4501
  %v4627 = vunpack.c.l.b16 %v4505
  %v4628 = vunpack.c.l.b16 %v4508
  %v4629 = vunpack.c.l.b16 %v4512
  %v4630 = vunpack.c.l.b16 %v4515
  %v4631 = vunpack.c.l.b16 %v4519
  %v4632 = vunpack.c.l.b16 %v4522
  %v4633 = vunpack.c.l.b16 %v4526
  %v4634 = vunpack.c.l.b16 %v4529
  %v4635 = vunpack.c.l.b16 %v4533
  %v4636 = vunpack.c.l.b16 %v4536
  %v4637 = vunpack.c.l.b16 %v4540
  %v4638 = vunpack.c.l.b16 %v4543
  %v4639 = vunpack.c.l.b16 %v4547
  %v4640 = vunpack.c.l.b16 %v4550
  %v4641 = vunpack.c.l.b16 %v4554
  %v4642 = vunpack.c.l.b16 %v4557
  %v4643 = vunpack.c.l.b16 %v4561
  %v4644 = vunpack.c.l.b16 %v4564
  %v4645 = vpack.c.b16 %v4582, %v4581
  %v4646 = vpack.c.b16 %v4584, %v4583
  %v4647 = vpack.c.b16 %v4586, %v4585
  %v4648 = vpack.c.b16 %v4588, %v4587
  %v4649 = vpack.c.b16 %v4590, %v4589
  %v4650 = vpack.c.b16 %v4592, %v4591
  %v4651 = vpack.c.b16 %v4594, %v4593
  %v4652 = vpack.c.b16 %v4596, %v4595
  %v4653 = vpack.c.b16 %v4598, %v4597
  %v4654 = vpack.c.b16 %v4600, %v4599
  %v4655 = vpack.c.b16 %v4602, %v4601
  %v4656 = vpack.c.b16 %v4604, %v4603
  %v4657 = vpack.c.b16 %v4606, %v4605
  %v4658 = vpack.c.b16 %v4608, %v4607
  %v4659 = vpack.c.b16 %v4610, %v4609
  %v4660 = vpack.c.b16 %v4612, %v4611
  %v4661 = vpack.c.b16 %v4614, %v4613
  %v4662 = vpack.c.b16 %v4616, %v4615
  %v4663 = vpack.c.b16 %v4618, %v4617
  %v4664 = vpack.c.b16 %v4620, %v4619
  %v4665 = vpack.c.b16 %v4622, %v4621
  %v4666 = vpack.c.b16 %v4624, %v4623
  %v4667 = vpack.c.b16 %v4626, %v4625
  %v4668 = vpack.c.b16 %v4628, %v4627
  %v4669 = vpack.c.b16 %v4630, %v4629
  %v4670 = vpack.c.b16 %v4632, %v4631
  %v4671 = vpack.c.b16 %v4634, %v4633
  %v4672 = vpack.c.b16 %v4636, %v4635
  %v4673 = vpack.c.b16 %v4638, %v4637
  %v4674 = vpack.c.b16 %v4640, %v4639
  %v4675 = vpack.c.b16 %v4642, %v4641
  %v4676 = vpack.c.b16 %v4644, %v4643
  %v4725 = vunpack.c.l.b16 %v4565
  %v4726 = vunpack.c.l.b16 %v4566
  %v4727 = vunpack.c.l.b16 %v4567
  %v4728 = vunpack.c.l.b16 %v4568
  %v4729 = vunpack.c.l.b16 %v4569
  %v4730 = vunpack.c.l.b16 %v4570
  %v4731 = vunpack.c.l.b16 %v4571
  %v4732 = vunpack.c.l.b16 %v4572
  %v4733 = vunpack.c.l.b16 %v4573
  %v4734 = vunpack.c.l.b16 %v4574
  %v4735 = vunpack.c.l.b16 %v4575
  %v4736 = vunpack.c.l.b16 %v4576
  %v4737 = vunpack.c.l.b16 %v4577
  %v4738 = vunpack.c.l.b16 %v4578
  %v4739 = vunpack.c.l.b16 %v4579
  %v4740 = vunpack.c.l.b16 %v4580
  %v4741 = vpack.c.b16 %v4726, %v4725
  %v4742 = vpack.c.b16 %v4728, %v4727
  %v4743 = vpack.c.b16 %v4730, %v4729
  %v4744 = vpack.c.b16 %v4732, %v4731
  %v4745 = vpack.c.b16 %v4734, %v4733
  %v4746 = vpack.c.b16 %v4736, %v4735
  %v4747 = vpack.c.b16 %v4738, %v4737
  %v4748 = vpack.c.b16 %v4740, %v4739
  %4757 = vmatprep.subr.bf16.mxu0 0
  %4758 = vmatpush1.bf16.msra.mxu0 %v4748
  %4759 = vmatprep.subr.bf16.mxu0 0
  %4760 = vmatpush1.bf16.msra.mxu0 %v4747
  %4761 = vmatprep.subr.bf16.mxu0 0
  %4762 = vmatpush1.bf16.msra.mxu0 %v4746
  %4763 = vmatprep.subr.bf16.mxu0 0
  %4764 = vmatpush1.bf16.msra.mxu0 %v4745
  %4765 = vmatprep.subr.bf16.mxu0 0
  %4766 = vmatpush1.bf16.msra.mxu0 %v4744
  %4767 = vmatprep.subr.bf16.mxu0 0
  %4768 = vmatpush1.bf16.msra.mxu0 %v4743
  %4769 = vmatprep.subr.bf16.mxu0 0
  %4770 = vmatpush1.bf16.msra.mxu0 %v4742
  %4771 = vmatprep.subr.bf16.mxu0 0
  %4772 = vmatpush1.bf16.msra.mxu0 %v4741
  %4773 = vmatprep.subr.bf16.mxu0 0
  %4774 = vmatpush2.bf16.msra.mxu0 0
  %4775 = vmatprep.subr.bf16.mxu0 0
  %4776 = vmatpush2.bf16.msra.mxu0 0
  %4777 = vmatprep.subr.bf16.mxu0 0
  %4778 = vmatpush2.bf16.msra.mxu0 0
  %4779 = vmatprep.subr.bf16.mxu0 0
  %4780 = vmatpush2.bf16.msra.mxu0 0
  %4781 = vmatprep.subr.bf16.mxu0 0
  %4782 = vmatpush2.bf16.msra.mxu0 0
  %4783 = vmatprep.subr.bf16.mxu0 0
  %4784 = vmatpush2.bf16.msra.mxu0 0
  %4785 = vmatprep.subr.bf16.mxu0 0
  %4786 = vmatpush2.bf16.msra.mxu0 0
  %4787 = vmatprep.subr.bf16.mxu0 0
  %4788 = vmatpush2.bf16.msra.mxu0 0
  %4789 = vmatprep.mubr.bf16.mxu0 0
  %4790 = vmatmul.mubr.bf16.gmra.mxu0 %v4645
  %v4791 = vpop.f32.mrf.mxu0
  %v4792 = vadd.f32 0.0, %v4791
  %v4793 = vpop.f32.mrf.mxu0
  %v4794 = vpop.f32.mrf.mxu0
  %v4795 = vadd.f32 0.0, %v4794
  %v4796 = vpop.f32.mrf.mxu0
  %4797 = vmatprep.mubr.bf16.mxu0 0
  %4798 = vmatmul.mubr.bf16.gmra.mxu0 %v4646
  %v4799 = vpop.f32.mrf.mxu0
  %v4800 = vadd.f32 0.0, %v4799
  %v4801 = vpop.f32.mrf.mxu0
  %v4802 = vpop.f32.mrf.mxu0
  %v4803 = vadd.f32 0.0, %v4802
  %v4804 = vpop.f32.mrf.mxu0
  %4805 = vmatprep.mubr.bf16.mxu0 0
  %4806 = vmatmul.mubr.bf16.gmra.mxu0 %v4647
  %v4807 = vpop.f32.mrf.mxu0
  %v4808 = vadd.f32 0.0, %v4807
  %v4809 = vpop.f32.mrf.mxu0
  %v4810 = vpop.f32.mrf.mxu0
  %v4811 = vadd.f32 0.0, %v4810
  %v4812 = vpop.f32.mrf.mxu0
  %4813 = vmatprep.mubr.bf16.mxu0 0
  %4814 = vmatmul.mubr.bf16.gmra.mxu0 %v4648
  %v4815 = vpop.f32.mrf.mxu0
  %v4816 = vadd.f32 0.0, %v4815
  %v4817 = vpop.f32.mrf.mxu0
  %v4818 = vpop.f32.mrf.mxu0
  %v4819 = vadd.f32 0.0, %v4818
  %v4820 = vpop.f32.mrf.mxu0
  %4821 = vmatprep.mubr.bf16.mxu0 0
  %4822 = vmatmul.mubr.bf16.gmra.mxu0 %v4649
  %v4823 = vpop.f32.mrf.mxu0
  %v4824 = vadd.f32 0.0, %v4823
  %v4825 = vpop.f32.mrf.mxu0
  %v4826 = vpop.f32.mrf.mxu0
  %v4827 = vadd.f32 0.0, %v4826
  %v4828 = vpop.f32.mrf.mxu0
  %4829 = vmatprep.mubr.bf16.mxu0 0
  %4830 = vmatmul.mubr.bf16.gmra.mxu0 %v4650
  %v4831 = vpop.f32.mrf.mxu0
  %v4832 = vadd.f32 0.0, %v4831
  %v4833 = vpop.f32.mrf.mxu0
  %v4834 = vpop.f32.mrf.mxu0
  %v4835 = vadd.f32 0.0, %v4834
  %v4836 = vpop.f32.mrf.mxu0
  %4837 = vmatprep.mubr.bf16.mxu0 0
  %4838 = vmatmul.mubr.bf16.gmra.mxu0 %v4651
  %v4839 = vpop.f32.mrf.mxu0
  %v4840 = vadd.f32 0.0, %v4839
  %v4841 = vpop.f32.mrf.mxu0
  %v4842 = vpop.f32.mrf.mxu0
  %v4843 = vadd.f32 0.0, %v4842
  %v4844 = vpop.f32.mrf.mxu0
  %4845 = vmatprep.mubr.bf16.mxu0 0
  %4846 = vmatmul.mubr.bf16.gmra.mxu0 %v4652
  %v4847 = vpop.f32.mrf.mxu0
  %v4848 = vadd.f32 0.0, %v4847
  %v4849 = vpop.f32.mrf.mxu0
  %v4850 = vpop.f32.mrf.mxu0
  %v4851 = vadd.f32 0.0, %v4850
  %v4852 = vpop.f32.mrf.mxu0
  %4853 = vmatprep.mubr.bf16.mxu0 0
  %4854 = vmatmul.mubr.bf16.gmra.mxu0 %v4653
  %v4855 = vpop.f32.mrf.mxu0
  %v4856 = vadd.f32 0.0, %v4855
  %v4857 = vpop.f32.mrf.mxu0
  %v4858 = vpop.f32.mrf.mxu0
  %v4859 = vadd.f32 0.0, %v4858
  %v4860 = vpop.f32.mrf.mxu0
  %4861 = vmatprep.mubr.bf16.mxu0 0
  %4862 = vmatmul.mubr.bf16.gmra.mxu0 %v4654
  %v4863 = vpop.f32.mrf.mxu0
  %v4864 = vadd.f32 0.0, %v4863
  %v4865 = vpop.f32.mrf.mxu0
  %v4866 = vpop.f32.mrf.mxu0
  %v4867 = vadd.f32 0.0, %v4866
  %v4868 = vpop.f32.mrf.mxu0
  %4869 = vmatprep.mubr.bf16.mxu0 0
  %4870 = vmatmul.mubr.bf16.gmra.mxu0 %v4655
  %v4871 = vpop.f32.mrf.mxu0
  %v4872 = vadd.f32 0.0, %v4871
  %v4873 = vpop.f32.mrf.mxu0
  %v4874 = vpop.f32.mrf.mxu0
  %v4875 = vadd.f32 0.0, %v4874
  %v4876 = vpop.f32.mrf.mxu0
  %4877 = vmatprep.mubr.bf16.mxu0 0
  %4878 = vmatmul.mubr.bf16.gmra.mxu0 %v4656
  %v4879 = vpop.f32.mrf.mxu0
  %v4880 = vadd.f32 0.0, %v4879
  %v4881 = vpop.f32.mrf.mxu0
  %v4882 = vpop.f32.mrf.mxu0
  %v4883 = vadd.f32 0.0, %v4882
  %v4884 = vpop.f32.mrf.mxu0
  %4885 = vmatprep.mubr.bf16.mxu0 0
  %4886 = vmatmul.mubr.bf16.gmra.mxu0 %v4657
  %v4887 = vpop.f32.mrf.mxu0
  %v4888 = vadd.f32 0.0, %v4887
  %v4889 = vpop.f32.mrf.mxu0
  %v4890 = vpop.f32.mrf.mxu0
  %v4891 = vadd.f32 0.0, %v4890
  %v4892 = vpop.f32.mrf.mxu0
  %4893 = vmatprep.mubr.bf16.mxu0 0
  %4894 = vmatmul.mubr.bf16.gmra.mxu0 %v4658
  %v4895 = vpop.f32.mrf.mxu0
  %v4896 = vadd.f32 0.0, %v4895
  %v4897 = vpop.f32.mrf.mxu0
  %v4898 = vpop.f32.mrf.mxu0
  %v4899 = vadd.f32 0.0, %v4898
  %v4900 = vpop.f32.mrf.mxu0
  %4901 = vmatprep.mubr.bf16.mxu0 0
  %4902 = vmatmul.mubr.bf16.gmra.mxu0 %v4659
  %v4903 = vpop.f32.mrf.mxu0
  %v4904 = vadd.f32 0.0, %v4903
  %v4905 = vpop.f32.mrf.mxu0
  %v4906 = vpop.f32.mrf.mxu0
  %v4907 = vadd.f32 0.0, %v4906
  %v4908 = vpop.f32.mrf.mxu0
  %4909 = vmatprep.mubr.bf16.mxu0 0
  %4910 = vmatmul.mubr.bf16.gmra.mxu0 %v4660
  %v4911 = vpop.f32.mrf.mxu0
  %v4912 = vadd.f32 0.0, %v4911
  %v4913 = vpop.f32.mrf.mxu0
  %v4914 = vpop.f32.mrf.mxu0
  %v4915 = vadd.f32 0.0, %v4914
  %v4916 = vpop.f32.mrf.mxu0
  %4917 = vmatprep.mubr.bf16.mxu0 0
  %4918 = vmatmul.mubr.bf16.gmra.mxu0 %v4661
  %v4919 = vpop.f32.mrf.mxu0
  %v4920 = vadd.f32 0.0, %v4919
  %v4921 = vpop.f32.mrf.mxu0
  %v4922 = vpop.f32.mrf.mxu0
  %v4923 = vadd.f32 0.0, %v4922
  %v4924 = vpop.f32.mrf.mxu0
  %4925 = vmatprep.mubr.bf16.mxu0 0
  %4926 = vmatmul.mubr.bf16.gmra.mxu0 %v4662
  %v4927 = vpop.f32.mrf.mxu0
  %v4928 = vadd.f32 0.0, %v4927
  %v4929 = vpop.f32.mrf.mxu0
  %v4930 = vpop.f32.mrf.mxu0
  %v4931 = vadd.f32 0.0, %v4930
  %v4932 = vpop.f32.mrf.mxu0
  %4933 = vmatprep.mubr.bf16.mxu0 0
  %4934 = vmatmul.mubr.bf16.gmra.mxu0 %v4663
  %v4935 = vpop.f32.mrf.mxu0
  %v4936 = vadd.f32 0.0, %v4935
  %v4937 = vpop.f32.mrf.mxu0
  %v4938 = vpop.f32.mrf.mxu0
  %v4939 = vadd.f32 0.0, %v4938
  %v4940 = vpop.f32.mrf.mxu0
  %4941 = vmatprep.mubr.bf16.mxu0 0
  %4942 = vmatmul.mubr.bf16.gmra.mxu0 %v4664
  %v4943 = vpop.f32.mrf.mxu0
  %v4944 = vadd.f32 0.0, %v4943
  %v4945 = vpop.f32.mrf.mxu0
  %v4946 = vpop.f32.mrf.mxu0
  %v4947 = vadd.f32 0.0, %v4946
  %v4948 = vpop.f32.mrf.mxu0
  %4949 = vmatprep.mubr.bf16.mxu0 0
  %4950 = vmatmul.mubr.bf16.gmra.mxu0 %v4665
  %v4951 = vpop.f32.mrf.mxu0
  %v4952 = vadd.f32 0.0, %v4951
  %v4953 = vpop.f32.mrf.mxu0
  %v4954 = vpop.f32.mrf.mxu0
  %v4955 = vadd.f32 0.0, %v4954
  %v4956 = vpop.f32.mrf.mxu0
  %4957 = vmatprep.mubr.bf16.mxu0 0
  %4958 = vmatmul.mubr.bf16.gmra.mxu0 %v4666
  %v4959 = vpop.f32.mrf.mxu0
  %v4960 = vadd.f32 0.0, %v4959
  %v4961 = vpop.f32.mrf.mxu0
  %v4962 = vpop.f32.mrf.mxu0
  %v4963 = vadd.f32 0.0, %v4962
  %v4964 = vpop.f32.mrf.mxu0
  %4965 = vmatprep.mubr.bf16.mxu0 0
  %4966 = vmatmul.mubr.bf16.gmra.mxu0 %v4667
  %v4967 = vpop.f32.mrf.mxu0
  %v4968 = vadd.f32 0.0, %v4967
  %v4969 = vpop.f32.mrf.mxu0
  %v4970 = vpop.f32.mrf.mxu0
  %v4971 = vadd.f32 0.0, %v4970
  %v4972 = vpop.f32.mrf.mxu0
  %4973 = vmatprep.mubr.bf16.mxu0 0
  %4974 = vmatmul.mubr.bf16.gmra.mxu0 %v4668
  %v4975 = vpop.f32.mrf.mxu0
  %v4976 = vadd.f32 0.0, %v4975
  %v4977 = vpop.f32.mrf.mxu0
  %v4978 = vpop.f32.mrf.mxu0
  %v4979 = vadd.f32 0.0, %v4978
  %v4980 = vpop.f32.mrf.mxu0
  %4981 = vmatprep.mubr.bf16.mxu0 0
  %4982 = vmatmul.mubr.bf16.gmra.mxu0 %v4669
  %v4983 = vpop.f32.mrf.mxu0
  %v4984 = vadd.f32 0.0, %v4983
  %v4985 = vpop.f32.mrf.mxu0
  %v4986 = vpop.f32.mrf.mxu0
  %v4987 = vadd.f32 0.0, %v4986
  %v4988 = vpop.f32.mrf.mxu0
  %4989 = vmatprep.mubr.bf16.mxu0 0
  %4990 = vmatmul.mubr.bf16.gmra.mxu0 %v4670
  %v4991 = vpop.f32.mrf.mxu0
  %v4992 = vadd.f32 0.0, %v4991
  %v4993 = vpop.f32.mrf.mxu0
  %v4994 = vpop.f32.mrf.mxu0
  %v4995 = vadd.f32 0.0, %v4994
  %v4996 = vpop.f32.mrf.mxu0
  %4997 = vmatprep.mubr.bf16.mxu0 0
  %4998 = vmatmul.mubr.bf16.gmra.mxu0 %v4671
  %v4999 = vpop.f32.mrf.mxu0
  %v5000 = vadd.f32 0.0, %v4999
  %v5001 = vpop.f32.mrf.mxu0
  %v5002 = vpop.f32.mrf.mxu0
  %v5003 = vadd.f32 0.0, %v5002
  %v5004 = vpop.f32.mrf.mxu0
  %5005 = vmatprep.mubr.bf16.mxu0 0
  %5006 = vmatmul.mubr.bf16.gmra.mxu0 %v4672
  %v5007 = vpop.f32.mrf.mxu0
  %v5008 = vadd.f32 0.0, %v5007
  %v5009 = vpop.f32.mrf.mxu0
  %v5010 = vpop.f32.mrf.mxu0
  %v5011 = vadd.f32 0.0, %v5010
  %v5012 = vpop.f32.mrf.mxu0
  %5013 = vmatprep.mubr.bf16.mxu0 0
  %5014 = vmatmul.mubr.bf16.gmra.mxu0 %v4673
  %v5015 = vpop.f32.mrf.mxu0
  %v5016 = vadd.f32 0.0, %v5015
  %v5017 = vpop.f32.mrf.mxu0
  %v5018 = vpop.f32.mrf.mxu0
  %v5019 = vadd.f32 0.0, %v5018
  %v5020 = vpop.f32.mrf.mxu0
  %5021 = vmatprep.mubr.bf16.mxu0 0
  %5022 = vmatmul.mubr.bf16.gmra.mxu0 %v4674
  %v5023 = vpop.f32.mrf.mxu0
  %v5024 = vadd.f32 0.0, %v5023
  %v5025 = vpop.f32.mrf.mxu0
  %v5026 = vpop.f32.mrf.mxu0
  %v5027 = vadd.f32 0.0, %v5026
  %v5028 = vpop.f32.mrf.mxu0
  %5029 = vmatprep.mubr.bf16.mxu0 0
  %5030 = vmatmul.mubr.bf16.gmra.mxu0 %v4675
  %v5031 = vpop.f32.mrf.mxu0
  %v5032 = vadd.f32 0.0, %v5031
  %v5033 = vpop.f32.mrf.mxu0
  %v5034 = vpop.f32.mrf.mxu0
  %v5035 = vadd.f32 0.0, %v5034
  %v5036 = vpop.f32.mrf.mxu0
  %5037 = vmatprep.mubr.bf16.mxu0 0
  %5038 = vmatmul.mubr.bf16.gmra.mxu0 %v4676
  %v5039 = vpop.f32.mrf.mxu0
  %v5040 = vadd.f32 0.0, %v5039
  %v5041 = vpop.f32.mrf.mxu0
  %v5042 = vpop.f32.mrf.mxu0
  %v5043 = vadd.f32 0.0, %v5042
  %v5044 = vpop.f32.mrf.mxu0
  %5045 = vdwg.mxu0
  %v5046 = vadd.f32 %v3988, %v4792
  %v5047 = vadd.f32 %v3991, %v4795
  %v5048 = vadd.f32 %v3996, %v4800
  %v5049 = vadd.f32 %v3999, %v4803
  %v5050 = vadd.f32 %v4004, %v4808
  %v5051 = vadd.f32 %v4007, %v4811
  %v5052 = vadd.f32 %v4012, %v4816
  %v5053 = vadd.f32 %v4015, %v4819
  %v5054 = vadd.f32 %v4020, %v4824
  %v5055 = vadd.f32 %v4023, %v4827
  %v5056 = vadd.f32 %v4028, %v4832
  %v5057 = vadd.f32 %v4031, %v4835
  %v5058 = vadd.f32 %v4036, %v4840
  %v5059 = vadd.f32 %v4039, %v4843
  %v5060 = vadd.f32 %v4044, %v4848
  %v5061 = vadd.f32 %v4047, %v4851
  %v5062 = vadd.f32 %v4052, %v4856
  %v5063 = vadd.f32 %v4055, %v4859
  %v5064 = vadd.f32 %v4060, %v4864
  %v5065 = vadd.f32 %v4063, %v4867
  %v5066 = vadd.f32 %v4068, %v4872
  %v5067 = vadd.f32 %v4071, %v4875
  %v5068 = vadd.f32 %v4076, %v4880
  %v5069 = vadd.f32 %v4079, %v4883
  %v5070 = vadd.f32 %v4084, %v4888
  %v5071 = vadd.f32 %v4087, %v4891
  %v5072 = vadd.f32 %v4092, %v4896
  %v5073 = vadd.f32 %v4095, %v4899
  %v5074 = vadd.f32 %v4100, %v4904
  %v5075 = vadd.f32 %v4103, %v4907
  %v5076 = vadd.f32 %v4108, %v4912
  %v5077 = vadd.f32 %v4111, %v4915
  %v5078 = vadd.f32 %v4116, %v4920
  %v5079 = vadd.f32 %v4119, %v4923
  %v5080 = vadd.f32 %v4124, %v4928
  %v5081 = vadd.f32 %v4127, %v4931
  %v5082 = vadd.f32 %v4132, %v4936
  %v5083 = vadd.f32 %v4135, %v4939
  %v5084 = vadd.f32 %v4140, %v4944
  %v5085 = vadd.f32 %v4143, %v4947
  %v5086 = vadd.f32 %v4148, %v4952
  %v5087 = vadd.f32 %v4151, %v4955
  %v5088 = vadd.f32 %v4156, %v4960
  %v5089 = vadd.f32 %v4159, %v4963
  %v5090 = vadd.f32 %v4164, %v4968
  %v5091 = vadd.f32 %v4167, %v4971
  %v5092 = vadd.f32 %v4172, %v4976
  %v5093 = vadd.f32 %v4175, %v4979
  %v5094 = vadd.f32 %v4180, %v4984
  %v5095 = vadd.f32 %v4183, %v4987
  %v5096 = vadd.f32 %v4188, %v4992
  %v5097 = vadd.f32 %v4191, %v4995
  %v5098 = vadd.f32 %v4196, %v5000
  %v5099 = vadd.f32 %v4199, %v5003
  %v5100 = vadd.f32 %v4204, %v5008
  %v5101 = vadd.f32 %v4207, %v5011
  %v5102 = vadd.f32 %v4212, %v5016
  %v5103 = vadd.f32 %v4215, %v5019
  %v5104 = vadd.f32 %v4220, %v5024
  %v5105 = vadd.f32 %v4223, %v5027
  %v5106 = vadd.f32 %v4228, %v5032
  %v5107 = vadd.f32 %v4231, %v5035
  %v5108 = vadd.f32 %v4236, %v5040
  %v5109 = vadd.f32 %v4239, %v5043
  %v5110 = vld [vmem:[%s2122] sm:$0xf]
  %v5111 = vld [vmem:[%s2122 + $0x4] sm:$0xf]
  %v5112 = vld [vmem:[%s2122 + $0xc] sm:$0xf]
  %v5113 = vld [vmem:[%s2122 + $0x10] sm:$0xf]
  %v5114 = vld [vmem:[%s2122 + $0x18] sm:$0xf]
  %v5115 = vld [vmem:[%s2122 + $0x1c] sm:$0xf]
  %v5116 = vld [vmem:[%s2122 + $0x24] sm:$0xf]
  %v5117 = vld [vmem:[%s2122 + $0x28] sm:$0xf]
  %v5118 = vld [vmem:[%s2122 + $0x30] sm:$0xf]
  %v5119 = vld [vmem:[%s2122 + $0x34] sm:$0xf]
  %v5120 = vld [vmem:[%s2122 + $0x3c] sm:$0xf]
  %v5121 = vld [vmem:[%s2122 + $0x40] sm:$0xf]
  %v5122 = vld [vmem:[%s2122 + $0x48] sm:$0xf]
  %v5123 = vld [vmem:[%s2122 + $0x4c] sm:$0xf]
  %v5124 = vld [vmem:[%s2122 + $0x54] sm:$0xf]
  %v5125 = vld [vmem:[%s2122 + $0x58] sm:$0xf]
  %v5126 = vld [vmem:[%s2122 + $0x60] sm:$0xf]
  %v5127 = vld [vmem:[%s2122 + $0x64] sm:$0xf]
  %v5128 = vld [vmem:[%s2122 + $0x6c] sm:$0xf]
  %v5129 = vld [vmem:[%s2122 + $0x70] sm:$0xf]
  %v5130 = vld [vmem:[%s2122 + $0x78] sm:$0xf]
  %v5131 = vld [vmem:[%s2122 + $0x7c] sm:$0xf]
  %v5132 = vld [vmem:[%s2122 + $0x84] sm:$0xf]
  %v5133 = vld [vmem:[%s2122 + $0x88] sm:$0xf]
  %v5134 = vld [vmem:[%s2122 + $0x90] sm:$0xf]
  %v5135 = vld [vmem:[%s2122 + $0x94] sm:$0xf]
  %v5136 = vld [vmem:[%s2122 + $0x9c] sm:$0xf]
  %v5137 = vld [vmem:[%s2122 + $0xa0] sm:$0xf]
  %v5138 = vld [vmem:[%s2122 + $0xa8] sm:$0xf]
  %v5139 = vld [vmem:[%s2122 + $0xac] sm:$0xf]
  %v5140 = vld [vmem:[%s2122 + $0xb4] sm:$0xf]
  %v5141 = vld [vmem:[%s2122 + $0xb8] sm:$0xf]
  %v5142 = vld [vmem:[%s2122 + $0xd8] sm:$0xf]
  %v5143 = vld [vmem:[%s2122 + $0xdc] sm:$0xf]
  %v5144 = vld [vmem:[%s2122 + $0xe4] sm:$0xf]
  %v5145 = vld [vmem:[%s2122 + $0xe8] sm:$0xf]
  %v5146 = vld [vmem:[%s2122 + $0xf0] sm:$0xf]
  %v5147 = vld [vmem:[%s2122 + $0xf4] sm:$0xf]
  %v5148 = vld [vmem:[%s2122 + $0xfc] sm:$0xf]
  %v5149 = vld [vmem:[%s2122 + $0x100] sm:$0xf]
  %v5150 = vld [vmem:[%s2122 + $0x108] sm:$0xf]
  %v5151 = vld [vmem:[%s2122 + $0x10c] sm:$0xf]
  %v5152 = vld [vmem:[%s2122 + $0x114] sm:$0xf]
  %v5153 = vld [vmem:[%s2122 + $0x118] sm:$0xf]
  %v5154 = vld [vmem:[%s2122 + $0x120] sm:$0xf]
  %v5155 = vld [vmem:[%s2122 + $0x124] sm:$0xf]
  %v5156 = vld [vmem:[%s2122 + $0x12c] sm:$0xf]
  %v5157 = vld [vmem:[%s2122 + $0x130] sm:$0xf]
  %v5158 = vld [vmem:[%s2122 + $0x138] sm:$0xf]
  %v5159 = vld [vmem:[%s2122 + $0x13c] sm:$0xf]
  %v5160 = vld [vmem:[%s2122 + $0x144] sm:$0xf]
  %v5161 = vld [vmem:[%s2122 + $0x148] sm:$0xf]
  %v5162 = vld [vmem:[%s2122 + $0x150] sm:$0xf]
  %v5163 = vld [vmem:[%s2122 + $0x154] sm:$0xf]
  %v5164 = vld [vmem:[%s2122 + $0x15c] sm:$0xf]
  %v5165 = vld [vmem:[%s2122 + $0x160] sm:$0xf]
  %v5166 = vld [vmem:[%s2122 + $0x168] sm:$0xf]
  %v5167 = vld [vmem:[%s2122 + $0x16c] sm:$0xf]
  %v5168 = vld [vmem:[%s2122 + $0x174] sm:$0xf]
  %v5169 = vld [vmem:[%s2122 + $0x178] sm:$0xf]
  %v5170 = vld [vmem:[%s2122 + $0x180] sm:$0xf]
  %v5171 = vld [vmem:[%s2122 + $0x184] sm:$0xf]
  %v5172 = vld [vmem:[%s2122 + $0x18c] sm:$0xf]
  %v5173 = vld [vmem:[%s2122 + $0x190] sm:$0xf]
  %v5174 = vld [vmem:[%s2 + $0xc0] sm:$0xf]
  %v5175 = vld [vmem:[%s2 + $0xc4] sm:$0xf]
  %v5176 = vld [vmem:[%s2 + $0xc8] sm:$0xf]
  %v5177 = vld [vmem:[%s2 + $0xcc] sm:$0xf]
  %v5178 = vld [vmem:[%s2 + $0xd0] sm:$0xf]
  %v5179 = vld [vmem:[%s2 + $0xd4] sm:$0xf]
  %v5180 = vld [vmem:[%s2 + $0xd8] sm:$0xf]
  %v5181 = vld [vmem:[%s2 + $0xdc] sm:$0xf]
  %v5182 = vld [vmem:[%s2 + $0xe0] sm:$0xf]
  %v5183 = vld [vmem:[%s2 + $0xe4] sm:$0xf]
  %v5184 = vld [vmem:[%s2 + $0xe8] sm:$0xf]
  %v5185 = vld [vmem:[%s2 + $0xec] sm:$0xf]
  %v5186 = vld [vmem:[%s2 + $0xf0] sm:$0xf]
  %v5187 = vld [vmem:[%s2 + $0xf4] sm:$0xf]
  %v5188 = vld [vmem:[%s2 + $0xf8] sm:$0xf]
  %v5189 = vld [vmem:[%s2 + $0xfc] sm:$0xf]
  %v5254 = vunpack.c.l.b16 %v5110
  %v5255 = vunpack.c.l.b16 %v5111
  %v5256 = vunpack.c.l.b16 %v5112
  %v5257 = vunpack.c.l.b16 %v5113
  %v5258 = vunpack.c.l.b16 %v5114
  %v5259 = vunpack.c.l.b16 %v5115
  %v5260 = vunpack.c.l.b16 %v5116
  %v5261 = vunpack.c.l.b16 %v5117
  %v5262 = vunpack.c.l.b16 %v5118
  %v5263 = vunpack.c.l.b16 %v5119
  %v5264 = vunpack.c.l.b16 %v5120
  %v5265 = vunpack.c.l.b16 %v5121
  %v5266 = vunpack.c.l.b16 %v5122
  %v5267 = vunpack.c.l.b16 %v5123
  %v5268 = vunpack.c.l.b16 %v5124
  %v5269 = vunpack.c.l.b16 %v5125
  %v5270 = vunpack.c.l.b16 %v5126
  %v5271 = vunpack.c.l.b16 %v5127
  %v5272 = vunpack.c.l.b16 %v5128
  %v5273 = vunpack.c.l.b16 %v5129
  %v5274 = vunpack.c.l.b16 %v5130
  %v5275 = vunpack.c.l.b16 %v5131
  %v5276 = vunpack.c.l.b16 %v5132
  %v5277 = vunpack.c.l.b16 %v5133
  %v5278 = vunpack.c.l.b16 %v5134
  %v5279 = vunpack.c.l.b16 %v5135
  %v5280 = vunpack.c.l.b16 %v5136
  %v5281 = vunpack.c.l.b16 %v5137
  %v5282 = vunpack.c.l.b16 %v5138
  %v5283 = vunpack.c.l.b16 %v5139
  %v5284 = vunpack.c.l.b16 %v5140
  %v5285 = vunpack.c.l.b16 %v5141
  %v5286 = vunpack.c.l.b16 %v5142
  %v5287 = vunpack.c.l.b16 %v5143
  %v5288 = vunpack.c.l.b16 %v5144
  %v5289 = vunpack.c.l.b16 %v5145
  %v5290 = vunpack.c.l.b16 %v5146
  %v5291 = vunpack.c.l.b16 %v5147
  %v5292 = vunpack.c.l.b16 %v5148
  %v5293 = vunpack.c.l.b16 %v5149
  %v5294 = vunpack.c.l.b16 %v5150
  %v5295 = vunpack.c.l.b16 %v5151
  %v5296 = vunpack.c.l.b16 %v5152
  %v5297 = vunpack.c.l.b16 %v5153
  %v5298 = vunpack.c.l.b16 %v5154
  %v5299 = vunpack.c.l.b16 %v5155
  %v5300 = vunpack.c.l.b16 %v5156
  %v5301 = vunpack.c.l.b16 %v5157
  %v5302 = vunpack.c.l.b16 %v5158
  %v5303 = vunpack.c.l.b16 %v5159
  %v5304 = vunpack.c.l.b16 %v5160
  %v5305 = vunpack.c.l.b16 %v5161
  %v5306 = vunpack.c.l.b16 %v5162
  %v5307 = vunpack.c.l.b16 %v5163
  %v5308 = vunpack.c.l.b16 %v5164
  %v5309 = vunpack.c.l.b16 %v5165
  %v5310 = vunpack.c.l.b16 %v5166
  %v5311 = vunpack.c.l.b16 %v5167
  %v5312 = vunpack.c.l.b16 %v5168
  %v5313 = vunpack.c.l.b16 %v5169
  %v5314 = vunpack.c.l.b16 %v5170
  %v5315 = vunpack.c.l.b16 %v5171
  %v5316 = vunpack.c.l.b16 %v5172
  %v5317 = vunpack.c.l.b16 %v5173
  %v5318 = vpack.c.b16 %v5255, %v5254
  %v5319 = vpack.c.b16 %v5257, %v5256
  %v5320 = vpack.c.b16 %v5259, %v5258
  %v5321 = vpack.c.b16 %v5261, %v5260
  %v5322 = vpack.c.b16 %v5263, %v5262
  %v5323 = vpack.c.b16 %v5265, %v5264
  %v5324 = vpack.c.b16 %v5267, %v5266
  %v5325 = vpack.c.b16 %v5269, %v5268
  %v5326 = vpack.c.b16 %v5271, %v5270
  %v5327 = vpack.c.b16 %v5273, %v5272
  %v5328 = vpack.c.b16 %v5275, %v5274
  %v5329 = vpack.c.b16 %v5277, %v5276
  %v5330 = vpack.c.b16 %v5279, %v5278
  %v5331 = vpack.c.b16 %v5281, %v5280
  %v5332 = vpack.c.b16 %v5283, %v5282
  %v5333 = vpack.c.b16 %v5285, %v5284
  %v5334 = vpack.c.b16 %v5287, %v5286
  %v5335 = vpack.c.b16 %v5289, %v5288
  %v5336 = vpack.c.b16 %v5291, %v5290
  %v5337 = vpack.c.b16 %v5293, %v5292
  %v5338 = vpack.c.b16 %v5295, %v5294
  %v5339 = vpack.c.b16 %v5297, %v5296
  %v5340 = vpack.c.b16 %v5299, %v5298
  %v5341 = vpack.c.b16 %v5301, %v5300
  %v5342 = vpack.c.b16 %v5303, %v5302
  %v5343 = vpack.c.b16 %v5305, %v5304
  %v5344 = vpack.c.b16 %v5307, %v5306
  %v5345 = vpack.c.b16 %v5309, %v5308
  %v5346 = vpack.c.b16 %v5311, %v5310
  %v5347 = vpack.c.b16 %v5313, %v5312
  %v5348 = vpack.c.b16 %v5315, %v5314
  %v5349 = vpack.c.b16 %v5317, %v5316
  %v5398 = vunpack.c.l.b16 %v5174
  %v5399 = vunpack.c.l.b16 %v5175
  %v5400 = vunpack.c.l.b16 %v5176
  %v5401 = vunpack.c.l.b16 %v5177
  %v5402 = vunpack.c.l.b16 %v5178
  %v5403 = vunpack.c.l.b16 %v5179
  %v5404 = vunpack.c.l.b16 %v5180
  %v5405 = vunpack.c.l.b16 %v5181
  %v5406 = vunpack.c.l.b16 %v5182
  %v5407 = vunpack.c.l.b16 %v5183
  %v5408 = vunpack.c.l.b16 %v5184
  %v5409 = vunpack.c.l.b16 %v5185
  %v5410 = vunpack.c.l.b16 %v5186
  %v5411 = vunpack.c.l.b16 %v5187
  %v5412 = vunpack.c.l.b16 %v5188
  %v5413 = vunpack.c.l.b16 %v5189
  %v5414 = vpack.c.b16 %v5399, %v5398
  %v5415 = vpack.c.b16 %v5401, %v5400
  %v5416 = vpack.c.b16 %v5403, %v5402
  %v5417 = vpack.c.b16 %v5405, %v5404
  %v5418 = vpack.c.b16 %v5407, %v5406
  %v5419 = vpack.c.b16 %v5409, %v5408
  %v5420 = vpack.c.b16 %v5411, %v5410
  %v5421 = vpack.c.b16 %v5413, %v5412
  %5430 = vmatprep.subr.bf16.mxu0 0
  %5431 = vmatpush1.bf16.msra.mxu0 %v5421
  %5432 = vmatprep.subr.bf16.mxu0 0
  %5433 = vmatpush1.bf16.msra.mxu0 %v5420
  %5434 = vmatprep.subr.bf16.mxu0 0
  %5435 = vmatpush1.bf16.msra.mxu0 %v5419
  %5436 = vmatprep.subr.bf16.mxu0 0
  %5437 = vmatpush1.bf16.msra.mxu0 %v5418
  %5438 = vmatprep.subr.bf16.mxu0 0
  %5439 = vmatpush1.bf16.msra.mxu0 %v5417
  %5440 = vmatprep.subr.bf16.mxu0 0
  %5441 = vmatpush1.bf16.msra.mxu0 %v5416
  %5442 = vmatprep.subr.bf16.mxu0 0
  %5443 = vmatpush1.bf16.msra.mxu0 %v5415
  %5444 = vmatprep.subr.bf16.mxu0 0
  %5445 = vmatpush1.bf16.msra.mxu0 %v5414
  %5446 = vmatprep.subr.bf16.mxu0 0
  %5447 = vmatpush2.bf16.msra.mxu0 0
  %5448 = vmatprep.subr.bf16.mxu0 0
  %5449 = vmatpush2.bf16.msra.mxu0 0
  %5450 = vmatprep.subr.bf16.mxu0 0
  %5451 = vmatpush2.bf16.msra.mxu0 0
  %5452 = vmatprep.subr.bf16.mxu0 0
  %5453 = vmatpush2.bf16.msra.mxu0 0
  %5454 = vmatprep.subr.bf16.mxu0 0
  %5455 = vmatpush2.bf16.msra.mxu0 0
  %5456 = vmatprep.subr.bf16.mxu0 0
  %5457 = vmatpush2.bf16.msra.mxu0 0
  %5458 = vmatprep.subr.bf16.mxu0 0
  %5459 = vmatpush2.bf16.msra.mxu0 0
  %5460 = vmatprep.subr.bf16.mxu0 0
  %5461 = vmatpush2.bf16.msra.mxu0 0
  %5462 = vmatprep.mubr.bf16.mxu0 0
  %5463 = vmatmul.mubr.bf16.gmra.mxu0 %v5318
  %v5464 = vpop.f32.mrf.mxu0
  %v5465 = vadd.f32 0.0, %v5464
  %v5466 = vpop.f32.mrf.mxu0
  %v5467 = vpop.f32.mrf.mxu0
  %v5468 = vadd.f32 0.0, %v5467
  %v5469 = vpop.f32.mrf.mxu0
  %5470 = vmatprep.mubr.bf16.mxu0 0
  %5471 = vmatmul.mubr.bf16.gmra.mxu0 %v5319
  %v5472 = vpop.f32.mrf.mxu0
  %v5473 = vadd.f32 0.0, %v5472
  %v5474 = vpop.f32.mrf.mxu0
  %v5475 = vpop.f32.mrf.mxu0
  %v5476 = vadd.f32 0.0, %v5475
  %v5477 = vpop.f32.mrf.mxu0
  %5478 = vmatprep.mubr.bf16.mxu0 0
  %5479 = vmatmul.mubr.bf16.gmra.mxu0 %v5320
  %v5480 = vpop.f32.mrf.mxu0
  %v5481 = vadd.f32 0.0, %v5480
  %v5482 = vpop.f32.mrf.mxu0
  %v5483 = vpop.f32.mrf.mxu0
  %v5484 = vadd.f32 0.0, %v5483
  %v5485 = vpop.f32.mrf.mxu0
  %5486 = vmatprep.mubr.bf16.mxu0 0
  %5487 = vmatmul.mubr.bf16.gmra.mxu0 %v5321
  %v5488 = vpop.f32.mrf.mxu0
  %v5489 = vadd.f32 0.0, %v5488
  %v5490 = vpop.f32.mrf.mxu0
  %v5491 = vpop.f32.mrf.mxu0
  %v5492 = vadd.f32 0.0, %v5491
  %v5493 = vpop.f32.mrf.mxu0
  %5494 = vmatprep.mubr.bf16.mxu0 0
  %5495 = vmatmul.mubr.bf16.gmra.mxu0 %v5322
  %v5496 = vpop.f32.mrf.mxu0
  %v5497 = vadd.f32 0.0, %v5496
  %v5498 = vpop.f32.mrf.mxu0
  %v5499 = vpop.f32.mrf.mxu0
  %v5500 = vadd.f32 0.0, %v5499
  %v5501 = vpop.f32.mrf.mxu0
  %5502 = vmatprep.mubr.bf16.mxu0 0
  %5503 = vmatmul.mubr.bf16.gmra.mxu0 %v5323
  %v5504 = vpop.f32.mrf.mxu0
  %v5505 = vadd.f32 0.0, %v5504
  %v5506 = vpop.f32.mrf.mxu0
  %v5507 = vpop.f32.mrf.mxu0
  %v5508 = vadd.f32 0.0, %v5507
  %v5509 = vpop.f32.mrf.mxu0
  %5510 = vmatprep.mubr.bf16.mxu0 0
  %5511 = vmatmul.mubr.bf16.gmra.mxu0 %v5324
  %v5512 = vpop.f32.mrf.mxu0
  %v5513 = vadd.f32 0.0, %v5512
  %v5514 = vpop.f32.mrf.mxu0
  %v5515 = vpop.f32.mrf.mxu0
  %v5516 = vadd.f32 0.0, %v5515
  %v5517 = vpop.f32.mrf.mxu0
  %5518 = vmatprep.mubr.bf16.mxu0 0
  %5519 = vmatmul.mubr.bf16.gmra.mxu0 %v5325
  %v5520 = vpop.f32.mrf.mxu0
  %v5521 = vadd.f32 0.0, %v5520
  %v5522 = vpop.f32.mrf.mxu0
  %v5523 = vpop.f32.mrf.mxu0
  %v5524 = vadd.f32 0.0, %v5523
  %v5525 = vpop.f32.mrf.mxu0
  %5526 = vmatprep.mubr.bf16.mxu0 0
  %5527 = vmatmul.mubr.bf16.gmra.mxu0 %v5326
  %v5528 = vpop.f32.mrf.mxu0
  %v5529 = vadd.f32 0.0, %v5528
  %v5530 = vpop.f32.mrf.mxu0
  %v5531 = vpop.f32.mrf.mxu0
  %v5532 = vadd.f32 0.0, %v5531
  %v5533 = vpop.f32.mrf.mxu0
  %5534 = vmatprep.mubr.bf16.mxu0 0
  %5535 = vmatmul.mubr.bf16.gmra.mxu0 %v5327
  %v5536 = vpop.f32.mrf.mxu0
  %v5537 = vadd.f32 0.0, %v5536
  %v5538 = vpop.f32.mrf.mxu0
  %v5539 = vpop.f32.mrf.mxu0
  %v5540 = vadd.f32 0.0, %v5539
  %v5541 = vpop.f32.mrf.mxu0
  %5542 = vmatprep.mubr.bf16.mxu0 0
  %5543 = vmatmul.mubr.bf16.gmra.mxu0 %v5328
  %v5544 = vpop.f32.mrf.mxu0
  %v5545 = vadd.f32 0.0, %v5544
  %v5546 = vpop.f32.mrf.mxu0
  %v5547 = vpop.f32.mrf.mxu0
  %v5548 = vadd.f32 0.0, %v5547
  %v5549 = vpop.f32.mrf.mxu0
  %5550 = vmatprep.mubr.bf16.mxu0 0
  %5551 = vmatmul.mubr.bf16.gmra.mxu0 %v5329
  %v5552 = vpop.f32.mrf.mxu0
  %v5553 = vadd.f32 0.0, %v5552
  %v5554 = vpop.f32.mrf.mxu0
  %v5555 = vpop.f32.mrf.mxu0
  %v5556 = vadd.f32 0.0, %v5555
  %v5557 = vpop.f32.mrf.mxu0
  %5558 = vmatprep.mubr.bf16.mxu0 0
  %5559 = vmatmul.mubr.bf16.gmra.mxu0 %v5330
  %v5560 = vpop.f32.mrf.mxu0
  %v5561 = vadd.f32 0.0, %v5560
  %v5562 = vpop.f32.mrf.mxu0
  %v5563 = vpop.f32.mrf.mxu0
  %v5564 = vadd.f32 0.0, %v5563
  %v5565 = vpop.f32.mrf.mxu0
  %5566 = vmatprep.mubr.bf16.mxu0 0
  %5567 = vmatmul.mubr.bf16.gmra.mxu0 %v5331
  %v5568 = vpop.f32.mrf.mxu0
  %v5569 = vadd.f32 0.0, %v5568
  %v5570 = vpop.f32.mrf.mxu0
  %v5571 = vpop.f32.mrf.mxu0
  %v5572 = vadd.f32 0.0, %v5571
  %v5573 = vpop.f32.mrf.mxu0
  %5574 = vmatprep.mubr.bf16.mxu0 0
  %5575 = vmatmul.mubr.bf16.gmra.mxu0 %v5332
  %v5576 = vpop.f32.mrf.mxu0
  %v5577 = vadd.f32 0.0, %v5576
  %v5578 = vpop.f32.mrf.mxu0
  %v5579 = vpop.f32.mrf.mxu0
  %v5580 = vadd.f32 0.0, %v5579
  %v5581 = vpop.f32.mrf.mxu0
  %5582 = vmatprep.mubr.bf16.mxu0 0
  %5583 = vmatmul.mubr.bf16.gmra.mxu0 %v5333
  %v5584 = vpop.f32.mrf.mxu0
  %v5585 = vadd.f32 0.0, %v5584
  %v5586 = vpop.f32.mrf.mxu0
  %v5587 = vpop.f32.mrf.mxu0
  %v5588 = vadd.f32 0.0, %v5587
  %v5589 = vpop.f32.mrf.mxu0
  %5590 = vmatprep.mubr.bf16.mxu0 0
  %5591 = vmatmul.mubr.bf16.gmra.mxu0 %v5334
  %v5592 = vpop.f32.mrf.mxu0
  %v5593 = vadd.f32 0.0, %v5592
  %v5594 = vpop.f32.mrf.mxu0
  %v5595 = vpop.f32.mrf.mxu0
  %v5596 = vadd.f32 0.0, %v5595
  %v5597 = vpop.f32.mrf.mxu0
  %5598 = vmatprep.mubr.bf16.mxu0 0
  %5599 = vmatmul.mubr.bf16.gmra.mxu0 %v5335
  %v5600 = vpop.f32.mrf.mxu0
  %v5601 = vadd.f32 0.0, %v5600
  %v5602 = vpop.f32.mrf.mxu0
  %v5603 = vpop.f32.mrf.mxu0
  %v5604 = vadd.f32 0.0, %v5603
  %v5605 = vpop.f32.mrf.mxu0
  %5606 = vmatprep.mubr.bf16.mxu0 0
  %5607 = vmatmul.mubr.bf16.gmra.mxu0 %v5336
  %v5608 = vpop.f32.mrf.mxu0
  %v5609 = vadd.f32 0.0, %v5608
  %v5610 = vpop.f32.mrf.mxu0
  %v5611 = vpop.f32.mrf.mxu0
  %v5612 = vadd.f32 0.0, %v5611
  %v5613 = vpop.f32.mrf.mxu0
  %5614 = vmatprep.mubr.bf16.mxu0 0
  %5615 = vmatmul.mubr.bf16.gmra.mxu0 %v5337
  %v5616 = vpop.f32.mrf.mxu0
  %v5617 = vadd.f32 0.0, %v5616
  %v5618 = vpop.f32.mrf.mxu0
  %v5619 = vpop.f32.mrf.mxu0
  %v5620 = vadd.f32 0.0, %v5619
  %v5621 = vpop.f32.mrf.mxu0
  %5622 = vmatprep.mubr.bf16.mxu0 0
  %5623 = vmatmul.mubr.bf16.gmra.mxu0 %v5338
  %v5624 = vpop.f32.mrf.mxu0
  %v5625 = vadd.f32 0.0, %v5624
  %v5626 = vpop.f32.mrf.mxu0
  %v5627 = vpop.f32.mrf.mxu0
  %v5628 = vadd.f32 0.0, %v5627
  %v5629 = vpop.f32.mrf.mxu0
  %5630 = vmatprep.mubr.bf16.mxu0 0
  %5631 = vmatmul.mubr.bf16.gmra.mxu0 %v5339
  %v5632 = vpop.f32.mrf.mxu0
  %v5633 = vadd.f32 0.0, %v5632
  %v5634 = vpop.f32.mrf.mxu0
  %v5635 = vpop.f32.mrf.mxu0
  %v5636 = vadd.f32 0.0, %v5635
  %v5637 = vpop.f32.mrf.mxu0
  %5638 = vmatprep.mubr.bf16.mxu0 0
  %5639 = vmatmul.mubr.bf16.gmra.mxu0 %v5340
  %v5640 = vpop.f32.mrf.mxu0
  %v5641 = vadd.f32 0.0, %v5640
  %v5642 = vpop.f32.mrf.mxu0
  %v5643 = vpop.f32.mrf.mxu0
  %v5644 = vadd.f32 0.0, %v5643
  %v5645 = vpop.f32.mrf.mxu0
  %5646 = vmatprep.mubr.bf16.mxu0 0
  %5647 = vmatmul.mubr.bf16.gmra.mxu0 %v5341
  %v5648 = vpop.f32.mrf.mxu0
  %v5649 = vadd.f32 0.0, %v5648
  %v5650 = vpop.f32.mrf.mxu0
  %v5651 = vpop.f32.mrf.mxu0
  %v5652 = vadd.f32 0.0, %v5651
  %v5653 = vpop.f32.mrf.mxu0
  %5654 = vmatprep.mubr.bf16.mxu0 0
  %5655 = vmatmul.mubr.bf16.gmra.mxu0 %v5342
  %v5656 = vpop.f32.mrf.mxu0
  %v5657 = vadd.f32 0.0, %v5656
  %v5658 = vpop.f32.mrf.mxu0
  %v5659 = vpop.f32.mrf.mxu0
  %v5660 = vadd.f32 0.0, %v5659
  %v5661 = vpop.f32.mrf.mxu0
  %5662 = vmatprep.mubr.bf16.mxu0 0
  %5663 = vmatmul.mubr.bf16.gmra.mxu0 %v5343
  %v5664 = vpop.f32.mrf.mxu0
  %v5665 = vadd.f32 0.0, %v5664
  %v5666 = vpop.f32.mrf.mxu0
  %v5667 = vpop.f32.mrf.mxu0
  %v5668 = vadd.f32 0.0, %v5667
  %v5669 = vpop.f32.mrf.mxu0
  %5670 = vmatprep.mubr.bf16.mxu0 0
  %5671 = vmatmul.mubr.bf16.gmra.mxu0 %v5344
  %v5672 = vpop.f32.mrf.mxu0
  %v5673 = vadd.f32 0.0, %v5672
  %v5674 = vpop.f32.mrf.mxu0
  %v5675 = vpop.f32.mrf.mxu0
  %v5676 = vadd.f32 0.0, %v5675
  %v5677 = vpop.f32.mrf.mxu0
  %5678 = vmatprep.mubr.bf16.mxu0 0
  %5679 = vmatmul.mubr.bf16.gmra.mxu0 %v5345
  %v5680 = vpop.f32.mrf.mxu0
  %v5681 = vadd.f32 0.0, %v5680
  %v5682 = vpop.f32.mrf.mxu0
  %v5683 = vpop.f32.mrf.mxu0
  %v5684 = vadd.f32 0.0, %v5683
  %v5685 = vpop.f32.mrf.mxu0
  %5686 = vmatprep.mubr.bf16.mxu0 0
  %5687 = vmatmul.mubr.bf16.gmra.mxu0 %v5346
  %v5688 = vpop.f32.mrf.mxu0
  %v5689 = vadd.f32 0.0, %v5688
  %v5690 = vpop.f32.mrf.mxu0
  %v5691 = vpop.f32.mrf.mxu0
  %v5692 = vadd.f32 0.0, %v5691
  %v5693 = vpop.f32.mrf.mxu0
  %5694 = vmatprep.mubr.bf16.mxu0 0
  %5695 = vmatmul.mubr.bf16.gmra.mxu0 %v5347
  %v5696 = vpop.f32.mrf.mxu0
  %v5697 = vadd.f32 0.0, %v5696
  %v5698 = vpop.f32.mrf.mxu0
  %v5699 = vpop.f32.mrf.mxu0
  %v5700 = vadd.f32 0.0, %v5699
  %v5701 = vpop.f32.mrf.mxu0
  %5702 = vmatprep.mubr.bf16.mxu0 0
  %5703 = vmatmul.mubr.bf16.gmra.mxu0 %v5348
  %v5704 = vpop.f32.mrf.mxu0
  %v5705 = vadd.f32 0.0, %v5704
  %v5706 = vpop.f32.mrf.mxu0
  %v5707 = vpop.f32.mrf.mxu0
  %v5708 = vadd.f32 0.0, %v5707
  %v5709 = vpop.f32.mrf.mxu0
  %5710 = vmatprep.mubr.bf16.mxu0 0
  %5711 = vmatmul.mubr.bf16.gmra.mxu0 %v5349
  %v5712 = vpop.f32.mrf.mxu0
  %v5713 = vadd.f32 0.0, %v5712
  %v5714 = vpop.f32.mrf.mxu0
  %v5715 = vpop.f32.mrf.mxu0
  %v5716 = vadd.f32 0.0, %v5715
  %v5717 = vpop.f32.mrf.mxu0
  %5718 = vdwg.mxu0
  %v5719 = vadd.f32 %v5046, %v5465
  %v5720 = vadd.f32 %v5047, %v5468
  %v5721 = vadd.f32 %v5048, %v5473
  %v5722 = vadd.f32 %v5049, %v5476
  %v5723 = vadd.f32 %v5050, %v5481
  %v5724 = vadd.f32 %v5051, %v5484
  %v5725 = vadd.f32 %v5052, %v5489
  %v5726 = vadd.f32 %v5053, %v5492
  %v5727 = vadd.f32 %v5054, %v5497
  %v5728 = vadd.f32 %v5055, %v5500
  %v5729 = vadd.f32 %v5056, %v5505
  %v5730 = vadd.f32 %v5057, %v5508
  %v5731 = vadd.f32 %v5058, %v5513
  %v5732 = vadd.f32 %v5059, %v5516
  %v5733 = vadd.f32 %v5060, %v5521
  %v5734 = vadd.f32 %v5061, %v5524
  %v5735 = vadd.f32 %v5062, %v5529
  %v5736 = vadd.f32 %v5063, %v5532
  %v5737 = vadd.f32 %v5064, %v5537
  %v5738 = vadd.f32 %v5065, %v5540
  %v5739 = vadd.f32 %v5066, %v5545
  %v5740 = vadd.f32 %v5067, %v5548
  %v5741 = vadd.f32 %v5068, %v5553
  %v5742 = vadd.f32 %v5069, %v5556
  %v5743 = vadd.f32 %v5070, %v5561
  %v5744 = vadd.f32 %v5071, %v5564
  %v5745 = vadd.f32 %v5072, %v5569
  %v5746 = vadd.f32 %v5073, %v5572
  %v5747 = vadd.f32 %v5074, %v5577
  %v5748 = vadd.f32 %v5075, %v5580
  %v5749 = vadd.f32 %v5076, %v5585
  %v5750 = vadd.f32 %v5077, %v5588
  %v5751 = vadd.f32 %v5078, %v5593
  %v5752 = vadd.f32 %v5079, %v5596
  %v5753 = vadd.f32 %v5080, %v5601
  %v5754 = vadd.f32 %v5081, %v5604
  %v5755 = vadd.f32 %v5082, %v5609
  %v5756 = vadd.f32 %v5083, %v5612
  %v5757 = vadd.f32 %v5084, %v5617
  %v5758 = vadd.f32 %v5085, %v5620
  %v5759 = vadd.f32 %v5086, %v5625
  %v5760 = vadd.f32 %v5087, %v5628
  %v5761 = vadd.f32 %v5088, %v5633
  %v5762 = vadd.f32 %v5089, %v5636
  %v5763 = vadd.f32 %v5090, %v5641
  %v5764 = vadd.f32 %v5091, %v5644
  %v5765 = vadd.f32 %v5092, %v5649
  %v5766 = vadd.f32 %v5093, %v5652
  %v5767 = vadd.f32 %v5094, %v5657
  %v5768 = vadd.f32 %v5095, %v5660
  %v5769 = vadd.f32 %v5096, %v5665
  %v5770 = vadd.f32 %v5097, %v5668
  %v5771 = vadd.f32 %v5098, %v5673
  %v5772 = vadd.f32 %v5099, %v5676
  %v5773 = vadd.f32 %v5100, %v5681
  %v5774 = vadd.f32 %v5101, %v5684
  %v5775 = vadd.f32 %v5102, %v5689
  %v5776 = vadd.f32 %v5103, %v5692
  %v5777 = vadd.f32 %v5104, %v5697
  %v5778 = vadd.f32 %v5105, %v5700
  %v5779 = vadd.f32 %v5106, %v5705
  %v5780 = vadd.f32 %v5107, %v5708
  %v5781 = vadd.f32 %v5108, %v5713
  %v5782 = vadd.f32 %v5109, %v5716
  %v5783 = vld [vmem:[%s2122] sm:$0xf]
  %v5784 = vld [vmem:[%s2122 + $0x4] sm:$0xf]
  %v5785 = vld [vmem:[%s2122 + $0x8] sm:$0x1]
  %v5786 = vld [vmem:[%s2122 + $0xc] sm:$0xf]
  %v5787 = vld [vmem:[%s2122 + $0x10] sm:$0xf]
  %v5788 = vld [vmem:[%s2122 + $0x14] sm:$0x1]
  %v5789 = vld [vmem:[%s2122 + $0x18] sm:$0xf]
  %v5790 = vld [vmem:[%s2122 + $0x1c] sm:$0xf]
  %v5791 = vld [vmem:[%s2122 + $0x20] sm:$0x1]
  %v5792 = vld [vmem:[%s2122 + $0x24] sm:$0xf]
  %v5793 = vld [vmem:[%s2122 + $0x28] sm:$0xf]
  %v5794 = vld [vmem:[%s2122 + $0x2c] sm:$0x1]
  %v5795 = vld [vmem:[%s2122 + $0x30] sm:$0xf]
  %v5796 = vld [vmem:[%s2122 + $0x34] sm:$0xf]
  %v5797 = vld [vmem:[%s2122 + $0x38] sm:$0x1]
  %v5798 = vld [vmem:[%s2122 + $0x3c] sm:$0xf]
  %v5799 = vld [vmem:[%s2122 + $0x40] sm:$0xf]
  %v5800 = vld [vmem:[%s2122 + $0x44] sm:$0x1]
  %v5801 = vld [vmem:[%s2122 + $0x48] sm:$0xf]
  %v5802 = vld [vmem:[%s2122 + $0x4c] sm:$0xf]
  %v5803 = vld [vmem:[%s2122 + $0x50] sm:$0x1]
  %v5804 = vld [vmem:[%s2122 + $0x54] sm:$0xf]
  %v5805 = vld [vmem:[%s2122 + $0x58] sm:$0xf]
  %v5806 = vld [vmem:[%s2122 + $0x5c] sm:$0x1]
  %v5807 = vld [vmem:[%s2122 + $0x60] sm:$0xf]
  %v5808 = vld [vmem:[%s2122 + $0x64] sm:$0xf]
  %v5809 = vld [vmem:[%s2122 + $0x68] sm:$0x1]
  %v5810 = vld [vmem:[%s2122 + $0x6c] sm:$0xf]
  %v5811 = vld [vmem:[%s2122 + $0x70] sm:$0xf]
  %v5812 = vld [vmem:[%s2122 + $0x74] sm:$0x1]
  %v5813 = vld [vmem:[%s2122 + $0x78] sm:$0xf]
  %v5814 = vld [vmem:[%s2122 + $0x7c] sm:$0xf]
  %v5815 = vld [vmem:[%s2122 + $0x80] sm:$0x1]
  %v5816 = vld [vmem:[%s2122 + $0x84] sm:$0xf]
  %v5817 = vld [vmem:[%s2122 + $0x88] sm:$0xf]
  %v5818 = vld [vmem:[%s2122 + $0x8c] sm:$0x1]
  %v5819 = vld [vmem:[%s2122 + $0x90] sm:$0xf]
  %v5820 = vld [vmem:[%s2122 + $0x94] sm:$0xf]
  %v5821 = vld [vmem:[%s2122 + $0x98] sm:$0x1]
  %v5822 = vld [vmem:[%s2122 + $0x9c] sm:$0xf]
  %v5823 = vld [vmem:[%s2122 + $0xa0] sm:$0xf]
  %v5824 = vld [vmem:[%s2122 + $0xa4] sm:$0x1]
  %v5825 = vld [vmem:[%s2122 + $0xa8] sm:$0xf]
  %v5826 = vld [vmem:[%s2122 + $0xac] sm:$0xf]
  %v5827 = vld [vmem:[%s2122 + $0xb0] sm:$0x1]
  %v5828 = vld [vmem:[%s2122 + $0xb4] sm:$0xf]
  %v5829 = vld [vmem:[%s2122 + $0xb8] sm:$0xf]
  %v5830 = vld [vmem:[%s2122 + $0xbc] sm:$0x1]
  %v5831 = vld [vmem:[%s2122 + $0xd8] sm:$0xf]
  %v5832 = vld [vmem:[%s2122 + $0xdc] sm:$0xf]
  %v5833 = vld [vmem:[%s2122 + $0xe0] sm:$0x1]
  %v5834 = vld [vmem:[%s2122 + $0xe4] sm:$0xf]
  %v5835 = vld [vmem:[%s2122 + $0xe8] sm:$0xf]
  %v5836 = vld [vmem:[%s2122 + $0xec] sm:$0x1]
  %v5837 = vld [vmem:[%s2122 + $0xf0] sm:$0xf]
  %v5838 = vld [vmem:[%s2122 + $0xf4] sm:$0xf]
  %v5839 = vld [vmem:[%s2122 + $0xf8] sm:$0x1]
  %v5840 = vld [vmem:[%s2122 + $0xfc] sm:$0xf]
  %v5841 = vld [vmem:[%s2122 + $0x100] sm:$0xf]
  %v5842 = vld [vmem:[%s2122 + $0x104] sm:$0x1]
  %v5843 = vld [vmem:[%s2122 + $0x108] sm:$0xf]
  %v5844 = vld [vmem:[%s2122 + $0x10c] sm:$0xf]
  %v5845 = vld [vmem:[%s2122 + $0x110] sm:$0x1]
  %v5846 = vld [vmem:[%s2122 + $0x114] sm:$0xf]
  %v5847 = vld [vmem:[%s2122 + $0x118] sm:$0xf]
  %v5848 = vld [vmem:[%s2122 + $0x11c] sm:$0x1]
  %v5849 = vld [vmem:[%s2122 + $0x120] sm:$0xf]
  %v5850 = vld [vmem:[%s2122 + $0x124] sm:$0xf]
  %v5851 = vld [vmem:[%s2122 + $0x128] sm:$0x1]
  %v5852 = vld [vmem:[%s2122 + $0x12c] sm:$0xf]
  %v5853 = vld [vmem:[%s2122 + $0x130] sm:$0xf]
  %v5854 = vld [vmem:[%s2122 + $0x134] sm:$0x1]
  %v5855 = vld [vmem:[%s2122 + $0x138] sm:$0xf]
  %v5856 = vld [vmem:[%s2122 + $0x13c] sm:$0xf]
  %v5857 = vld [vmem:[%s2122 + $0x140] sm:$0x1]
  %v5858 = vld [vmem:[%s2122 + $0x144] sm:$0xf]
  %v5859 = vld [vmem:[%s2122 + $0x148] sm:$0xf]
  %v5860 = vld [vmem:[%s2122 + $0x14c] sm:$0x1]
  %v5861 = vld [vmem:[%s2122 + $0x150] sm:$0xf]
  %v5862 = vld [vmem:[%s2122 + $0x154] sm:$0xf]
  %v5863 = vld [vmem:[%s2122 + $0x158] sm:$0x1]
  %v5864 = vld [vmem:[%s2122 + $0x15c] sm:$0xf]
  %v5865 = vld [vmem:[%s2122 + $0x160] sm:$0xf]
  %v5866 = vld [vmem:[%s2122 + $0x164] sm:$0x1]
  %v5867 = vld [vmem:[%s2122 + $0x168] sm:$0xf]
  %v5868 = vld [vmem:[%s2122 + $0x16c] sm:$0xf]
  %v5869 = vld [vmem:[%s2122 + $0x170] sm:$0x1]
  %v5870 = vld [vmem:[%s2122 + $0x174] sm:$0xf]
  %v5871 = vld [vmem:[%s2122 + $0x178] sm:$0xf]
  %v5872 = vld [vmem:[%s2122 + $0x17c] sm:$0x1]
  %v5873 = vld [vmem:[%s2122 + $0x180] sm:$0xf]
  %v5874 = vld [vmem:[%s2122 + $0x184] sm:$0xf]
  %v5875 = vld [vmem:[%s2122 + $0x188] sm:$0x1]
  %v5876 = vld [vmem:[%s2122 + $0x18c] sm:$0xf]
  %v5877 = vld [vmem:[%s2122 + $0x190] sm:$0xf]
  %v5878 = vld [vmem:[%s2122 + $0x194] sm:$0x1]
  %v5880 = vshrl.u32 %v5783, 16
  %v5882 = vrot.slane %v5880, 4
  %v5883 = vshll.u32 %v5783, 16
  %v5885 = vrot.slane %v5883, 5
  %v5886 = vor.u32 %v5882, %v5885
  %v5887 = vrot.slane %v5886, 4
  %v5889 = vshll.u32 %v5784, 16
  %v5891 = vrot.slane %v5889, 5
  %v5892 = vsel %vm2463, %v5887, %v5891
  %v5893 = vshrl.u32 %v5784, 16
  %v5895 = vrot.slane %v5893, 4
  %v5896 = vor.u32 %v5895, %v5891
  %v5897 = vrot.slane %v5896, 4
  %v5899 = vshll.u32 %v5785, 16
  %v5901 = vrot.slane %v5899, 5
  %v5902 = vsel %vm2463, %v5897, %v5901
  %v5904 = vshrl.u32 %v5786, 16
  %v5906 = vrot.slane %v5904, 4
  %v5907 = vshll.u32 %v5786, 16
  %v5909 = vrot.slane %v5907, 5
  %v5910 = vor.u32 %v5906, %v5909
  %v5911 = vrot.slane %v5910, 4
  %v5913 = vshll.u32 %v5787, 16
  %v5915 = vrot.slane %v5913, 5
  %v5916 = vsel %vm2463, %v5911, %v5915
  %v5917 = vshrl.u32 %v5787, 16
  %v5919 = vrot.slane %v5917, 4
  %v5920 = vor.u32 %v5919, %v5915
  %v5921 = vrot.slane %v5920, 4
  %v5923 = vshll.u32 %v5788, 16
  %v5925 = vrot.slane %v5923, 5
  %v5926 = vsel %vm2463, %v5921, %v5925
  %v5928 = vshrl.u32 %v5789, 16
  %v5930 = vrot.slane %v5928, 4
  %v5931 = vshll.u32 %v5789, 16
  %v5933 = vrot.slane %v5931, 5
  %v5934 = vor.u32 %v5930, %v5933
  %v5935 = vrot.slane %v5934, 4
  %v5937 = vshll.u32 %v5790, 16
  %v5939 = vrot.slane %v5937, 5
  %v5940 = vsel %vm2463, %v5935, %v5939
  %v5941 = vshrl.u32 %v5790, 16
  %v5943 = vrot.slane %v5941, 4
  %v5944 = vor.u32 %v5943, %v5939
  %v5945 = vrot.slane %v5944, 4
  %v5947 = vshll.u32 %v5791, 16
  %v5949 = vrot.slane %v5947, 5
  %v5950 = vsel %vm2463, %v5945, %v5949
  %v5952 = vshrl.u32 %v5792, 16
  %v5954 = vrot.slane %v5952, 4
  %v5955 = vshll.u32 %v5792, 16
  %v5957 = vrot.slane %v5955, 5
  %v5958 = vor.u32 %v5954, %v5957
  %v5959 = vrot.slane %v5958, 4
  %v5961 = vshll.u32 %v5793, 16
  %v5963 = vrot.slane %v5961, 5
  %v5964 = vsel %vm2463, %v5959, %v5963
  %v5965 = vshrl.u32 %v5793, 16
  %v5967 = vrot.slane %v5965, 4
  %v5968 = vor.u32 %v5967, %v5963
  %v5969 = vrot.slane %v5968, 4
  %v5971 = vshll.u32 %v5794, 16
  %v5973 = vrot.slane %v5971, 5
  %v5974 = vsel %vm2463, %v5969, %v5973
  %v5976 = vshrl.u32 %v5795, 16
  %v5978 = vrot.slane %v5976, 4
  %v5979 = vshll.u32 %v5795, 16
  %v5981 = vrot.slane %v5979, 5
  %v5982 = vor.u32 %v5978, %v5981
  %v5983 = vrot.slane %v5982, 4
  %v5985 = vshll.u32 %v5796, 16
  %v5987 = vrot.slane %v5985, 5
  %v5988 = vsel %vm2463, %v5983, %v5987
  %v5989 = vshrl.u32 %v5796, 16
  %v5991 = vrot.slane %v5989, 4
  %v5992 = vor.u32 %v5991, %v5987
  %v5993 = vrot.slane %v5992, 4
  %v5995 = vshll.u32 %v5797, 16
  %v5997 = vrot.slane %v5995, 5
  %v5998 = vsel %vm2463, %v5993, %v5997
  %v6000 = vshrl.u32 %v5798, 16
  %v6002 = vrot.slane %v6000, 4
  %v6003 = vshll.u32 %v5798, 16
  %v6005 = vrot.slane %v6003, 5
  %v6006 = vor.u32 %v6002, %v6005
  %v6007 = vrot.slane %v6006, 4
  %v6009 = vshll.u32 %v5799, 16
  %v6011 = vrot.slane %v6009, 5
  %v6012 = vsel %vm2463, %v6007, %v6011
  %v6013 = vshrl.u32 %v5799, 16
  %v6015 = vrot.slane %v6013, 4
  %v6016 = vor.u32 %v6015, %v6011
  %v6017 = vrot.slane %v6016, 4
  %v6019 = vshll.u32 %v5800, 16
  %v6021 = vrot.slane %v6019, 5
  %v6022 = vsel %vm2463, %v6017, %v6021
  %v6024 = vshrl.u32 %v5801, 16
  %v6026 = vrot.slane %v6024, 4
  %v6027 = vshll.u32 %v5801, 16
  %v6029 = vrot.slane %v6027, 5
  %v6030 = vor.u32 %v6026, %v6029
  %v6031 = vrot.slane %v6030, 4
  %v6033 = vshll.u32 %v5802, 16
  %v6035 = vrot.slane %v6033, 5
  %v6036 = vsel %vm2463, %v6031, %v6035
  %v6037 = vshrl.u32 %v5802, 16
  %v6039 = vrot.slane %v6037, 4
  %v6040 = vor.u32 %v6039, %v6035
  %v6041 = vrot.slane %v6040, 4
  %v6043 = vshll.u32 %v5803, 16
  %v6045 = vrot.slane %v6043, 5
  %v6046 = vsel %vm2463, %v6041, %v6045
  %v6048 = vshrl.u32 %v5804, 16
  %v6050 = vrot.slane %v6048, 4
  %v6051 = vshll.u32 %v5804, 16
  %v6053 = vrot.slane %v6051, 5
  %v6054 = vor.u32 %v6050, %v6053
  %v6055 = vrot.slane %v6054, 4
  %v6057 = vshll.u32 %v5805, 16
  %v6059 = vrot.slane %v6057, 5
  %v6060 = vsel %vm2463, %v6055, %v6059
  %v6061 = vshrl.u32 %v5805, 16
  %v6063 = vrot.slane %v6061, 4
  %v6064 = vor.u32 %v6063, %v6059
  %v6065 = vrot.slane %v6064, 4
  %v6067 = vshll.u32 %v5806, 16
  %v6069 = vrot.slane %v6067, 5
  %v6070 = vsel %vm2463, %v6065, %v6069
  %v6072 = vshrl.u32 %v5807, 16
  %v6074 = vrot.slane %v6072, 4
  %v6075 = vshll.u32 %v5807, 16
  %v6077 = vrot.slane %v6075, 5
  %v6078 = vor.u32 %v6074, %v6077
  %v6079 = vrot.slane %v6078, 4
  %v6081 = vshll.u32 %v5808, 16
  %v6083 = vrot.slane %v6081, 5
  %v6084 = vsel %vm2463, %v6079, %v6083
  %v6085 = vshrl.u32 %v5808, 16
  %v6087 = vrot.slane %v6085, 4
  %v6088 = vor.u32 %v6087, %v6083
  %v6089 = vrot.slane %v6088, 4
  %v6091 = vshll.u32 %v5809, 16
  %v6093 = vrot.slane %v6091, 5
  %v6094 = vsel %vm2463, %v6089, %v6093
  %v6096 = vshrl.u32 %v5810, 16
  %v6098 = vrot.slane %v6096, 4
  %v6099 = vshll.u32 %v5810, 16
  %v6101 = vrot.slane %v6099, 5
  %v6102 = vor.u32 %v6098, %v6101
  %v6103 = vrot.slane %v6102, 4
  %v6105 = vshll.u32 %v5811, 16
  %v6107 = vrot.slane %v6105, 5
  %v6108 = vsel %vm2463, %v6103, %v6107
  %v6109 = vshrl.u32 %v5811, 16
  %v6111 = vrot.slane %v6109, 4
  %v6112 = vor.u32 %v6111, %v6107
  %v6113 = vrot.slane %v6112, 4
  %v6115 = vshll.u32 %v5812, 16
  %v6117 = vrot.slane %v6115, 5
  %v6118 = vsel %vm2463, %v6113, %v6117
  %v6120 = vshrl.u32 %v5813, 16
  %v6122 = vrot.slane %v6120, 4
  %v6123 = vshll.u32 %v5813, 16
  %v6125 = vrot.slane %v6123, 5
  %v6126 = vor.u32 %v6122, %v6125
  %v6127 = vrot.slane %v6126, 4
  %v6129 = vshll.u32 %v5814, 16
  %v6131 = vrot.slane %v6129, 5
  %v6132 = vsel %vm2463, %v6127, %v6131
  %v6133 = vshrl.u32 %v5814, 16
  %v6135 = vrot.slane %v6133, 4
  %v6136 = vor.u32 %v6135, %v6131
  %v6137 = vrot.slane %v6136, 4
  %v6139 = vshll.u32 %v5815, 16
  %v6141 = vrot.slane %v6139, 5
  %v6142 = vsel %vm2463, %v6137, %v6141
  %v6144 = vshrl.u32 %v5816, 16
  %v6146 = vrot.slane %v6144, 4
  %v6147 = vshll.u32 %v5816, 16
  %v6149 = vrot.slane %v6147, 5
  %v6150 = vor.u32 %v6146, %v6149
  %v6151 = vrot.slane %v6150, 4
  %v6153 = vshll.u32 %v5817, 16
  %v6155 = vrot.slane %v6153, 5
  %v6156 = vsel %vm2463, %v6151, %v6155
  %v6157 = vshrl.u32 %v5817, 16
  %v6159 = vrot.slane %v6157, 4
  %v6160 = vor.u32 %v6159, %v6155
  %v6161 = vrot.slane %v6160, 4
  %v6163 = vshll.u32 %v5818, 16
  %v6165 = vrot.slane %v6163, 5
  %v6166 = vsel %vm2463, %v6161, %v6165
  %v6168 = vshrl.u32 %v5819, 16
  %v6170 = vrot.slane %v6168, 4
  %v6171 = vshll.u32 %v5819, 16
  %v6173 = vrot.slane %v6171, 5
  %v6174 = vor.u32 %v6170, %v6173
  %v6175 = vrot.slane %v6174, 4
  %v6177 = vshll.u32 %v5820, 16
  %v6179 = vrot.slane %v6177, 5
  %v6180 = vsel %vm2463, %v6175, %v6179
  %v6181 = vshrl.u32 %v5820, 16
  %v6183 = vrot.slane %v6181, 4
  %v6184 = vor.u32 %v6183, %v6179
  %v6185 = vrot.slane %v6184, 4
  %v6187 = vshll.u32 %v5821, 16
  %v6189 = vrot.slane %v6187, 5
  %v6190 = vsel %vm2463, %v6185, %v6189
  %v6192 = vshrl.u32 %v5822, 16
  %v6194 = vrot.slane %v6192, 4
  %v6195 = vshll.u32 %v5822, 16
  %v6197 = vrot.slane %v6195, 5
  %v6198 = vor.u32 %v6194, %v6197
  %v6199 = vrot.slane %v6198, 4
  %v6201 = vshll.u32 %v5823, 16
  %v6203 = vrot.slane %v6201, 5
  %v6204 = vsel %vm2463, %v6199, %v6203
  %v6205 = vshrl.u32 %v5823, 16
  %v6207 = vrot.slane %v6205, 4
  %v6208 = vor.u32 %v6207, %v6203
  %v6209 = vrot.slane %v6208, 4
  %v6211 = vshll.u32 %v5824, 16
  %v6213 = vrot.slane %v6211, 5
  %v6214 = vsel %vm2463, %v6209, %v6213
  %v6216 = vshrl.u32 %v5825, 16
  %v6218 = vrot.slane %v6216, 4
  %v6219 = vshll.u32 %v5825, 16
  %v6221 = vrot.slane %v6219, 5
  %v6222 = vor.u32 %v6218, %v6221
  %v6223 = vrot.slane %v6222, 4
  %v6225 = vshll.u32 %v5826, 16
  %v6227 = vrot.slane %v6225, 5
  %v6228 = vsel %vm2463, %v6223, %v6227
  %v6229 = vshrl.u32 %v5826, 16
  %v6231 = vrot.slane %v6229, 4
  %v6232 = vor.u32 %v6231, %v6227
  %v6233 = vrot.slane %v6232, 4
  %v6235 = vshll.u32 %v5827, 16
  %v6237 = vrot.slane %v6235, 5
  %v6238 = vsel %vm2463, %v6233, %v6237
  %v6240 = vshrl.u32 %v5828, 16
  %v6242 = vrot.slane %v6240, 4
  %v6243 = vshll.u32 %v5828, 16
  %v6245 = vrot.slane %v6243, 5
  %v6246 = vor.u32 %v6242, %v6245
  %v6247 = vrot.slane %v6246, 4
  %v6249 = vshll.u32 %v5829, 16
  %v6251 = vrot.slane %v6249, 5
  %v6252 = vsel %vm2463, %v6247, %v6251
  %v6253 = vshrl.u32 %v5829, 16
  %v6255 = vrot.slane %v6253, 4
  %v6256 = vor.u32 %v6255, %v6251
  %v6257 = vrot.slane %v6256, 4
  %v6259 = vshll.u32 %v5830, 16
  %v6261 = vrot.slane %v6259, 5
  %v6262 = vsel %vm2463, %v6257, %v6261
  %v6264 = vshrl.u32 %v5831, 16
  %v6266 = vrot.slane %v6264, 4
  %v6267 = vshll.u32 %v5831, 16
  %v6269 = vrot.slane %v6267, 5
  %v6270 = vor.u32 %v6266, %v6269
  %v6271 = vrot.slane %v6270, 4
  %v6273 = vshll.u32 %v5832, 16
  %v6275 = vrot.slane %v6273, 5
  %v6276 = vsel %vm2463, %v6271, %v6275
  %v6277 = vshrl.u32 %v5832, 16
  %v6279 = vrot.slane %v6277, 4
  %v6280 = vor.u32 %v6279, %v6275
  %v6281 = vrot.slane %v6280, 4
  %v6283 = vshll.u32 %v5833, 16
  %v6285 = vrot.slane %v6283, 5
  %v6286 = vsel %vm2463, %v6281, %v6285
  %v6288 = vshrl.u32 %v5834, 16
  %v6290 = vrot.slane %v6288, 4
  %v6291 = vshll.u32 %v5834, 16
  %v6293 = vrot.slane %v6291, 5
  %v6294 = vor.u32 %v6290, %v6293
  %v6295 = vrot.slane %v6294, 4
  %v6297 = vshll.u32 %v5835, 16
  %v6299 = vrot.slane %v6297, 5
  %v6300 = vsel %vm2463, %v6295, %v6299
  %v6301 = vshrl.u32 %v5835, 16
  %v6303 = vrot.slane %v6301, 4
  %v6304 = vor.u32 %v6303, %v6299
  %v6305 = vrot.slane %v6304, 4
  %v6307 = vshll.u32 %v5836, 16
  %v6309 = vrot.slane %v6307, 5
  %v6310 = vsel %vm2463, %v6305, %v6309
  %v6312 = vshrl.u32 %v5837, 16
  %v6314 = vrot.slane %v6312, 4
  %v6315 = vshll.u32 %v5837, 16
  %v6317 = vrot.slane %v6315, 5
  %v6318 = vor.u32 %v6314, %v6317
  %v6319 = vrot.slane %v6318, 4
  %v6321 = vshll.u32 %v5838, 16
  %v6323 = vrot.slane %v6321, 5
  %v6324 = vsel %vm2463, %v6319, %v6323
  %v6325 = vshrl.u32 %v5838, 16
  %v6327 = vrot.slane %v6325, 4
  %v6328 = vor.u32 %v6327, %v6323
  %v6329 = vrot.slane %v6328, 4
  %v6331 = vshll.u32 %v5839, 16
  %v6333 = vrot.slane %v6331, 5
  %v6334 = vsel %vm2463, %v6329, %v6333
  %v6336 = vshrl.u32 %v5840, 16
  %v6338 = vrot.slane %v6336, 4
  %v6339 = vshll.u32 %v5840, 16
  %v6341 = vrot.slane %v6339, 5
  %v6342 = vor.u32 %v6338, %v6341
  %v6343 = vrot.slane %v6342, 4
  %v6345 = vshll.u32 %v5841, 16
  %v6347 = vrot.slane %v6345, 5
  %v6348 = vsel %vm2463, %v6343, %v6347
  %v6349 = vshrl.u32 %v5841, 16
  %v6351 = vrot.slane %v6349, 4
  %v6352 = vor.u32 %v6351, %v6347
  %v6353 = vrot.slane %v6352, 4
  %v6355 = vshll.u32 %v5842, 16
  %v6357 = vrot.slane %v6355, 5
  %v6358 = vsel %vm2463, %v6353, %v6357
  %v6360 = vshrl.u32 %v5843, 16
  %v6362 = vrot.slane %v6360, 4
  %v6363 = vshll.u32 %v5843, 16
  %v6365 = vrot.slane %v6363, 5
  %v6366 = vor.u32 %v6362, %v6365
  %v6367 = vrot.slane %v6366, 4
  %v6369 = vshll.u32 %v5844, 16
  %v6371 = vrot.slane %v6369, 5
  %v6372 = vsel %vm2463, %v6367, %v6371
  %v6373 = vshrl.u32 %v5844, 16
  %v6375 = vrot.slane %v6373, 4
  %v6376 = vor.u32 %v6375, %v6371
  %v6377 = vrot.slane %v6376, 4
  %v6379 = vshll.u32 %v5845, 16
  %v6381 = vrot.slane %v6379, 5
  %v6382 = vsel %vm2463, %v6377, %v6381
  %v6384 = vshrl.u32 %v5846, 16
  %v6386 = vrot.slane %v6384, 4
  %v6387 = vshll.u32 %v5846, 16
  %v6389 = vrot.slane %v6387, 5
  %v6390 = vor.u32 %v6386, %v6389
  %v6391 = vrot.slane %v6390, 4
  %v6393 = vshll.u32 %v5847, 16
  %v6395 = vrot.slane %v6393, 5
  %v6396 = vsel %vm2463, %v6391, %v6395
  %v6397 = vshrl.u32 %v5847, 16
  %v6399 = vrot.slane %v6397, 4
  %v6400 = vor.u32 %v6399, %v6395
  %v6401 = vrot.slane %v6400, 4
  %v6403 = vshll.u32 %v5848, 16
  %v6405 = vrot.slane %v6403, 5
  %v6406 = vsel %vm2463, %v6401, %v6405
  %v6408 = vshrl.u32 %v5849, 16
  %v6410 = vrot.slane %v6408, 4
  %v6411 = vshll.u32 %v5849, 16
  %v6413 = vrot.slane %v6411, 5
  %v6414 = vor.u32 %v6410, %v6413
  %v6415 = vrot.slane %v6414, 4
  %v6417 = vshll.u32 %v5850, 16
  %v6419 = vrot.slane %v6417, 5
  %v6420 = vsel %vm2463, %v6415, %v6419
  %v6421 = vshrl.u32 %v5850, 16
  %v6423 = vrot.slane %v6421, 4
  %v6424 = vor.u32 %v6423, %v6419
  %v6425 = vrot.slane %v6424, 4
  %v6427 = vshll.u32 %v5851, 16
  %v6429 = vrot.slane %v6427, 5
  %v6430 = vsel %vm2463, %v6425, %v6429
  %v6432 = vshrl.u32 %v5852, 16
  %v6434 = vrot.slane %v6432, 4
  %v6435 = vshll.u32 %v5852, 16
  %v6437 = vrot.slane %v6435, 5
  %v6438 = vor.u32 %v6434, %v6437
  %v6439 = vrot.slane %v6438, 4
  %v6441 = vshll.u32 %v5853, 16
  %v6443 = vrot.slane %v6441, 5
  %v6444 = vsel %vm2463, %v6439, %v6443
  %v6445 = vshrl.u32 %v5853, 16
  %v6447 = vrot.slane %v6445, 4
  %v6448 = vor.u32 %v6447, %v6443
  %v6449 = vrot.slane %v6448, 4
  %v6451 = vshll.u32 %v5854, 16
  %v6453 = vrot.slane %v6451, 5
  %v6454 = vsel %vm2463, %v6449, %v6453
  %v6456 = vshrl.u32 %v5855, 16
  %v6458 = vrot.slane %v6456, 4
  %v6459 = vshll.u32 %v5855, 16
  %v6461 = vrot.slane %v6459, 5
  %v6462 = vor.u32 %v6458, %v6461
  %v6463 = vrot.slane %v6462, 4
  %v6465 = vshll.u32 %v5856, 16
  %v6467 = vrot.slane %v6465, 5
  %v6468 = vsel %vm2463, %v6463, %v6467
  %v6469 = vshrl.u32 %v5856, 16
  %v6471 = vrot.slane %v6469, 4
  %v6472 = vor.u32 %v6471, %v6467
  %v6473 = vrot.slane %v6472, 4
  %v6475 = vshll.u32 %v5857, 16
  %v6477 = vrot.slane %v6475, 5
  %v6478 = vsel %vm2463, %v6473, %v6477
  %v6480 = vshrl.u32 %v5858, 16
  %v6482 = vrot.slane %v6480, 4
  %v6483 = vshll.u32 %v5858, 16
  %v6485 = vrot.slane %v6483, 5
  %v6486 = vor.u32 %v6482, %v6485
  %v6487 = vrot.slane %v6486, 4
  %v6489 = vshll.u32 %v5859, 16
  %v6491 = vrot.slane %v6489, 5
  %v6492 = vsel %vm2463, %v6487, %v6491
  %v6493 = vshrl.u32 %v5859, 16
  %v6495 = vrot.slane %v6493, 4
  %v6496 = vor.u32 %v6495, %v6491
  %v6497 = vrot.slane %v6496, 4
  %v6499 = vshll.u32 %v5860, 16
  %v6501 = vrot.slane %v6499, 5
  %v6502 = vsel %vm2463, %v6497, %v6501
  %v6504 = vshrl.u32 %v5861, 16
  %v6506 = vrot.slane %v6504, 4
  %v6507 = vshll.u32 %v5861, 16
  %v6509 = vrot.slane %v6507, 5
  %v6510 = vor.u32 %v6506, %v6509
  %v6511 = vrot.slane %v6510, 4
  %v6513 = vshll.u32 %v5862, 16
  %v6515 = vrot.slane %v6513, 5
  %v6516 = vsel %vm2463, %v6511, %v6515
  %v6517 = vshrl.u32 %v5862, 16
  %v6519 = vrot.slane %v6517, 4
  %v6520 = vor.u32 %v6519, %v6515
  %v6521 = vrot.slane %v6520, 4
  %v6523 = vshll.u32 %v5863, 16
  %v6525 = vrot.slane %v6523, 5
  %v6526 = vsel %vm2463, %v6521, %v6525
  %v6528 = vshrl.u32 %v5864, 16
  %v6530 = vrot.slane %v6528, 4
  %v6531 = vshll.u32 %v5864, 16
  %v6533 = vrot.slane %v6531, 5
  %v6534 = vor.u32 %v6530, %v6533
  %v6535 = vrot.slane %v6534, 4
  %v6537 = vshll.u32 %v5865, 16
  %v6539 = vrot.slane %v6537, 5
  %v6540 = vsel %vm2463, %v6535, %v6539
  %v6541 = vshrl.u32 %v5865, 16
  %v6543 = vrot.slane %v6541, 4
  %v6544 = vor.u32 %v6543, %v6539
  %v6545 = vrot.slane %v6544, 4
  %v6547 = vshll.u32 %v5866, 16
  %v6549 = vrot.slane %v6547, 5
  %v6550 = vsel %vm2463, %v6545, %v6549
  %v6552 = vshrl.u32 %v5867, 16
  %v6554 = vrot.slane %v6552, 4
  %v6555 = vshll.u32 %v5867, 16
  %v6557 = vrot.slane %v6555, 5
  %v6558 = vor.u32 %v6554, %v6557
  %v6559 = vrot.slane %v6558, 4
  %v6561 = vshll.u32 %v5868, 16
  %v6563 = vrot.slane %v6561, 5
  %v6564 = vsel %vm2463, %v6559, %v6563
  %v6565 = vshrl.u32 %v5868, 16
  %v6567 = vrot.slane %v6565, 4
  %v6568 = vor.u32 %v6567, %v6563
  %v6569 = vrot.slane %v6568, 4
  %v6571 = vshll.u32 %v5869, 16
  %v6573 = vrot.slane %v6571, 5
  %v6574 = vsel %vm2463, %v6569, %v6573
  %v6576 = vshrl.u32 %v5870, 16
  %v6578 = vrot.slane %v6576, 4
  %v6579 = vshll.u32 %v5870, 16
  %v6581 = vrot.slane %v6579, 5
  %v6582 = vor.u32 %v6578, %v6581
  %v6583 = vrot.slane %v6582, 4
  %v6585 = vshll.u32 %v5871, 16
  %v6587 = vrot.slane %v6585, 5
  %v6588 = vsel %vm2463, %v6583, %v6587
  %v6589 = vshrl.u32 %v5871, 16
  %v6591 = vrot.slane %v6589, 4
  %v6592 = vor.u32 %v6591, %v6587
  %v6593 = vrot.slane %v6592, 4
  %v6595 = vshll.u32 %v5872, 16
  %v6597 = vrot.slane %v6595, 5
  %v6598 = vsel %vm2463, %v6593, %v6597
  %v6600 = vshrl.u32 %v5873, 16
  %v6602 = vrot.slane %v6600, 4
  %v6603 = vshll.u32 %v5873, 16
  %v6605 = vrot.slane %v6603, 5
  %v6606 = vor.u32 %v6602, %v6605
  %v6607 = vrot.slane %v6606, 4
  %v6609 = vshll.u32 %v5874, 16
  %v6611 = vrot.slane %v6609, 5
  %v6612 = vsel %vm2463, %v6607, %v6611
  %v6613 = vshrl.u32 %v5874, 16
  %v6615 = vrot.slane %v6613, 4
  %v6616 = vor.u32 %v6615, %v6611
  %v6617 = vrot.slane %v6616, 4
  %v6619 = vshll.u32 %v5875, 16
  %v6621 = vrot.slane %v6619, 5
  %v6622 = vsel %vm2463, %v6617, %v6621
  %v6624 = vshrl.u32 %v5876, 16
  %v6626 = vrot.slane %v6624, 4
  %v6627 = vshll.u32 %v5876, 16
  %v6629 = vrot.slane %v6627, 5
  %v6630 = vor.u32 %v6626, %v6629
  %v6631 = vrot.slane %v6630, 4
  %v6633 = vshll.u32 %v5877, 16
  %v6635 = vrot.slane %v6633, 5
  %v6636 = vsel %vm2463, %v6631, %v6635
  %v6637 = vshrl.u32 %v5877, 16
  %v6639 = vrot.slane %v6637, 4
  %v6640 = vor.u32 %v6639, %v6635
  %v6641 = vrot.slane %v6640, 4
  %v6643 = vshll.u32 %v5878, 16
  %v6645 = vrot.slane %v6643, 5
  %v6646 = vsel %vm2463, %v6641, %v6645
  %v6647 = vld [vmem:[%s2 + $0x100] sm:$0xf]
  %v6648 = vld [vmem:[%s2 + $0x104] sm:$0xf]
  %v6649 = vld [vmem:[%s2 + $0x108] sm:$0xf]
  %v6650 = vld [vmem:[%s2 + $0x10c] sm:$0xf]
  %v6651 = vld [vmem:[%s2 + $0x110] sm:$0xf]
  %v6652 = vld [vmem:[%s2 + $0x114] sm:$0xf]
  %v6653 = vld [vmem:[%s2 + $0x118] sm:$0xf]
  %v6654 = vld [vmem:[%s2 + $0x11c] sm:$0xf]
  %v6655 = vld [vmem:[%s2 + $0x120] sm:$0xf]
  %v6656 = vld [vmem:[%s2 + $0x124] sm:$0xf]
  %v6657 = vld [vmem:[%s2 + $0x128] sm:$0xf]
  %v6658 = vld [vmem:[%s2 + $0x12c] sm:$0xf]
  %v6659 = vld [vmem:[%s2 + $0x130] sm:$0xf]
  %v6660 = vld [vmem:[%s2 + $0x134] sm:$0xf]
  %v6661 = vld [vmem:[%s2 + $0x138] sm:$0xf]
  %v6662 = vld [vmem:[%s2 + $0x13c] sm:$0xf]
  %v6663 = vunpack.c.l.b16 %v5892
  %v6664 = vunpack.c.l.b16 %v5902
  %v6665 = vunpack.c.l.b16 %v5916
  %v6666 = vunpack.c.l.b16 %v5926
  %v6667 = vunpack.c.l.b16 %v5940
  %v6668 = vunpack.c.l.b16 %v5950
  %v6669 = vunpack.c.l.b16 %v5964
  %v6670 = vunpack.c.l.b16 %v5974
  %v6671 = vunpack.c.l.b16 %v5988
  %v6672 = vunpack.c.l.b16 %v5998
  %v6673 = vunpack.c.l.b16 %v6012
  %v6674 = vunpack.c.l.b16 %v6022
  %v6675 = vunpack.c.l.b16 %v6036
  %v6676 = vunpack.c.l.b16 %v6046
  %v6677 = vunpack.c.l.b16 %v6060
  %v6678 = vunpack.c.l.b16 %v6070
  %v6679 = vunpack.c.l.b16 %v6084
  %v6680 = vunpack.c.l.b16 %v6094
  %v6681 = vunpack.c.l.b16 %v6108
  %v6682 = vunpack.c.l.b16 %v6118
  %v6683 = vunpack.c.l.b16 %v6132
  %v6684 = vunpack.c.l.b16 %v6142
  %v6685 = vunpack.c.l.b16 %v6156
  %v6686 = vunpack.c.l.b16 %v6166
  %v6687 = vunpack.c.l.b16 %v6180
  %v6688 = vunpack.c.l.b16 %v6190
  %v6689 = vunpack.c.l.b16 %v6204
  %v6690 = vunpack.c.l.b16 %v6214
  %v6691 = vunpack.c.l.b16 %v6228
  %v6692 = vunpack.c.l.b16 %v6238
  %v6693 = vunpack.c.l.b16 %v6252
  %v6694 = vunpack.c.l.b16 %v6262
  %v6695 = vunpack.c.l.b16 %v6276
  %v6696 = vunpack.c.l.b16 %v6286
  %v6697 = vunpack.c.l.b16 %v6300
  %v6698 = vunpack.c.l.b16 %v6310
  %v6699 = vunpack.c.l.b16 %v6324
  %v6700 = vunpack.c.l.b16 %v6334
  %v6701 = vunpack.c.l.b16 %v6348
  %v6702 = vunpack.c.l.b16 %v6358
  %v6703 = vunpack.c.l.b16 %v6372
  %v6704 = vunpack.c.l.b16 %v6382
  %v6705 = vunpack.c.l.b16 %v6396
  %v6706 = vunpack.c.l.b16 %v6406
  %v6707 = vunpack.c.l.b16 %v6420
  %v6708 = vunpack.c.l.b16 %v6430
  %v6709 = vunpack.c.l.b16 %v6444
  %v6710 = vunpack.c.l.b16 %v6454
  %v6711 = vunpack.c.l.b16 %v6468
  %v6712 = vunpack.c.l.b16 %v6478
  %v6713 = vunpack.c.l.b16 %v6492
  %v6714 = vunpack.c.l.b16 %v6502
  %v6715 = vunpack.c.l.b16 %v6516
  %v6716 = vunpack.c.l.b16 %v6526
  %v6717 = vunpack.c.l.b16 %v6540
  %v6718 = vunpack.c.l.b16 %v6550
  %v6719 = vunpack.c.l.b16 %v6564
  %v6720 = vunpack.c.l.b16 %v6574
  %v6721 = vunpack.c.l.b16 %v6588
  %v6722 = vunpack.c.l.b16 %v6598
  %v6723 = vunpack.c.l.b16 %v6612
  %v6724 = vunpack.c.l.b16 %v6622
  %v6725 = vunpack.c.l.b16 %v6636
  %v6726 = vunpack.c.l.b16 %v6646
  %v6727 = vpack.c.b16 %v6664, %v6663
  %v6728 = vpack.c.b16 %v6666, %v6665
  %v6729 = vpack.c.b16 %v6668, %v6667
  %v6730 = vpack.c.b16 %v6670, %v6669
  %v6731 = vpack.c.b16 %v6672, %v6671
  %v6732 = vpack.c.b16 %v6674, %v6673
  %v6733 = vpack.c.b16 %v6676, %v6675
  %v6734 = vpack.c.b16 %v6678, %v6677
  %v6735 = vpack.c.b16 %v6680, %v6679
  %v6736 = vpack.c.b16 %v6682, %v6681
  %v6737 = vpack.c.b16 %v6684, %v6683
  %v6738 = vpack.c.b16 %v6686, %v6685
  %v6739 = vpack.c.b16 %v6688, %v6687
  %v6740 = vpack.c.b16 %v6690, %v6689
  %v6741 = vpack.c.b16 %v6692, %v6691
  %v6742 = vpack.c.b16 %v6694, %v6693
  %v6743 = vpack.c.b16 %v6696, %v6695
  %v6744 = vpack.c.b16 %v6698, %v6697
  %v6745 = vpack.c.b16 %v6700, %v6699
  %v6746 = vpack.c.b16 %v6702, %v6701
  %v6747 = vpack.c.b16 %v6704, %v6703
  %v6748 = vpack.c.b16 %v6706, %v6705
  %v6749 = vpack.c.b16 %v6708, %v6707
  %v6750 = vpack.c.b16 %v6710, %v6709
  %v6751 = vpack.c.b16 %v6712, %v6711
  %v6752 = vpack.c.b16 %v6714, %v6713
  %v6753 = vpack.c.b16 %v6716, %v6715
  %v6754 = vpack.c.b16 %v6718, %v6717
  %v6755 = vpack.c.b16 %v6720, %v6719
  %v6756 = vpack.c.b16 %v6722, %v6721
  %v6757 = vpack.c.b16 %v6724, %v6723
  %v6758 = vpack.c.b16 %v6726, %v6725
  %v6807 = vunpack.c.l.b16 %v6647
  %v6808 = vunpack.c.l.b16 %v6648
  %v6809 = vunpack.c.l.b16 %v6649
  %v6810 = vunpack.c.l.b16 %v6650
  %v6811 = vunpack.c.l.b16 %v6651
  %v6812 = vunpack.c.l.b16 %v6652
  %v6813 = vunpack.c.l.b16 %v6653
  %v6814 = vunpack.c.l.b16 %v6654
  %v6815 = vunpack.c.l.b16 %v6655
  %v6816 = vunpack.c.l.b16 %v6656
  %v6817 = vunpack.c.l.b16 %v6657
  %v6818 = vunpack.c.l.b16 %v6658
  %v6819 = vunpack.c.l.b16 %v6659
  %v6820 = vunpack.c.l.b16 %v6660
  %v6821 = vunpack.c.l.b16 %v6661
  %v6822 = vunpack.c.l.b16 %v6662
  %v6823 = vpack.c.b16 %v6808, %v6807
  %v6824 = vpack.c.b16 %v6810, %v6809
  %v6825 = vpack.c.b16 %v6812, %v6811
  %v6826 = vpack.c.b16 %v6814, %v6813
  %v6827 = vpack.c.b16 %v6816, %v6815
  %v6828 = vpack.c.b16 %v6818, %v6817
  %v6829 = vpack.c.b16 %v6820, %v6819
  %v6830 = vpack.c.b16 %v6822, %v6821
  %6839 = vmatprep.subr.bf16.mxu0 0
  %6840 = vmatpush1.bf16.msra.mxu0 %v6830
  %6841 = vmatprep.subr.bf16.mxu0 0
  %6842 = vmatpush1.bf16.msra.mxu0 %v6829
  %6843 = vmatprep.subr.bf16.mxu0 0
  %6844 = vmatpush1.bf16.msra.mxu0 %v6828
  %6845 = vmatprep.subr.bf16.mxu0 0
  %6846 = vmatpush1.bf16.msra.mxu0 %v6827
  %6847 = vmatprep.subr.bf16.mxu0 0
  %6848 = vmatpush1.bf16.msra.mxu0 %v6826
  %6849 = vmatprep.subr.bf16.mxu0 0
  %6850 = vmatpush1.bf16.msra.mxu0 %v6825
  %6851 = vmatprep.subr.bf16.mxu0 0
  %6852 = vmatpush1.bf16.msra.mxu0 %v6824
  %6853 = vmatprep.subr.bf16.mxu0 0
  %6854 = vmatpush1.bf16.msra.mxu0 %v6823
  %6855 = vmatprep.subr.bf16.mxu0 0
  %6856 = vmatpush2.bf16.msra.mxu0 0
  %6857 = vmatprep.subr.bf16.mxu0 0
  %6858 = vmatpush2.bf16.msra.mxu0 0
  %6859 = vmatprep.subr.bf16.mxu0 0
  %6860 = vmatpush2.bf16.msra.mxu0 0
  %6861 = vmatprep.subr.bf16.mxu0 0
  %6862 = vmatpush2.bf16.msra.mxu0 0
  %6863 = vmatprep.subr.bf16.mxu0 0
  %6864 = vmatpush2.bf16.msra.mxu0 0
  %6865 = vmatprep.subr.bf16.mxu0 0
  %6866 = vmatpush2.bf16.msra.mxu0 0
  %6867 = vmatprep.subr.bf16.mxu0 0
  %6868 = vmatpush2.bf16.msra.mxu0 0
  %6869 = vmatprep.subr.bf16.mxu0 0
  %6870 = vmatpush2.bf16.msra.mxu0 0
  %6871 = vmatprep.mubr.bf16.mxu0 0
  %6872 = vmatmul.mubr.bf16.gmra.mxu0 %v6727
  %v6873 = vpop.f32.mrf.mxu0
  %v6874 = vadd.f32 0.0, %v6873
  %v6875 = vpop.f32.mrf.mxu0
  %v6876 = vpop.f32.mrf.mxu0
  %v6877 = vadd.f32 0.0, %v6876
  %v6878 = vpop.f32.mrf.mxu0
  %6879 = vmatprep.mubr.bf16.mxu0 0
  %6880 = vmatmul.mubr.bf16.gmra.mxu0 %v6728
  %v6881 = vpop.f32.mrf.mxu0
  %v6882 = vadd.f32 0.0, %v6881
  %v6883 = vpop.f32.mrf.mxu0
  %v6884 = vpop.f32.mrf.mxu0
  %v6885 = vadd.f32 0.0, %v6884
  %v6886 = vpop.f32.mrf.mxu0
  %6887 = vmatprep.mubr.bf16.mxu0 0
  %6888 = vmatmul.mubr.bf16.gmra.mxu0 %v6729
  %v6889 = vpop.f32.mrf.mxu0
  %v6890 = vadd.f32 0.0, %v6889
  %v6891 = vpop.f32.mrf.mxu0
  %v6892 = vpop.f32.mrf.mxu0
  %v6893 = vadd.f32 0.0, %v6892
  %v6894 = vpop.f32.mrf.mxu0
  %6895 = vmatprep.mubr.bf16.mxu0 0
  %6896 = vmatmul.mubr.bf16.gmra.mxu0 %v6730
  %v6897 = vpop.f32.mrf.mxu0
  %v6898 = vadd.f32 0.0, %v6897
  %v6899 = vpop.f32.mrf.mxu0
  %v6900 = vpop.f32.mrf.mxu0
  %v6901 = vadd.f32 0.0, %v6900
  %v6902 = vpop.f32.mrf.mxu0
  %6903 = vmatprep.mubr.bf16.mxu0 0
  %6904 = vmatmul.mubr.bf16.gmra.mxu0 %v6731
  %v6905 = vpop.f32.mrf.mxu0
  %v6906 = vadd.f32 0.0, %v6905
  %v6907 = vpop.f32.mrf.mxu0
  %v6908 = vpop.f32.mrf.mxu0
  %v6909 = vadd.f32 0.0, %v6908
  %v6910 = vpop.f32.mrf.mxu0
  %6911 = vmatprep.mubr.bf16.mxu0 0
  %6912 = vmatmul.mubr.bf16.gmra.mxu0 %v6732
  %v6913 = vpop.f32.mrf.mxu0
  %v6914 = vadd.f32 0.0, %v6913
  %v6915 = vpop.f32.mrf.mxu0
  %v6916 = vpop.f32.mrf.mxu0
  %v6917 = vadd.f32 0.0, %v6916
  %v6918 = vpop.f32.mrf.mxu0
  %6919 = vmatprep.mubr.bf16.mxu0 0
  %6920 = vmatmul.mubr.bf16.gmra.mxu0 %v6733
  %v6921 = vpop.f32.mrf.mxu0
  %v6922 = vadd.f32 0.0, %v6921
  %v6923 = vpop.f32.mrf.mxu0
  %v6924 = vpop.f32.mrf.mxu0
  %v6925 = vadd.f32 0.0, %v6924
  %v6926 = vpop.f32.mrf.mxu0
  %6927 = vmatprep.mubr.bf16.mxu0 0
  %6928 = vmatmul.mubr.bf16.gmra.mxu0 %v6734
  %v6929 = vpop.f32.mrf.mxu0
  %v6930 = vadd.f32 0.0, %v6929
  %v6931 = vpop.f32.mrf.mxu0
  %v6932 = vpop.f32.mrf.mxu0
  %v6933 = vadd.f32 0.0, %v6932
  %v6934 = vpop.f32.mrf.mxu0
  %6935 = vmatprep.mubr.bf16.mxu0 0
  %6936 = vmatmul.mubr.bf16.gmra.mxu0 %v6735
  %v6937 = vpop.f32.mrf.mxu0
  %v6938 = vadd.f32 0.0, %v6937
  %v6939 = vpop.f32.mrf.mxu0
  %v6940 = vpop.f32.mrf.mxu0
  %v6941 = vadd.f32 0.0, %v6940
  %v6942 = vpop.f32.mrf.mxu0
  %6943 = vmatprep.mubr.bf16.mxu0 0
  %6944 = vmatmul.mubr.bf16.gmra.mxu0 %v6736
  %v6945 = vpop.f32.mrf.mxu0
  %v6946 = vadd.f32 0.0, %v6945
  %v6947 = vpop.f32.mrf.mxu0
  %v6948 = vpop.f32.mrf.mxu0
  %v6949 = vadd.f32 0.0, %v6948
  %v6950 = vpop.f32.mrf.mxu0
  %6951 = vmatprep.mubr.bf16.mxu0 0
  %6952 = vmatmul.mubr.bf16.gmra.mxu0 %v6737
  %v6953 = vpop.f32.mrf.mxu0
  %v6954 = vadd.f32 0.0, %v6953
  %v6955 = vpop.f32.mrf.mxu0
  %v6956 = vpop.f32.mrf.mxu0
  %v6957 = vadd.f32 0.0, %v6956
  %v6958 = vpop.f32.mrf.mxu0
  %6959 = vmatprep.mubr.bf16.mxu0 0
  %6960 = vmatmul.mubr.bf16.gmra.mxu0 %v6738
  %v6961 = vpop.f32.mrf.mxu0
  %v6962 = vadd.f32 0.0, %v6961
  %v6963 = vpop.f32.mrf.mxu0
  %v6964 = vpop.f32.mrf.mxu0
  %v6965 = vadd.f32 0.0, %v6964
  %v6966 = vpop.f32.mrf.mxu0
  %6967 = vmatprep.mubr.bf16.mxu0 0
  %6968 = vmatmul.mubr.bf16.gmra.mxu0 %v6739
  %v6969 = vpop.f32.mrf.mxu0
  %v6970 = vadd.f32 0.0, %v6969
  %v6971 = vpop.f32.mrf.mxu0
  %v6972 = vpop.f32.mrf.mxu0
  %v6973 = vadd.f32 0.0, %v6972
  %v6974 = vpop.f32.mrf.mxu0
  %6975 = vmatprep.mubr.bf16.mxu0 0
  %6976 = vmatmul.mubr.bf16.gmra.mxu0 %v6740
  %v6977 = vpop.f32.mrf.mxu0
  %v6978 = vadd.f32 0.0, %v6977
  %v6979 = vpop.f32.mrf.mxu0
  %v6980 = vpop.f32.mrf.mxu0
  %v6981 = vadd.f32 0.0, %v6980
  %v6982 = vpop.f32.mrf.mxu0
  %6983 = vmatprep.mubr.bf16.mxu0 0
  %6984 = vmatmul.mubr.bf16.gmra.mxu0 %v6741
  %v6985 = vpop.f32.mrf.mxu0
  %v6986 = vadd.f32 0.0, %v6985
  %v6987 = vpop.f32.mrf.mxu0
  %v6988 = vpop.f32.mrf.mxu0
  %v6989 = vadd.f32 0.0, %v6988
  %v6990 = vpop.f32.mrf.mxu0
  %6991 = vmatprep.mubr.bf16.mxu0 0
  %6992 = vmatmul.mubr.bf16.gmra.mxu0 %v6742
  %v6993 = vpop.f32.mrf.mxu0
  %v6994 = vadd.f32 0.0, %v6993
  %v6995 = vpop.f32.mrf.mxu0
  %v6996 = vpop.f32.mrf.mxu0
  %v6997 = vadd.f32 0.0, %v6996
  %v6998 = vpop.f32.mrf.mxu0
  %6999 = vmatprep.mubr.bf16.mxu0 0
  %7000 = vmatmul.mubr.bf16.gmra.mxu0 %v6743
  %v7001 = vpop.f32.mrf.mxu0
  %v7002 = vadd.f32 0.0, %v7001
  %v7003 = vpop.f32.mrf.mxu0
  %v7004 = vpop.f32.mrf.mxu0
  %v7005 = vadd.f32 0.0, %v7004
  %v7006 = vpop.f32.mrf.mxu0
  %7007 = vmatprep.mubr.bf16.mxu0 0
  %7008 = vmatmul.mubr.bf16.gmra.mxu0 %v6744
  %v7009 = vpop.f32.mrf.mxu0
  %v7010 = vadd.f32 0.0, %v7009
  %v7011 = vpop.f32.mrf.mxu0
  %v7012 = vpop.f32.mrf.mxu0
  %v7013 = vadd.f32 0.0, %v7012
  %v7014 = vpop.f32.mrf.mxu0
  %7015 = vmatprep.mubr.bf16.mxu0 0
  %7016 = vmatmul.mubr.bf16.gmra.mxu0 %v6745
  %v7017 = vpop.f32.mrf.mxu0
  %v7018 = vadd.f32 0.0, %v7017
  %v7019 = vpop.f32.mrf.mxu0
  %v7020 = vpop.f32.mrf.mxu0
  %v7021 = vadd.f32 0.0, %v7020
  %v7022 = vpop.f32.mrf.mxu0
  %7023 = vmatprep.mubr.bf16.mxu0 0
  %7024 = vmatmul.mubr.bf16.gmra.mxu0 %v6746
  %v7025 = vpop.f32.mrf.mxu0
  %v7026 = vadd.f32 0.0, %v7025
  %v7027 = vpop.f32.mrf.mxu0
  %v7028 = vpop.f32.mrf.mxu0
  %v7029 = vadd.f32 0.0, %v7028
  %v7030 = vpop.f32.mrf.mxu0
  %7031 = vmatprep.mubr.bf16.mxu0 0
  %7032 = vmatmul.mubr.bf16.gmra.mxu0 %v6747
  %v7033 = vpop.f32.mrf.mxu0
  %v7034 = vadd.f32 0.0, %v7033
  %v7035 = vpop.f32.mrf.mxu0
  %v7036 = vpop.f32.mrf.mxu0
  %v7037 = vadd.f32 0.0, %v7036
  %v7038 = vpop.f32.mrf.mxu0
  %7039 = vmatprep.mubr.bf16.mxu0 0
  %7040 = vmatmul.mubr.bf16.gmra.mxu0 %v6748
  %v7041 = vpop.f32.mrf.mxu0
  %v7042 = vadd.f32 0.0, %v7041
  %v7043 = vpop.f32.mrf.mxu0
  %v7044 = vpop.f32.mrf.mxu0
  %v7045 = vadd.f32 0.0, %v7044
  %v7046 = vpop.f32.mrf.mxu0
  %7047 = vmatprep.mubr.bf16.mxu0 0
  %7048 = vmatmul.mubr.bf16.gmra.mxu0 %v6749
  %v7049 = vpop.f32.mrf.mxu0
  %v7050 = vadd.f32 0.0, %v7049
  %v7051 = vpop.f32.mrf.mxu0
  %v7052 = vpop.f32.mrf.mxu0
  %v7053 = vadd.f32 0.0, %v7052
  %v7054 = vpop.f32.mrf.mxu0
  %7055 = vmatprep.mubr.bf16.mxu0 0
  %7056 = vmatmul.mubr.bf16.gmra.mxu0 %v6750
  %v7057 = vpop.f32.mrf.mxu0
  %v7058 = vadd.f32 0.0, %v7057
  %v7059 = vpop.f32.mrf.mxu0
  %v7060 = vpop.f32.mrf.mxu0
  %v7061 = vadd.f32 0.0, %v7060
  %v7062 = vpop.f32.mrf.mxu0
  %7063 = vmatprep.mubr.bf16.mxu0 0
  %7064 = vmatmul.mubr.bf16.gmra.mxu0 %v6751
  %v7065 = vpop.f32.mrf.mxu0
  %v7066 = vadd.f32 0.0, %v7065
  %v7067 = vpop.f32.mrf.mxu0
  %v7068 = vpop.f32.mrf.mxu0
  %v7069 = vadd.f32 0.0, %v7068
  %v7070 = vpop.f32.mrf.mxu0
  %7071 = vmatprep.mubr.bf16.mxu0 0
  %7072 = vmatmul.mubr.bf16.gmra.mxu0 %v6752
  %v7073 = vpop.f32.mrf.mxu0
  %v7074 = vadd.f32 0.0, %v7073
  %v7075 = vpop.f32.mrf.mxu0
  %v7076 = vpop.f32.mrf.mxu0
  %v7077 = vadd.f32 0.0, %v7076
  %v7078 = vpop.f32.mrf.mxu0
  %7079 = vmatprep.mubr.bf16.mxu0 0
  %7080 = vmatmul.mubr.bf16.gmra.mxu0 %v6753
  %v7081 = vpop.f32.mrf.mxu0
  %v7082 = vadd.f32 0.0, %v7081
  %v7083 = vpop.f32.mrf.mxu0
  %v7084 = vpop.f32.mrf.mxu0
  %v7085 = vadd.f32 0.0, %v7084
  %v7086 = vpop.f32.mrf.mxu0
  %7087 = vmatprep.mubr.bf16.mxu0 0
  %7088 = vmatmul.mubr.bf16.gmra.mxu0 %v6754
  %v7089 = vpop.f32.mrf.mxu0
  %v7090 = vadd.f32 0.0, %v7089
  %v7091 = vpop.f32.mrf.mxu0
  %v7092 = vpop.f32.mrf.mxu0
  %v7093 = vadd.f32 0.0, %v7092
  %v7094 = vpop.f32.mrf.mxu0
  %7095 = vmatprep.mubr.bf16.mxu0 0
  %7096 = vmatmul.mubr.bf16.gmra.mxu0 %v6755
  %v7097 = vpop.f32.mrf.mxu0
  %v7098 = vadd.f32 0.0, %v7097
  %v7099 = vpop.f32.mrf.mxu0
  %v7100 = vpop.f32.mrf.mxu0
  %v7101 = vadd.f32 0.0, %v7100
  %v7102 = vpop.f32.mrf.mxu0
  %7103 = vmatprep.mubr.bf16.mxu0 0
  %7104 = vmatmul.mubr.bf16.gmra.mxu0 %v6756
  %v7105 = vpop.f32.mrf.mxu0
  %v7106 = vadd.f32 0.0, %v7105
  %v7107 = vpop.f32.mrf.mxu0
  %v7108 = vpop.f32.mrf.mxu0
  %v7109 = vadd.f32 0.0, %v7108
  %v7110 = vpop.f32.mrf.mxu0
  %7111 = vmatprep.mubr.bf16.mxu0 0
  %7112 = vmatmul.mubr.bf16.gmra.mxu0 %v6757
  %v7113 = vpop.f32.mrf.mxu0
  %v7114 = vadd.f32 0.0, %v7113
  %v7115 = vpop.f32.mrf.mxu0
  %v7116 = vpop.f32.mrf.mxu0
  %v7117 = vadd.f32 0.0, %v7116
  %v7118 = vpop.f32.mrf.mxu0
  %7119 = vmatprep.mubr.bf16.mxu0 0
  %7120 = vmatmul.mubr.bf16.gmra.mxu0 %v6758
  %v7121 = vpop.f32.mrf.mxu0
  %v7122 = vadd.f32 0.0, %v7121
  %v7123 = vpop.f32.mrf.mxu0
  %v7124 = vpop.f32.mrf.mxu0
  %v7125 = vadd.f32 0.0, %v7124
  %v7126 = vpop.f32.mrf.mxu0
  %7127 = vdwg.mxu0
  %v7128 = vadd.f32 %v5719, %v6874
  %v7129 = vadd.f32 %v5720, %v6877
  %v7130 = vadd.f32 %v5721, %v6882
  %v7131 = vadd.f32 %v5722, %v6885
  %v7132 = vadd.f32 %v5723, %v6890
  %v7133 = vadd.f32 %v5724, %v6893
  %v7134 = vadd.f32 %v5725, %v6898
  %v7135 = vadd.f32 %v5726, %v6901
  %v7136 = vadd.f32 %v5727, %v6906
  %v7137 = vadd.f32 %v5728, %v6909
  %v7138 = vadd.f32 %v5729, %v6914
  %v7139 = vadd.f32 %v5730, %v6917
  %v7140 = vadd.f32 %v5731, %v6922
  %v7141 = vadd.f32 %v5732, %v6925
  %v7142 = vadd.f32 %v5733, %v6930
  %v7143 = vadd.f32 %v5734, %v6933
  %v7144 = vadd.f32 %v5735, %v6938
  %v7145 = vadd.f32 %v5736, %v6941
  %v7146 = vadd.f32 %v5737, %v6946
  %v7147 = vadd.f32 %v5738, %v6949
  %v7148 = vadd.f32 %v5739, %v6954
  %v7149 = vadd.f32 %v5740, %v6957
  %v7150 = vadd.f32 %v5741, %v6962
  %v7151 = vadd.f32 %v5742, %v6965
  %v7152 = vadd.f32 %v5743, %v6970
  %v7153 = vadd.f32 %v5744, %v6973
  %v7154 = vadd.f32 %v5745, %v6978
  %v7155 = vadd.f32 %v5746, %v6981
  %v7156 = vadd.f32 %v5747, %v6986
  %v7157 = vadd.f32 %v5748, %v6989
  %v7158 = vadd.f32 %v5749, %v6994
  %v7159 = vadd.f32 %v5750, %v6997
  %v7160 = vadd.f32 %v5751, %v7002
  %v7161 = vadd.f32 %v5752, %v7005
  %v7162 = vadd.f32 %v5753, %v7010
  %v7163 = vadd.f32 %v5754, %v7013
  %v7164 = vadd.f32 %v5755, %v7018
  %v7165 = vadd.f32 %v5756, %v7021
  %v7166 = vadd.f32 %v5757, %v7026
  %v7167 = vadd.f32 %v5758, %v7029
  %v7168 = vadd.f32 %v5759, %v7034
  %v7169 = vadd.f32 %v5760, %v7037
  %v7170 = vadd.f32 %v5761, %v7042
  %v7171 = vadd.f32 %v5762, %v7045
  %v7172 = vadd.f32 %v5763, %v7050
  %v7173 = vadd.f32 %v5764, %v7053
  %v7174 = vadd.f32 %v5765, %v7058
  %v7175 = vadd.f32 %v5766, %v7061
  %v7176 = vadd.f32 %v5767, %v7066
  %v7177 = vadd.f32 %v5768, %v7069
  %v7178 = vadd.f32 %v5769, %v7074
  %v7179 = vadd.f32 %v5770, %v7077
  %v7180 = vadd.f32 %v5771, %v7082
  %v7181 = vadd.f32 %v5772, %v7085
  %v7182 = vadd.f32 %v5773, %v7090
  %v7183 = vadd.f32 %v5774, %v7093
  %v7184 = vadd.f32 %v5775, %v7098
  %v7185 = vadd.f32 %v5776, %v7101
  %v7186 = vadd.f32 %v5777, %v7106
  %v7187 = vadd.f32 %v5778, %v7109
  %v7188 = vadd.f32 %v5779, %v7114
  %v7189 = vadd.f32 %v5780, %v7117
  %v7190 = vadd.f32 %v5781, %v7122
  %v7191 = vadd.f32 %v5782, %v7125
  %v7192 = vld [vmem:[%s2122] sm:$0xe]
  %v7193 = vld [vmem:[%s2122 + $0xc] sm:$0xe]
  %v7194 = vld [vmem:[%s2122 + $0x18] sm:$0xe]
  %v7195 = vld [vmem:[%s2122 + $0x24] sm:$0xe]
  %v7196 = vld [vmem:[%s2122 + $0x30] sm:$0xe]
  %v7197 = vld [vmem:[%s2122 + $0x3c] sm:$0xe]
  %v7198 = vld [vmem:[%s2122 + $0x48] sm:$0xe]
  %v7199 = vld [vmem:[%s2122 + $0x54] sm:$0xe]
  %v7200 = vld [vmem:[%s2122 + $0x60] sm:$0xe]
  %v7201 = vld [vmem:[%s2122 + $0x6c] sm:$0xe]
  %v7202 = vld [vmem:[%s2122 + $0x78] sm:$0xe]
  %v7203 = vld [vmem:[%s2122 + $0x84] sm:$0xe]
  %v7204 = vld [vmem:[%s2122 + $0x90] sm:$0xe]
  %v7205 = vld [vmem:[%s2122 + $0x9c] sm:$0xe]
  %v7206 = vld [vmem:[%s2122 + $0xa8] sm:$0xe]
  %v7207 = vld [vmem:[%s2122 + $0xb4] sm:$0xe]
  %v7208 = vld [vmem:[%s2122 + $0xd8] sm:$0xe]
  %v7209 = vld [vmem:[%s2122 + $0xe4] sm:$0xe]
  %v7210 = vld [vmem:[%s2122 + $0xf0] sm:$0xe]
  %v7211 = vld [vmem:[%s2122 + $0xfc] sm:$0xe]
  %v7212 = vld [vmem:[%s2122 + $0x108] sm:$0xe]
  %v7213 = vld [vmem:[%s2122 + $0x114] sm:$0xe]
  %v7214 = vld [vmem:[%s2122 + $0x120] sm:$0xe]
  %v7215 = vld [vmem:[%s2122 + $0x12c] sm:$0xe]
  %v7216 = vld [vmem:[%s2122 + $0x138] sm:$0xe]
  %v7217 = vld [vmem:[%s2122 + $0x144] sm:$0xe]
  %v7218 = vld [vmem:[%s2122 + $0x150] sm:$0xe]
  %v7219 = vld [vmem:[%s2122 + $0x15c] sm:$0xe]
  %v7220 = vld [vmem:[%s2122 + $0x168] sm:$0xe]
  %v7221 = vld [vmem:[%s2122 + $0x174] sm:$0xe]
  %v7222 = vld [vmem:[%s2122 + $0x180] sm:$0xe]
  %v7223 = vld [vmem:[%s2122 + $0x18c] sm:$0xe]
  %v7320 = vrot.slane %v7192, 5
  %v7321 = vrot.slane %v7320, 4
  %v7322 = vrot.slane %v5784, 5
  %v7323 = vsel %vm4340, %v7321, %v7322
  %v7324 = vrot.slane %v7322, 4
  %v7325 = vrot.slane %v5785, 5
  %v7326 = vsel %vm4340, %v7324, %v7325
  %v7327 = vrot.slane %v7193, 5
  %v7328 = vrot.slane %v7327, 4
  %v7329 = vrot.slane %v5787, 5
  %v7330 = vsel %vm4340, %v7328, %v7329
  %v7331 = vrot.slane %v7329, 4
  %v7332 = vrot.slane %v5788, 5
  %v7333 = vsel %vm4340, %v7331, %v7332
  %v7334 = vrot.slane %v7194, 5
  %v7335 = vrot.slane %v7334, 4
  %v7336 = vrot.slane %v5790, 5
  %v7337 = vsel %vm4340, %v7335, %v7336
  %v7338 = vrot.slane %v7336, 4
  %v7339 = vrot.slane %v5791, 5
  %v7340 = vsel %vm4340, %v7338, %v7339
  %v7341 = vrot.slane %v7195, 5
  %v7342 = vrot.slane %v7341, 4
  %v7343 = vrot.slane %v5793, 5
  %v7344 = vsel %vm4340, %v7342, %v7343
  %v7345 = vrot.slane %v7343, 4
  %v7346 = vrot.slane %v5794, 5
  %v7347 = vsel %vm4340, %v7345, %v7346
  %v7348 = vrot.slane %v7196, 5
  %v7349 = vrot.slane %v7348, 4
  %v7350 = vrot.slane %v5796, 5
  %v7351 = vsel %vm4340, %v7349, %v7350
  %v7352 = vrot.slane %v7350, 4
  %v7353 = vrot.slane %v5797, 5
  %v7354 = vsel %vm4340, %v7352, %v7353
  %v7355 = vrot.slane %v7197, 5
  %v7356 = vrot.slane %v7355, 4
  %v7357 = vrot.slane %v5799, 5
  %v7358 = vsel %vm4340, %v7356, %v7357
  %v7359 = vrot.slane %v7357, 4
  %v7360 = vrot.slane %v5800, 5
  %v7361 = vsel %vm4340, %v7359, %v7360
  %v7362 = vrot.slane %v7198, 5
  %v7363 = vrot.slane %v7362, 4
  %v7364 = vrot.slane %v5802, 5
  %v7365 = vsel %vm4340, %v7363, %v7364
  %v7366 = vrot.slane %v7364, 4
  %v7367 = vrot.slane %v5803, 5
  %v7368 = vsel %vm4340, %v7366, %v7367
  %v7369 = vrot.slane %v7199, 5
  %v7370 = vrot.slane %v7369, 4
  %v7371 = vrot.slane %v5805, 5
  %v7372 = vsel %vm4340, %v7370, %v7371
  %v7373 = vrot.slane %v7371, 4
  %v7374 = vrot.slane %v5806, 5
  %v7375 = vsel %vm4340, %v7373, %v7374
  %v7376 = vrot.slane %v7200, 5
  %v7377 = vrot.slane %v7376, 4
  %v7378 = vrot.slane %v5808, 5
  %v7379 = vsel %vm4340, %v7377, %v7378
  %v7380 = vrot.slane %v7378, 4
  %v7381 = vrot.slane %v5809, 5
  %v7382 = vsel %vm4340, %v7380, %v7381
  %v7383 = vrot.slane %v7201, 5
  %v7384 = vrot.slane %v7383, 4
  %v7385 = vrot.slane %v5811, 5
  %v7386 = vsel %vm4340, %v7384, %v7385
  %v7387 = vrot.slane %v7385, 4
  %v7388 = vrot.slane %v5812, 5
  %v7389 = vsel %vm4340, %v7387, %v7388
  %v7390 = vrot.slane %v7202, 5
  %v7391 = vrot.slane %v7390, 4
  %v7392 = vrot.slane %v5814, 5
  %v7393 = vsel %vm4340, %v7391, %v7392
  %v7394 = vrot.slane %v7392, 4
  %v7395 = vrot.slane %v5815, 5
  %v7396 = vsel %vm4340, %v7394, %v7395
  %v7397 = vrot.slane %v7203, 5
  %v7398 = vrot.slane %v7397, 4
  %v7399 = vrot.slane %v5817, 5
  %v7400 = vsel %vm4340, %v7398, %v7399
  %v7401 = vrot.slane %v7399, 4
  %v7402 = vrot.slane %v5818, 5
  %v7403 = vsel %vm4340, %v7401, %v7402
  %v7404 = vrot.slane %v7204, 5
  %v7405 = vrot.slane %v7404, 4
  %v7406 = vrot.slane %v5820, 5
  %v7407 = vsel %vm4340, %v7405, %v7406
  %v7408 = vrot.slane %v7406, 4
  %v7409 = vrot.slane %v5821, 5
  %v7410 = vsel %vm4340, %v7408, %v7409
  %v7411 = vrot.slane %v7205, 5
  %v7412 = vrot.slane %v7411, 4
  %v7413 = vrot.slane %v5823, 5
  %v7414 = vsel %vm4340, %v7412, %v7413
  %v7415 = vrot.slane %v7413, 4
  %v7416 = vrot.slane %v5824, 5
  %v7417 = vsel %vm4340, %v7415, %v7416
  %v7418 = vrot.slane %v7206, 5
  %v7419 = vrot.slane %v7418, 4
  %v7420 = vrot.slane %v5826, 5
  %v7421 = vsel %vm4340, %v7419, %v7420
  %v7422 = vrot.slane %v7420, 4
  %v7423 = vrot.slane %v5827, 5
  %v7424 = vsel %vm4340, %v7422, %v7423
  %v7425 = vrot.slane %v7207, 5
  %v7426 = vrot.slane %v7425, 4
  %v7427 = vrot.slane %v5829, 5
  %v7428 = vsel %vm4340, %v7426, %v7427
  %v7429 = vrot.slane %v7427, 4
  %v7430 = vrot.slane %v5830, 5
  %v7431 = vsel %vm4340, %v7429, %v7430
  %v7432 = vrot.slane %v7208, 5
  %v7433 = vrot.slane %v7432, 4
  %v7434 = vrot.slane %v5832, 5
  %v7435 = vsel %vm4340, %v7433, %v7434
  %v7436 = vrot.slane %v7434, 4
  %v7437 = vrot.slane %v5833, 5
  %v7438 = vsel %vm4340, %v7436, %v7437
  %v7439 = vrot.slane %v7209, 5
  %v7440 = vrot.slane %v7439, 4
  %v7441 = vrot.slane %v5835, 5
  %v7442 = vsel %vm4340, %v7440, %v7441
  %v7443 = vrot.slane %v7441, 4
  %v7444 = vrot.slane %v5836, 5
  %v7445 = vsel %vm4340, %v7443, %v7444
  %v7446 = vrot.slane %v7210, 5
  %v7447 = vrot.slane %v7446, 4
  %v7448 = vrot.slane %v5838, 5
  %v7449 = vsel %vm4340, %v7447, %v7448
  %v7450 = vrot.slane %v7448, 4
  %v7451 = vrot.slane %v5839, 5
  %v7452 = vsel %vm4340, %v7450, %v7451
  %v7453 = vrot.slane %v7211, 5
  %v7454 = vrot.slane %v7453, 4
  %v7455 = vrot.slane %v5841, 5
  %v7456 = vsel %vm4340, %v7454, %v7455
  %v7457 = vrot.slane %v7455, 4
  %v7458 = vrot.slane %v5842, 5
  %v7459 = vsel %vm4340, %v7457, %v7458
  %v7460 = vrot.slane %v7212, 5
  %v7461 = vrot.slane %v7460, 4
  %v7462 = vrot.slane %v5844, 5
  %v7463 = vsel %vm4340, %v7461, %v7462
  %v7464 = vrot.slane %v7462, 4
  %v7465 = vrot.slane %v5845, 5
  %v7466 = vsel %vm4340, %v7464, %v7465
  %v7467 = vrot.slane %v7213, 5
  %v7468 = vrot.slane %v7467, 4
  %v7469 = vrot.slane %v5847, 5
  %v7470 = vsel %vm4340, %v7468, %v7469
  %v7471 = vrot.slane %v7469, 4
  %v7472 = vrot.slane %v5848, 5
  %v7473 = vsel %vm4340, %v7471, %v7472
  %v7474 = vrot.slane %v7214, 5
  %v7475 = vrot.slane %v7474, 4
  %v7476 = vrot.slane %v5850, 5
  %v7477 = vsel %vm4340, %v7475, %v7476
  %v7478 = vrot.slane %v7476, 4
  %v7479 = vrot.slane %v5851, 5
  %v7480 = vsel %vm4340, %v7478, %v7479
  %v7481 = vrot.slane %v7215, 5
  %v7482 = vrot.slane %v7481, 4
  %v7483 = vrot.slane %v5853, 5
  %v7484 = vsel %vm4340, %v7482, %v7483
  %v7485 = vrot.slane %v7483, 4
  %v7486 = vrot.slane %v5854, 5
  %v7487 = vsel %vm4340, %v7485, %v7486
  %v7488 = vrot.slane %v7216, 5
  %v7489 = vrot.slane %v7488, 4
  %v7490 = vrot.slane %v5856, 5
  %v7491 = vsel %vm4340, %v7489, %v7490
  %v7492 = vrot.slane %v7490, 4
  %v7493 = vrot.slane %v5857, 5
  %v7494 = vsel %vm4340, %v7492, %v7493
  %v7495 = vrot.slane %v7217, 5
  %v7496 = vrot.slane %v7495, 4
  %v7497 = vrot.slane %v5859, 5
  %v7498 = vsel %vm4340, %v7496, %v7497
  %v7499 = vrot.slane %v7497, 4
  %v7500 = vrot.slane %v5860, 5
  %v7501 = vsel %vm4340, %v7499, %v7500
  %v7502 = vrot.slane %v7218, 5
  %v7503 = vrot.slane %v7502, 4
  %v7504 = vrot.slane %v5862, 5
  %v7505 = vsel %vm4340, %v7503, %v7504
  %v7506 = vrot.slane %v7504, 4
  %v7507 = vrot.slane %v5863, 5
  %v7508 = vsel %vm4340, %v7506, %v7507
  %v7509 = vrot.slane %v7219, 5
  %v7510 = vrot.slane %v7509, 4
  %v7511 = vrot.slane %v5865, 5
  %v7512 = vsel %vm4340, %v7510, %v7511
  %v7513 = vrot.slane %v7511, 4
  %v7514 = vrot.slane %v5866, 5
  %v7515 = vsel %vm4340, %v7513, %v7514
  %v7516 = vrot.slane %v7220, 5
  %v7517 = vrot.slane %v7516, 4
  %v7518 = vrot.slane %v5868, 5
  %v7519 = vsel %vm4340, %v7517, %v7518
  %v7520 = vrot.slane %v7518, 4
  %v7521 = vrot.slane %v5869, 5
  %v7522 = vsel %vm4340, %v7520, %v7521
  %v7523 = vrot.slane %v7221, 5
  %v7524 = vrot.slane %v7523, 4
  %v7525 = vrot.slane %v5871, 5
  %v7526 = vsel %vm4340, %v7524, %v7525
  %v7527 = vrot.slane %v7525, 4
  %v7528 = vrot.slane %v5872, 5
  %v7529 = vsel %vm4340, %v7527, %v7528
  %v7530 = vrot.slane %v7222, 5
  %v7531 = vrot.slane %v7530, 4
  %v7532 = vrot.slane %v5874, 5
  %v7533 = vsel %vm4340, %v7531, %v7532
  %v7534 = vrot.slane %v7532, 4
  %v7535 = vrot.slane %v5875, 5
  %v7536 = vsel %vm4340, %v7534, %v7535
  %v7537 = vrot.slane %v7223, 5
  %v7538 = vrot.slane %v7537, 4
  %v7539 = vrot.slane %v5877, 5
  %v7540 = vsel %vm4340, %v7538, %v7539
  %v7541 = vrot.slane %v7539, 4
  %v7542 = vrot.slane %v5878, 5
  %v7543 = vsel %vm4340, %v7541, %v7542
  %v7544 = vld [vmem:[%s2 + $0x140] sm:$0xf]
  %v7545 = vld [vmem:[%s2 + $0x144] sm:$0xf]
  %v7546 = vld [vmem:[%s2 + $0x148] sm:$0xf]
  %v7547 = vld [vmem:[%s2 + $0x14c] sm:$0xf]
  %v7548 = vld [vmem:[%s2 + $0x150] sm:$0xf]
  %v7549 = vld [vmem:[%s2 + $0x154] sm:$0xf]
  %v7550 = vld [vmem:[%s2 + $0x158] sm:$0xf]
  %v7551 = vld [vmem:[%s2 + $0x15c] sm:$0xf]
  %v7552 = vld [vmem:[%s2 + $0x160] sm:$0xf]
  %v7553 = vld [vmem:[%s2 + $0x164] sm:$0xf]
  %v7554 = vld [vmem:[%s2 + $0x168] sm:$0xf]
  %v7555 = vld [vmem:[%s2 + $0x16c] sm:$0xf]
  %v7556 = vld [vmem:[%s2 + $0x170] sm:$0xf]
  %v7557 = vld [vmem:[%s2 + $0x174] sm:$0xf]
  %v7558 = vld [vmem:[%s2 + $0x178] sm:$0xf]
  %v7559 = vld [vmem:[%s2 + $0x17c] sm:$0xf]
  %v7560 = vunpack.c.l.b16 %v7323
  %v7561 = vunpack.c.l.b16 %v7326
  %v7562 = vunpack.c.l.b16 %v7330
  %v7563 = vunpack.c.l.b16 %v7333
  %v7564 = vunpack.c.l.b16 %v7337
  %v7565 = vunpack.c.l.b16 %v7340
  %v7566 = vunpack.c.l.b16 %v7344
  %v7567 = vunpack.c.l.b16 %v7347
  %v7568 = vunpack.c.l.b16 %v7351
  %v7569 = vunpack.c.l.b16 %v7354
  %v7570 = vunpack.c.l.b16 %v7358
  %v7571 = vunpack.c.l.b16 %v7361
  %v7572 = vunpack.c.l.b16 %v7365
  %v7573 = vunpack.c.l.b16 %v7368
  %v7574 = vunpack.c.l.b16 %v7372
  %v7575 = vunpack.c.l.b16 %v7375
  %v7576 = vunpack.c.l.b16 %v7379
  %v7577 = vunpack.c.l.b16 %v7382
  %v7578 = vunpack.c.l.b16 %v7386
  %v7579 = vunpack.c.l.b16 %v7389
  %v7580 = vunpack.c.l.b16 %v7393
  %v7581 = vunpack.c.l.b16 %v7396
  %v7582 = vunpack.c.l.b16 %v7400
  %v7583 = vunpack.c.l.b16 %v7403
  %v7584 = vunpack.c.l.b16 %v7407
  %v7585 = vunpack.c.l.b16 %v7410
  %v7586 = vunpack.c.l.b16 %v7414
  %v7587 = vunpack.c.l.b16 %v7417
  %v7588 = vunpack.c.l.b16 %v7421
  %v7589 = vunpack.c.l.b16 %v7424
  %v7590 = vunpack.c.l.b16 %v7428
  %v7591 = vunpack.c.l.b16 %v7431
  %v7592 = vunpack.c.l.b16 %v7435
  %v7593 = vunpack.c.l.b16 %v7438
  %v7594 = vunpack.c.l.b16 %v7442
  %v7595 = vunpack.c.l.b16 %v7445
  %v7596 = vunpack.c.l.b16 %v7449
  %v7597 = vunpack.c.l.b16 %v7452
  %v7598 = vunpack.c.l.b16 %v7456
  %v7599 = vunpack.c.l.b16 %v7459
  %v7600 = vunpack.c.l.b16 %v7463
  %v7601 = vunpack.c.l.b16 %v7466
  %v7602 = vunpack.c.l.b16 %v7470
  %v7603 = vunpack.c.l.b16 %v7473
  %v7604 = vunpack.c.l.b16 %v7477
  %v7605 = vunpack.c.l.b16 %v7480
  %v7606 = vunpack.c.l.b16 %v7484
  %v7607 = vunpack.c.l.b16 %v7487
  %v7608 = vunpack.c.l.b16 %v7491
  %v7609 = vunpack.c.l.b16 %v7494
  %v7610 = vunpack.c.l.b16 %v7498
  %v7611 = vunpack.c.l.b16 %v7501
  %v7612 = vunpack.c.l.b16 %v7505
  %v7613 = vunpack.c.l.b16 %v7508
  %v7614 = vunpack.c.l.b16 %v7512
  %v7615 = vunpack.c.l.b16 %v7515
  %v7616 = vunpack.c.l.b16 %v7519
  %v7617 = vunpack.c.l.b16 %v7522
  %v7618 = vunpack.c.l.b16 %v7526
  %v7619 = vunpack.c.l.b16 %v7529
  %v7620 = vunpack.c.l.b16 %v7533
  %v7621 = vunpack.c.l.b16 %v7536
  %v7622 = vunpack.c.l.b16 %v7540
  %v7623 = vunpack.c.l.b16 %v7543
  %v7624 = vpack.c.b16 %v7561, %v7560
  %v7625 = vpack.c.b16 %v7563, %v7562
  %v7626 = vpack.c.b16 %v7565, %v7564
  %v7627 = vpack.c.b16 %v7567, %v7566
  %v7628 = vpack.c.b16 %v7569, %v7568
  %v7629 = vpack.c.b16 %v7571, %v7570
  %v7630 = vpack.c.b16 %v7573, %v7572
  %v7631 = vpack.c.b16 %v7575, %v7574
  %v7632 = vpack.c.b16 %v7577, %v7576
  %v7633 = vpack.c.b16 %v7579, %v7578
  %v7634 = vpack.c.b16 %v7581, %v7580
  %v7635 = vpack.c.b16 %v7583, %v7582
  %v7636 = vpack.c.b16 %v7585, %v7584
  %v7637 = vpack.c.b16 %v7587, %v7586
  %v7638 = vpack.c.b16 %v7589, %v7588
  %v7639 = vpack.c.b16 %v7591, %v7590
  %v7640 = vpack.c.b16 %v7593, %v7592
  %v7641 = vpack.c.b16 %v7595, %v7594
  %v7642 = vpack.c.b16 %v7597, %v7596
  %v7643 = vpack.c.b16 %v7599, %v7598
  %v7644 = vpack.c.b16 %v7601, %v7600
  %v7645 = vpack.c.b16 %v7603, %v7602
  %v7646 = vpack.c.b16 %v7605, %v7604
  %v7647 = vpack.c.b16 %v7607, %v7606
  %v7648 = vpack.c.b16 %v7609, %v7608
  %v7649 = vpack.c.b16 %v7611, %v7610
  %v7650 = vpack.c.b16 %v7613, %v7612
  %v7651 = vpack.c.b16 %v7615, %v7614
  %v7652 = vpack.c.b16 %v7617, %v7616
  %v7653 = vpack.c.b16 %v7619, %v7618
  %v7654 = vpack.c.b16 %v7621, %v7620
  %v7655 = vpack.c.b16 %v7623, %v7622
  %v7704 = vunpack.c.l.b16 %v7544
  %v7705 = vunpack.c.l.b16 %v7545
  %v7706 = vunpack.c.l.b16 %v7546
  %v7707 = vunpack.c.l.b16 %v7547
  %v7708 = vunpack.c.l.b16 %v7548
  %v7709 = vunpack.c.l.b16 %v7549
  %v7710 = vunpack.c.l.b16 %v7550
  %v7711 = vunpack.c.l.b16 %v7551
  %v7712 = vunpack.c.l.b16 %v7552
  %v7713 = vunpack.c.l.b16 %v7553
  %v7714 = vunpack.c.l.b16 %v7554
  %v7715 = vunpack.c.l.b16 %v7555
  %v7716 = vunpack.c.l.b16 %v7556
  %v7717 = vunpack.c.l.b16 %v7557
  %v7718 = vunpack.c.l.b16 %v7558
  %v7719 = vunpack.c.l.b16 %v7559
  %v7720 = vpack.c.b16 %v7705, %v7704
  %v7721 = vpack.c.b16 %v7707, %v7706
  %v7722 = vpack.c.b16 %v7709, %v7708
  %v7723 = vpack.c.b16 %v7711, %v7710
  %v7724 = vpack.c.b16 %v7713, %v7712
  %v7725 = vpack.c.b16 %v7715, %v7714
  %v7726 = vpack.c.b16 %v7717, %v7716
  %v7727 = vpack.c.b16 %v7719, %v7718
  %7736 = vmatprep.subr.bf16.mxu0 0
  %7737 = vmatpush1.bf16.msra.mxu0 %v7727
  %7738 = vmatprep.subr.bf16.mxu0 0
  %7739 = vmatpush1.bf16.msra.mxu0 %v7726
  %7740 = vmatprep.subr.bf16.mxu0 0
  %7741 = vmatpush1.bf16.msra.mxu0 %v7725
  %7742 = vmatprep.subr.bf16.mxu0 0
  %7743 = vmatpush1.bf16.msra.mxu0 %v7724
  %7744 = vmatprep.subr.bf16.mxu0 0
  %7745 = vmatpush1.bf16.msra.mxu0 %v7723
  %7746 = vmatprep.subr.bf16.mxu0 0
  %7747 = vmatpush1.bf16.msra.mxu0 %v7722
  %7748 = vmatprep.subr.bf16.mxu0 0
  %7749 = vmatpush1.bf16.msra.mxu0 %v7721
  %7750 = vmatprep.subr.bf16.mxu0 0
  %7751 = vmatpush1.bf16.msra.mxu0 %v7720
  %7752 = vmatprep.subr.bf16.mxu0 0
  %7753 = vmatpush2.bf16.msra.mxu0 0
  %7754 = vmatprep.subr.bf16.mxu0 0
  %7755 = vmatpush2.bf16.msra.mxu0 0
  %7756 = vmatprep.subr.bf16.mxu0 0
  %7757 = vmatpush2.bf16.msra.mxu0 0
  %7758 = vmatprep.subr.bf16.mxu0 0
  %7759 = vmatpush2.bf16.msra.mxu0 0
  %7760 = vmatprep.subr.bf16.mxu0 0
  %7761 = vmatpush2.bf16.msra.mxu0 0
  %7762 = vmatprep.subr.bf16.mxu0 0
  %7763 = vmatpush2.bf16.msra.mxu0 0
  %7764 = vmatprep.subr.bf16.mxu0 0
  %7765 = vmatpush2.bf16.msra.mxu0 0
  %7766 = vmatprep.subr.bf16.mxu0 0
  %7767 = vmatpush2.bf16.msra.mxu0 0
  %7768 = vmatprep.mubr.bf16.mxu0 0
  %7769 = vmatmul.mubr.bf16.gmra.mxu0 %v7624
  %v7770 = vpop.f32.mrf.mxu0
  %v7771 = vadd.f32 0.0, %v7770
  %v7772 = vpop.f32.mrf.mxu0
  %v7773 = vpop.f32.mrf.mxu0
  %v7774 = vadd.f32 0.0, %v7773
  %v7775 = vpop.f32.mrf.mxu0
  %7776 = vmatprep.mubr.bf16.mxu0 0
  %7777 = vmatmul.mubr.bf16.gmra.mxu0 %v7625
  %v7778 = vpop.f32.mrf.mxu0
  %v7779 = vadd.f32 0.0, %v7778
  %v7780 = vpop.f32.mrf.mxu0
  %v7781 = vpop.f32.mrf.mxu0
  %v7782 = vadd.f32 0.0, %v7781
  %v7783 = vpop.f32.mrf.mxu0
  %7784 = vmatprep.mubr.bf16.mxu0 0
  %7785 = vmatmul.mubr.bf16.gmra.mxu0 %v7626
  %v7786 = vpop.f32.mrf.mxu0
  %v7787 = vadd.f32 0.0, %v7786
  %v7788 = vpop.f32.mrf.mxu0
  %v7789 = vpop.f32.mrf.mxu0
  %v7790 = vadd.f32 0.0, %v7789
  %v7791 = vpop.f32.mrf.mxu0
  %7792 = vmatprep.mubr.bf16.mxu0 0
  %7793 = vmatmul.mubr.bf16.gmra.mxu0 %v7627
  %v7794 = vpop.f32.mrf.mxu0
  %v7795 = vadd.f32 0.0, %v7794
  %v7796 = vpop.f32.mrf.mxu0
  %v7797 = vpop.f32.mrf.mxu0
  %v7798 = vadd.f32 0.0, %v7797
  %v7799 = vpop.f32.mrf.mxu0
  %7800 = vmatprep.mubr.bf16.mxu0 0
  %7801 = vmatmul.mubr.bf16.gmra.mxu0 %v7628
  %v7802 = vpop.f32.mrf.mxu0
  %v7803 = vadd.f32 0.0, %v7802
  %v7804 = vpop.f32.mrf.mxu0
  %v7805 = vpop.f32.mrf.mxu0
  %v7806 = vadd.f32 0.0, %v7805
  %v7807 = vpop.f32.mrf.mxu0
  %7808 = vmatprep.mubr.bf16.mxu0 0
  %7809 = vmatmul.mubr.bf16.gmra.mxu0 %v7629
  %v7810 = vpop.f32.mrf.mxu0
  %v7811 = vadd.f32 0.0, %v7810
  %v7812 = vpop.f32.mrf.mxu0
  %v7813 = vpop.f32.mrf.mxu0
  %v7814 = vadd.f32 0.0, %v7813
  %v7815 = vpop.f32.mrf.mxu0
  %7816 = vmatprep.mubr.bf16.mxu0 0
  %7817 = vmatmul.mubr.bf16.gmra.mxu0 %v7630
  %v7818 = vpop.f32.mrf.mxu0
  %v7819 = vadd.f32 0.0, %v7818
  %v7820 = vpop.f32.mrf.mxu0
  %v7821 = vpop.f32.mrf.mxu0
  %v7822 = vadd.f32 0.0, %v7821
  %v7823 = vpop.f32.mrf.mxu0
  %7824 = vmatprep.mubr.bf16.mxu0 0
  %7825 = vmatmul.mubr.bf16.gmra.mxu0 %v7631
  %v7826 = vpop.f32.mrf.mxu0
  %v7827 = vadd.f32 0.0, %v7826
  %v7828 = vpop.f32.mrf.mxu0
  %v7829 = vpop.f32.mrf.mxu0
  %v7830 = vadd.f32 0.0, %v7829
  %v7831 = vpop.f32.mrf.mxu0
  %7832 = vmatprep.mubr.bf16.mxu0 0
  %7833 = vmatmul.mubr.bf16.gmra.mxu0 %v7632
  %v7834 = vpop.f32.mrf.mxu0
  %v7835 = vadd.f32 0.0, %v7834
  %v7836 = vpop.f32.mrf.mxu0
  %v7837 = vpop.f32.mrf.mxu0
  %v7838 = vadd.f32 0.0, %v7837
  %v7839 = vpop.f32.mrf.mxu0
  %7840 = vmatprep.mubr.bf16.mxu0 0
  %7841 = vmatmul.mubr.bf16.gmra.mxu0 %v7633
  %v7842 = vpop.f32.mrf.mxu0
  %v7843 = vadd.f32 0.0, %v7842
  %v7844 = vpop.f32.mrf.mxu0
  %v7845 = vpop.f32.mrf.mxu0
  %v7846 = vadd.f32 0.0, %v7845
  %v7847 = vpop.f32.mrf.mxu0
  %7848 = vmatprep.mubr.bf16.mxu0 0
  %7849 = vmatmul.mubr.bf16.gmra.mxu0 %v7634
  %v7850 = vpop.f32.mrf.mxu0
  %v7851 = vadd.f32 0.0, %v7850
  %v7852 = vpop.f32.mrf.mxu0
  %v7853 = vpop.f32.mrf.mxu0
  %v7854 = vadd.f32 0.0, %v7853
  %v7855 = vpop.f32.mrf.mxu0
  %7856 = vmatprep.mubr.bf16.mxu0 0
  %7857 = vmatmul.mubr.bf16.gmra.mxu0 %v7635
  %v7858 = vpop.f32.mrf.mxu0
  %v7859 = vadd.f32 0.0, %v7858
  %v7860 = vpop.f32.mrf.mxu0
  %v7861 = vpop.f32.mrf.mxu0
  %v7862 = vadd.f32 0.0, %v7861
  %v7863 = vpop.f32.mrf.mxu0
  %7864 = vmatprep.mubr.bf16.mxu0 0
  %7865 = vmatmul.mubr.bf16.gmra.mxu0 %v7636
  %v7866 = vpop.f32.mrf.mxu0
  %v7867 = vadd.f32 0.0, %v7866
  %v7868 = vpop.f32.mrf.mxu0
  %v7869 = vpop.f32.mrf.mxu0
  %v7870 = vadd.f32 0.0, %v7869
  %v7871 = vpop.f32.mrf.mxu0
  %7872 = vmatprep.mubr.bf16.mxu0 0
  %7873 = vmatmul.mubr.bf16.gmra.mxu0 %v7637
  %v7874 = vpop.f32.mrf.mxu0
  %v7875 = vadd.f32 0.0, %v7874
  %v7876 = vpop.f32.mrf.mxu0
  %v7877 = vpop.f32.mrf.mxu0
  %v7878 = vadd.f32 0.0, %v7877
  %v7879 = vpop.f32.mrf.mxu0
  %7880 = vmatprep.mubr.bf16.mxu0 0
  %7881 = vmatmul.mubr.bf16.gmra.mxu0 %v7638
  %v7882 = vpop.f32.mrf.mxu0
  %v7883 = vadd.f32 0.0, %v7882
  %v7884 = vpop.f32.mrf.mxu0
  %v7885 = vpop.f32.mrf.mxu0
  %v7886 = vadd.f32 0.0, %v7885
  %v7887 = vpop.f32.mrf.mxu0
  %7888 = vmatprep.mubr.bf16.mxu0 0
  %7889 = vmatmul.mubr.bf16.gmra.mxu0 %v7639
  %v7890 = vpop.f32.mrf.mxu0
  %v7891 = vadd.f32 0.0, %v7890
  %v7892 = vpop.f32.mrf.mxu0
  %v7893 = vpop.f32.mrf.mxu0
  %v7894 = vadd.f32 0.0, %v7893
  %v7895 = vpop.f32.mrf.mxu0
  %7896 = vmatprep.mubr.bf16.mxu0 0
  %7897 = vmatmul.mubr.bf16.gmra.mxu0 %v7640
  %v7898 = vpop.f32.mrf.mxu0
  %v7899 = vadd.f32 0.0, %v7898
  %v7900 = vpop.f32.mrf.mxu0
  %v7901 = vpop.f32.mrf.mxu0
  %v7902 = vadd.f32 0.0, %v7901
  %v7903 = vpop.f32.mrf.mxu0
  %7904 = vmatprep.mubr.bf16.mxu0 0
  %7905 = vmatmul.mubr.bf16.gmra.mxu0 %v7641
  %v7906 = vpop.f32.mrf.mxu0
  %v7907 = vadd.f32 0.0, %v7906
  %v7908 = vpop.f32.mrf.mxu0
  %v7909 = vpop.f32.mrf.mxu0
  %v7910 = vadd.f32 0.0, %v7909
  %v7911 = vpop.f32.mrf.mxu0
  %7912 = vmatprep.mubr.bf16.mxu0 0
  %7913 = vmatmul.mubr.bf16.gmra.mxu0 %v7642
  %v7914 = vpop.f32.mrf.mxu0
  %v7915 = vadd.f32 0.0, %v7914
  %v7916 = vpop.f32.mrf.mxu0
  %v7917 = vpop.f32.mrf.mxu0
  %v7918 = vadd.f32 0.0, %v7917
  %v7919 = vpop.f32.mrf.mxu0
  %7920 = vmatprep.mubr.bf16.mxu0 0
  %7921 = vmatmul.mubr.bf16.gmra.mxu0 %v7643
  %v7922 = vpop.f32.mrf.mxu0
  %v7923 = vadd.f32 0.0, %v7922
  %v7924 = vpop.f32.mrf.mxu0
  %v7925 = vpop.f32.mrf.mxu0
  %v7926 = vadd.f32 0.0, %v7925
  %v7927 = vpop.f32.mrf.mxu0
  %7928 = vmatprep.mubr.bf16.mxu0 0
  %7929 = vmatmul.mubr.bf16.gmra.mxu0 %v7644
  %v7930 = vpop.f32.mrf.mxu0
  %v7931 = vadd.f32 0.0, %v7930
  %v7932 = vpop.f32.mrf.mxu0
  %v7933 = vpop.f32.mrf.mxu0
  %v7934 = vadd.f32 0.0, %v7933
  %v7935 = vpop.f32.mrf.mxu0
  %7936 = vmatprep.mubr.bf16.mxu0 0
  %7937 = vmatmul.mubr.bf16.gmra.mxu0 %v7645
  %v7938 = vpop.f32.mrf.mxu0
  %v7939 = vadd.f32 0.0, %v7938
  %v7940 = vpop.f32.mrf.mxu0
  %v7941 = vpop.f32.mrf.mxu0
  %v7942 = vadd.f32 0.0, %v7941
  %v7943 = vpop.f32.mrf.mxu0
  %7944 = vmatprep.mubr.bf16.mxu0 0
  %7945 = vmatmul.mubr.bf16.gmra.mxu0 %v7646
  %v7946 = vpop.f32.mrf.mxu0
  %v7947 = vadd.f32 0.0, %v7946
  %v7948 = vpop.f32.mrf.mxu0
  %v7949 = vpop.f32.mrf.mxu0
  %v7950 = vadd.f32 0.0, %v7949
  %v7951 = vpop.f32.mrf.mxu0
  %7952 = vmatprep.mubr.bf16.mxu0 0
  %7953 = vmatmul.mubr.bf16.gmra.mxu0 %v7647
  %v7954 = vpop.f32.mrf.mxu0
  %v7955 = vadd.f32 0.0, %v7954
  %v7956 = vpop.f32.mrf.mxu0
  %v7957 = vpop.f32.mrf.mxu0
  %v7958 = vadd.f32 0.0, %v7957
  %v7959 = vpop.f32.mrf.mxu0
  %7960 = vmatprep.mubr.bf16.mxu0 0
  %7961 = vmatmul.mubr.bf16.gmra.mxu0 %v7648
  %v7962 = vpop.f32.mrf.mxu0
  %v7963 = vadd.f32 0.0, %v7962
  %v7964 = vpop.f32.mrf.mxu0
  %v7965 = vpop.f32.mrf.mxu0
  %v7966 = vadd.f32 0.0, %v7965
  %v7967 = vpop.f32.mrf.mxu0
  %7968 = vmatprep.mubr.bf16.mxu0 0
  %7969 = vmatmul.mubr.bf16.gmra.mxu0 %v7649
  %v7970 = vpop.f32.mrf.mxu0
  %v7971 = vadd.f32 0.0, %v7970
  %v7972 = vpop.f32.mrf.mxu0
  %v7973 = vpop.f32.mrf.mxu0
  %v7974 = vadd.f32 0.0, %v7973
  %v7975 = vpop.f32.mrf.mxu0
  %7976 = vmatprep.mubr.bf16.mxu0 0
  %7977 = vmatmul.mubr.bf16.gmra.mxu0 %v7650
  %v7978 = vpop.f32.mrf.mxu0
  %v7979 = vadd.f32 0.0, %v7978
  %v7980 = vpop.f32.mrf.mxu0
  %v7981 = vpop.f32.mrf.mxu0
  %v7982 = vadd.f32 0.0, %v7981
  %v7983 = vpop.f32.mrf.mxu0
  %7984 = vmatprep.mubr.bf16.mxu0 0
  %7985 = vmatmul.mubr.bf16.gmra.mxu0 %v7651
  %v7986 = vpop.f32.mrf.mxu0
  %v7987 = vadd.f32 0.0, %v7986
  %v7988 = vpop.f32.mrf.mxu0
  %v7989 = vpop.f32.mrf.mxu0
  %v7990 = vadd.f32 0.0, %v7989
  %v7991 = vpop.f32.mrf.mxu0
  %7992 = vmatprep.mubr.bf16.mxu0 0
  %7993 = vmatmul.mubr.bf16.gmra.mxu0 %v7652
  %v7994 = vpop.f32.mrf.mxu0
  %v7995 = vadd.f32 0.0, %v7994
  %v7996 = vpop.f32.mrf.mxu0
  %v7997 = vpop.f32.mrf.mxu0
  %v7998 = vadd.f32 0.0, %v7997
  %v7999 = vpop.f32.mrf.mxu0
  %8000 = vmatprep.mubr.bf16.mxu0 0
  %8001 = vmatmul.mubr.bf16.gmra.mxu0 %v7653
  %v8002 = vpop.f32.mrf.mxu0
  %v8003 = vadd.f32 0.0, %v8002
  %v8004 = vpop.f32.mrf.mxu0
  %v8005 = vpop.f32.mrf.mxu0
  %v8006 = vadd.f32 0.0, %v8005
  %v8007 = vpop.f32.mrf.mxu0
  %8008 = vmatprep.mubr.bf16.mxu0 0
  %8009 = vmatmul.mubr.bf16.gmra.mxu0 %v7654
  %v8010 = vpop.f32.mrf.mxu0
  %v8011 = vadd.f32 0.0, %v8010
  %v8012 = vpop.f32.mrf.mxu0
  %v8013 = vpop.f32.mrf.mxu0
  %v8014 = vadd.f32 0.0, %v8013
  %v8015 = vpop.f32.mrf.mxu0
  %8016 = vmatprep.mubr.bf16.mxu0 0
  %8017 = vmatmul.mubr.bf16.gmra.mxu0 %v7655
  %v8018 = vpop.f32.mrf.mxu0
  %v8019 = vadd.f32 0.0, %v8018
  %v8020 = vpop.f32.mrf.mxu0
  %v8021 = vpop.f32.mrf.mxu0
  %v8022 = vadd.f32 0.0, %v8021
  %v8023 = vpop.f32.mrf.mxu0
  %8024 = vdwg.mxu0
  %v8025 = vadd.f32 %v7128, %v7771
  %v8026 = vadd.f32 %v7129, %v7774
  %v8027 = vadd.f32 %v7130, %v7779
  %v8028 = vadd.f32 %v7131, %v7782
  %v8029 = vadd.f32 %v7132, %v7787
  %v8030 = vadd.f32 %v7133, %v7790
  %v8031 = vadd.f32 %v7134, %v7795
  %v8032 = vadd.f32 %v7135, %v7798
  %v8033 = vadd.f32 %v7136, %v7803
  %v8034 = vadd.f32 %v7137, %v7806
  %v8035 = vadd.f32 %v7138, %v7811
  %v8036 = vadd.f32 %v7139, %v7814
  %v8037 = vadd.f32 %v7140, %v7819
  %v8038 = vadd.f32 %v7141, %v7822
  %v8039 = vadd.f32 %v7142, %v7827
  %v8040 = vadd.f32 %v7143, %v7830
  %v8041 = vadd.f32 %v7144, %v7835
  %v8042 = vadd.f32 %v7145, %v7838
  %v8043 = vadd.f32 %v7146, %v7843
  %v8044 = vadd.f32 %v7147, %v7846
  %v8045 = vadd.f32 %v7148, %v7851
  %v8046 = vadd.f32 %v7149, %v7854
  %v8047 = vadd.f32 %v7150, %v7859
  %v8048 = vadd.f32 %v7151, %v7862
  %v8049 = vadd.f32 %v7152, %v7867
  %v8050 = vadd.f32 %v7153, %v7870
  %v8051 = vadd.f32 %v7154, %v7875
  %v8052 = vadd.f32 %v7155, %v7878
  %v8053 = vadd.f32 %v7156, %v7883
  %v8054 = vadd.f32 %v7157, %v7886
  %v8055 = vadd.f32 %v7158, %v7891
  %v8056 = vadd.f32 %v7159, %v7894
  %v8057 = vadd.f32 %v7160, %v7899
  %v8058 = vadd.f32 %v7161, %v7902
  %v8059 = vadd.f32 %v7162, %v7907
  %v8060 = vadd.f32 %v7163, %v7910
  %v8061 = vadd.f32 %v7164, %v7915
  %v8062 = vadd.f32 %v7165, %v7918
  %v8063 = vadd.f32 %v7166, %v7923
  %v8064 = vadd.f32 %v7167, %v7926
  %v8065 = vadd.f32 %v7168, %v7931
  %v8066 = vadd.f32 %v7169, %v7934
  %v8067 = vadd.f32 %v7170, %v7939
  %v8068 = vadd.f32 %v7171, %v7942
  %v8069 = vadd.f32 %v7172, %v7947
  %v8070 = vadd.f32 %v7173, %v7950
  %v8071 = vadd.f32 %v7174, %v7955
  %v8072 = vadd.f32 %v7175, %v7958
  %v8073 = vadd.f32 %v7176, %v7963
  %v8074 = vadd.f32 %v7177, %v7966
  %v8075 = vadd.f32 %v7178, %v7971
  %v8076 = vadd.f32 %v7179, %v7974
  %v8077 = vadd.f32 %v7180, %v7979
  %v8078 = vadd.f32 %v7181, %v7982
  %v8079 = vadd.f32 %v7182, %v7987
  %v8080 = vadd.f32 %v7183, %v7990
  %v8081 = vadd.f32 %v7184, %v7995
  %v8082 = vadd.f32 %v7185, %v7998
  %v8083 = vadd.f32 %v7186, %v8003
  %v8084 = vadd.f32 %v7187, %v8006
  %v8085 = vadd.f32 %v7188, %v8011
  %v8086 = vadd.f32 %v7189, %v8014
  %v8087 = vadd.f32 %v7190, %v8019
  %v8088 = vadd.f32 %v7191, %v8022
  %s8089 = scalar_lea.vmem [#allocation2], 24
  %v8090 = vld [vmem:[%s8089] sm:$0xf]
  %v8091 = vld [vmem:[%s8089 + $0x4] sm:$0xf]
  %v8092 = vld [vmem:[%s8089 + $0xc] sm:$0xf]
  %v8093 = vld [vmem:[%s8089 + $0x10] sm:$0xf]
  %v8094 = vld [vmem:[%s8089 + $0x18] sm:$0xf]
  %v8095 = vld [vmem:[%s8089 + $0x1c] sm:$0xf]
  %v8096 = vld [vmem:[%s8089 + $0x24] sm:$0xf]
  %v8097 = vld [vmem:[%s8089 + $0x28] sm:$0xf]
  %v8098 = vld [vmem:[%s8089 + $0x30] sm:$0xf]
  %v8099 = vld [vmem:[%s8089 + $0x34] sm:$0xf]
  %v8100 = vld [vmem:[%s8089 + $0x3c] sm:$0xf]
  %v8101 = vld [vmem:[%s8089 + $0x40] sm:$0xf]
  %v8102 = vld [vmem:[%s8089 + $0x48] sm:$0xf]
  %v8103 = vld [vmem:[%s8089 + $0x4c] sm:$0xf]
  %v8104 = vld [vmem:[%s8089 + $0x54] sm:$0xf]
  %v8105 = vld [vmem:[%s8089 + $0x58] sm:$0xf]
  %v8106 = vld [vmem:[%s8089 + $0x60] sm:$0xf]
  %v8107 = vld [vmem:[%s8089 + $0x64] sm:$0xf]
  %v8108 = vld [vmem:[%s8089 + $0x6c] sm:$0xf]
  %v8109 = vld [vmem:[%s8089 + $0x70] sm:$0xf]
  %v8110 = vld [vmem:[%s8089 + $0x78] sm:$0xf]
  %v8111 = vld [vmem:[%s8089 + $0x7c] sm:$0xf]
  %v8112 = vld [vmem:[%s8089 + $0x84] sm:$0xf]
  %v8113 = vld [vmem:[%s8089 + $0x88] sm:$0xf]
  %v8114 = vld [vmem:[%s8089 + $0x90] sm:$0xf]
  %v8115 = vld [vmem:[%s8089 + $0x94] sm:$0xf]
  %v8116 = vld [vmem:[%s8089 + $0x9c] sm:$0xf]
  %v8117 = vld [vmem:[%s8089 + $0xa0] sm:$0xf]
  %v8118 = vld [vmem:[%s8089 + $0xa8] sm:$0xf]
  %v8119 = vld [vmem:[%s8089 + $0xac] sm:$0xf]
  %v8120 = vld [vmem:[%s8089 + $0xb4] sm:$0xf]
  %v8121 = vld [vmem:[%s8089 + $0xb8] sm:$0xf]
  %v8122 = vld [vmem:[%s8089 + $0xd8] sm:$0xf]
  %v8123 = vld [vmem:[%s8089 + $0xdc] sm:$0xf]
  %v8124 = vld [vmem:[%s8089 + $0xe4] sm:$0xf]
  %v8125 = vld [vmem:[%s8089 + $0xe8] sm:$0xf]
  %v8126 = vld [vmem:[%s8089 + $0xf0] sm:$0xf]
  %v8127 = vld [vmem:[%s8089 + $0xf4] sm:$0xf]
  %v8128 = vld [vmem:[%s8089 + $0xfc] sm:$0xf]
  %v8129 = vld [vmem:[%s8089 + $0x100] sm:$0xf]
  %v8130 = vld [vmem:[%s8089 + $0x108] sm:$0xf]
  %v8131 = vld [vmem:[%s8089 + $0x10c] sm:$0xf]
  %v8132 = vld [vmem:[%s8089 + $0x114] sm:$0xf]
  %v8133 = vld [vmem:[%s8089 + $0x118] sm:$0xf]
  %v8134 = vld [vmem:[%s8089 + $0x120] sm:$0xf]
  %v8135 = vld [vmem:[%s8089 + $0x124] sm:$0xf]
  %v8136 = vld [vmem:[%s8089 + $0x12c] sm:$0xf]
  %v8137 = vld [vmem:[%s8089 + $0x130] sm:$0xf]
  %v8138 = vld [vmem:[%s8089 + $0x138] sm:$0xf]
  %v8139 = vld [vmem:[%s8089 + $0x13c] sm:$0xf]
  %v8140 = vld [vmem:[%s8089 + $0x144] sm:$0xf]
  %v8141 = vld [vmem:[%s8089 + $0x148] sm:$0xf]
  %v8142 = vld [vmem:[%s8089 + $0x150] sm:$0xf]
  %v8143 = vld [vmem:[%s8089 + $0x154] sm:$0xf]
  %v8144 = vld [vmem:[%s8089 + $0x15c] sm:$0xf]
  %v8145 = vld [vmem:[%s8089 + $0x160] sm:$0xf]
  %v8146 = vld [vmem:[%s8089 + $0x168] sm:$0xf]
  %v8147 = vld [vmem:[%s8089 + $0x16c] sm:$0xf]
  %v8148 = vld [vmem:[%s8089 + $0x174] sm:$0xf]
  %v8149 = vld [vmem:[%s8089 + $0x178] sm:$0xf]
  %v8150 = vld [vmem:[%s8089 + $0x180] sm:$0xf]
  %v8151 = vld [vmem:[%s8089 + $0x184] sm:$0xf]
  %v8152 = vld [vmem:[%s8089 + $0x18c] sm:$0xf]
  %v8153 = vld [vmem:[%s8089 + $0x190] sm:$0xf]
  %v8154 = vld [vmem:[%s2 + $0x180] sm:$0xf]
  %v8155 = vld [vmem:[%s2 + $0x184] sm:$0xf]
  %v8156 = vld [vmem:[%s2 + $0x188] sm:$0xf]
  %v8157 = vld [vmem:[%s2 + $0x18c] sm:$0xf]
  %v8158 = vld [vmem:[%s2 + $0x190] sm:$0xf]
  %v8159 = vld [vmem:[%s2 + $0x194] sm:$0xf]
  %v8160 = vld [vmem:[%s2 + $0x198] sm:$0xf]
  %v8161 = vld [vmem:[%s2 + $0x19c] sm:$0xf]
  %v8162 = vld [vmem:[%s2 + $0x1a0] sm:$0xf]
  %v8163 = vld [vmem:[%s2 + $0x1a4] sm:$0xf]
  %v8164 = vld [vmem:[%s2 + $0x1a8] sm:$0xf]
  %v8165 = vld [vmem:[%s2 + $0x1ac] sm:$0xf]
  %v8166 = vld [vmem:[%s2 + $0x1b0] sm:$0xf]
  %v8167 = vld [vmem:[%s2 + $0x1b4] sm:$0xf]
  %v8168 = vld [vmem:[%s2 + $0x1b8] sm:$0xf]
  %v8169 = vld [vmem:[%s2 + $0x1bc] sm:$0xf]
  %v8234 = vunpack.c.l.b16 %v8090
  %v8235 = vunpack.c.l.b16 %v8091
  %v8236 = vunpack.c.l.b16 %v8092
  %v8237 = vunpack.c.l.b16 %v8093
  %v8238 = vunpack.c.l.b16 %v8094
  %v8239 = vunpack.c.l.b16 %v8095
  %v8240 = vunpack.c.l.b16 %v8096
  %v8241 = vunpack.c.l.b16 %v8097
  %v8242 = vunpack.c.l.b16 %v8098
  %v8243 = vunpack.c.l.b16 %v8099
  %v8244 = vunpack.c.l.b16 %v8100
  %v8245 = vunpack.c.l.b16 %v8101
  %v8246 = vunpack.c.l.b16 %v8102
  %v8247 = vunpack.c.l.b16 %v8103
  %v8248 = vunpack.c.l.b16 %v8104
  %v8249 = vunpack.c.l.b16 %v8105
  %v8250 = vunpack.c.l.b16 %v8106
  %v8251 = vunpack.c.l.b16 %v8107
  %v8252 = vunpack.c.l.b16 %v8108
  %v8253 = vunpack.c.l.b16 %v8109
  %v8254 = vunpack.c.l.b16 %v8110
  %v8255 = vunpack.c.l.b16 %v8111
  %v8256 = vunpack.c.l.b16 %v8112
  %v8257 = vunpack.c.l.b16 %v8113
  %v8258 = vunpack.c.l.b16 %v8114
  %v8259 = vunpack.c.l.b16 %v8115
  %v8260 = vunpack.c.l.b16 %v8116
  %v8261 = vunpack.c.l.b16 %v8117
  %v8262 = vunpack.c.l.b16 %v8118
  %v8263 = vunpack.c.l.b16 %v8119
  %v8264 = vunpack.c.l.b16 %v8120
  %v8265 = vunpack.c.l.b16 %v8121
  %v8266 = vunpack.c.l.b16 %v8122
  %v8267 = vunpack.c.l.b16 %v8123
  %v8268 = vunpack.c.l.b16 %v8124
  %v8269 = vunpack.c.l.b16 %v8125
  %v8270 = vunpack.c.l.b16 %v8126
  %v8271 = vunpack.c.l.b16 %v8127
  %v8272 = vunpack.c.l.b16 %v8128
  %v8273 = vunpack.c.l.b16 %v8129
  %v8274 = vunpack.c.l.b16 %v8130
  %v8275 = vunpack.c.l.b16 %v8131
  %v8276 = vunpack.c.l.b16 %v8132
  %v8277 = vunpack.c.l.b16 %v8133
  %v8278 = vunpack.c.l.b16 %v8134
  %v8279 = vunpack.c.l.b16 %v8135
  %v8280 = vunpack.c.l.b16 %v8136
  %v8281 = vunpack.c.l.b16 %v8137
  %v8282 = vunpack.c.l.b16 %v8138
  %v8283 = vunpack.c.l.b16 %v8139
  %v8284 = vunpack.c.l.b16 %v8140
  %v8285 = vunpack.c.l.b16 %v8141
  %v8286 = vunpack.c.l.b16 %v8142
  %v8287 = vunpack.c.l.b16 %v8143
  %v8288 = vunpack.c.l.b16 %v8144
  %v8289 = vunpack.c.l.b16 %v8145
  %v8290 = vunpack.c.l.b16 %v8146
  %v8291 = vunpack.c.l.b16 %v8147
  %v8292 = vunpack.c.l.b16 %v8148
  %v8293 = vunpack.c.l.b16 %v8149
  %v8294 = vunpack.c.l.b16 %v8150
  %v8295 = vunpack.c.l.b16 %v8151
  %v8296 = vunpack.c.l.b16 %v8152
  %v8297 = vunpack.c.l.b16 %v8153
  %v8298 = vpack.c.b16 %v8235, %v8234
  %v8299 = vpack.c.b16 %v8237, %v8236
  %v8300 = vpack.c.b16 %v8239, %v8238
  %v8301 = vpack.c.b16 %v8241, %v8240
  %v8302 = vpack.c.b16 %v8243, %v8242
  %v8303 = vpack.c.b16 %v8245, %v8244
  %v8304 = vpack.c.b16 %v8247, %v8246
  %v8305 = vpack.c.b16 %v8249, %v8248
  %v8306 = vpack.c.b16 %v8251, %v8250
  %v8307 = vpack.c.b16 %v8253, %v8252
  %v8308 = vpack.c.b16 %v8255, %v8254
  %v8309 = vpack.c.b16 %v8257, %v8256
  %v8310 = vpack.c.b16 %v8259, %v8258
  %v8311 = vpack.c.b16 %v8261, %v8260
  %v8312 = vpack.c.b16 %v8263, %v8262
  %v8313 = vpack.c.b16 %v8265, %v8264
  %v8314 = vpack.c.b16 %v8267, %v8266
  %v8315 = vpack.c.b16 %v8269, %v8268
  %v8316 = vpack.c.b16 %v8271, %v8270
  %v8317 = vpack.c.b16 %v8273, %v8272
  %v8318 = vpack.c.b16 %v8275, %v8274
  %v8319 = vpack.c.b16 %v8277, %v8276
  %v8320 = vpack.c.b16 %v8279, %v8278
  %v8321 = vpack.c.b16 %v8281, %v8280
  %v8322 = vpack.c.b16 %v8283, %v8282
  %v8323 = vpack.c.b16 %v8285, %v8284
  %v8324 = vpack.c.b16 %v8287, %v8286
  %v8325 = vpack.c.b16 %v8289, %v8288
  %v8326 = vpack.c.b16 %v8291, %v8290
  %v8327 = vpack.c.b16 %v8293, %v8292
  %v8328 = vpack.c.b16 %v8295, %v8294
  %v8329 = vpack.c.b16 %v8297, %v8296
  %v8378 = vunpack.c.l.b16 %v8154
  %v8379 = vunpack.c.l.b16 %v8155
  %v8380 = vunpack.c.l.b16 %v8156
  %v8381 = vunpack.c.l.b16 %v8157
  %v8382 = vunpack.c.l.b16 %v8158
  %v8383 = vunpack.c.l.b16 %v8159
  %v8384 = vunpack.c.l.b16 %v8160
  %v8385 = vunpack.c.l.b16 %v8161
  %v8386 = vunpack.c.l.b16 %v8162
  %v8387 = vunpack.c.l.b16 %v8163
  %v8388 = vunpack.c.l.b16 %v8164
  %v8389 = vunpack.c.l.b16 %v8165
  %v8390 = vunpack.c.l.b16 %v8166
  %v8391 = vunpack.c.l.b16 %v8167
  %v8392 = vunpack.c.l.b16 %v8168
  %v8393 = vunpack.c.l.b16 %v8169
  %v8394 = vpack.c.b16 %v8379, %v8378
  %v8395 = vpack.c.b16 %v8381, %v8380
  %v8396 = vpack.c.b16 %v8383, %v8382
  %v8397 = vpack.c.b16 %v8385, %v8384
  %v8398 = vpack.c.b16 %v8387, %v8386
  %v8399 = vpack.c.b16 %v8389, %v8388
  %v8400 = vpack.c.b16 %v8391, %v8390
  %v8401 = vpack.c.b16 %v8393, %v8392
  %8410 = vmatprep.subr.bf16.mxu0 0
  %8411 = vmatpush1.bf16.msra.mxu0 %v8401
  %8412 = vmatprep.subr.bf16.mxu0 0
  %8413 = vmatpush1.bf16.msra.mxu0 %v8400
  %8414 = vmatprep.subr.bf16.mxu0 0
  %8415 = vmatpush1.bf16.msra.mxu0 %v8399
  %8416 = vmatprep.subr.bf16.mxu0 0
  %8417 = vmatpush1.bf16.msra.mxu0 %v8398
  %8418 = vmatprep.subr.bf16.mxu0 0
  %8419 = vmatpush1.bf16.msra.mxu0 %v8397
  %8420 = vmatprep.subr.bf16.mxu0 0
  %8421 = vmatpush1.bf16.msra.mxu0 %v8396
  %8422 = vmatprep.subr.bf16.mxu0 0
  %8423 = vmatpush1.bf16.msra.mxu0 %v8395
  %8424 = vmatprep.subr.bf16.mxu0 0
  %8425 = vmatpush1.bf16.msra.mxu0 %v8394
  %8426 = vmatprep.subr.bf16.mxu0 0
  %8427 = vmatpush2.bf16.msra.mxu0 0
  %8428 = vmatprep.subr.bf16.mxu0 0
  %8429 = vmatpush2.bf16.msra.mxu0 0
  %8430 = vmatprep.subr.bf16.mxu0 0
  %8431 = vmatpush2.bf16.msra.mxu0 0
  %8432 = vmatprep.subr.bf16.mxu0 0
  %8433 = vmatpush2.bf16.msra.mxu0 0
  %8434 = vmatprep.subr.bf16.mxu0 0
  %8435 = vmatpush2.bf16.msra.mxu0 0
  %8436 = vmatprep.subr.bf16.mxu0 0
  %8437 = vmatpush2.bf16.msra.mxu0 0
  %8438 = vmatprep.subr.bf16.mxu0 0
  %8439 = vmatpush2.bf16.msra.mxu0 0
  %8440 = vmatprep.subr.bf16.mxu0 0
  %8441 = vmatpush2.bf16.msra.mxu0 0
  %8442 = vmatprep.mubr.bf16.mxu0 0
  %8443 = vmatmul.mubr.bf16.gmra.mxu0 %v8298
  %v8444 = vpop.f32.mrf.mxu0
  %v8445 = vadd.f32 0.0, %v8444
  %v8446 = vpop.f32.mrf.mxu0
  %v8447 = vpop.f32.mrf.mxu0
  %v8448 = vadd.f32 0.0, %v8447
  %v8449 = vpop.f32.mrf.mxu0
  %8450 = vmatprep.mubr.bf16.mxu0 0
  %8451 = vmatmul.mubr.bf16.gmra.mxu0 %v8299
  %v8452 = vpop.f32.mrf.mxu0
  %v8453 = vadd.f32 0.0, %v8452
  %v8454 = vpop.f32.mrf.mxu0
  %v8455 = vpop.f32.mrf.mxu0
  %v8456 = vadd.f32 0.0, %v8455
  %v8457 = vpop.f32.mrf.mxu0
  %8458 = vmatprep.mubr.bf16.mxu0 0
  %8459 = vmatmul.mubr.bf16.gmra.mxu0 %v8300
  %v8460 = vpop.f32.mrf.mxu0
  %v8461 = vadd.f32 0.0, %v8460
  %v8462 = vpop.f32.mrf.mxu0
  %v8463 = vpop.f32.mrf.mxu0
  %v8464 = vadd.f32 0.0, %v8463
  %v8465 = vpop.f32.mrf.mxu0
  %8466 = vmatprep.mubr.bf16.mxu0 0
  %8467 = vmatmul.mubr.bf16.gmra.mxu0 %v8301
  %v8468 = vpop.f32.mrf.mxu0
  %v8469 = vadd.f32 0.0, %v8468
  %v8470 = vpop.f32.mrf.mxu0
  %v8471 = vpop.f32.mrf.mxu0
  %v8472 = vadd.f32 0.0, %v8471
  %v8473 = vpop.f32.mrf.mxu0
  %8474 = vmatprep.mubr.bf16.mxu0 0
  %8475 = vmatmul.mubr.bf16.gmra.mxu0 %v8302
  %v8476 = vpop.f32.mrf.mxu0
  %v8477 = vadd.f32 0.0, %v8476
  %v8478 = vpop.f32.mrf.mxu0
  %v8479 = vpop.f32.mrf.mxu0
  %v8480 = vadd.f32 0.0, %v8479
  %v8481 = vpop.f32.mrf.mxu0
  %8482 = vmatprep.mubr.bf16.mxu0 0
  %8483 = vmatmul.mubr.bf16.gmra.mxu0 %v8303
  %v8484 = vpop.f32.mrf.mxu0
  %v8485 = vadd.f32 0.0, %v8484
  %v8486 = vpop.f32.mrf.mxu0
  %v8487 = vpop.f32.mrf.mxu0
  %v8488 = vadd.f32 0.0, %v8487
  %v8489 = vpop.f32.mrf.mxu0
  %8490 = vmatprep.mubr.bf16.mxu0 0
  %8491 = vmatmul.mubr.bf16.gmra.mxu0 %v8304
  %v8492 = vpop.f32.mrf.mxu0
  %v8493 = vadd.f32 0.0, %v8492
  %v8494 = vpop.f32.mrf.mxu0
  %v8495 = vpop.f32.mrf.mxu0
  %v8496 = vadd.f32 0.0, %v8495
  %v8497 = vpop.f32.mrf.mxu0
  %8498 = vmatprep.mubr.bf16.mxu0 0
  %8499 = vmatmul.mubr.bf16.gmra.mxu0 %v8305
  %v8500 = vpop.f32.mrf.mxu0
  %v8501 = vadd.f32 0.0, %v8500
  %v8502 = vpop.f32.mrf.mxu0
  %v8503 = vpop.f32.mrf.mxu0
  %v8504 = vadd.f32 0.0, %v8503
  %v8505 = vpop.f32.mrf.mxu0
  %8506 = vmatprep.mubr.bf16.mxu0 0
  %8507 = vmatmul.mubr.bf16.gmra.mxu0 %v8306
  %v8508 = vpop.f32.mrf.mxu0
  %v8509 = vadd.f32 0.0, %v8508
  %v8510 = vpop.f32.mrf.mxu0
  %v8511 = vpop.f32.mrf.mxu0
  %v8512 = vadd.f32 0.0, %v8511
  %v8513 = vpop.f32.mrf.mxu0
  %8514 = vmatprep.mubr.bf16.mxu0 0
  %8515 = vmatmul.mubr.bf16.gmra.mxu0 %v8307
  %v8516 = vpop.f32.mrf.mxu0
  %v8517 = vadd.f32 0.0, %v8516
  %v8518 = vpop.f32.mrf.mxu0
  %v8519 = vpop.f32.mrf.mxu0
  %v8520 = vadd.f32 0.0, %v8519
  %v8521 = vpop.f32.mrf.mxu0
  %8522 = vmatprep.mubr.bf16.mxu0 0
  %8523 = vmatmul.mubr.bf16.gmra.mxu0 %v8308
  %v8524 = vpop.f32.mrf.mxu0
  %v8525 = vadd.f32 0.0, %v8524
  %v8526 = vpop.f32.mrf.mxu0
  %v8527 = vpop.f32.mrf.mxu0
  %v8528 = vadd.f32 0.0, %v8527
  %v8529 = vpop.f32.mrf.mxu0
  %8530 = vmatprep.mubr.bf16.mxu0 0
  %8531 = vmatmul.mubr.bf16.gmra.mxu0 %v8309
  %v8532 = vpop.f32.mrf.mxu0
  %v8533 = vadd.f32 0.0, %v8532
  %v8534 = vpop.f32.mrf.mxu0
  %v8535 = vpop.f32.mrf.mxu0
  %v8536 = vadd.f32 0.0, %v8535
  %v8537 = vpop.f32.mrf.mxu0
  %8538 = vmatprep.mubr.bf16.mxu0 0
  %8539 = vmatmul.mubr.bf16.gmra.mxu0 %v8310
  %v8540 = vpop.f32.mrf.mxu0
  %v8541 = vadd.f32 0.0, %v8540
  %v8542 = vpop.f32.mrf.mxu0
  %v8543 = vpop.f32.mrf.mxu0
  %v8544 = vadd.f32 0.0, %v8543
  %v8545 = vpop.f32.mrf.mxu0
  %8546 = vmatprep.mubr.bf16.mxu0 0
  %8547 = vmatmul.mubr.bf16.gmra.mxu0 %v8311
  %v8548 = vpop.f32.mrf.mxu0
  %v8549 = vadd.f32 0.0, %v8548
  %v8550 = vpop.f32.mrf.mxu0
  %v8551 = vpop.f32.mrf.mxu0
  %v8552 = vadd.f32 0.0, %v8551
  %v8553 = vpop.f32.mrf.mxu0
  %8554 = vmatprep.mubr.bf16.mxu0 0
  %8555 = vmatmul.mubr.bf16.gmra.mxu0 %v8312
  %v8556 = vpop.f32.mrf.mxu0
  %v8557 = vadd.f32 0.0, %v8556
  %v8558 = vpop.f32.mrf.mxu0
  %v8559 = vpop.f32.mrf.mxu0
  %v8560 = vadd.f32 0.0, %v8559
  %v8561 = vpop.f32.mrf.mxu0
  %8562 = vmatprep.mubr.bf16.mxu0 0
  %8563 = vmatmul.mubr.bf16.gmra.mxu0 %v8313
  %v8564 = vpop.f32.mrf.mxu0
  %v8565 = vadd.f32 0.0, %v8564
  %v8566 = vpop.f32.mrf.mxu0
  %v8567 = vpop.f32.mrf.mxu0
  %v8568 = vadd.f32 0.0, %v8567
  %v8569 = vpop.f32.mrf.mxu0
  %8570 = vmatprep.mubr.bf16.mxu0 0
  %8571 = vmatmul.mubr.bf16.gmra.mxu0 %v8314
  %v8572 = vpop.f32.mrf.mxu0
  %v8573 = vadd.f32 0.0, %v8572
  %v8574 = vpop.f32.mrf.mxu0
  %v8575 = vpop.f32.mrf.mxu0
  %v8576 = vadd.f32 0.0, %v8575
  %v8577 = vpop.f32.mrf.mxu0
  %8578 = vmatprep.mubr.bf16.mxu0 0
  %8579 = vmatmul.mubr.bf16.gmra.mxu0 %v8315
  %v8580 = vpop.f32.mrf.mxu0
  %v8581 = vadd.f32 0.0, %v8580
  %v8582 = vpop.f32.mrf.mxu0
  %v8583 = vpop.f32.mrf.mxu0
  %v8584 = vadd.f32 0.0, %v8583
  %v8585 = vpop.f32.mrf.mxu0
  %8586 = vmatprep.mubr.bf16.mxu0 0
  %8587 = vmatmul.mubr.bf16.gmra.mxu0 %v8316
  %v8588 = vpop.f32.mrf.mxu0
  %v8589 = vadd.f32 0.0, %v8588
  %v8590 = vpop.f32.mrf.mxu0
  %v8591 = vpop.f32.mrf.mxu0
  %v8592 = vadd.f32 0.0, %v8591
  %v8593 = vpop.f32.mrf.mxu0
  %8594 = vmatprep.mubr.bf16.mxu0 0
  %8595 = vmatmul.mubr.bf16.gmra.mxu0 %v8317
  %v8596 = vpop.f32.mrf.mxu0
  %v8597 = vadd.f32 0.0, %v8596
  %v8598 = vpop.f32.mrf.mxu0
  %v8599 = vpop.f32.mrf.mxu0
  %v8600 = vadd.f32 0.0, %v8599
  %v8601 = vpop.f32.mrf.mxu0
  %8602 = vmatprep.mubr.bf16.mxu0 0
  %8603 = vmatmul.mubr.bf16.gmra.mxu0 %v8318
  %v8604 = vpop.f32.mrf.mxu0
  %v8605 = vadd.f32 0.0, %v8604
  %v8606 = vpop.f32.mrf.mxu0
  %v8607 = vpop.f32.mrf.mxu0
  %v8608 = vadd.f32 0.0, %v8607
  %v8609 = vpop.f32.mrf.mxu0
  %8610 = vmatprep.mubr.bf16.mxu0 0
  %8611 = vmatmul.mubr.bf16.gmra.mxu0 %v8319
  %v8612 = vpop.f32.mrf.mxu0
  %v8613 = vadd.f32 0.0, %v8612
  %v8614 = vpop.f32.mrf.mxu0
  %v8615 = vpop.f32.mrf.mxu0
  %v8616 = vadd.f32 0.0, %v8615
  %v8617 = vpop.f32.mrf.mxu0
  %8618 = vmatprep.mubr.bf16.mxu0 0
  %8619 = vmatmul.mubr.bf16.gmra.mxu0 %v8320
  %v8620 = vpop.f32.mrf.mxu0
  %v8621 = vadd.f32 0.0, %v8620
  %v8622 = vpop.f32.mrf.mxu0
  %v8623 = vpop.f32.mrf.mxu0
  %v8624 = vadd.f32 0.0, %v8623
  %v8625 = vpop.f32.mrf.mxu0
  %8626 = vmatprep.mubr.bf16.mxu0 0
  %8627 = vmatmul.mubr.bf16.gmra.mxu0 %v8321
  %v8628 = vpop.f32.mrf.mxu0
  %v8629 = vadd.f32 0.0, %v8628
  %v8630 = vpop.f32.mrf.mxu0
  %v8631 = vpop.f32.mrf.mxu0
  %v8632 = vadd.f32 0.0, %v8631
  %v8633 = vpop.f32.mrf.mxu0
  %8634 = vmatprep.mubr.bf16.mxu0 0
  %8635 = vmatmul.mubr.bf16.gmra.mxu0 %v8322
  %v8636 = vpop.f32.mrf.mxu0
  %v8637 = vadd.f32 0.0, %v8636
  %v8638 = vpop.f32.mrf.mxu0
  %v8639 = vpop.f32.mrf.mxu0
  %v8640 = vadd.f32 0.0, %v8639
  %v8641 = vpop.f32.mrf.mxu0
  %8642 = vmatprep.mubr.bf16.mxu0 0
  %8643 = vmatmul.mubr.bf16.gmra.mxu0 %v8323
  %v8644 = vpop.f32.mrf.mxu0
  %v8645 = vadd.f32 0.0, %v8644
  %v8646 = vpop.f32.mrf.mxu0
  %v8647 = vpop.f32.mrf.mxu0
  %v8648 = vadd.f32 0.0, %v8647
  %v8649 = vpop.f32.mrf.mxu0
  %8650 = vmatprep.mubr.bf16.mxu0 0
  %8651 = vmatmul.mubr.bf16.gmra.mxu0 %v8324
  %v8652 = vpop.f32.mrf.mxu0
  %v8653 = vadd.f32 0.0, %v8652
  %v8654 = vpop.f32.mrf.mxu0
  %v8655 = vpop.f32.mrf.mxu0
  %v8656 = vadd.f32 0.0, %v8655
  %v8657 = vpop.f32.mrf.mxu0
  %8658 = vmatprep.mubr.bf16.mxu0 0
  %8659 = vmatmul.mubr.bf16.gmra.mxu0 %v8325
  %v8660 = vpop.f32.mrf.mxu0
  %v8661 = vadd.f32 0.0, %v8660
  %v8662 = vpop.f32.mrf.mxu0
  %v8663 = vpop.f32.mrf.mxu0
  %v8664 = vadd.f32 0.0, %v8663
  %v8665 = vpop.f32.mrf.mxu0
  %8666 = vmatprep.mubr.bf16.mxu0 0
  %8667 = vmatmul.mubr.bf16.gmra.mxu0 %v8326
  %v8668 = vpop.f32.mrf.mxu0
  %v8669 = vadd.f32 0.0, %v8668
  %v8670 = vpop.f32.mrf.mxu0
  %v8671 = vpop.f32.mrf.mxu0
  %v8672 = vadd.f32 0.0, %v8671
  %v8673 = vpop.f32.mrf.mxu0
  %8674 = vmatprep.mubr.bf16.mxu0 0
  %8675 = vmatmul.mubr.bf16.gmra.mxu0 %v8327
  %v8676 = vpop.f32.mrf.mxu0
  %v8677 = vadd.f32 0.0, %v8676
  %v8678 = vpop.f32.mrf.mxu0
  %v8679 = vpop.f32.mrf.mxu0
  %v8680 = vadd.f32 0.0, %v8679
  %v8681 = vpop.f32.mrf.mxu0
  %8682 = vmatprep.mubr.bf16.mxu0 0
  %8683 = vmatmul.mubr.bf16.gmra.mxu0 %v8328
  %v8684 = vpop.f32.mrf.mxu0
  %v8685 = vadd.f32 0.0, %v8684
  %v8686 = vpop.f32.mrf.mxu0
  %v8687 = vpop.f32.mrf.mxu0
  %v8688 = vadd.f32 0.0, %v8687
  %v8689 = vpop.f32.mrf.mxu0
  %8690 = vmatprep.mubr.bf16.mxu0 0
  %8691 = vmatmul.mubr.bf16.gmra.mxu0 %v8329
  %v8692 = vpop.f32.mrf.mxu0
  %v8693 = vadd.f32 0.0, %v8692
  %v8694 = vpop.f32.mrf.mxu0
  %v8695 = vpop.f32.mrf.mxu0
  %v8696 = vadd.f32 0.0, %v8695
  %v8697 = vpop.f32.mrf.mxu0
  %8698 = vdwg.mxu0
  %v8699 = vadd.f32 %v8025, %v8445
  %v8700 = vadd.f32 %v8026, %v8448
  %v8701 = vadd.f32 %v8027, %v8453
  %v8702 = vadd.f32 %v8028, %v8456
  %v8703 = vadd.f32 %v8029, %v8461
  %v8704 = vadd.f32 %v8030, %v8464
  %v8705 = vadd.f32 %v8031, %v8469
  %v8706 = vadd.f32 %v8032, %v8472
  %v8707 = vadd.f32 %v8033, %v8477
  %v8708 = vadd.f32 %v8034, %v8480
  %v8709 = vadd.f32 %v8035, %v8485
  %v8710 = vadd.f32 %v8036, %v8488
  %v8711 = vadd.f32 %v8037, %v8493
  %v8712 = vadd.f32 %v8038, %v8496
  %v8713 = vadd.f32 %v8039, %v8501
  %v8714 = vadd.f32 %v8040, %v8504
  %v8715 = vadd.f32 %v8041, %v8509
  %v8716 = vadd.f32 %v8042, %v8512
  %v8717 = vadd.f32 %v8043, %v8517
  %v8718 = vadd.f32 %v8044, %v8520
  %v8719 = vadd.f32 %v8045, %v8525
  %v8720 = vadd.f32 %v8046, %v8528
  %v8721 = vadd.f32 %v8047, %v8533
  %v8722 = vadd.f32 %v8048, %v8536
  %v8723 = vadd.f32 %v8049, %v8541
  %v8724 = vadd.f32 %v8050, %v8544
  %v8725 = vadd.f32 %v8051, %v8549
  %v8726 = vadd.f32 %v8052, %v8552
  %v8727 = vadd.f32 %v8053, %v8557
  %v8728 = vadd.f32 %v8054, %v8560
  %v8729 = vadd.f32 %v8055, %v8565
  %v8730 = vadd.f32 %v8056, %v8568
  %v8731 = vadd.f32 %v8057, %v8573
  %v8732 = vadd.f32 %v8058, %v8576
  %v8733 = vadd.f32 %v8059, %v8581
  %v8734 = vadd.f32 %v8060, %v8584
  %v8735 = vadd.f32 %v8061, %v8589
  %v8736 = vadd.f32 %v8062, %v8592
  %v8737 = vadd.f32 %v8063, %v8597
  %v8738 = vadd.f32 %v8064, %v8600
  %v8739 = vadd.f32 %v8065, %v8605
  %v8740 = vadd.f32 %v8066, %v8608
  %v8741 = vadd.f32 %v8067, %v8613
  %v8742 = vadd.f32 %v8068, %v8616
  %v8743 = vadd.f32 %v8069, %v8621
  %v8744 = vadd.f32 %v8070, %v8624
  %v8745 = vadd.f32 %v8071, %v8629
  %v8746 = vadd.f32 %v8072, %v8632
  %v8747 = vadd.f32 %v8073, %v8637
  %v8748 = vadd.f32 %v8074, %v8640
  %v8749 = vadd.f32 %v8075, %v8645
  %v8750 = vadd.f32 %v8076, %v8648
  %v8751 = vadd.f32 %v8077, %v8653
  %v8752 = vadd.f32 %v8078, %v8656
  %v8753 = vadd.f32 %v8079, %v8661
  %v8754 = vadd.f32 %v8080, %v8664
  %v8755 = vadd.f32 %v8081, %v8669
  %v8756 = vadd.f32 %v8082, %v8672
  %v8757 = vadd.f32 %v8083, %v8677
  %v8758 = vadd.f32 %v8084, %v8680
  %v8759 = vadd.f32 %v8085, %v8685
  %v8760 = vadd.f32 %v8086, %v8688
  %v8761 = vadd.f32 %v8087, %v8693
  %v8762 = vadd.f32 %v8088, %v8696
  %v8763 = vld [vmem:[%s8089] sm:$0xf]
  %v8764 = vld [vmem:[%s8089 + $0x4] sm:$0xf]
  %v8765 = vld [vmem:[%s8089 + $0x8] sm:$0x1]
  %v8766 = vld [vmem:[%s8089 + $0xc] sm:$0xf]
  %v8767 = vld [vmem:[%s8089 + $0x10] sm:$0xf]
  %v8768 = vld [vmem:[%s8089 + $0x14] sm:$0x1]
  %v8769 = vld [vmem:[%s8089 + $0x18] sm:$0xf]
  %v8770 = vld [vmem:[%s8089 + $0x1c] sm:$0xf]
  %v8771 = vld [vmem:[%s8089 + $0x20] sm:$0x1]
  %v8772 = vld [vmem:[%s8089 + $0x24] sm:$0xf]
  %v8773 = vld [vmem:[%s8089 + $0x28] sm:$0xf]
  %v8774 = vld [vmem:[%s8089 + $0x2c] sm:$0x1]
  %v8775 = vld [vmem:[%s8089 + $0x30] sm:$0xf]
  %v8776 = vld [vmem:[%s8089 + $0x34] sm:$0xf]
  %v8777 = vld [vmem:[%s8089 + $0x38] sm:$0x1]
  %v8778 = vld [vmem:[%s8089 + $0x3c] sm:$0xf]
  %v8779 = vld [vmem:[%s8089 + $0x40] sm:$0xf]
  %v8780 = vld [vmem:[%s8089 + $0x44] sm:$0x1]
  %v8781 = vld [vmem:[%s8089 + $0x48] sm:$0xf]
  %v8782 = vld [vmem:[%s8089 + $0x4c] sm:$0xf]
  %v8783 = vld [vmem:[%s8089 + $0x50] sm:$0x1]
  %v8784 = vld [vmem:[%s8089 + $0x54] sm:$0xf]
  %v8785 = vld [vmem:[%s8089 + $0x58] sm:$0xf]
  %v8786 = vld [vmem:[%s8089 + $0x5c] sm:$0x1]
  %v8787 = vld [vmem:[%s8089 + $0x60] sm:$0xf]
  %v8788 = vld [vmem:[%s8089 + $0x64] sm:$0xf]
  %v8789 = vld [vmem:[%s8089 + $0x68] sm:$0x1]
  %v8790 = vld [vmem:[%s8089 + $0x6c] sm:$0xf]
  %v8791 = vld [vmem:[%s8089 + $0x70] sm:$0xf]
  %v8792 = vld [vmem:[%s8089 + $0x74] sm:$0x1]
  %v8793 = vld [vmem:[%s8089 + $0x78] sm:$0xf]
  %v8794 = vld [vmem:[%s8089 + $0x7c] sm:$0xf]
  %v8795 = vld [vmem:[%s8089 + $0x80] sm:$0x1]
  %v8796 = vld [vmem:[%s8089 + $0x84] sm:$0xf]
  %v8797 = vld [vmem:[%s8089 + $0x88] sm:$0xf]
  %v8798 = vld [vmem:[%s8089 + $0x8c] sm:$0x1]
  %v8799 = vld [vmem:[%s8089 + $0x90] sm:$0xf]
  %v8800 = vld [vmem:[%s8089 + $0x94] sm:$0xf]
  %v8801 = vld [vmem:[%s8089 + $0x98] sm:$0x1]
  %v8802 = vld [vmem:[%s8089 + $0x9c] sm:$0xf]
  %v8803 = vld [vmem:[%s8089 + $0xa0] sm:$0xf]
  %v8804 = vld [vmem:[%s8089 + $0xa4] sm:$0x1]
  %v8805 = vld [vmem:[%s8089 + $0xa8] sm:$0xf]
  %v8806 = vld [vmem:[%s8089 + $0xac] sm:$0xf]
  %v8807 = vld [vmem:[%s8089 + $0xb0] sm:$0x1]
  %v8808 = vld [vmem:[%s8089 + $0xb4] sm:$0xf]
  %v8809 = vld [vmem:[%s8089 + $0xb8] sm:$0xf]
  %v8810 = vld [vmem:[%s8089 + $0xbc] sm:$0x1]
  %v8811 = vld [vmem:[%s8089 + $0xd8] sm:$0xf]
  %v8812 = vld [vmem:[%s8089 + $0xdc] sm:$0xf]
  %v8813 = vld [vmem:[%s8089 + $0xe0] sm:$0x1]
  %v8814 = vld [vmem:[%s8089 + $0xe4] sm:$0xf]
  %v8815 = vld [vmem:[%s8089 + $0xe8] sm:$0xf]
  %v8816 = vld [vmem:[%s8089 + $0xec] sm:$0x1]
  %v8817 = vld [vmem:[%s8089 + $0xf0] sm:$0xf]
  %v8818 = vld [vmem:[%s8089 + $0xf4] sm:$0xf]
  %v8819 = vld [vmem:[%s8089 + $0xf8] sm:$0x1]
  %v8820 = vld [vmem:[%s8089 + $0xfc] sm:$0xf]
  %v8821 = vld [vmem:[%s8089 + $0x100] sm:$0xf]
  %v8822 = vld [vmem:[%s8089 + $0x104] sm:$0x1]
  %v8823 = vld [vmem:[%s8089 + $0x108] sm:$0xf]
  %v8824 = vld [vmem:[%s8089 + $0x10c] sm:$0xf]
  %v8825 = vld [vmem:[%s8089 + $0x110] sm:$0x1]
  %v8826 = vld [vmem:[%s8089 + $0x114] sm:$0xf]
  %v8827 = vld [vmem:[%s8089 + $0x118] sm:$0xf]
  %v8828 = vld [vmem:[%s8089 + $0x11c] sm:$0x1]
  %v8829 = vld [vmem:[%s8089 + $0x120] sm:$0xf]
  %v8830 = vld [vmem:[%s8089 + $0x124] sm:$0xf]
  %v8831 = vld [vmem:[%s8089 + $0x128] sm:$0x1]
  %v8832 = vld [vmem:[%s8089 + $0x12c] sm:$0xf]
  %v8833 = vld [vmem:[%s8089 + $0x130] sm:$0xf]
  %v8834 = vld [vmem:[%s8089 + $0x134] sm:$0x1]
  %v8835 = vld [vmem:[%s8089 + $0x138] sm:$0xf]
  %v8836 = vld [vmem:[%s8089 + $0x13c] sm:$0xf]
  %v8837 = vld [vmem:[%s8089 + $0x140] sm:$0x1]
  %v8838 = vld [vmem:[%s8089 + $0x144] sm:$0xf]
  %v8839 = vld [vmem:[%s8089 + $0x148] sm:$0xf]
  %v8840 = vld [vmem:[%s8089 + $0x14c] sm:$0x1]
  %v8841 = vld [vmem:[%s8089 + $0x150] sm:$0xf]
  %v8842 = vld [vmem:[%s8089 + $0x154] sm:$0xf]
  %v8843 = vld [vmem:[%s8089 + $0x158] sm:$0x1]
  %v8844 = vld [vmem:[%s8089 + $0x15c] sm:$0xf]
  %v8845 = vld [vmem:[%s8089 + $0x160] sm:$0xf]
  %v8846 = vld [vmem:[%s8089 + $0x164] sm:$0x1]
  %v8847 = vld [vmem:[%s8089 + $0x168] sm:$0xf]
  %v8848 = vld [vmem:[%s8089 + $0x16c] sm:$0xf]
  %v8849 = vld [vmem:[%s8089 + $0x170] sm:$0x1]
  %v8850 = vld [vmem:[%s8089 + $0x174] sm:$0xf]
  %v8851 = vld [vmem:[%s8089 + $0x178] sm:$0xf]
  %v8852 = vld [vmem:[%s8089 + $0x17c] sm:$0x1]
  %v8853 = vld [vmem:[%s8089 + $0x180] sm:$0xf]
  %v8854 = vld [vmem:[%s8089 + $0x184] sm:$0xf]
  %v8855 = vld [vmem:[%s8089 + $0x188] sm:$0x1]
  %v8856 = vld [vmem:[%s8089 + $0x18c] sm:$0xf]
  %v8857 = vld [vmem:[%s8089 + $0x190] sm:$0xf]
  %v8858 = vld [vmem:[%s8089 + $0x194] sm:$0x1]
  %v8860 = vshrl.u32 %v8763, 16
  %v8862 = vrot.slane %v8860, 4
  %v8863 = vshll.u32 %v8763, 16
  %v8865 = vrot.slane %v8863, 5
  %v8866 = vor.u32 %v8862, %v8865
  %v8867 = vrot.slane %v8866, 4
  %v8869 = vshll.u32 %v8764, 16
  %v8871 = vrot.slane %v8869, 5
  %v8872 = vsel %vm2463, %v8867, %v8871
  %v8873 = vshrl.u32 %v8764, 16
  %v8875 = vrot.slane %v8873, 4
  %v8876 = vor.u32 %v8875, %v8871
  %v8877 = vrot.slane %v8876, 4
  %v8879 = vshll.u32 %v8765, 16
  %v8881 = vrot.slane %v8879, 5
  %v8882 = vsel %vm2463, %v8877, %v8881
  %v8884 = vshrl.u32 %v8766, 16
  %v8886 = vrot.slane %v8884, 4
  %v8887 = vshll.u32 %v8766, 16
  %v8889 = vrot.slane %v8887, 5
  %v8890 = vor.u32 %v8886, %v8889
  %v8891 = vrot.slane %v8890, 4
  %v8893 = vshll.u32 %v8767, 16
  %v8895 = vrot.slane %v8893, 5
  %v8896 = vsel %vm2463, %v8891, %v8895
  %v8897 = vshrl.u32 %v8767, 16
  %v8899 = vrot.slane %v8897, 4
  %v8900 = vor.u32 %v8899, %v8895
  %v8901 = vrot.slane %v8900, 4
  %v8903 = vshll.u32 %v8768, 16
  %v8905 = vrot.slane %v8903, 5
  %v8906 = vsel %vm2463, %v8901, %v8905
  %v8908 = vshrl.u32 %v8769, 16
  %v8910 = vrot.slane %v8908, 4
  %v8911 = vshll.u32 %v8769, 16
  %v8913 = vrot.slane %v8911, 5
  %v8914 = vor.u32 %v8910, %v8913
  %v8915 = vrot.slane %v8914, 4
  %v8917 = vshll.u32 %v8770, 16
  %v8919 = vrot.slane %v8917, 5
  %v8920 = vsel %vm2463, %v8915, %v8919
  %v8921 = vshrl.u32 %v8770, 16
  %v8923 = vrot.slane %v8921, 4
  %v8924 = vor.u32 %v8923, %v8919
  %v8925 = vrot.slane %v8924, 4
  %v8927 = vshll.u32 %v8771, 16
  %v8929 = vrot.slane %v8927, 5
  %v8930 = vsel %vm2463, %v8925, %v8929
  %v8932 = vshrl.u32 %v8772, 16
  %v8934 = vrot.slane %v8932, 4
  %v8935 = vshll.u32 %v8772, 16
  %v8937 = vrot.slane %v8935, 5
  %v8938 = vor.u32 %v8934, %v8937
  %v8939 = vrot.slane %v8938, 4
  %v8941 = vshll.u32 %v8773, 16
  %v8943 = vrot.slane %v8941, 5
  %v8944 = vsel %vm2463, %v8939, %v8943
  %v8945 = vshrl.u32 %v8773, 16
  %v8947 = vrot.slane %v8945, 4
  %v8948 = vor.u32 %v8947, %v8943
  %v8949 = vrot.slane %v8948, 4
  %v8951 = vshll.u32 %v8774, 16
  %v8953 = vrot.slane %v8951, 5
  %v8954 = vsel %vm2463, %v8949, %v8953
  %v8956 = vshrl.u32 %v8775, 16
  %v8958 = vrot.slane %v8956, 4
  %v8959 = vshll.u32 %v8775, 16
  %v8961 = vrot.slane %v8959, 5
  %v8962 = vor.u32 %v8958, %v8961
  %v8963 = vrot.slane %v8962, 4
  %v8965 = vshll.u32 %v8776, 16
  %v8967 = vrot.slane %v8965, 5
  %v8968 = vsel %vm2463, %v8963, %v8967
  %v8969 = vshrl.u32 %v8776, 16
  %v8971 = vrot.slane %v8969, 4
  %v8972 = vor.u32 %v8971, %v8967
  %v8973 = vrot.slane %v8972, 4
  %v8975 = vshll.u32 %v8777, 16
  %v8977 = vrot.slane %v8975, 5
  %v8978 = vsel %vm2463, %v8973, %v8977
  %v8980 = vshrl.u32 %v8778, 16
  %v8982 = vrot.slane %v8980, 4
  %v8983 = vshll.u32 %v8778, 16
  %v8985 = vrot.slane %v8983, 5
  %v8986 = vor.u32 %v8982, %v8985
  %v8987 = vrot.slane %v8986, 4
  %v8989 = vshll.u32 %v8779, 16
  %v8991 = vrot.slane %v8989, 5
  %v8992 = vsel %vm2463, %v8987, %v8991
  %v8993 = vshrl.u32 %v8779, 16
  %v8995 = vrot.slane %v8993, 4
  %v8996 = vor.u32 %v8995, %v8991
  %v8997 = vrot.slane %v8996, 4
  %v8999 = vshll.u32 %v8780, 16
  %v9001 = vrot.slane %v8999, 5
  %v9002 = vsel %vm2463, %v8997, %v9001
  %v9004 = vshrl.u32 %v8781, 16
  %v9006 = vrot.slane %v9004, 4
  %v9007 = vshll.u32 %v8781, 16
  %v9009 = vrot.slane %v9007, 5
  %v9010 = vor.u32 %v9006, %v9009
  %v9011 = vrot.slane %v9010, 4
  %v9013 = vshll.u32 %v8782, 16
  %v9015 = vrot.slane %v9013, 5
  %v9016 = vsel %vm2463, %v9011, %v9015
  %v9017 = vshrl.u32 %v8782, 16
  %v9019 = vrot.slane %v9017, 4
  %v9020 = vor.u32 %v9019, %v9015
  %v9021 = vrot.slane %v9020, 4
  %v9023 = vshll.u32 %v8783, 16
  %v9025 = vrot.slane %v9023, 5
  %v9026 = vsel %vm2463, %v9021, %v9025
  %v9028 = vshrl.u32 %v8784, 16
  %v9030 = vrot.slane %v9028, 4
  %v9031 = vshll.u32 %v8784, 16
  %v9033 = vrot.slane %v9031, 5
  %v9034 = vor.u32 %v9030, %v9033
  %v9035 = vrot.slane %v9034, 4
  %v9037 = vshll.u32 %v8785, 16
  %v9039 = vrot.slane %v9037, 5
  %v9040 = vsel %vm2463, %v9035, %v9039
  %v9041 = vshrl.u32 %v8785, 16
  %v9043 = vrot.slane %v9041, 4
  %v9044 = vor.u32 %v9043, %v9039
  %v9045 = vrot.slane %v9044, 4
  %v9047 = vshll.u32 %v8786, 16
  %v9049 = vrot.slane %v9047, 5
  %v9050 = vsel %vm2463, %v9045, %v9049
  %v9052 = vshrl.u32 %v8787, 16
  %v9054 = vrot.slane %v9052, 4
  %v9055 = vshll.u32 %v8787, 16
  %v9057 = vrot.slane %v9055, 5
  %v9058 = vor.u32 %v9054, %v9057
  %v9059 = vrot.slane %v9058, 4
  %v9061 = vshll.u32 %v8788, 16
  %v9063 = vrot.slane %v9061, 5
  %v9064 = vsel %vm2463, %v9059, %v9063
  %v9065 = vshrl.u32 %v8788, 16
  %v9067 = vrot.slane %v9065, 4
  %v9068 = vor.u32 %v9067, %v9063
  %v9069 = vrot.slane %v9068, 4
  %v9071 = vshll.u32 %v8789, 16
  %v9073 = vrot.slane %v9071, 5
  %v9074 = vsel %vm2463, %v9069, %v9073
  %v9076 = vshrl.u32 %v8790, 16
  %v9078 = vrot.slane %v9076, 4
  %v9079 = vshll.u32 %v8790, 16
  %v9081 = vrot.slane %v9079, 5
  %v9082 = vor.u32 %v9078, %v9081
  %v9083 = vrot.slane %v9082, 4
  %v9085 = vshll.u32 %v8791, 16
  %v9087 = vrot.slane %v9085, 5
  %v9088 = vsel %vm2463, %v9083, %v9087
  %v9089 = vshrl.u32 %v8791, 16
  %v9091 = vrot.slane %v9089, 4
  %v9092 = vor.u32 %v9091, %v9087
  %v9093 = vrot.slane %v9092, 4
  %v9095 = vshll.u32 %v8792, 16
  %v9097 = vrot.slane %v9095, 5
  %v9098 = vsel %vm2463, %v9093, %v9097
  %v9100 = vshrl.u32 %v8793, 16
  %v9102 = vrot.slane %v9100, 4
  %v9103 = vshll.u32 %v8793, 16
  %v9105 = vrot.slane %v9103, 5
  %v9106 = vor.u32 %v9102, %v9105
  %v9107 = vrot.slane %v9106, 4
  %v9109 = vshll.u32 %v8794, 16
  %v9111 = vrot.slane %v9109, 5
  %v9112 = vsel %vm2463, %v9107, %v9111
  %v9113 = vshrl.u32 %v8794, 16
  %v9115 = vrot.slane %v9113, 4
  %v9116 = vor.u32 %v9115, %v9111
  %v9117 = vrot.slane %v9116, 4
  %v9119 = vshll.u32 %v8795, 16
  %v9121 = vrot.slane %v9119, 5
  %v9122 = vsel %vm2463, %v9117, %v9121
  %v9124 = vshrl.u32 %v8796, 16
  %v9126 = vrot.slane %v9124, 4
  %v9127 = vshll.u32 %v8796, 16
  %v9129 = vrot.slane %v9127, 5
  %v9130 = vor.u32 %v9126, %v9129
  %v9131 = vrot.slane %v9130, 4
  %v9133 = vshll.u32 %v8797, 16
  %v9135 = vrot.slane %v9133, 5
  %v9136 = vsel %vm2463, %v9131, %v9135
  %v9137 = vshrl.u32 %v8797, 16
  %v9139 = vrot.slane %v9137, 4
  %v9140 = vor.u32 %v9139, %v9135
  %v9141 = vrot.slane %v9140, 4
  %v9143 = vshll.u32 %v8798, 16
  %v9145 = vrot.slane %v9143, 5
  %v9146 = vsel %vm2463, %v9141, %v9145
  %v9148 = vshrl.u32 %v8799, 16
  %v9150 = vrot.slane %v9148, 4
  %v9151 = vshll.u32 %v8799, 16
  %v9153 = vrot.slane %v9151, 5
  %v9154 = vor.u32 %v9150, %v9153
  %v9155 = vrot.slane %v9154, 4
  %v9157 = vshll.u32 %v8800, 16
  %v9159 = vrot.slane %v9157, 5
  %v9160 = vsel %vm2463, %v9155, %v9159
  %v9161 = vshrl.u32 %v8800, 16
  %v9163 = vrot.slane %v9161, 4
  %v9164 = vor.u32 %v9163, %v9159
  %v9165 = vrot.slane %v9164, 4
  %v9167 = vshll.u32 %v8801, 16
  %v9169 = vrot.slane %v9167, 5
  %v9170 = vsel %vm2463, %v9165, %v9169
  %v9172 = vshrl.u32 %v8802, 16
  %v9174 = vrot.slane %v9172, 4
  %v9175 = vshll.u32 %v8802, 16
  %v9177 = vrot.slane %v9175, 5
  %v9178 = vor.u32 %v9174, %v9177
  %v9179 = vrot.slane %v9178, 4
  %v9181 = vshll.u32 %v8803, 16
  %v9183 = vrot.slane %v9181, 5
  %v9184 = vsel %vm2463, %v9179, %v9183
  %v9185 = vshrl.u32 %v8803, 16
  %v9187 = vrot.slane %v9185, 4
  %v9188 = vor.u32 %v9187, %v9183
  %v9189 = vrot.slane %v9188, 4
  %v9191 = vshll.u32 %v8804, 16
  %v9193 = vrot.slane %v9191, 5
  %v9194 = vsel %vm2463, %v9189, %v9193
  %v9196 = vshrl.u32 %v8805, 16
  %v9198 = vrot.slane %v9196, 4
  %v9199 = vshll.u32 %v8805, 16
  %v9201 = vrot.slane %v9199, 5
  %v9202 = vor.u32 %v9198, %v9201
  %v9203 = vrot.slane %v9202, 4
  %v9205 = vshll.u32 %v8806, 16
  %v9207 = vrot.slane %v9205, 5
  %v9208 = vsel %vm2463, %v9203, %v9207
  %v9209 = vshrl.u32 %v8806, 16
  %v9211 = vrot.slane %v9209, 4
  %v9212 = vor.u32 %v9211, %v9207
  %v9213 = vrot.slane %v9212, 4
  %v9215 = vshll.u32 %v8807, 16
  %v9217 = vrot.slane %v9215, 5
  %v9218 = vsel %vm2463, %v9213, %v9217
  %v9220 = vshrl.u32 %v8808, 16
  %v9222 = vrot.slane %v9220, 4
  %v9223 = vshll.u32 %v8808, 16
  %v9225 = vrot.slane %v9223, 5
  %v9226 = vor.u32 %v9222, %v9225
  %v9227 = vrot.slane %v9226, 4
  %v9229 = vshll.u32 %v8809, 16
  %v9231 = vrot.slane %v9229, 5
  %v9232 = vsel %vm2463, %v9227, %v9231
  %v9233 = vshrl.u32 %v8809, 16
  %v9235 = vrot.slane %v9233, 4
  %v9236 = vor.u32 %v9235, %v9231
  %v9237 = vrot.slane %v9236, 4
  %v9239 = vshll.u32 %v8810, 16
  %v9241 = vrot.slane %v9239, 5
  %v9242 = vsel %vm2463, %v9237, %v9241
  %v9244 = vshrl.u32 %v8811, 16
  %v9246 = vrot.slane %v9244, 4
  %v9247 = vshll.u32 %v8811, 16
  %v9249 = vrot.slane %v9247, 5
  %v9250 = vor.u32 %v9246, %v9249
  %v9251 = vrot.slane %v9250, 4
  %v9253 = vshll.u32 %v8812, 16
  %v9255 = vrot.slane %v9253, 5
  %v9256 = vsel %vm2463, %v9251, %v9255
  %v9257 = vshrl.u32 %v8812, 16
  %v9259 = vrot.slane %v9257, 4
  %v9260 = vor.u32 %v9259, %v9255
  %v9261 = vrot.slane %v9260, 4
  %v9263 = vshll.u32 %v8813, 16
  %v9265 = vrot.slane %v9263, 5
  %v9266 = vsel %vm2463, %v9261, %v9265
  %v9268 = vshrl.u32 %v8814, 16
  %v9270 = vrot.slane %v9268, 4
  %v9271 = vshll.u32 %v8814, 16
  %v9273 = vrot.slane %v9271, 5
  %v9274 = vor.u32 %v9270, %v9273
  %v9275 = vrot.slane %v9274, 4
  %v9277 = vshll.u32 %v8815, 16
  %v9279 = vrot.slane %v9277, 5
  %v9280 = vsel %vm2463, %v9275, %v9279
  %v9281 = vshrl.u32 %v8815, 16
  %v9283 = vrot.slane %v9281, 4
  %v9284 = vor.u32 %v9283, %v9279
  %v9285 = vrot.slane %v9284, 4
  %v9287 = vshll.u32 %v8816, 16
  %v9289 = vrot.slane %v9287, 5
  %v9290 = vsel %vm2463, %v9285, %v9289
  %v9292 = vshrl.u32 %v8817, 16
  %v9294 = vrot.slane %v9292, 4
  %v9295 = vshll.u32 %v8817, 16
  %v9297 = vrot.slane %v9295, 5
  %v9298 = vor.u32 %v9294, %v9297
  %v9299 = vrot.slane %v9298, 4
  %v9301 = vshll.u32 %v8818, 16
  %v9303 = vrot.slane %v9301, 5
  %v9304 = vsel %vm2463, %v9299, %v9303
  %v9305 = vshrl.u32 %v8818, 16
  %v9307 = vrot.slane %v9305, 4
  %v9308 = vor.u32 %v9307, %v9303
  %v9309 = vrot.slane %v9308, 4
  %v9311 = vshll.u32 %v8819, 16
  %v9313 = vrot.slane %v9311, 5
  %v9314 = vsel %vm2463, %v9309, %v9313
  %v9316 = vshrl.u32 %v8820, 16
  %v9318 = vrot.slane %v9316, 4
  %v9319 = vshll.u32 %v8820, 16
  %v9321 = vrot.slane %v9319, 5
  %v9322 = vor.u32 %v9318, %v9321
  %v9323 = vrot.slane %v9322, 4
  %v9325 = vshll.u32 %v8821, 16
  %v9327 = vrot.slane %v9325, 5
  %v9328 = vsel %vm2463, %v9323, %v9327
  %v9329 = vshrl.u32 %v8821, 16
  %v9331 = vrot.slane %v9329, 4
  %v9332 = vor.u32 %v9331, %v9327
  %v9333 = vrot.slane %v9332, 4
  %v9335 = vshll.u32 %v8822, 16
  %v9337 = vrot.slane %v9335, 5
  %v9338 = vsel %vm2463, %v9333, %v9337
  %v9340 = vshrl.u32 %v8823, 16
  %v9342 = vrot.slane %v9340, 4
  %v9343 = vshll.u32 %v8823, 16
  %v9345 = vrot.slane %v9343, 5
  %v9346 = vor.u32 %v9342, %v9345
  %v9347 = vrot.slane %v9346, 4
  %v9349 = vshll.u32 %v8824, 16
  %v9351 = vrot.slane %v9349, 5
  %v9352 = vsel %vm2463, %v9347, %v9351
  %v9353 = vshrl.u32 %v8824, 16
  %v9355 = vrot.slane %v9353, 4
  %v9356 = vor.u32 %v9355, %v9351
  %v9357 = vrot.slane %v9356, 4
  %v9359 = vshll.u32 %v8825, 16
  %v9361 = vrot.slane %v9359, 5
  %v9362 = vsel %vm2463, %v9357, %v9361
  %v9364 = vshrl.u32 %v8826, 16
  %v9366 = vrot.slane %v9364, 4
  %v9367 = vshll.u32 %v8826, 16
  %v9369 = vrot.slane %v9367, 5
  %v9370 = vor.u32 %v9366, %v9369
  %v9371 = vrot.slane %v9370, 4
  %v9373 = vshll.u32 %v8827, 16
  %v9375 = vrot.slane %v9373, 5
  %v9376 = vsel %vm2463, %v9371, %v9375
  %v9377 = vshrl.u32 %v8827, 16
  %v9379 = vrot.slane %v9377, 4
  %v9380 = vor.u32 %v9379, %v9375
  %v9381 = vrot.slane %v9380, 4
  %v9383 = vshll.u32 %v8828, 16
  %v9385 = vrot.slane %v9383, 5
  %v9386 = vsel %vm2463, %v9381, %v9385
  %v9388 = vshrl.u32 %v8829, 16
  %v9390 = vrot.slane %v9388, 4
  %v9391 = vshll.u32 %v8829, 16
  %v9393 = vrot.slane %v9391, 5
  %v9394 = vor.u32 %v9390, %v9393
  %v9395 = vrot.slane %v9394, 4
  %v9397 = vshll.u32 %v8830, 16
  %v9399 = vrot.slane %v9397, 5
  %v9400 = vsel %vm2463, %v9395, %v9399
  %v9401 = vshrl.u32 %v8830, 16
  %v9403 = vrot.slane %v9401, 4
  %v9404 = vor.u32 %v9403, %v9399
  %v9405 = vrot.slane %v9404, 4
  %v9407 = vshll.u32 %v8831, 16
  %v9409 = vrot.slane %v9407, 5
  %v9410 = vsel %vm2463, %v9405, %v9409
  %v9412 = vshrl.u32 %v8832, 16
  %v9414 = vrot.slane %v9412, 4
  %v9415 = vshll.u32 %v8832, 16
  %v9417 = vrot.slane %v9415, 5
  %v9418 = vor.u32 %v9414, %v9417
  %v9419 = vrot.slane %v9418, 4
  %v9421 = vshll.u32 %v8833, 16
  %v9423 = vrot.slane %v9421, 5
  %v9424 = vsel %vm2463, %v9419, %v9423
  %v9425 = vshrl.u32 %v8833, 16
  %v9427 = vrot.slane %v9425, 4
  %v9428 = vor.u32 %v9427, %v9423
  %v9429 = vrot.slane %v9428, 4
  %v9431 = vshll.u32 %v8834, 16
  %v9433 = vrot.slane %v9431, 5
  %v9434 = vsel %vm2463, %v9429, %v9433
  %v9436 = vshrl.u32 %v8835, 16
  %v9438 = vrot.slane %v9436, 4
  %v9439 = vshll.u32 %v8835, 16
  %v9441 = vrot.slane %v9439, 5
  %v9442 = vor.u32 %v9438, %v9441
  %v9443 = vrot.slane %v9442, 4
  %v9445 = vshll.u32 %v8836, 16
  %v9447 = vrot.slane %v9445, 5
  %v9448 = vsel %vm2463, %v9443, %v9447
  %v9449 = vshrl.u32 %v8836, 16
  %v9451 = vrot.slane %v9449, 4
  %v9452 = vor.u32 %v9451, %v9447
  %v9453 = vrot.slane %v9452, 4
  %v9455 = vshll.u32 %v8837, 16
  %v9457 = vrot.slane %v9455, 5
  %v9458 = vsel %vm2463, %v9453, %v9457
  %v9460 = vshrl.u32 %v8838, 16
  %v9462 = vrot.slane %v9460, 4
  %v9463 = vshll.u32 %v8838, 16
  %v9465 = vrot.slane %v9463, 5
  %v9466 = vor.u32 %v9462, %v9465
  %v9467 = vrot.slane %v9466, 4
  %v9469 = vshll.u32 %v8839, 16
  %v9471 = vrot.slane %v9469, 5
  %v9472 = vsel %vm2463, %v9467, %v9471
  %v9473 = vshrl.u32 %v8839, 16
  %v9475 = vrot.slane %v9473, 4
  %v9476 = vor.u32 %v9475, %v9471
  %v9477 = vrot.slane %v9476, 4
  %v9479 = vshll.u32 %v8840, 16
  %v9481 = vrot.slane %v9479, 5
  %v9482 = vsel %vm2463, %v9477, %v9481
  %v9484 = vshrl.u32 %v8841, 16
  %v9486 = vrot.slane %v9484, 4
  %v9487 = vshll.u32 %v8841, 16
  %v9489 = vrot.slane %v9487, 5
  %v9490 = vor.u32 %v9486, %v9489
  %v9491 = vrot.slane %v9490, 4
  %v9493 = vshll.u32 %v8842, 16
  %v9495 = vrot.slane %v9493, 5
  %v9496 = vsel %vm2463, %v9491, %v9495
  %v9497 = vshrl.u32 %v8842, 16
  %v9499 = vrot.slane %v9497, 4
  %v9500 = vor.u32 %v9499, %v9495
  %v9501 = vrot.slane %v9500, 4
  %v9503 = vshll.u32 %v8843, 16
  %v9505 = vrot.slane %v9503, 5
  %v9506 = vsel %vm2463, %v9501, %v9505
  %v9508 = vshrl.u32 %v8844, 16
  %v9510 = vrot.slane %v9508, 4
  %v9511 = vshll.u32 %v8844, 16
  %v9513 = vrot.slane %v9511, 5
  %v9514 = vor.u32 %v9510, %v9513
  %v9515 = vrot.slane %v9514, 4
  %v9517 = vshll.u32 %v8845, 16
  %v9519 = vrot.slane %v9517, 5
  %v9520 = vsel %vm2463, %v9515, %v9519
  %v9521 = vshrl.u32 %v8845, 16
  %v9523 = vrot.slane %v9521, 4
  %v9524 = vor.u32 %v9523, %v9519
  %v9525 = vrot.slane %v9524, 4
  %v9527 = vshll.u32 %v8846, 16
  %v9529 = vrot.slane %v9527, 5
  %v9530 = vsel %vm2463, %v9525, %v9529
  %v9532 = vshrl.u32 %v8847, 16
  %v9534 = vrot.slane %v9532, 4
  %v9535 = vshll.u32 %v8847, 16
  %v9537 = vrot.slane %v9535, 5
  %v9538 = vor.u32 %v9534, %v9537
  %v9539 = vrot.slane %v9538, 4
  %v9541 = vshll.u32 %v8848, 16
  %v9543 = vrot.slane %v9541, 5
  %v9544 = vsel %vm2463, %v9539, %v9543
  %v9545 = vshrl.u32 %v8848, 16
  %v9547 = vrot.slane %v9545, 4
  %v9548 = vor.u32 %v9547, %v9543
  %v9549 = vrot.slane %v9548, 4
  %v9551 = vshll.u32 %v8849, 16
  %v9553 = vrot.slane %v9551, 5
  %v9554 = vsel %vm2463, %v9549, %v9553
  %v9556 = vshrl.u32 %v8850, 16
  %v9558 = vrot.slane %v9556, 4
  %v9559 = vshll.u32 %v8850, 16
  %v9561 = vrot.slane %v9559, 5
  %v9562 = vor.u32 %v9558, %v9561
  %v9563 = vrot.slane %v9562, 4
  %v9565 = vshll.u32 %v8851, 16
  %v9567 = vrot.slane %v9565, 5
  %v9568 = vsel %vm2463, %v9563, %v9567
  %v9569 = vshrl.u32 %v8851, 16
  %v9571 = vrot.slane %v9569, 4
  %v9572 = vor.u32 %v9571, %v9567
  %v9573 = vrot.slane %v9572, 4
  %v9575 = vshll.u32 %v8852, 16
  %v9577 = vrot.slane %v9575, 5
  %v9578 = vsel %vm2463, %v9573, %v9577
  %v9580 = vshrl.u32 %v8853, 16
  %v9582 = vrot.slane %v9580, 4
  %v9583 = vshll.u32 %v8853, 16
  %v9585 = vrot.slane %v9583, 5
  %v9586 = vor.u32 %v9582, %v9585
  %v9587 = vrot.slane %v9586, 4
  %v9589 = vshll.u32 %v8854, 16
  %v9591 = vrot.slane %v9589, 5
  %v9592 = vsel %vm2463, %v9587, %v9591
  %v9593 = vshrl.u32 %v8854, 16
  %v9595 = vrot.slane %v9593, 4
  %v9596 = vor.u32 %v9595, %v9591
  %v9597 = vrot.slane %v9596, 4
  %v9599 = vshll.u32 %v8855, 16
  %v9601 = vrot.slane %v9599, 5
  %v9602 = vsel %vm2463, %v9597, %v9601
  %v9604 = vshrl.u32 %v8856, 16
  %v9606 = vrot.slane %v9604, 4
  %v9607 = vshll.u32 %v8856, 16
  %v9609 = vrot.slane %v9607, 5
  %v9610 = vor.u32 %v9606, %v9609
  %v9611 = vrot.slane %v9610, 4
  %v9613 = vshll.u32 %v8857, 16
  %v9615 = vrot.slane %v9613, 5
  %v9616 = vsel %vm2463, %v9611, %v9615
  %v9617 = vshrl.u32 %v8857, 16
  %v9619 = vrot.slane %v9617, 4
  %v9620 = vor.u32 %v9619, %v9615
  %v9621 = vrot.slane %v9620, 4
  %v9623 = vshll.u32 %v8858, 16
  %v9625 = vrot.slane %v9623, 5
  %v9626 = vsel %vm2463, %v9621, %v9625
  %v9627 = vld [vmem:[%s2 + $0x1c0] sm:$0xf]
  %v9628 = vld [vmem:[%s2 + $0x1c4] sm:$0xf]
  %v9629 = vld [vmem:[%s2 + $0x1c8] sm:$0xf]
  %v9630 = vld [vmem:[%s2 + $0x1cc] sm:$0xf]
  %v9631 = vld [vmem:[%s2 + $0x1d0] sm:$0xf]
  %v9632 = vld [vmem:[%s2 + $0x1d4] sm:$0xf]
  %v9633 = vld [vmem:[%s2 + $0x1d8] sm:$0xf]
  %v9634 = vld [vmem:[%s2 + $0x1dc] sm:$0xf]
  %v9635 = vld [vmem:[%s2 + $0x1e0] sm:$0xf]
  %v9636 = vld [vmem:[%s2 + $0x1e4] sm:$0xf]
  %v9637 = vld [vmem:[%s2 + $0x1e8] sm:$0xf]
  %v9638 = vld [vmem:[%s2 + $0x1ec] sm:$0xf]
  %v9639 = vld [vmem:[%s2 + $0x1f0] sm:$0xf]
  %v9640 = vld [vmem:[%s2 + $0x1f4] sm:$0xf]
  %v9641 = vld [vmem:[%s2 + $0x1f8] sm:$0xf]
  %v9642 = vld [vmem:[%s2 + $0x1fc] sm:$0xf]
  %v9643 = vunpack.c.l.b16 %v8872
  %v9644 = vunpack.c.l.b16 %v8882
  %v9645 = vunpack.c.l.b16 %v8896
  %v9646 = vunpack.c.l.b16 %v8906
  %v9647 = vunpack.c.l.b16 %v8920
  %v9648 = vunpack.c.l.b16 %v8930
  %v9649 = vunpack.c.l.b16 %v8944
  %v9650 = vunpack.c.l.b16 %v8954
  %v9651 = vunpack.c.l.b16 %v8968
  %v9652 = vunpack.c.l.b16 %v8978
  %v9653 = vunpack.c.l.b16 %v8992
  %v9654 = vunpack.c.l.b16 %v9002
  %v9655 = vunpack.c.l.b16 %v9016
  %v9656 = vunpack.c.l.b16 %v9026
  %v9657 = vunpack.c.l.b16 %v9040
  %v9658 = vunpack.c.l.b16 %v9050
  %v9659 = vunpack.c.l.b16 %v9064
  %v9660 = vunpack.c.l.b16 %v9074
  %v9661 = vunpack.c.l.b16 %v9088
  %v9662 = vunpack.c.l.b16 %v9098
  %v9663 = vunpack.c.l.b16 %v9112
  %v9664 = vunpack.c.l.b16 %v9122
  %v9665 = vunpack.c.l.b16 %v9136
  %v9666 = vunpack.c.l.b16 %v9146
  %v9667 = vunpack.c.l.b16 %v9160
  %v9668 = vunpack.c.l.b16 %v9170
  %v9669 = vunpack.c.l.b16 %v9184
  %v9670 = vunpack.c.l.b16 %v9194
  %v9671 = vunpack.c.l.b16 %v9208
  %v9672 = vunpack.c.l.b16 %v9218
  %v9673 = vunpack.c.l.b16 %v9232
  %v9674 = vunpack.c.l.b16 %v9242
  %v9675 = vunpack.c.l.b16 %v9256
  %v9676 = vunpack.c.l.b16 %v9266
  %v9677 = vunpack.c.l.b16 %v9280
  %v9678 = vunpack.c.l.b16 %v9290
  %v9679 = vunpack.c.l.b16 %v9304
  %v9680 = vunpack.c.l.b16 %v9314
  %v9681 = vunpack.c.l.b16 %v9328
  %v9682 = vunpack.c.l.b16 %v9338
  %v9683 = vunpack.c.l.b16 %v9352
  %v9684 = vunpack.c.l.b16 %v9362
  %v9685 = vunpack.c.l.b16 %v9376
  %v9686 = vunpack.c.l.b16 %v9386
  %v9687 = vunpack.c.l.b16 %v9400
  %v9688 = vunpack.c.l.b16 %v9410
  %v9689 = vunpack.c.l.b16 %v9424
  %v9690 = vunpack.c.l.b16 %v9434
  %v9691 = vunpack.c.l.b16 %v9448
  %v9692 = vunpack.c.l.b16 %v9458
  %v9693 = vunpack.c.l.b16 %v9472
  %v9694 = vunpack.c.l.b16 %v9482
  %v9695 = vunpack.c.l.b16 %v9496
  %v9696 = vunpack.c.l.b16 %v9506
  %v9697 = vunpack.c.l.b16 %v9520
  %v9698 = vunpack.c.l.b16 %v9530
  %v9699 = vunpack.c.l.b16 %v9544
  %v9700 = vunpack.c.l.b16 %v9554
  %v9701 = vunpack.c.l.b16 %v9568
  %v9702 = vunpack.c.l.b16 %v9578
  %v9703 = vunpack.c.l.b16 %v9592
  %v9704 = vunpack.c.l.b16 %v9602
  %v9705 = vunpack.c.l.b16 %v9616
  %v9706 = vunpack.c.l.b16 %v9626
  %v9707 = vpack.c.b16 %v9644, %v9643
  %v9708 = vpack.c.b16 %v9646, %v9645
  %v9709 = vpack.c.b16 %v9648, %v9647
  %v9710 = vpack.c.b16 %v9650, %v9649
  %v9711 = vpack.c.b16 %v9652, %v9651
  %v9712 = vpack.c.b16 %v9654, %v9653
  %v9713 = vpack.c.b16 %v9656, %v9655
  %v9714 = vpack.c.b16 %v9658, %v9657
  %v9715 = vpack.c.b16 %v9660, %v9659
  %v9716 = vpack.c.b16 %v9662, %v9661
  %v9717 = vpack.c.b16 %v9664, %v9663
  %v9718 = vpack.c.b16 %v9666, %v9665
  %v9719 = vpack.c.b16 %v9668, %v9667
  %v9720 = vpack.c.b16 %v9670, %v9669
  %v9721 = vpack.c.b16 %v9672, %v9671
  %v9722 = vpack.c.b16 %v9674, %v9673
  %v9723 = vpack.c.b16 %v9676, %v9675
  %v9724 = vpack.c.b16 %v9678, %v9677
  %v9725 = vpack.c.b16 %v9680, %v9679
  %v9726 = vpack.c.b16 %v9682, %v9681
  %v9727 = vpack.c.b16 %v9684, %v9683
  %v9728 = vpack.c.b16 %v9686, %v9685
  %v9729 = vpack.c.b16 %v9688, %v9687
  %v9730 = vpack.c.b16 %v9690, %v9689
  %v9731 = vpack.c.b16 %v9692, %v9691
  %v9732 = vpack.c.b16 %v9694, %v9693
  %v9733 = vpack.c.b16 %v9696, %v9695
  %v9734 = vpack.c.b16 %v9698, %v9697
  %v9735 = vpack.c.b16 %v9700, %v9699
  %v9736 = vpack.c.b16 %v9702, %v9701
  %v9737 = vpack.c.b16 %v9704, %v9703
  %v9738 = vpack.c.b16 %v9706, %v9705
  %v9787 = vunpack.c.l.b16 %v9627
  %v9788 = vunpack.c.l.b16 %v9628
  %v9789 = vunpack.c.l.b16 %v9629
  %v9790 = vunpack.c.l.b16 %v9630
  %v9791 = vunpack.c.l.b16 %v9631
  %v9792 = vunpack.c.l.b16 %v9632
  %v9793 = vunpack.c.l.b16 %v9633
  %v9794 = vunpack.c.l.b16 %v9634
  %v9795 = vunpack.c.l.b16 %v9635
  %v9796 = vunpack.c.l.b16 %v9636
  %v9797 = vunpack.c.l.b16 %v9637
  %v9798 = vunpack.c.l.b16 %v9638
  %v9799 = vunpack.c.l.b16 %v9639
  %v9800 = vunpack.c.l.b16 %v9640
  %v9801 = vunpack.c.l.b16 %v9641
  %v9802 = vunpack.c.l.b16 %v9642
  %v9803 = vpack.c.b16 %v9788, %v9787
  %v9804 = vpack.c.b16 %v9790, %v9789
  %v9805 = vpack.c.b16 %v9792, %v9791
  %v9806 = vpack.c.b16 %v9794, %v9793
  %v9807 = vpack.c.b16 %v9796, %v9795
  %v9808 = vpack.c.b16 %v9798, %v9797
  %v9809 = vpack.c.b16 %v9800, %v9799
  %v9810 = vpack.c.b16 %v9802, %v9801
  %9819 = vmatprep.subr.bf16.mxu0 0
  %9820 = vmatpush1.bf16.msra.mxu0 %v9810
  %9821 = vmatprep.subr.bf16.mxu0 0
  %9822 = vmatpush1.bf16.msra.mxu0 %v9809
  %9823 = vmatprep.subr.bf16.mxu0 0
  %9824 = vmatpush1.bf16.msra.mxu0 %v9808
  %9825 = vmatprep.subr.bf16.mxu0 0
  %9826 = vmatpush1.bf16.msra.mxu0 %v9807
  %9827 = vmatprep.subr.bf16.mxu0 0
  %9828 = vmatpush1.bf16.msra.mxu0 %v9806
  %9829 = vmatprep.subr.bf16.mxu0 0
  %9830 = vmatpush1.bf16.msra.mxu0 %v9805
  %9831 = vmatprep.subr.bf16.mxu0 0
  %9832 = vmatpush1.bf16.msra.mxu0 %v9804
  %9833 = vmatprep.subr.bf16.mxu0 0
  %9834 = vmatpush1.bf16.msra.mxu0 %v9803
  %9835 = vmatprep.subr.bf16.mxu0 0
  %9836 = vmatpush2.bf16.msra.mxu0 0
  %9837 = vmatprep.subr.bf16.mxu0 0
  %9838 = vmatpush2.bf16.msra.mxu0 0
  %9839 = vmatprep.subr.bf16.mxu0 0
  %9840 = vmatpush2.bf16.msra.mxu0 0
  %9841 = vmatprep.subr.bf16.mxu0 0
  %9842 = vmatpush2.bf16.msra.mxu0 0
  %9843 = vmatprep.subr.bf16.mxu0 0
  %9844 = vmatpush2.bf16.msra.mxu0 0
  %9845 = vmatprep.subr.bf16.mxu0 0
  %9846 = vmatpush2.bf16.msra.mxu0 0
  %9847 = vmatprep.subr.bf16.mxu0 0
  %9848 = vmatpush2.bf16.msra.mxu0 0
  %9849 = vmatprep.subr.bf16.mxu0 0
  %9850 = vmatpush2.bf16.msra.mxu0 0
  %9851 = vmatprep.mubr.bf16.mxu0 0
  %9852 = vmatmul.mubr.bf16.gmra.mxu0 %v9707
  %v9853 = vpop.f32.mrf.mxu0
  %v9854 = vadd.f32 0.0, %v9853
  %v9855 = vpop.f32.mrf.mxu0
  %v9856 = vpop.f32.mrf.mxu0
  %v9857 = vadd.f32 0.0, %v9856
  %v9858 = vpop.f32.mrf.mxu0
  %9859 = vmatprep.mubr.bf16.mxu0 0
  %9860 = vmatmul.mubr.bf16.gmra.mxu0 %v9708
  %v9861 = vpop.f32.mrf.mxu0
  %v9862 = vadd.f32 0.0, %v9861
  %v9863 = vpop.f32.mrf.mxu0
  %v9864 = vpop.f32.mrf.mxu0
  %v9865 = vadd.f32 0.0, %v9864
  %v9866 = vpop.f32.mrf.mxu0
  %9867 = vmatprep.mubr.bf16.mxu0 0
  %9868 = vmatmul.mubr.bf16.gmra.mxu0 %v9709
  %v9869 = vpop.f32.mrf.mxu0
  %v9870 = vadd.f32 0.0, %v9869
  %v9871 = vpop.f32.mrf.mxu0
  %v9872 = vpop.f32.mrf.mxu0
  %v9873 = vadd.f32 0.0, %v9872
  %v9874 = vpop.f32.mrf.mxu0
  %9875 = vmatprep.mubr.bf16.mxu0 0
  %9876 = vmatmul.mubr.bf16.gmra.mxu0 %v9710
  %v9877 = vpop.f32.mrf.mxu0
  %v9878 = vadd.f32 0.0, %v9877
  %v9879 = vpop.f32.mrf.mxu0
  %v9880 = vpop.f32.mrf.mxu0
  %v9881 = vadd.f32 0.0, %v9880
  %v9882 = vpop.f32.mrf.mxu0
  %9883 = vmatprep.mubr.bf16.mxu0 0
  %9884 = vmatmul.mubr.bf16.gmra.mxu0 %v9711
  %v9885 = vpop.f32.mrf.mxu0
  %v9886 = vadd.f32 0.0, %v9885
  %v9887 = vpop.f32.mrf.mxu0
  %v9888 = vpop.f32.mrf.mxu0
  %v9889 = vadd.f32 0.0, %v9888
  %v9890 = vpop.f32.mrf.mxu0
  %9891 = vmatprep.mubr.bf16.mxu0 0
  %9892 = vmatmul.mubr.bf16.gmra.mxu0 %v9712
  %v9893 = vpop.f32.mrf.mxu0
  %v9894 = vadd.f32 0.0, %v9893
  %v9895 = vpop.f32.mrf.mxu0
  %v9896 = vpop.f32.mrf.mxu0
  %v9897 = vadd.f32 0.0, %v9896
  %v9898 = vpop.f32.mrf.mxu0
  %9899 = vmatprep.mubr.bf16.mxu0 0
  %9900 = vmatmul.mubr.bf16.gmra.mxu0 %v9713
  %v9901 = vpop.f32.mrf.mxu0
  %v9902 = vadd.f32 0.0, %v9901
  %v9903 = vpop.f32.mrf.mxu0
  %v9904 = vpop.f32.mrf.mxu0
  %v9905 = vadd.f32 0.0, %v9904
  %v9906 = vpop.f32.mrf.mxu0
  %9907 = vmatprep.mubr.bf16.mxu0 0
  %9908 = vmatmul.mubr.bf16.gmra.mxu0 %v9714
  %v9909 = vpop.f32.mrf.mxu0
  %v9910 = vadd.f32 0.0, %v9909
  %v9911 = vpop.f32.mrf.mxu0
  %v9912 = vpop.f32.mrf.mxu0
  %v9913 = vadd.f32 0.0, %v9912
  %v9914 = vpop.f32.mrf.mxu0
  %9915 = vmatprep.mubr.bf16.mxu0 0
  %9916 = vmatmul.mubr.bf16.gmra.mxu0 %v9715
  %v9917 = vpop.f32.mrf.mxu0
  %v9918 = vadd.f32 0.0, %v9917
  %v9919 = vpop.f32.mrf.mxu0
  %v9920 = vpop.f32.mrf.mxu0
  %v9921 = vadd.f32 0.0, %v9920
  %v9922 = vpop.f32.mrf.mxu0
  %9923 = vmatprep.mubr.bf16.mxu0 0
  %9924 = vmatmul.mubr.bf16.gmra.mxu0 %v9716
  %v9925 = vpop.f32.mrf.mxu0
  %v9926 = vadd.f32 0.0, %v9925
  %v9927 = vpop.f32.mrf.mxu0
  %v9928 = vpop.f32.mrf.mxu0
  %v9929 = vadd.f32 0.0, %v9928
  %v9930 = vpop.f32.mrf.mxu0
  %9931 = vmatprep.mubr.bf16.mxu0 0
  %9932 = vmatmul.mubr.bf16.gmra.mxu0 %v9717
  %v9933 = vpop.f32.mrf.mxu0
  %v9934 = vadd.f32 0.0, %v9933
  %v9935 = vpop.f32.mrf.mxu0
  %v9936 = vpop.f32.mrf.mxu0
  %v9937 = vadd.f32 0.0, %v9936
  %v9938 = vpop.f32.mrf.mxu0
  %9939 = vmatprep.mubr.bf16.mxu0 0
  %9940 = vmatmul.mubr.bf16.gmra.mxu0 %v9718
  %v9941 = vpop.f32.mrf.mxu0
  %v9942 = vadd.f32 0.0, %v9941
  %v9943 = vpop.f32.mrf.mxu0
  %v9944 = vpop.f32.mrf.mxu0
  %v9945 = vadd.f32 0.0, %v9944
  %v9946 = vpop.f32.mrf.mxu0
  %9947 = vmatprep.mubr.bf16.mxu0 0
  %9948 = vmatmul.mubr.bf16.gmra.mxu0 %v9719
  %v9949 = vpop.f32.mrf.mxu0
  %v9950 = vadd.f32 0.0, %v9949
  %v9951 = vpop.f32.mrf.mxu0
  %v9952 = vpop.f32.mrf.mxu0
  %v9953 = vadd.f32 0.0, %v9952
  %v9954 = vpop.f32.mrf.mxu0
  %9955 = vmatprep.mubr.bf16.mxu0 0
  %9956 = vmatmul.mubr.bf16.gmra.mxu0 %v9720
  %v9957 = vpop.f32.mrf.mxu0
  %v9958 = vadd.f32 0.0, %v9957
  %v9959 = vpop.f32.mrf.mxu0
  %v9960 = vpop.f32.mrf.mxu0
  %v9961 = vadd.f32 0.0, %v9960
  %v9962 = vpop.f32.mrf.mxu0
  %9963 = vmatprep.mubr.bf16.mxu0 0
  %9964 = vmatmul.mubr.bf16.gmra.mxu0 %v9721
  %v9965 = vpop.f32.mrf.mxu0
  %v9966 = vadd.f32 0.0, %v9965
  %v9967 = vpop.f32.mrf.mxu0
  %v9968 = vpop.f32.mrf.mxu0
  %v9969 = vadd.f32 0.0, %v9968
  %v9970 = vpop.f32.mrf.mxu0
  %9971 = vmatprep.mubr.bf16.mxu0 0
  %9972 = vmatmul.mubr.bf16.gmra.mxu0 %v9722
  %v9973 = vpop.f32.mrf.mxu0
  %v9974 = vadd.f32 0.0, %v9973
  %v9975 = vpop.f32.mrf.mxu0
  %v9976 = vpop.f32.mrf.mxu0
  %v9977 = vadd.f32 0.0, %v9976
  %v9978 = vpop.f32.mrf.mxu0
  %9979 = vmatprep.mubr.bf16.mxu0 0
  %9980 = vmatmul.mubr.bf16.gmra.mxu0 %v9723
  %v9981 = vpop.f32.mrf.mxu0
  %v9982 = vadd.f32 0.0, %v9981
  %v9983 = vpop.f32.mrf.mxu0
  %v9984 = vpop.f32.mrf.mxu0
  %v9985 = vadd.f32 0.0, %v9984
  %v9986 = vpop.f32.mrf.mxu0
  %9987 = vmatprep.mubr.bf16.mxu0 0
  %9988 = vmatmul.mubr.bf16.gmra.mxu0 %v9724
  %v9989 = vpop.f32.mrf.mxu0
  %v9990 = vadd.f32 0.0, %v9989
  %v9991 = vpop.f32.mrf.mxu0
  %v9992 = vpop.f32.mrf.mxu0
  %v9993 = vadd.f32 0.0, %v9992
  %v9994 = vpop.f32.mrf.mxu0
  %9995 = vmatprep.mubr.bf16.mxu0 0
  %9996 = vmatmul.mubr.bf16.gmra.mxu0 %v9725
  %v9997 = vpop.f32.mrf.mxu0
  %v9998 = vadd.f32 0.0, %v9997
  %v9999 = vpop.f32.mrf.mxu0
  %v10000 = vpop.f32.mrf.mxu0
  %v10001 = vadd.f32 0.0, %v10000
  %v10002 = vpop.f32.mrf.mxu0
  %10003 = vmatprep.mubr.bf16.mxu0 0
  %10004 = vmatmul.mubr.bf16.gmra.mxu0 %v9726
  %v10005 = vpop.f32.mrf.mxu0
  %v10006 = vadd.f32 0.0, %v10005
  %v10007 = vpop.f32.mrf.mxu0
  %v10008 = vpop.f32.mrf.mxu0
  %v10009 = vadd.f32 0.0, %v10008
  %v10010 = vpop.f32.mrf.mxu0
  %10011 = vmatprep.mubr.bf16.mxu0 0
  %10012 = vmatmul.mubr.bf16.gmra.mxu0 %v9727
  %v10013 = vpop.f32.mrf.mxu0
  %v10014 = vadd.f32 0.0, %v10013
  %v10015 = vpop.f32.mrf.mxu0
  %v10016 = vpop.f32.mrf.mxu0
  %v10017 = vadd.f32 0.0, %v10016
  %v10018 = vpop.f32.mrf.mxu0
  %10019 = vmatprep.mubr.bf16.mxu0 0
  %10020 = vmatmul.mubr.bf16.gmra.mxu0 %v9728
  %v10021 = vpop.f32.mrf.mxu0
  %v10022 = vadd.f32 0.0, %v10021
  %v10023 = vpop.f32.mrf.mxu0
  %v10024 = vpop.f32.mrf.mxu0
  %v10025 = vadd.f32 0.0, %v10024
  %v10026 = vpop.f32.mrf.mxu0
  %10027 = vmatprep.mubr.bf16.mxu0 0
  %10028 = vmatmul.mubr.bf16.gmra.mxu0 %v9729
  %v10029 = vpop.f32.mrf.mxu0
  %v10030 = vadd.f32 0.0, %v10029
  %v10031 = vpop.f32.mrf.mxu0
  %v10032 = vpop.f32.mrf.mxu0
  %v10033 = vadd.f32 0.0, %v10032
  %v10034 = vpop.f32.mrf.mxu0
  %10035 = vmatprep.mubr.bf16.mxu0 0
  %10036 = vmatmul.mubr.bf16.gmra.mxu0 %v9730
  %v10037 = vpop.f32.mrf.mxu0
  %v10038 = vadd.f32 0.0, %v10037
  %v10039 = vpop.f32.mrf.mxu0
  %v10040 = vpop.f32.mrf.mxu0
  %v10041 = vadd.f32 0.0, %v10040
  %v10042 = vpop.f32.mrf.mxu0
  %10043 = vmatprep.mubr.bf16.mxu0 0
  %10044 = vmatmul.mubr.bf16.gmra.mxu0 %v9731
  %v10045 = vpop.f32.mrf.mxu0
  %v10046 = vadd.f32 0.0, %v10045
  %v10047 = vpop.f32.mrf.mxu0
  %v10048 = vpop.f32.mrf.mxu0
  %v10049 = vadd.f32 0.0, %v10048
  %v10050 = vpop.f32.mrf.mxu0
  %10051 = vmatprep.mubr.bf16.mxu0 0
  %10052 = vmatmul.mubr.bf16.gmra.mxu0 %v9732
  %v10053 = vpop.f32.mrf.mxu0
  %v10054 = vadd.f32 0.0, %v10053
  %v10055 = vpop.f32.mrf.mxu0
  %v10056 = vpop.f32.mrf.mxu0
  %v10057 = vadd.f32 0.0, %v10056
  %v10058 = vpop.f32.mrf.mxu0
  %10059 = vmatprep.mubr.bf16.mxu0 0
  %10060 = vmatmul.mubr.bf16.gmra.mxu0 %v9733
  %v10061 = vpop.f32.mrf.mxu0
  %v10062 = vadd.f32 0.0, %v10061
  %v10063 = vpop.f32.mrf.mxu0
  %v10064 = vpop.f32.mrf.mxu0
  %v10065 = vadd.f32 0.0, %v10064
  %v10066 = vpop.f32.mrf.mxu0
  %10067 = vmatprep.mubr.bf16.mxu0 0
  %10068 = vmatmul.mubr.bf16.gmra.mxu0 %v9734
  %v10069 = vpop.f32.mrf.mxu0
  %v10070 = vadd.f32 0.0, %v10069
  %v10071 = vpop.f32.mrf.mxu0
  %v10072 = vpop.f32.mrf.mxu0
  %v10073 = vadd.f32 0.0, %v10072
  %v10074 = vpop.f32.mrf.mxu0
  %10075 = vmatprep.mubr.bf16.mxu0 0
  %10076 = vmatmul.mubr.bf16.gmra.mxu0 %v9735
  %v10077 = vpop.f32.mrf.mxu0
  %v10078 = vadd.f32 0.0, %v10077
  %v10079 = vpop.f32.mrf.mxu0
  %v10080 = vpop.f32.mrf.mxu0
  %v10081 = vadd.f32 0.0, %v10080
  %v10082 = vpop.f32.mrf.mxu0
  %10083 = vmatprep.mubr.bf16.mxu0 0
  %10084 = vmatmul.mubr.bf16.gmra.mxu0 %v9736
  %v10085 = vpop.f32.mrf.mxu0
  %v10086 = vadd.f32 0.0, %v10085
  %v10087 = vpop.f32.mrf.mxu0
  %v10088 = vpop.f32.mrf.mxu0
  %v10089 = vadd.f32 0.0, %v10088
  %v10090 = vpop.f32.mrf.mxu0
  %10091 = vmatprep.mubr.bf16.mxu0 0
  %10092 = vmatmul.mubr.bf16.gmra.mxu0 %v9737
  %v10093 = vpop.f32.mrf.mxu0
  %v10094 = vadd.f32 0.0, %v10093
  %v10095 = vpop.f32.mrf.mxu0
  %v10096 = vpop.f32.mrf.mxu0
  %v10097 = vadd.f32 0.0, %v10096
  %v10098 = vpop.f32.mrf.mxu0
  %10099 = vmatprep.mubr.bf16.mxu0 0
  %10100 = vmatmul.mubr.bf16.gmra.mxu0 %v9738
  %v10101 = vpop.f32.mrf.mxu0
  %v10102 = vadd.f32 0.0, %v10101
  %v10103 = vpop.f32.mrf.mxu0
  %v10104 = vpop.f32.mrf.mxu0
  %v10105 = vadd.f32 0.0, %v10104
  %v10106 = vpop.f32.mrf.mxu0
  %10107 = vdwg.mxu0
  %v10108 = vadd.f32 %v8699, %v9854
  %v10109 = vadd.f32 %v8700, %v9857
  %v10110 = vadd.f32 %v8701, %v9862
  %v10111 = vadd.f32 %v8702, %v9865
  %v10112 = vadd.f32 %v8703, %v9870
  %v10113 = vadd.f32 %v8704, %v9873
  %v10114 = vadd.f32 %v8705, %v9878
  %v10115 = vadd.f32 %v8706, %v9881
  %v10116 = vadd.f32 %v8707, %v9886
  %v10117 = vadd.f32 %v8708, %v9889
  %v10118 = vadd.f32 %v8709, %v9894
  %v10119 = vadd.f32 %v8710, %v9897
  %v10120 = vadd.f32 %v8711, %v9902
  %v10121 = vadd.f32 %v8712, %v9905
  %v10122 = vadd.f32 %v8713, %v9910
  %v10123 = vadd.f32 %v8714, %v9913
  %v10124 = vadd.f32 %v8715, %v9918
  %v10125 = vadd.f32 %v8716, %v9921
  %v10126 = vadd.f32 %v8717, %v9926
  %v10127 = vadd.f32 %v8718, %v9929
  %v10128 = vadd.f32 %v8719, %v9934
  %v10129 = vadd.f32 %v8720, %v9937
  %v10130 = vadd.f32 %v8721, %v9942
  %v10131 = vadd.f32 %v8722, %v9945
  %v10132 = vadd.f32 %v8723, %v9950
  %v10133 = vadd.f32 %v8724, %v9953
  %v10134 = vadd.f32 %v8725, %v9958
  %v10135 = vadd.f32 %v8726, %v9961
  %v10136 = vadd.f32 %v8727, %v9966
  %v10137 = vadd.f32 %v8728, %v9969
  %v10138 = vadd.f32 %v8729, %v9974
  %v10139 = vadd.f32 %v8730, %v9977
  %v10140 = vadd.f32 %v8731, %v9982
  %v10141 = vadd.f32 %v8732, %v9985
  %v10142 = vadd.f32 %v8733, %v9990
  %v10143 = vadd.f32 %v8734, %v9993
  %v10144 = vadd.f32 %v8735, %v9998
  %v10145 = vadd.f32 %v8736, %v10001
  %v10146 = vadd.f32 %v8737, %v10006
  %v10147 = vadd.f32 %v8738, %v10009
  %v10148 = vadd.f32 %v8739, %v10014
  %v10149 = vadd.f32 %v8740, %v10017
  %v10150 = vadd.f32 %v8741, %v10022
  %v10151 = vadd.f32 %v8742, %v10025
  %v10152 = vadd.f32 %v8743, %v10030
  %v10153 = vadd.f32 %v8744, %v10033
  %v10154 = vadd.f32 %v8745, %v10038
  %v10155 = vadd.f32 %v8746, %v10041
  %v10156 = vadd.f32 %v8747, %v10046
  %v10157 = vadd.f32 %v8748, %v10049
  %v10158 = vadd.f32 %v8749, %v10054
  %v10159 = vadd.f32 %v8750, %v10057
  %v10160 = vadd.f32 %v8751, %v10062
  %v10161 = vadd.f32 %v8752, %v10065
  %v10162 = vadd.f32 %v8753, %v10070
  %v10163 = vadd.f32 %v8754, %v10073
  %v10164 = vadd.f32 %v8755, %v10078
  %v10165 = vadd.f32 %v8756, %v10081
  %v10166 = vadd.f32 %v8757, %v10086
  %v10167 = vadd.f32 %v8758, %v10089
  %v10168 = vadd.f32 %v8759, %v10094
  %v10169 = vadd.f32 %v8760, %v10097
  %v10170 = vadd.f32 %v8761, %v10102
  %v10171 = vadd.f32 %v8762, %v10105
  %v10172 = vld [vmem:[%s8089] sm:$0xe]
  %v10173 = vld [vmem:[%s8089 + $0xc] sm:$0xe]
  %v10174 = vld [vmem:[%s8089 + $0x18] sm:$0xe]
  %v10175 = vld [vmem:[%s8089 + $0x24] sm:$0xe]
  %v10176 = vld [vmem:[%s8089 + $0x30] sm:$0xe]
  %v10177 = vld [vmem:[%s8089 + $0x3c] sm:$0xe]
  %v10178 = vld [vmem:[%s8089 + $0x48] sm:$0xe]
  %v10179 = vld [vmem:[%s8089 + $0x54] sm:$0xe]
  %v10180 = vld [vmem:[%s8089 + $0x60] sm:$0xe]
  %v10181 = vld [vmem:[%s8089 + $0x6c] sm:$0xe]
  %v10182 = vld [vmem:[%s8089 + $0x78] sm:$0xe]
  %v10183 = vld [vmem:[%s8089 + $0x84] sm:$0xe]
  %v10184 = vld [vmem:[%s8089 + $0x90] sm:$0xe]
  %v10185 = vld [vmem:[%s8089 + $0x9c] sm:$0xe]
  %v10186 = vld [vmem:[%s8089 + $0xa8] sm:$0xe]
  %v10187 = vld [vmem:[%s8089 + $0xb4] sm:$0xe]
  %v10188 = vld [vmem:[%s8089 + $0xd8] sm:$0xe]
  %v10189 = vld [vmem:[%s8089 + $0xe4] sm:$0xe]
  %v10190 = vld [vmem:[%s8089 + $0xf0] sm:$0xe]
  %v10191 = vld [vmem:[%s8089 + $0xfc] sm:$0xe]
  %v10192 = vld [vmem:[%s8089 + $0x108] sm:$0xe]
  %v10193 = vld [vmem:[%s8089 + $0x114] sm:$0xe]
  %v10194 = vld [vmem:[%s8089 + $0x120] sm:$0xe]
  %v10195 = vld [vmem:[%s8089 + $0x12c] sm:$0xe]
  %v10196 = vld [vmem:[%s8089 + $0x138] sm:$0xe]
  %v10197 = vld [vmem:[%s8089 + $0x144] sm:$0xe]
  %v10198 = vld [vmem:[%s8089 + $0x150] sm:$0xe]
  %v10199 = vld [vmem:[%s8089 + $0x15c] sm:$0xe]
  %v10200 = vld [vmem:[%s8089 + $0x168] sm:$0xe]
  %v10201 = vld [vmem:[%s8089 + $0x174] sm:$0xe]
  %v10202 = vld [vmem:[%s8089 + $0x180] sm:$0xe]
  %v10203 = vld [vmem:[%s8089 + $0x18c] sm:$0xe]
  %v10300 = vrot.slane %v10172, 5
  %v10301 = vrot.slane %v10300, 4
  %v10302 = vrot.slane %v8764, 5
  %v10303 = vsel %vm4340, %v10301, %v10302
  %v10304 = vrot.slane %v10302, 4
  %v10305 = vrot.slane %v8765, 5
  %v10306 = vsel %vm4340, %v10304, %v10305
  %v10307 = vrot.slane %v10173, 5
  %v10308 = vrot.slane %v10307, 4
  %v10309 = vrot.slane %v8767, 5
  %v10310 = vsel %vm4340, %v10308, %v10309
  %v10311 = vrot.slane %v10309, 4
  %v10312 = vrot.slane %v8768, 5
  %v10313 = vsel %vm4340, %v10311, %v10312
  %v10314 = vrot.slane %v10174, 5
  %v10315 = vrot.slane %v10314, 4
  %v10316 = vrot.slane %v8770, 5
  %v10317 = vsel %vm4340, %v10315, %v10316
  %v10318 = vrot.slane %v10316, 4
  %v10319 = vrot.slane %v8771, 5
  %v10320 = vsel %vm4340, %v10318, %v10319
  %v10321 = vrot.slane %v10175, 5
  %v10322 = vrot.slane %v10321, 4
  %v10323 = vrot.slane %v8773, 5
  %v10324 = vsel %vm4340, %v10322, %v10323
  %v10325 = vrot.slane %v10323, 4
  %v10326 = vrot.slane %v8774, 5
  %v10327 = vsel %vm4340, %v10325, %v10326
  %v10328 = vrot.slane %v10176, 5
  %v10329 = vrot.slane %v10328, 4
  %v10330 = vrot.slane %v8776, 5
  %v10331 = vsel %vm4340, %v10329, %v10330
  %v10332 = vrot.slane %v10330, 4
  %v10333 = vrot.slane %v8777, 5
  %v10334 = vsel %vm4340, %v10332, %v10333
  %v10335 = vrot.slane %v10177, 5
  %v10336 = vrot.slane %v10335, 4
  %v10337 = vrot.slane %v8779, 5
  %v10338 = vsel %vm4340, %v10336, %v10337
  %v10339 = vrot.slane %v10337, 4
  %v10340 = vrot.slane %v8780, 5
  %v10341 = vsel %vm4340, %v10339, %v10340
  %v10342 = vrot.slane %v10178, 5
  %v10343 = vrot.slane %v10342, 4
  %v10344 = vrot.slane %v8782, 5
  %v10345 = vsel %vm4340, %v10343, %v10344
  %v10346 = vrot.slane %v10344, 4
  %v10347 = vrot.slane %v8783, 5
  %v10348 = vsel %vm4340, %v10346, %v10347
  %v10349 = vrot.slane %v10179, 5
  %v10350 = vrot.slane %v10349, 4
  %v10351 = vrot.slane %v8785, 5
  %v10352 = vsel %vm4340, %v10350, %v10351
  %v10353 = vrot.slane %v10351, 4
  %v10354 = vrot.slane %v8786, 5
  %v10355 = vsel %vm4340, %v10353, %v10354
  %v10356 = vrot.slane %v10180, 5
  %v10357 = vrot.slane %v10356, 4
  %v10358 = vrot.slane %v8788, 5
  %v10359 = vsel %vm4340, %v10357, %v10358
  %v10360 = vrot.slane %v10358, 4
  %v10361 = vrot.slane %v8789, 5
  %v10362 = vsel %vm4340, %v10360, %v10361
  %v10363 = vrot.slane %v10181, 5
  %v10364 = vrot.slane %v10363, 4
  %v10365 = vrot.slane %v8791, 5
  %v10366 = vsel %vm4340, %v10364, %v10365
  %v10367 = vrot.slane %v10365, 4
  %v10368 = vrot.slane %v8792, 5
  %v10369 = vsel %vm4340, %v10367, %v10368
  %v10370 = vrot.slane %v10182, 5
  %v10371 = vrot.slane %v10370, 4
  %v10372 = vrot.slane %v8794, 5
  %v10373 = vsel %vm4340, %v10371, %v10372
  %v10374 = vrot.slane %v10372, 4
  %v10375 = vrot.slane %v8795, 5
  %v10376 = vsel %vm4340, %v10374, %v10375
  %v10377 = vrot.slane %v10183, 5
  %v10378 = vrot.slane %v10377, 4
  %v10379 = vrot.slane %v8797, 5
  %v10380 = vsel %vm4340, %v10378, %v10379
  %v10381 = vrot.slane %v10379, 4
  %v10382 = vrot.slane %v8798, 5
  %v10383 = vsel %vm4340, %v10381, %v10382
  %v10384 = vrot.slane %v10184, 5
  %v10385 = vrot.slane %v10384, 4
  %v10386 = vrot.slane %v8800, 5
  %v10387 = vsel %vm4340, %v10385, %v10386
  %v10388 = vrot.slane %v10386, 4
  %v10389 = vrot.slane %v8801, 5
  %v10390 = vsel %vm4340, %v10388, %v10389
  %v10391 = vrot.slane %v10185, 5
  %v10392 = vrot.slane %v10391, 4
  %v10393 = vrot.slane %v8803, 5
  %v10394 = vsel %vm4340, %v10392, %v10393
  %v10395 = vrot.slane %v10393, 4
  %v10396 = vrot.slane %v8804, 5
  %v10397 = vsel %vm4340, %v10395, %v10396
  %v10398 = vrot.slane %v10186, 5
  %v10399 = vrot.slane %v10398, 4
  %v10400 = vrot.slane %v8806, 5
  %v10401 = vsel %vm4340, %v10399, %v10400
  %v10402 = vrot.slane %v10400, 4
  %v10403 = vrot.slane %v8807, 5
  %v10404 = vsel %vm4340, %v10402, %v10403
  %v10405 = vrot.slane %v10187, 5
  %v10406 = vrot.slane %v10405, 4
  %v10407 = vrot.slane %v8809, 5
  %v10408 = vsel %vm4340, %v10406, %v10407
  %v10409 = vrot.slane %v10407, 4
  %v10410 = vrot.slane %v8810, 5
  %v10411 = vsel %vm4340, %v10409, %v10410
  %v10412 = vrot.slane %v10188, 5
  %v10413 = vrot.slane %v10412, 4
  %v10414 = vrot.slane %v8812, 5
  %v10415 = vsel %vm4340, %v10413, %v10414
  %v10416 = vrot.slane %v10414, 4
  %v10417 = vrot.slane %v8813, 5
  %v10418 = vsel %vm4340, %v10416, %v10417
  %v10419 = vrot.slane %v10189, 5
  %v10420 = vrot.slane %v10419, 4
  %v10421 = vrot.slane %v8815, 5
  %v10422 = vsel %vm4340, %v10420, %v10421
  %v10423 = vrot.slane %v10421, 4
  %v10424 = vrot.slane %v8816, 5
  %v10425 = vsel %vm4340, %v10423, %v10424
  %v10426 = vrot.slane %v10190, 5
  %v10427 = vrot.slane %v10426, 4
  %v10428 = vrot.slane %v8818, 5
  %v10429 = vsel %vm4340, %v10427, %v10428
  %v10430 = vrot.slane %v10428, 4
  %v10431 = vrot.slane %v8819, 5
  %v10432 = vsel %vm4340, %v10430, %v10431
  %v10433 = vrot.slane %v10191, 5
  %v10434 = vrot.slane %v10433, 4
  %v10435 = vrot.slane %v8821, 5
  %v10436 = vsel %vm4340, %v10434, %v10435
  %v10437 = vrot.slane %v10435, 4
  %v10438 = vrot.slane %v8822, 5
  %v10439 = vsel %vm4340, %v10437, %v10438
  %v10440 = vrot.slane %v10192, 5
  %v10441 = vrot.slane %v10440, 4
  %v10442 = vrot.slane %v8824, 5
  %v10443 = vsel %vm4340, %v10441, %v10442
  %v10444 = vrot.slane %v10442, 4
  %v10445 = vrot.slane %v8825, 5
  %v10446 = vsel %vm4340, %v10444, %v10445
  %v10447 = vrot.slane %v10193, 5
  %v10448 = vrot.slane %v10447, 4
  %v10449 = vrot.slane %v8827, 5
  %v10450 = vsel %vm4340, %v10448, %v10449
  %v10451 = vrot.slane %v10449, 4
  %v10452 = vrot.slane %v8828, 5
  %v10453 = vsel %vm4340, %v10451, %v10452
  %v10454 = vrot.slane %v10194, 5
  %v10455 = vrot.slane %v10454, 4
  %v10456 = vrot.slane %v8830, 5
  %v10457 = vsel %vm4340, %v10455, %v10456
  %v10458 = vrot.slane %v10456, 4
  %v10459 = vrot.slane %v8831, 5
  %v10460 = vsel %vm4340, %v10458, %v10459
  %v10461 = vrot.slane %v10195, 5
  %v10462 = vrot.slane %v10461, 4
  %v10463 = vrot.slane %v8833, 5
  %v10464 = vsel %vm4340, %v10462, %v10463
  %v10465 = vrot.slane %v10463, 4
  %v10466 = vrot.slane %v8834, 5
  %v10467 = vsel %vm4340, %v10465, %v10466
  %v10468 = vrot.slane %v10196, 5
  %v10469 = vrot.slane %v10468, 4
  %v10470 = vrot.slane %v8836, 5
  %v10471 = vsel %vm4340, %v10469, %v10470
  %v10472 = vrot.slane %v10470, 4
  %v10473 = vrot.slane %v8837, 5
  %v10474 = vsel %vm4340, %v10472, %v10473
  %v10475 = vrot.slane %v10197, 5
  %v10476 = vrot.slane %v10475, 4
  %v10477 = vrot.slane %v8839, 5
  %v10478 = vsel %vm4340, %v10476, %v10477
  %v10479 = vrot.slane %v10477, 4
  %v10480 = vrot.slane %v8840, 5
  %v10481 = vsel %vm4340, %v10479, %v10480
  %v10482 = vrot.slane %v10198, 5
  %v10483 = vrot.slane %v10482, 4
  %v10484 = vrot.slane %v8842, 5
  %v10485 = vsel %vm4340, %v10483, %v10484
  %v10486 = vrot.slane %v10484, 4
  %v10487 = vrot.slane %v8843, 5
  %v10488 = vsel %vm4340, %v10486, %v10487
  %v10489 = vrot.slane %v10199, 5
  %v10490 = vrot.slane %v10489, 4
  %v10491 = vrot.slane %v8845, 5
  %v10492 = vsel %vm4340, %v10490, %v10491
  %v10493 = vrot.slane %v10491, 4
  %v10494 = vrot.slane %v8846, 5
  %v10495 = vsel %vm4340, %v10493, %v10494
  %v10496 = vrot.slane %v10200, 5
  %v10497 = vrot.slane %v10496, 4
  %v10498 = vrot.slane %v8848, 5
  %v10499 = vsel %vm4340, %v10497, %v10498
  %v10500 = vrot.slane %v10498, 4
  %v10501 = vrot.slane %v8849, 5
  %v10502 = vsel %vm4340, %v10500, %v10501
  %v10503 = vrot.slane %v10201, 5
  %v10504 = vrot.slane %v10503, 4
  %v10505 = vrot.slane %v8851, 5
  %v10506 = vsel %vm4340, %v10504, %v10505
  %v10507 = vrot.slane %v10505, 4
  %v10508 = vrot.slane %v8852, 5
  %v10509 = vsel %vm4340, %v10507, %v10508
  %v10510 = vrot.slane %v10202, 5
  %v10511 = vrot.slane %v10510, 4
  %v10512 = vrot.slane %v8854, 5
  %v10513 = vsel %vm4340, %v10511, %v10512
  %v10514 = vrot.slane %v10512, 4
  %v10515 = vrot.slane %v8855, 5
  %v10516 = vsel %vm4340, %v10514, %v10515
  %v10517 = vrot.slane %v10203, 5
  %v10518 = vrot.slane %v10517, 4
  %v10519 = vrot.slane %v8857, 5
  %v10520 = vsel %vm4340, %v10518, %v10519
  %v10521 = vrot.slane %v10519, 4
  %v10522 = vrot.slane %v8858, 5
  %v10523 = vsel %vm4340, %v10521, %v10522
  %v10524 = vld [vmem:[%s2 + $0x200] sm:$0xf]
  %v10525 = vld [vmem:[%s2 + $0x204] sm:$0xf]
  %v10526 = vld [vmem:[%s2 + $0x208] sm:$0xf]
  %v10527 = vld [vmem:[%s2 + $0x20c] sm:$0xf]
  %v10528 = vld [vmem:[%s2 + $0x210] sm:$0xf]
  %v10529 = vld [vmem:[%s2 + $0x214] sm:$0xf]
  %v10530 = vld [vmem:[%s2 + $0x218] sm:$0xf]
  %v10531 = vld [vmem:[%s2 + $0x21c] sm:$0xf]
  %v10532 = vld [vmem:[%s2 + $0x220] sm:$0xf]
  %v10533 = vld [vmem:[%s2 + $0x224] sm:$0xf]
  %v10534 = vld [vmem:[%s2 + $0x228] sm:$0xf]
  %v10535 = vld [vmem:[%s2 + $0x22c] sm:$0xf]
  %v10536 = vld [vmem:[%s2 + $0x230] sm:$0xf]
  %v10537 = vld [vmem:[%s2 + $0x234] sm:$0xf]
  %v10538 = vld [vmem:[%s2 + $0x238] sm:$0xf]
  %v10539 = vld [vmem:[%s2 + $0x23c] sm:$0xf]
  %v10540 = vunpack.c.l.b16 %v10303
  %v10541 = vunpack.c.l.b16 %v10306
  %v10542 = vunpack.c.l.b16 %v10310
  %v10543 = vunpack.c.l.b16 %v10313
  %v10544 = vunpack.c.l.b16 %v10317
  %v10545 = vunpack.c.l.b16 %v10320
  %v10546 = vunpack.c.l.b16 %v10324
  %v10547 = vunpack.c.l.b16 %v10327
  %v10548 = vunpack.c.l.b16 %v10331
  %v10549 = vunpack.c.l.b16 %v10334
  %v10550 = vunpack.c.l.b16 %v10338
  %v10551 = vunpack.c.l.b16 %v10341
  %v10552 = vunpack.c.l.b16 %v10345
  %v10553 = vunpack.c.l.b16 %v10348
  %v10554 = vunpack.c.l.b16 %v10352
  %v10555 = vunpack.c.l.b16 %v10355
  %v10556 = vunpack.c.l.b16 %v10359
  %v10557 = vunpack.c.l.b16 %v10362
  %v10558 = vunpack.c.l.b16 %v10366
  %v10559 = vunpack.c.l.b16 %v10369
  %v10560 = vunpack.c.l.b16 %v10373
  %v10561 = vunpack.c.l.b16 %v10376
  %v10562 = vunpack.c.l.b16 %v10380
  %v10563 = vunpack.c.l.b16 %v10383
  %v10564 = vunpack.c.l.b16 %v10387
  %v10565 = vunpack.c.l.b16 %v10390
  %v10566 = vunpack.c.l.b16 %v10394
  %v10567 = vunpack.c.l.b16 %v10397
  %v10568 = vunpack.c.l.b16 %v10401
  %v10569 = vunpack.c.l.b16 %v10404
  %v10570 = vunpack.c.l.b16 %v10408
  %v10571 = vunpack.c.l.b16 %v10411
  %v10572 = vunpack.c.l.b16 %v10415
  %v10573 = vunpack.c.l.b16 %v10418
  %v10574 = vunpack.c.l.b16 %v10422
  %v10575 = vunpack.c.l.b16 %v10425
  %v10576 = vunpack.c.l.b16 %v10429
  %v10577 = vunpack.c.l.b16 %v10432
  %v10578 = vunpack.c.l.b16 %v10436
  %v10579 = vunpack.c.l.b16 %v10439
  %v10580 = vunpack.c.l.b16 %v10443
  %v10581 = vunpack.c.l.b16 %v10446
  %v10582 = vunpack.c.l.b16 %v10450
  %v10583 = vunpack.c.l.b16 %v10453
  %v10584 = vunpack.c.l.b16 %v10457
  %v10585 = vunpack.c.l.b16 %v10460
  %v10586 = vunpack.c.l.b16 %v10464
  %v10587 = vunpack.c.l.b16 %v10467
  %v10588 = vunpack.c.l.b16 %v10471
  %v10589 = vunpack.c.l.b16 %v10474
  %v10590 = vunpack.c.l.b16 %v10478
  %v10591 = vunpack.c.l.b16 %v10481
  %v10592 = vunpack.c.l.b16 %v10485
  %v10593 = vunpack.c.l.b16 %v10488
  %v10594 = vunpack.c.l.b16 %v10492
  %v10595 = vunpack.c.l.b16 %v10495
  %v10596 = vunpack.c.l.b16 %v10499
  %v10597 = vunpack.c.l.b16 %v10502
  %v10598 = vunpack.c.l.b16 %v10506
  %v10599 = vunpack.c.l.b16 %v10509
  %v10600 = vunpack.c.l.b16 %v10513
  %v10601 = vunpack.c.l.b16 %v10516
  %v10602 = vunpack.c.l.b16 %v10520
  %v10603 = vunpack.c.l.b16 %v10523
  %v10604 = vpack.c.b16 %v10541, %v10540
  %v10605 = vpack.c.b16 %v10543, %v10542
  %v10606 = vpack.c.b16 %v10545, %v10544
  %v10607 = vpack.c.b16 %v10547, %v10546
  %v10608 = vpack.c.b16 %v10549, %v10548
  %v10609 = vpack.c.b16 %v10551, %v10550
  %v10610 = vpack.c.b16 %v10553, %v10552
  %v10611 = vpack.c.b16 %v10555, %v10554
  %v10612 = vpack.c.b16 %v10557, %v10556
  %v10613 = vpack.c.b16 %v10559, %v10558
  %v10614 = vpack.c.b16 %v10561, %v10560
  %v10615 = vpack.c.b16 %v10563, %v10562
  %v10616 = vpack.c.b16 %v10565, %v10564
  %v10617 = vpack.c.b16 %v10567, %v10566
  %v10618 = vpack.c.b16 %v10569, %v10568
  %v10619 = vpack.c.b16 %v10571, %v10570
  %v10620 = vpack.c.b16 %v10573, %v10572
  %v10621 = vpack.c.b16 %v10575, %v10574
  %v10622 = vpack.c.b16 %v10577, %v10576
  %v10623 = vpack.c.b16 %v10579, %v10578
  %v10624 = vpack.c.b16 %v10581, %v10580
  %v10625 = vpack.c.b16 %v10583, %v10582
  %v10626 = vpack.c.b16 %v10585, %v10584
  %v10627 = vpack.c.b16 %v10587, %v10586
  %v10628 = vpack.c.b16 %v10589, %v10588
  %v10629 = vpack.c.b16 %v10591, %v10590
  %v10630 = vpack.c.b16 %v10593, %v10592
  %v10631 = vpack.c.b16 %v10595, %v10594
  %v10632 = vpack.c.b16 %v10597, %v10596
  %v10633 = vpack.c.b16 %v10599, %v10598
  %v10634 = vpack.c.b16 %v10601, %v10600
  %v10635 = vpack.c.b16 %v10603, %v10602
  %v10684 = vunpack.c.l.b16 %v10524
  %v10685 = vunpack.c.l.b16 %v10525
  %v10686 = vunpack.c.l.b16 %v10526
  %v10687 = vunpack.c.l.b16 %v10527
  %v10688 = vunpack.c.l.b16 %v10528
  %v10689 = vunpack.c.l.b16 %v10529
  %v10690 = vunpack.c.l.b16 %v10530
  %v10691 = vunpack.c.l.b16 %v10531
  %v10692 = vunpack.c.l.b16 %v10532
  %v10693 = vunpack.c.l.b16 %v10533
  %v10694 = vunpack.c.l.b16 %v10534
  %v10695 = vunpack.c.l.b16 %v10535
  %v10696 = vunpack.c.l.b16 %v10536
  %v10697 = vunpack.c.l.b16 %v10537
  %v10698 = vunpack.c.l.b16 %v10538
  %v10699 = vunpack.c.l.b16 %v10539
  %v10700 = vpack.c.b16 %v10685, %v10684
  %v10701 = vpack.c.b16 %v10687, %v10686
  %v10702 = vpack.c.b16 %v10689, %v10688
  %v10703 = vpack.c.b16 %v10691, %v10690
  %v10704 = vpack.c.b16 %v10693, %v10692
  %v10705 = vpack.c.b16 %v10695, %v10694
  %v10706 = vpack.c.b16 %v10697, %v10696
  %v10707 = vpack.c.b16 %v10699, %v10698
  %10716 = vmatprep.subr.bf16.mxu0 0
  %10717 = vmatpush1.bf16.msra.mxu0 %v10707
  %10718 = vmatprep.subr.bf16.mxu0 0
  %10719 = vmatpush1.bf16.msra.mxu0 %v10706
  %10720 = vmatprep.subr.bf16.mxu0 0
  %10721 = vmatpush1.bf16.msra.mxu0 %v10705
  %10722 = vmatprep.subr.bf16.mxu0 0
  %10723 = vmatpush1.bf16.msra.mxu0 %v10704
  %10724 = vmatprep.subr.bf16.mxu0 0
  %10725 = vmatpush1.bf16.msra.mxu0 %v10703
  %10726 = vmatprep.subr.bf16.mxu0 0
  %10727 = vmatpush1.bf16.msra.mxu0 %v10702
  %10728 = vmatprep.subr.bf16.mxu0 0
  %10729 = vmatpush1.bf16.msra.mxu0 %v10701
  %10730 = vmatprep.subr.bf16.mxu0 0
  %10731 = vmatpush1.bf16.msra.mxu0 %v10700
  %10732 = vmatprep.subr.bf16.mxu0 0
  %10733 = vmatpush2.bf16.msra.mxu0 0
  %10734 = vmatprep.subr.bf16.mxu0 0
  %10735 = vmatpush2.bf16.msra.mxu0 0
  %10736 = vmatprep.subr.bf16.mxu0 0
  %10737 = vmatpush2.bf16.msra.mxu0 0
  %10738 = vmatprep.subr.bf16.mxu0 0
  %10739 = vmatpush2.bf16.msra.mxu0 0
  %10740 = vmatprep.subr.bf16.mxu0 0
  %10741 = vmatpush2.bf16.msra.mxu0 0
  %10742 = vmatprep.subr.bf16.mxu0 0
  %10743 = vmatpush2.bf16.msra.mxu0 0
  %10744 = vmatprep.subr.bf16.mxu0 0
  %10745 = vmatpush2.bf16.msra.mxu0 0
  %10746 = vmatprep.subr.bf16.mxu0 0
  %10747 = vmatpush2.bf16.msra.mxu0 0
  %10748 = vmatprep.mubr.bf16.mxu0 0
  %10749 = vmatmul.mubr.bf16.gmra.mxu0 %v10604
  %v10750 = vpop.f32.mrf.mxu0
  %v10751 = vadd.f32 0.0, %v10750
  %v10752 = vpop.f32.mrf.mxu0
  %v10753 = vpop.f32.mrf.mxu0
  %v10754 = vadd.f32 0.0, %v10753
  %v10755 = vpop.f32.mrf.mxu0
  %10756 = vmatprep.mubr.bf16.mxu0 0
  %10757 = vmatmul.mubr.bf16.gmra.mxu0 %v10605
  %v10758 = vpop.f32.mrf.mxu0
  %v10759 = vadd.f32 0.0, %v10758
  %v10760 = vpop.f32.mrf.mxu0
  %v10761 = vpop.f32.mrf.mxu0
  %v10762 = vadd.f32 0.0, %v10761
  %v10763 = vpop.f32.mrf.mxu0
  %10764 = vmatprep.mubr.bf16.mxu0 0
  %10765 = vmatmul.mubr.bf16.gmra.mxu0 %v10606
  %v10766 = vpop.f32.mrf.mxu0
  %v10767 = vadd.f32 0.0, %v10766
  %v10768 = vpop.f32.mrf.mxu0
  %v10769 = vpop.f32.mrf.mxu0
  %v10770 = vadd.f32 0.0, %v10769
  %v10771 = vpop.f32.mrf.mxu0
  %10772 = vmatprep.mubr.bf16.mxu0 0
  %10773 = vmatmul.mubr.bf16.gmra.mxu0 %v10607
  %v10774 = vpop.f32.mrf.mxu0
  %v10775 = vadd.f32 0.0, %v10774
  %v10776 = vpop.f32.mrf.mxu0
  %v10777 = vpop.f32.mrf.mxu0
  %v10778 = vadd.f32 0.0, %v10777
  %v10779 = vpop.f32.mrf.mxu0
  %10780 = vmatprep.mubr.bf16.mxu0 0
  %10781 = vmatmul.mubr.bf16.gmra.mxu0 %v10608
  %v10782 = vpop.f32.mrf.mxu0
  %v10783 = vadd.f32 0.0, %v10782
  %v10784 = vpop.f32.mrf.mxu0
  %v10785 = vpop.f32.mrf.mxu0
  %v10786 = vadd.f32 0.0, %v10785
  %v10787 = vpop.f32.mrf.mxu0
  %10788 = vmatprep.mubr.bf16.mxu0 0
  %10789 = vmatmul.mubr.bf16.gmra.mxu0 %v10609
  %v10790 = vpop.f32.mrf.mxu0
  %v10791 = vadd.f32 0.0, %v10790
  %v10792 = vpop.f32.mrf.mxu0
  %v10793 = vpop.f32.mrf.mxu0
  %v10794 = vadd.f32 0.0, %v10793
  %v10795 = vpop.f32.mrf.mxu0
  %10796 = vmatprep.mubr.bf16.mxu0 0
  %10797 = vmatmul.mubr.bf16.gmra.mxu0 %v10610
  %v10798 = vpop.f32.mrf.mxu0
  %v10799 = vadd.f32 0.0, %v10798
  %v10800 = vpop.f32.mrf.mxu0
  %v10801 = vpop.f32.mrf.mxu0
  %v10802 = vadd.f32 0.0, %v10801
  %v10803 = vpop.f32.mrf.mxu0
  %10804 = vmatprep.mubr.bf16.mxu0 0
  %10805 = vmatmul.mubr.bf16.gmra.mxu0 %v10611
  %v10806 = vpop.f32.mrf.mxu0
  %v10807 = vadd.f32 0.0, %v10806
  %v10808 = vpop.f32.mrf.mxu0
  %v10809 = vpop.f32.mrf.mxu0
  %v10810 = vadd.f32 0.0, %v10809
  %v10811 = vpop.f32.mrf.mxu0
  %10812 = vmatprep.mubr.bf16.mxu0 0
  %10813 = vmatmul.mubr.bf16.gmra.mxu0 %v10612
  %v10814 = vpop.f32.mrf.mxu0
  %v10815 = vadd.f32 0.0, %v10814
  %v10816 = vpop.f32.mrf.mxu0
  %v10817 = vpop.f32.mrf.mxu0
  %v10818 = vadd.f32 0.0, %v10817
  %v10819 = vpop.f32.mrf.mxu0
  %10820 = vmatprep.mubr.bf16.mxu0 0
  %10821 = vmatmul.mubr.bf16.gmra.mxu0 %v10613
  %v10822 = vpop.f32.mrf.mxu0
  %v10823 = vadd.f32 0.0, %v10822
  %v10824 = vpop.f32.mrf.mxu0
  %v10825 = vpop.f32.mrf.mxu0
  %v10826 = vadd.f32 0.0, %v10825
  %v10827 = vpop.f32.mrf.mxu0
  %10828 = vmatprep.mubr.bf16.mxu0 0
  %10829 = vmatmul.mubr.bf16.gmra.mxu0 %v10614
  %v10830 = vpop.f32.mrf.mxu0
  %v10831 = vadd.f32 0.0, %v10830
  %v10832 = vpop.f32.mrf.mxu0
  %v10833 = vpop.f32.mrf.mxu0
  %v10834 = vadd.f32 0.0, %v10833
  %v10835 = vpop.f32.mrf.mxu0
  %10836 = vmatprep.mubr.bf16.mxu0 0
  %10837 = vmatmul.mubr.bf16.gmra.mxu0 %v10615
  %v10838 = vpop.f32.mrf.mxu0
  %v10839 = vadd.f32 0.0, %v10838
  %v10840 = vpop.f32.mrf.mxu0
  %v10841 = vpop.f32.mrf.mxu0
  %v10842 = vadd.f32 0.0, %v10841
  %v10843 = vpop.f32.mrf.mxu0
  %10844 = vmatprep.mubr.bf16.mxu0 0
  %10845 = vmatmul.mubr.bf16.gmra.mxu0 %v10616
  %v10846 = vpop.f32.mrf.mxu0
  %v10847 = vadd.f32 0.0, %v10846
  %v10848 = vpop.f32.mrf.mxu0
  %v10849 = vpop.f32.mrf.mxu0
  %v10850 = vadd.f32 0.0, %v10849
  %v10851 = vpop.f32.mrf.mxu0
  %10852 = vmatprep.mubr.bf16.mxu0 0
  %10853 = vmatmul.mubr.bf16.gmra.mxu0 %v10617
  %v10854 = vpop.f32.mrf.mxu0
  %v10855 = vadd.f32 0.0, %v10854
  %v10856 = vpop.f32.mrf.mxu0
  %v10857 = vpop.f32.mrf.mxu0
  %v10858 = vadd.f32 0.0, %v10857
  %v10859 = vpop.f32.mrf.mxu0
  %10860 = vmatprep.mubr.bf16.mxu0 0
  %10861 = vmatmul.mubr.bf16.gmra.mxu0 %v10618
  %v10862 = vpop.f32.mrf.mxu0
  %v10863 = vadd.f32 0.0, %v10862
  %v10864 = vpop.f32.mrf.mxu0
  %v10865 = vpop.f32.mrf.mxu0
  %v10866 = vadd.f32 0.0, %v10865
  %v10867 = vpop.f32.mrf.mxu0
  %10868 = vmatprep.mubr.bf16.mxu0 0
  %10869 = vmatmul.mubr.bf16.gmra.mxu0 %v10619
  %v10870 = vpop.f32.mrf.mxu0
  %v10871 = vadd.f32 0.0, %v10870
  %v10872 = vpop.f32.mrf.mxu0
  %v10873 = vpop.f32.mrf.mxu0
  %v10874 = vadd.f32 0.0, %v10873
  %v10875 = vpop.f32.mrf.mxu0
  %10876 = vmatprep.mubr.bf16.mxu0 0
  %10877 = vmatmul.mubr.bf16.gmra.mxu0 %v10620
  %v10878 = vpop.f32.mrf.mxu0
  %v10879 = vadd.f32 0.0, %v10878
  %v10880 = vpop.f32.mrf.mxu0
  %v10881 = vpop.f32.mrf.mxu0
  %v10882 = vadd.f32 0.0, %v10881
  %v10883 = vpop.f32.mrf.mxu0
  %10884 = vmatprep.mubr.bf16.mxu0 0
  %10885 = vmatmul.mubr.bf16.gmra.mxu0 %v10621
  %v10886 = vpop.f32.mrf.mxu0
  %v10887 = vadd.f32 0.0, %v10886
  %v10888 = vpop.f32.mrf.mxu0
  %v10889 = vpop.f32.mrf.mxu0
  %v10890 = vadd.f32 0.0, %v10889
  %v10891 = vpop.f32.mrf.mxu0
  %10892 = vmatprep.mubr.bf16.mxu0 0
  %10893 = vmatmul.mubr.bf16.gmra.mxu0 %v10622
  %v10894 = vpop.f32.mrf.mxu0
  %v10895 = vadd.f32 0.0, %v10894
  %v10896 = vpop.f32.mrf.mxu0
  %v10897 = vpop.f32.mrf.mxu0
  %v10898 = vadd.f32 0.0, %v10897
  %v10899 = vpop.f32.mrf.mxu0
  %10900 = vmatprep.mubr.bf16.mxu0 0
  %10901 = vmatmul.mubr.bf16.gmra.mxu0 %v10623
  %v10902 = vpop.f32.mrf.mxu0
  %v10903 = vadd.f32 0.0, %v10902
  %v10904 = vpop.f32.mrf.mxu0
  %v10905 = vpop.f32.mrf.mxu0
  %v10906 = vadd.f32 0.0, %v10905
  %v10907 = vpop.f32.mrf.mxu0
  %10908 = vmatprep.mubr.bf16.mxu0 0
  %10909 = vmatmul.mubr.bf16.gmra.mxu0 %v10624
  %v10910 = vpop.f32.mrf.mxu0
  %v10911 = vadd.f32 0.0, %v10910
  %v10912 = vpop.f32.mrf.mxu0
  %v10913 = vpop.f32.mrf.mxu0
  %v10914 = vadd.f32 0.0, %v10913
  %v10915 = vpop.f32.mrf.mxu0
  %10916 = vmatprep.mubr.bf16.mxu0 0
  %10917 = vmatmul.mubr.bf16.gmra.mxu0 %v10625
  %v10918 = vpop.f32.mrf.mxu0
  %v10919 = vadd.f32 0.0, %v10918
  %v10920 = vpop.f32.mrf.mxu0
  %v10921 = vpop.f32.mrf.mxu0
  %v10922 = vadd.f32 0.0, %v10921
  %v10923 = vpop.f32.mrf.mxu0
  %10924 = vmatprep.mubr.bf16.mxu0 0
  %10925 = vmatmul.mubr.bf16.gmra.mxu0 %v10626
  %v10926 = vpop.f32.mrf.mxu0
  %v10927 = vadd.f32 0.0, %v10926
  %v10928 = vpop.f32.mrf.mxu0
  %v10929 = vpop.f32.mrf.mxu0
  %v10930 = vadd.f32 0.0, %v10929
  %v10931 = vpop.f32.mrf.mxu0
  %10932 = vmatprep.mubr.bf16.mxu0 0
  %10933 = vmatmul.mubr.bf16.gmra.mxu0 %v10627
  %v10934 = vpop.f32.mrf.mxu0
  %v10935 = vadd.f32 0.0, %v10934
  %v10936 = vpop.f32.mrf.mxu0
  %v10937 = vpop.f32.mrf.mxu0
  %v10938 = vadd.f32 0.0, %v10937
  %v10939 = vpop.f32.mrf.mxu0
  %10940 = vmatprep.mubr.bf16.mxu0 0
  %10941 = vmatmul.mubr.bf16.gmra.mxu0 %v10628
  %v10942 = vpop.f32.mrf.mxu0
  %v10943 = vadd.f32 0.0, %v10942
  %v10944 = vpop.f32.mrf.mxu0
  %v10945 = vpop.f32.mrf.mxu0
  %v10946 = vadd.f32 0.0, %v10945
  %v10947 = vpop.f32.mrf.mxu0
  %10948 = vmatprep.mubr.bf16.mxu0 0
  %10949 = vmatmul.mubr.bf16.gmra.mxu0 %v10629
  %v10950 = vpop.f32.mrf.mxu0
  %v10951 = vadd.f32 0.0, %v10950
  %v10952 = vpop.f32.mrf.mxu0
  %v10953 = vpop.f32.mrf.mxu0
  %v10954 = vadd.f32 0.0, %v10953
  %v10955 = vpop.f32.mrf.mxu0
  %10956 = vmatprep.mubr.bf16.mxu0 0
  %10957 = vmatmul.mubr.bf16.gmra.mxu0 %v10630
  %v10958 = vpop.f32.mrf.mxu0
  %v10959 = vadd.f32 0.0, %v10958
  %v10960 = vpop.f32.mrf.mxu0
  %v10961 = vpop.f32.mrf.mxu0
  %v10962 = vadd.f32 0.0, %v10961
  %v10963 = vpop.f32.mrf.mxu0
  %10964 = vmatprep.mubr.bf16.mxu0 0
  %10965 = vmatmul.mubr.bf16.gmra.mxu0 %v10631
  %v10966 = vpop.f32.mrf.mxu0
  %v10967 = vadd.f32 0.0, %v10966
  %v10968 = vpop.f32.mrf.mxu0
  %v10969 = vpop.f32.mrf.mxu0
  %v10970 = vadd.f32 0.0, %v10969
  %v10971 = vpop.f32.mrf.mxu0
  %10972 = vmatprep.mubr.bf16.mxu0 0
  %10973 = vmatmul.mubr.bf16.gmra.mxu0 %v10632
  %v10974 = vpop.f32.mrf.mxu0
  %v10975 = vadd.f32 0.0, %v10974
  %v10976 = vpop.f32.mrf.mxu0
  %v10977 = vpop.f32.mrf.mxu0
  %v10978 = vadd.f32 0.0, %v10977
  %v10979 = vpop.f32.mrf.mxu0
  %10980 = vmatprep.mubr.bf16.mxu0 0
  %10981 = vmatmul.mubr.bf16.gmra.mxu0 %v10633
  %v10982 = vpop.f32.mrf.mxu0
  %v10983 = vadd.f32 0.0, %v10982
  %v10984 = vpop.f32.mrf.mxu0
  %v10985 = vpop.f32.mrf.mxu0
  %v10986 = vadd.f32 0.0, %v10985
  %v10987 = vpop.f32.mrf.mxu0
  %10988 = vmatprep.mubr.bf16.mxu0 0
  %10989 = vmatmul.mubr.bf16.gmra.mxu0 %v10634
  %v10990 = vpop.f32.mrf.mxu0
  %v10991 = vadd.f32 0.0, %v10990
  %v10992 = vpop.f32.mrf.mxu0
  %v10993 = vpop.f32.mrf.mxu0
  %v10994 = vadd.f32 0.0, %v10993
  %v10995 = vpop.f32.mrf.mxu0
  %10996 = vmatprep.mubr.bf16.mxu0 0
  %10997 = vmatmul.mubr.bf16.gmra.mxu0 %v10635
  %v10998 = vpop.f32.mrf.mxu0
  %v10999 = vadd.f32 0.0, %v10998
  %v11000 = vpop.f32.mrf.mxu0
  %v11001 = vpop.f32.mrf.mxu0
  %v11002 = vadd.f32 0.0, %v11001
  %v11003 = vpop.f32.mrf.mxu0
  %11004 = vdwg.mxu0
  %v11005 = vadd.f32 %v10108, %v10751
  %v11006 = vadd.f32 %v10109, %v10754
  %v11007 = vadd.f32 %v10110, %v10759
  %v11008 = vadd.f32 %v10111, %v10762
  %v11009 = vadd.f32 %v10112, %v10767
  %v11010 = vadd.f32 %v10113, %v10770
  %v11011 = vadd.f32 %v10114, %v10775
  %v11012 = vadd.f32 %v10115, %v10778
  %v11013 = vadd.f32 %v10116, %v10783
  %v11014 = vadd.f32 %v10117, %v10786
  %v11015 = vadd.f32 %v10118, %v10791
  %v11016 = vadd.f32 %v10119, %v10794
  %v11017 = vadd.f32 %v10120, %v10799
  %v11018 = vadd.f32 %v10121, %v10802
  %v11019 = vadd.f32 %v10122, %v10807
  %v11020 = vadd.f32 %v10123, %v10810
  %v11021 = vadd.f32 %v10124, %v10815
  %v11022 = vadd.f32 %v10125, %v10818
  %v11023 = vadd.f32 %v10126, %v10823
  %v11024 = vadd.f32 %v10127, %v10826
  %v11025 = vadd.f32 %v10128, %v10831
  %v11026 = vadd.f32 %v10129, %v10834
  %v11027 = vadd.f32 %v10130, %v10839
  %v11028 = vadd.f32 %v10131, %v10842
  %v11029 = vadd.f32 %v10132, %v10847
  %v11030 = vadd.f32 %v10133, %v10850
  %v11031 = vadd.f32 %v10134, %v10855
  %v11032 = vadd.f32 %v10135, %v10858
  %v11033 = vadd.f32 %v10136, %v10863
  %v11034 = vadd.f32 %v10137, %v10866
  %v11035 = vadd.f32 %v10138, %v10871
  %v11036 = vadd.f32 %v10139, %v10874
  %v11037 = vadd.f32 %v10140, %v10879
  %v11038 = vadd.f32 %v10141, %v10882
  %v11039 = vadd.f32 %v10142, %v10887
  %v11040 = vadd.f32 %v10143, %v10890
  %v11041 = vadd.f32 %v10144, %v10895
  %v11042 = vadd.f32 %v10145, %v10898
  %v11043 = vadd.f32 %v10146, %v10903
  %v11044 = vadd.f32 %v10147, %v10906
  %v11045 = vadd.f32 %v10148, %v10911
  %v11046 = vadd.f32 %v10149, %v10914
  %v11047 = vadd.f32 %v10150, %v10919
  %v11048 = vadd.f32 %v10151, %v10922
  %v11049 = vadd.f32 %v10152, %v10927
  %v11050 = vadd.f32 %v10153, %v10930
  %v11051 = vadd.f32 %v10154, %v10935
  %v11052 = vadd.f32 %v10155, %v10938
  %v11053 = vadd.f32 %v10156, %v10943
  %v11054 = vadd.f32 %v10157, %v10946
  %v11055 = vadd.f32 %v10158, %v10951
  %v11056 = vadd.f32 %v10159, %v10954
  %v11057 = vadd.f32 %v10160, %v10959
  %v11058 = vadd.f32 %v10161, %v10962
  %v11059 = vadd.f32 %v10162, %v10967
  %v11060 = vadd.f32 %v10163, %v10970
  %v11061 = vadd.f32 %v10164, %v10975
  %v11062 = vadd.f32 %v10165, %v10978
  %v11063 = vadd.f32 %v10166, %v10983
  %v11064 = vadd.f32 %v10167, %v10986
  %v11065 = vadd.f32 %v10168, %v10991
  %v11066 = vadd.f32 %v10169, %v10994
  %v11067 = vadd.f32 %v10170, %v10999
  %v11068 = vadd.f32 %v10171, %v11002
  %v11069 = vadd.f32 %v11005, %v11006
  %v11070 = vadd.f32 %v11069, %v11007
  %v11071 = vadd.f32 %v11070, %v11008
  %v11072 = vadd.f32 %v11071, %v11009
  %v11073 = vadd.f32 %v11072, %v11010
  %v11074 = vadd.f32 %v11073, %v11011
  %v11075 = vadd.f32 %v11074, %v11012
  %v11076 = vadd.f32 %v11075, %v11013
  %v11077 = vadd.f32 %v11076, %v11014
  %v11078 = vadd.f32 %v11077, %v11015
  %v11079 = vadd.f32 %v11078, %v11016
  %v11080 = vadd.f32 %v11079, %v11017
  %v11081 = vadd.f32 %v11080, %v11018
  %v11082 = vadd.f32 %v11081, %v11019
  %v11083 = vadd.f32 %v11082, %v11020
  %v11084 = vadd.f32 %v11083, %v11021
  %v11085 = vadd.f32 %v11084, %v11022
  %v11086 = vadd.f32 %v11085, %v11023
  %v11087 = vadd.f32 %v11086, %v11024
  %v11088 = vadd.f32 %v11087, %v11025
  %v11089 = vadd.f32 %v11088, %v11026
  %v11090 = vadd.f32 %v11089, %v11027
  %v11091 = vadd.f32 %v11090, %v11028
  %v11092 = vadd.f32 %v11091, %v11029
  %v11093 = vadd.f32 %v11092, %v11030
  %v11094 = vadd.f32 %v11093, %v11031
  %v11095 = vadd.f32 %v11094, %v11032
  %v11096 = vadd.f32 %v11095, %v11033
  %v11097 = vadd.f32 %v11096, %v11034
  %v11098 = vadd.f32 %v11097, %v11035
  %v11099 = vadd.f32 %v11098, %v11036
  %v11100 = vadd.f32 %v11099, %v11037
  %v11101 = vadd.f32 %v11100, %v11038
  %v11102 = vadd.f32 %v11101, %v11039
  %v11103 = vadd.f32 %v11102, %v11040
  %v11104 = vadd.f32 %v11103, %v11041
  %v11105 = vadd.f32 %v11104, %v11042
  %v11106 = vadd.f32 %v11105, %v11043
  %v11107 = vadd.f32 %v11106, %v11044
  %v11108 = vadd.f32 %v11107, %v11045
  %v11109 = vadd.f32 %v11108, %v11046
  %v11110 = vadd.f32 %v11109, %v11047
  %v11111 = vadd.f32 %v11110, %v11048
  %v11112 = vadd.f32 %v11111, %v11049
  %v11113 = vadd.f32 %v11112, %v11050
  %v11114 = vadd.f32 %v11113, %v11051
  %v11115 = vadd.f32 %v11114, %v11052
  %v11116 = vadd.f32 %v11115, %v11053
  %v11117 = vadd.f32 %v11116, %v11054
  %v11118 = vadd.f32 %v11117, %v11055
  %v11119 = vadd.f32 %v11118, %v11056
  %v11120 = vadd.f32 %v11119, %v11057
  %v11121 = vadd.f32 %v11120, %v11058
  %v11122 = vadd.f32 %v11121, %v11059
  %v11123 = vadd.f32 %v11122, %v11060
  %v11124 = vadd.f32 %v11123, %v11061
  %v11125 = vadd.f32 %v11124, %v11062
  %v11126 = vadd.f32 %v11125, %v11063
  %v11127 = vadd.f32 %v11126, %v11064
  %v11128 = vadd.f32 %v11127, %v11065
  %v11129 = vadd.f32 %v11128, %v11066
  %v11130 = vadd.f32 %v11129, %v11067
  %v11131 = vadd.f32 %v11130, %v11068
  %v11132 = vrot.slane %v11131, 4
  %v11133 = vadd.f32 %v11131, %v11132
  %v11134 = vrot.slane %v11133, 2
  %v11135 = vadd.f32 %v11133, %v11134
  %v11136 = vrot.slane %v11135, 1
  %v11137 = vadd.f32 %v11135, %v11136
  %v11138 = vmul.f32 %v11137, 0.001953125
  %v11139 = vmul.f32 %v11005, %v11005
  %v11140 = vmul.f32 %v11006, %v11006
  %v11141 = vmul.f32 %v11007, %v11007
  %v11142 = vmul.f32 %v11008, %v11008
  %v11143 = vmul.f32 %v11009, %v11009
  %v11144 = vmul.f32 %v11010, %v11010
  %v11145 = vmul.f32 %v11011, %v11011
  %v11146 = vmul.f32 %v11012, %v11012
  %v11147 = vmul.f32 %v11013, %v11013
  %v11148 = vmul.f32 %v11014, %v11014
  %v11149 = vmul.f32 %v11015, %v11015
  %v11150 = vmul.f32 %v11016, %v11016
  %v11151 = vmul.f32 %v11017, %v11017
  %v11152 = vmul.f32 %v11018, %v11018
  %v11153 = vmul.f32 %v11019, %v11019
  %v11154 = vmul.f32 %v11020, %v11020
  %v11155 = vmul.f32 %v11021, %v11021
  %v11156 = vmul.f32 %v11022, %v11022
  %v11157 = vmul.f32 %v11023, %v11023
  %v11158 = vmul.f32 %v11024, %v11024
  %v11159 = vmul.f32 %v11025, %v11025
  %v11160 = vmul.f32 %v11026, %v11026
  %v11161 = vmul.f32 %v11027, %v11027
  %v11162 = vmul.f32 %v11028, %v11028
  %v11163 = vmul.f32 %v11029, %v11029
  %v11164 = vmul.f32 %v11030, %v11030
  %v11165 = vmul.f32 %v11031, %v11031
  %v11166 = vmul.f32 %v11032, %v11032
  %v11167 = vmul.f32 %v11033, %v11033
  %v11168 = vmul.f32 %v11034, %v11034
  %v11169 = vmul.f32 %v11035, %v11035
  %v11170 = vmul.f32 %v11036, %v11036
  %v11171 = vmul.f32 %v11037, %v11037
  %v11172 = vmul.f32 %v11038, %v11038
  %v11173 = vmul.f32 %v11039, %v11039
  %v11174 = vmul.f32 %v11040, %v11040
  %v11175 = vmul.f32 %v11041, %v11041
  %v11176 = vmul.f32 %v11042, %v11042
  %v11177 = vmul.f32 %v11043, %v11043
  %v11178 = vmul.f32 %v11044, %v11044
  %v11179 = vmul.f32 %v11045, %v11045
  %v11180 = vmul.f32 %v11046, %v11046
  %v11181 = vmul.f32 %v11047, %v11047
  %v11182 = vmul.f32 %v11048, %v11048
  %v11183 = vmul.f32 %v11049, %v11049
  %v11184 = vmul.f32 %v11050, %v11050
  %v11185 = vmul.f32 %v11051, %v11051
  %v11186 = vmul.f32 %v11052, %v11052
  %v11187 = vmul.f32 %v11053, %v11053
  %v11188 = vmul.f32 %v11054, %v11054
  %v11189 = vmul.f32 %v11055, %v11055
  %v11190 = vmul.f32 %v11056, %v11056
  %v11191 = vmul.f32 %v11057, %v11057
  %v11192 = vmul.f32 %v11058, %v11058
  %v11193 = vmul.f32 %v11059, %v11059
  %v11194 = vmul.f32 %v11060, %v11060
  %v11195 = vmul.f32 %v11061, %v11061
  %v11196 = vmul.f32 %v11062, %v11062
  %v11197 = vmul.f32 %v11063, %v11063
  %v11198 = vmul.f32 %v11064, %v11064
  %v11199 = vmul.f32 %v11065, %v11065
  %v11200 = vmul.f32 %v11066, %v11066
  %v11201 = vmul.f32 %v11067, %v11067
  %v11202 = vmul.f32 %v11068, %v11068
  %v11203 = vadd.f32 %v11139, %v11140
  %v11204 = vadd.f32 %v11203, %v11141
  %v11205 = vadd.f32 %v11204, %v11142
  %v11206 = vadd.f32 %v11205, %v11143
  %v11207 = vadd.f32 %v11206, %v11144
  %v11208 = vadd.f32 %v11207, %v11145
  %v11209 = vadd.f32 %v11208, %v11146
  %v11210 = vadd.f32 %v11209, %v11147
  %v11211 = vadd.f32 %v11210, %v11148
  %v11212 = vadd.f32 %v11211, %v11149
  %v11213 = vadd.f32 %v11212, %v11150
  %v11214 = vadd.f32 %v11213, %v11151
  %v11215 = vadd.f32 %v11214, %v11152
  %v11216 = vadd.f32 %v11215, %v11153
  %v11217 = vadd.f32 %v11216, %v11154
  %v11218 = vadd.f32 %v11217, %v11155
  %v11219 = vadd.f32 %v11218, %v11156
  %v11220 = vadd.f32 %v11219, %v11157
  %v11221 = vadd.f32 %v11220, %v11158
  %v11222 = vadd.f32 %v11221, %v11159
  %v11223 = vadd.f32 %v11222, %v11160
  %v11224 = vadd.f32 %v11223, %v11161
  %v11225 = vadd.f32 %v11224, %v11162
  %v11226 = vadd.f32 %v11225, %v11163
  %v11227 = vadd.f32 %v11226, %v11164
  %v11228 = vadd.f32 %v11227, %v11165
  %v11229 = vadd.f32 %v11228, %v11166
  %v11230 = vadd.f32 %v11229, %v11167
  %v11231 = vadd.f32 %v11230, %v11168
  %v11232 = vadd.f32 %v11231, %v11169
  %v11233 = vadd.f32 %v11232, %v11170
  %v11234 = vadd.f32 %v11233, %v11171
  %v11235 = vadd.f32 %v11234, %v11172
  %v11236 = vadd.f32 %v11235, %v11173
  %v11237 = vadd.f32 %v11236, %v11174
  %v11238 = vadd.f32 %v11237, %v11175
  %v11239 = vadd.f32 %v11238, %v11176
  %v11240 = vadd.f32 %v11239, %v11177
  %v11241 = vadd.f32 %v11240, %v11178
  %v11242 = vadd.f32 %v11241, %v11179
  %v11243 = vadd.f32 %v11242, %v11180
  %v11244 = vadd.f32 %v11243, %v11181
  %v11245 = vadd.f32 %v11244, %v11182
  %v11246 = vadd.f32 %v11245, %v11183
  %v11247 = vadd.f32 %v11246, %v11184
  %v11248 = vadd.f32 %v11247, %v11185
  %v11249 = vadd.f32 %v11248, %v11186
  %v11250 = vadd.f32 %v11249, %v11187
  %v11251 = vadd.f32 %v11250, %v11188
  %v11252 = vadd.f32 %v11251, %v11189
  %v11253 = vadd.f32 %v11252, %v11190
  %v11254 = vadd.f32 %v11253, %v11191
  %v11255 = vadd.f32 %v11254, %v11192
  %v11256 = vadd.f32 %v11255, %v11193
  %v11257 = vadd.f32 %v11256, %v11194
  %v11258 = vadd.f32 %v11257, %v11195
  %v11259 = vadd.f32 %v11258, %v11196
  %v11260 = vadd.f32 %v11259, %v11197
  %v11261 = vadd.f32 %v11260, %v11198
  %v11262 = vadd.f32 %v11261, %v11199
  %v11263 = vadd.f32 %v11262, %v11200
  %v11264 = vadd.f32 %v11263, %v11201
  %v11265 = vadd.f32 %v11264, %v11202
  %v11266 = vrot.slane %v11265, 4
  %v11267 = vadd.f32 %v11265, %v11266
  %v11268 = vrot.slane %v11267, 2
  %v11269 = vadd.f32 %v11267, %v11268
  %v11270 = vrot.slane %v11269, 1
  %v11271 = vadd.f32 %v11269, %v11270
  %v11272 = vmul.f32 %v11271, 0.001953125
  %v11273 = vmul.f32 %v11138, %v11138
  %v11274 = vsub.f32 %v11272, %v11273
  %v11275 = vmax.f32 %v11274, 0.0
  %v11276 = vld [vmem:[%s5] sm:$0x1]
  %v11277 = vadd.f32 %v11275, 1e-05
  %v11278 = vrsqrt.pop %v11277
  %v11279 = vmul.f32 %v11276, %v11278
  %v11280 = vld [vmem:[%s6] sm:$0x1]
  %v11281 = vmul.f32 %v11138, %v11279
  %v11282 = vsub.f32 %v11280, %v11281
  %v11284 = vlaneseq
  %v11285 = vshrl.u32 %v11284, 7
  %v11286 = vsub.s32 0, %v11285
  %v11287 = vrot.slane %v11279, %v11286
  %v11289 = vmul.f32 %v11005, %v11287
  %v11290 = vmul.f32 %v11006, %v11287
  %v11291 = vmul.f32 %v11007, %v11287
  %v11292 = vmul.f32 %v11008, %v11287
  %v11293 = vmul.f32 %v11009, %v11287
  %v11294 = vmul.f32 %v11010, %v11287
  %v11295 = vmul.f32 %v11011, %v11287
  %v11296 = vmul.f32 %v11012, %v11287
  %v11297 = vmul.f32 %v11013, %v11287
  %v11298 = vmul.f32 %v11014, %v11287
  %v11299 = vmul.f32 %v11015, %v11287
  %v11300 = vmul.f32 %v11016, %v11287
  %v11301 = vmul.f32 %v11017, %v11287
  %v11302 = vmul.f32 %v11018, %v11287
  %v11303 = vmul.f32 %v11019, %v11287
  %v11304 = vmul.f32 %v11020, %v11287
  %v11305 = vmul.f32 %v11021, %v11287
  %v11306 = vmul.f32 %v11022, %v11287
  %v11307 = vmul.f32 %v11023, %v11287
  %v11308 = vmul.f32 %v11024, %v11287
  %v11309 = vmul.f32 %v11025, %v11287
  %v11310 = vmul.f32 %v11026, %v11287
  %v11311 = vmul.f32 %v11027, %v11287
  %v11312 = vmul.f32 %v11028, %v11287
  %v11313 = vmul.f32 %v11029, %v11287
  %v11314 = vmul.f32 %v11030, %v11287
  %v11315 = vmul.f32 %v11031, %v11287
  %v11316 = vmul.f32 %v11032, %v11287
  %v11317 = vmul.f32 %v11033, %v11287
  %v11318 = vmul.f32 %v11034, %v11287
  %v11319 = vmul.f32 %v11035, %v11287
  %v11320 = vmul.f32 %v11036, %v11287
  %v11321 = vmul.f32 %v11037, %v11287
  %v11322 = vmul.f32 %v11038, %v11287
  %v11323 = vmul.f32 %v11039, %v11287
  %v11324 = vmul.f32 %v11040, %v11287
  %v11325 = vmul.f32 %v11041, %v11287
  %v11326 = vmul.f32 %v11042, %v11287
  %v11327 = vmul.f32 %v11043, %v11287
  %v11328 = vmul.f32 %v11044, %v11287
  %v11329 = vmul.f32 %v11045, %v11287
  %v11330 = vmul.f32 %v11046, %v11287
  %v11331 = vmul.f32 %v11047, %v11287
  %v11332 = vmul.f32 %v11048, %v11287
  %v11333 = vmul.f32 %v11049, %v11287
  %v11334 = vmul.f32 %v11050, %v11287
  %v11335 = vmul.f32 %v11051, %v11287
  %v11336 = vmul.f32 %v11052, %v11287
  %v11337 = vmul.f32 %v11053, %v11287
  %v11338 = vmul.f32 %v11054, %v11287
  %v11339 = vmul.f32 %v11055, %v11287
  %v11340 = vmul.f32 %v11056, %v11287
  %v11341 = vmul.f32 %v11057, %v11287
  %v11342 = vmul.f32 %v11058, %v11287
  %v11343 = vmul.f32 %v11059, %v11287
  %v11344 = vmul.f32 %v11060, %v11287
  %v11345 = vmul.f32 %v11061, %v11287
  %v11346 = vmul.f32 %v11062, %v11287
  %v11347 = vmul.f32 %v11063, %v11287
  %v11348 = vmul.f32 %v11064, %v11287
  %v11349 = vmul.f32 %v11065, %v11287
  %v11350 = vmul.f32 %v11066, %v11287
  %v11351 = vmul.f32 %v11067, %v11287
  %v11352 = vmul.f32 %v11068, %v11287
  %v11354 = vlaneseq
  %v11355 = vshrl.u32 %v11354, 7
  %v11356 = vsub.s32 0, %v11355
  %v11357 = vrot.slane %v11282, %v11356
  %v11359 = vadd.f32 %v11289, %v11357
  %v11360 = vadd.f32 %v11290, %v11357
  %v11361 = vadd.f32 %v11291, %v11357
  %v11362 = vadd.f32 %v11292, %v11357
  %v11363 = vadd.f32 %v11293, %v11357
  %v11364 = vadd.f32 %v11294, %v11357
  %v11365 = vadd.f32 %v11295, %v11357
  %v11366 = vadd.f32 %v11296, %v11357
  %v11367 = vadd.f32 %v11297, %v11357
  %v11368 = vadd.f32 %v11298, %v11357
  %v11369 = vadd.f32 %v11299, %v11357
  %v11370 = vadd.f32 %v11300, %v11357
  %v11371 = vadd.f32 %v11301, %v11357
  %v11372 = vadd.f32 %v11302, %v11357
  %v11373 = vadd.f32 %v11303, %v11357
  %v11374 = vadd.f32 %v11304, %v11357
  %v11375 = vadd.f32 %v11305, %v11357
  %v11376 = vadd.f32 %v11306, %v11357
  %v11377 = vadd.f32 %v11307, %v11357
  %v11378 = vadd.f32 %v11308, %v11357
  %v11379 = vadd.f32 %v11309, %v11357
  %v11380 = vadd.f32 %v11310, %v11357
  %v11381 = vadd.f32 %v11311, %v11357
  %v11382 = vadd.f32 %v11312, %v11357
  %v11383 = vadd.f32 %v11313, %v11357
  %v11384 = vadd.f32 %v11314, %v11357
  %v11385 = vadd.f32 %v11315, %v11357
  %v11386 = vadd.f32 %v11316, %v11357
  %v11387 = vadd.f32 %v11317, %v11357
  %v11388 = vadd.f32 %v11318, %v11357
  %v11389 = vadd.f32 %v11319, %v11357
  %v11390 = vadd.f32 %v11320, %v11357
  %v11391 = vadd.f32 %v11321, %v11357
  %v11392 = vadd.f32 %v11322, %v11357
  %v11393 = vadd.f32 %v11323, %v11357
  %v11394 = vadd.f32 %v11324, %v11357
  %v11395 = vadd.f32 %v11325, %v11357
  %v11396 = vadd.f32 %v11326, %v11357
  %v11397 = vadd.f32 %v11327, %v11357
  %v11398 = vadd.f32 %v11328, %v11357
  %v11399 = vadd.f32 %v11329, %v11357
  %v11400 = vadd.f32 %v11330, %v11357
  %v11401 = vadd.f32 %v11331, %v11357
  %v11402 = vadd.f32 %v11332, %v11357
  %v11403 = vadd.f32 %v11333, %v11357
  %v11404 = vadd.f32 %v11334, %v11357
  %v11405 = vadd.f32 %v11335, %v11357
  %v11406 = vadd.f32 %v11336, %v11357
  %v11407 = vadd.f32 %v11337, %v11357
  %v11408 = vadd.f32 %v11338, %v11357
  %v11409 = vadd.f32 %v11339, %v11357
  %v11410 = vadd.f32 %v11340, %v11357
  %v11411 = vadd.f32 %v11341, %v11357
  %v11412 = vadd.f32 %v11342, %v11357
  %v11413 = vadd.f32 %v11343, %v11357
  %v11414 = vadd.f32 %v11344, %v11357
  %v11415 = vadd.f32 %v11345, %v11357
  %v11416 = vadd.f32 %v11346, %v11357
  %v11417 = vadd.f32 %v11347, %v11357
  %v11418 = vadd.f32 %v11348, %v11357
  %v11419 = vadd.f32 %v11349, %v11357
  %v11420 = vadd.f32 %v11350, %v11357
  %v11421 = vadd.f32 %v11351, %v11357
  %v11422 = vadd.f32 %v11352, %v11357
  %v11423 = vmax.f32 %v11359, 0.0
  %v11424 = vmax.f32 %v11360, 0.0
  %v11425 = vmax.f32 %v11361, 0.0
  %v11426 = vmax.f32 %v11362, 0.0
  %v11427 = vmax.f32 %v11363, 0.0
  %v11428 = vmax.f32 %v11364, 0.0
  %v11429 = vmax.f32 %v11365, 0.0
  %v11430 = vmax.f32 %v11366, 0.0
  %v11431 = vmax.f32 %v11367, 0.0
  %v11432 = vmax.f32 %v11368, 0.0
  %v11433 = vmax.f32 %v11369, 0.0
  %v11434 = vmax.f32 %v11370, 0.0
  %v11435 = vmax.f32 %v11371, 0.0
  %v11436 = vmax.f32 %v11372, 0.0
  %v11437 = vmax.f32 %v11373, 0.0
  %v11438 = vmax.f32 %v11374, 0.0
  %v11439 = vmax.f32 %v11375, 0.0
  %v11440 = vmax.f32 %v11376, 0.0
  %v11441 = vmax.f32 %v11377, 0.0
  %v11442 = vmax.f32 %v11378, 0.0
  %v11443 = vmax.f32 %v11379, 0.0
  %v11444 = vmax.f32 %v11380, 0.0
  %v11445 = vmax.f32 %v11381, 0.0
  %v11446 = vmax.f32 %v11382, 0.0
  %v11447 = vmax.f32 %v11383, 0.0
  %v11448 = vmax.f32 %v11384, 0.0
  %v11449 = vmax.f32 %v11385, 0.0
  %v11450 = vmax.f32 %v11386, 0.0
  %v11451 = vmax.f32 %v11387, 0.0
  %v11452 = vmax.f32 %v11388, 0.0
  %v11453 = vmax.f32 %v11389, 0.0
  %v11454 = vmax.f32 %v11390, 0.0
  %v11455 = vmax.f32 %v11391, 0.0
  %v11456 = vmax.f32 %v11392, 0.0
  %v11457 = vmax.f32 %v11393, 0.0
  %v11458 = vmax.f32 %v11394, 0.0
  %v11459 = vmax.f32 %v11395, 0.0
  %v11460 = vmax.f32 %v11396, 0.0
  %v11461 = vmax.f32 %v11397, 0.0
  %v11462 = vmax.f32 %v11398, 0.0
  %v11463 = vmax.f32 %v11399, 0.0
  %v11464 = vmax.f32 %v11400, 0.0
  %v11465 = vmax.f32 %v11401, 0.0
  %v11466 = vmax.f32 %v11402, 0.0
  %v11467 = vmax.f32 %v11403, 0.0
  %v11468 = vmax.f32 %v11404, 0.0
  %v11469 = vmax.f32 %v11405, 0.0
  %v11470 = vmax.f32 %v11406, 0.0
  %v11471 = vmax.f32 %v11407, 0.0
  %v11472 = vmax.f32 %v11408, 0.0
  %v11473 = vmax.f32 %v11409, 0.0
  %v11474 = vmax.f32 %v11410, 0.0
  %v11475 = vmax.f32 %v11411, 0.0
  %v11476 = vmax.f32 %v11412, 0.0
  %v11477 = vmax.f32 %v11413, 0.0
  %v11478 = vmax.f32 %v11414, 0.0
  %v11479 = vmax.f32 %v11415, 0.0
  %v11480 = vmax.f32 %v11416, 0.0
  %v11481 = vmax.f32 %v11417, 0.0
  %v11482 = vmax.f32 %v11418, 0.0
  %v11483 = vmax.f32 %v11419, 0.0
  %v11484 = vmax.f32 %v11420, 0.0
  %v11485 = vmax.f32 %v11421, 0.0
  %v11486 = vmax.f32 %v11422, 0.0
  %11487 = vst [vmem:[%s7] sm:$0xff] %v11423
  %11488 = vst [vmem:[%s7 + $0x8] sm:$0xff] %v11424
  %11489 = vst [vmem:[%s7 + $0x10] sm:$0xff] %v11425
  %11490 = vst [vmem:[%s7 + $0x18] sm:$0xff] %v11426
  %11491 = vst [vmem:[%s7 + $0x20] sm:$0xff] %v11427
  %11492 = vst [vmem:[%s7 + $0x28] sm:$0xff] %v11428
  %11493 = vst [vmem:[%s7 + $0x30] sm:$0xff] %v11429
  %11494 = vst [vmem:[%s7 + $0x38] sm:$0xff] %v11430
  %11495 = vst [vmem:[%s7 + $0x40] sm:$0xff] %v11431
  %11496 = vst [vmem:[%s7 + $0x48] sm:$0xff] %v11432
  %11497 = vst [vmem:[%s7 + $0x50] sm:$0xff] %v11433
  %11498 = vst [vmem:[%s7 + $0x58] sm:$0xff] %v11434
  %11499 = vst [vmem:[%s7 + $0x60] sm:$0xff] %v11435
  %11500 = vst [vmem:[%s7 + $0x68] sm:$0xff] %v11436
  %11501 = vst [vmem:[%s7 + $0x70] sm:$0xff] %v11437
  %11502 = vst [vmem:[%s7 + $0x78] sm:$0xff] %v11438
  %11503 = vst [vmem:[%s7 + $0x80] sm:$0xff] %v11439
  %11504 = vst [vmem:[%s7 + $0x88] sm:$0xff] %v11440
  %11505 = vst [vmem:[%s7 + $0x90] sm:$0xff] %v11441
  %11506 = vst [vmem:[%s7 + $0x98] sm:$0xff] %v11442
  %11507 = vst [vmem:[%s7 + $0xa0] sm:$0xff] %v11443
  %11508 = vst [vmem:[%s7 + $0xa8] sm:$0xff] %v11444
  %11509 = vst [vmem:[%s7 + $0xb0] sm:$0xff] %v11445
  %11510 = vst [vmem:[%s7 + $0xb8] sm:$0xff] %v11446
  %11511 = vst [vmem:[%s7 + $0xc0] sm:$0xff] %v11447
  %11512 = vst [vmem:[%s7 + $0xc8] sm:$0xff] %v11448
  %11513 = vst [vmem:[%s7 + $0xd0] sm:$0xff] %v11449
  %11514 = vst [vmem:[%s7 + $0xd8] sm:$0xff] %v11450
  %11515 = vst [vmem:[%s7 + $0xe0] sm:$0xff] %v11451
  %11516 = vst [vmem:[%s7 + $0xe8] sm:$0xff] %v11452
  %11517 = vst [vmem:[%s7 + $0xf0] sm:$0xff] %v11453
  %11518 = vst [vmem:[%s7 + $0xf8] sm:$0xff] %v11454
  %11519 = vst [vmem:[%s7 + $0x100] sm:$0xff] %v11455
  %11520 = vst [vmem:[%s7 + $0x108] sm:$0xff] %v11456
  %11521 = vst [vmem:[%s7 + $0x110] sm:$0xff] %v11457
  %11522 = vst [vmem:[%s7 + $0x118] sm:$0xff] %v11458
  %11523 = vst [vmem:[%s7 + $0x120] sm:$0xff] %v11459
  %11524 = vst [vmem:[%s7 + $0x128] sm:$0xff] %v11460
  %11525 = vst [vmem:[%s7 + $0x130] sm:$0xff] %v11461
  %11526 = vst [vmem:[%s7 + $0x138] sm:$0xff] %v11462
  %11527 = vst [vmem:[%s7 + $0x140] sm:$0xff] %v11463
  %11528 = vst [vmem:[%s7 + $0x148] sm:$0xff] %v11464
  %11529 = vst [vmem:[%s7 + $0x150] sm:$0xff] %v11465
  %11530 = vst [vmem:[%s7 + $0x158] sm:$0xff] %v11466
  %11531 = vst [vmem:[%s7 + $0x160] sm:$0xff] %v11467
  %11532 = vst [vmem:[%s7 + $0x168] sm:$0xff] %v11468
  %11533 = vst [vmem:[%s7 + $0x170] sm:$0xff] %v11469
  %11534 = vst [vmem:[%s7 + $0x178] sm:$0xff] %v11470
  %11535 = vst [vmem:[%s7 + $0x180] sm:$0xff] %v11471
  %11536 = vst [vmem:[%s7 + $0x188] sm:$0xff] %v11472
  %11537 = vst [vmem:[%s7 + $0x190] sm:$0xff] %v11473
  %11538 = vst [vmem:[%s7 + $0x198] sm:$0xff] %v11474
  %11539 = vst [vmem:[%s7 + $0x1a0] sm:$0xff] %v11475
  %11540 = vst [vmem:[%s7 + $0x1a8] sm:$0xff] %v11476
  %11541 = vst [vmem:[%s7 + $0x1b0] sm:$0xff] %v11477
  %11542 = vst [vmem:[%s7 + $0x1b8] sm:$0xff] %v11478
  %11543 = vst [vmem:[%s7 + $0x1c0] sm:$0xff] %v11479
  %11544 = vst [vmem:[%s7 + $0x1c8] sm:$0xff] %v11480
  %11545 = vst [vmem:[%s7 + $0x1d0] sm:$0xff] %v11481
  %11546 = vst [vmem:[%s7 + $0x1d8] sm:$0xff] %v11482
  %11547 = vst [vmem:[%s7 + $0x1e0] sm:$0xff] %v11483
  %11548 = vst [vmem:[%s7 + $0x1e8] sm:$0xff] %v11484
  %11549 = vst [vmem:[%s7 + $0x1f0] sm:$0xff] %v11485
  %11550 = vst [vmem:[%s7 + $0x1f8] sm:$0xff] %v11486
  // Predicated region
  $region30: #{convolution_block.1} parent=0 // pred_check
    _
  $region31: #{convolution_block.1} parent=0 // pred_check_branch
    %11552 = sbr.rel (0) target = $region33
  $region32: #{convolution_block.1} parent=0 // pred_region
    _
  $region33: #{convolution_block.1} parent=0 // pred_fallthru
    _
  // Predicated region
  $region34: #{convolution_block.1} parent=0 // pred_check
    _
  $region35: #{convolution_block.1} parent=0 // pred_check_branch
    %11554 = sbr.rel (0) target = $region37
  $region36: #{convolution_block.1} parent=0 // pred_region
    _
  $region37: #{convolution_block.1} parent=0 // pred_fallthru
    _

</llo_original>
